<compile_context>
chip_gen: v6e
topology: v6e:2x2x1
jax: 0.10.0
libtpu: 0.0.40
codegen_flags: <defaults>
</compile_context>

<pallas_src>
import functools

import jax
import jax.numpy as jnp
from jax import lax
from jax.experimental import pallas as pl
from jax.experimental.pallas import tpu as pltpu


# ----------------------------------------------------------------------------
# Helpers
# ----------------------------------------------------------------------------
def _pick_chunk(T, target=32):
    """Largest divisor of T that is <= target (chunk of timesteps per grid step)."""
    tc = min(T, target)
    while T % tc != 0:
        tc -= 1
    return tc


def _full_spec(a):
    """Whole-array block, constant index map (operand resident across the grid)."""
    return pl.BlockSpec(a.shape, lambda c, _nd=a.ndim: (0,) * _nd)


def _lstm_cell(gates, c_prev, H):
    """PyTorch gate order [i, f, g, o]."""
    i_g = jax.nn.sigmoid(gates[:, 0 * H:1 * H])
    f_g = jax.nn.sigmoid(gates[:, 1 * H:2 * H])
    g_g = jnp.tanh(gates[:, 2 * H:3 * H])
    o_g = jax.nn.sigmoid(gates[:, 3 * H:4 * H])
    c_new = f_g * c_prev + i_g * g_g
    h_new = o_g * jnp.tanh(c_new)
    return h_new, c_new


# ----------------------------------------------------------------------------
# Kernel 1: fused bidirectional LSTM layer, chunked over T
# ----------------------------------------------------------------------------
def _bidir_lstm_layer_kernel(
        xf_ref, xb_ref,                       # (tc, B, Din): fwd-order chunk c / chunk nc-1-c
        wih_f_ref, whh_f_ref, b_f_ref,        # (Din, 4H), (H, 4H), (1, 4H)
        wih_b_ref, whh_b_ref, b_b_ref,
        outf_ref, outb_ref,                   # (tc, B, H) each
        hf_ref, cf_ref, hb_ref, cb_ref,       # (B, H) carried state
        gxf_ref, gxb_ref,                     # (tc, B, 4H) hoisted input projections
        *, hidden_dim, unroll):
    tc, B, Din = xf_ref.shape
    H = hidden_dim

    @pl.when(pl.program_id(0) == 0)
    def _init():
        hf_ref[...] = jnp.zeros_like(hf_ref)
        cf_ref[...] = jnp.zeros_like(cf_ref)
        hb_ref[...] = jnp.zeros_like(hb_ref)
        cb_ref[...] = jnp.zeros_like(cb_ref)

    # Hoisted input projection: one big MXU matmul per direction per chunk;
    # bias folded in here so the loop body never re-broadcasts it.
    xf2d = xf_ref[...].reshape(tc * B, Din)
    xb2d = xb_ref[...].reshape(tc * B, Din)
    gxf_ref[...] = (jnp.dot(xf2d, wih_f_ref[...], preferred_element_type=jnp.float32)
                    + b_f_ref[...]).reshape(tc, B, 4 * H)
    gxb_ref[...] = (jnp.dot(xb2d, wih_b_ref[...], preferred_element_type=jnp.float32)
                    + b_b_ref[...]).reshape(tc, B, 4 * H)

    whh_f = whh_f_ref[...]
    whh_b = whh_b_ref[...]

    def step(t, carry):
        hf, cf, hb, cb = carry
        # Forward chain: local time t within this chunk.
        gf = gxf_ref[t] + jnp.dot(hf, whh_f, preferred_element_type=jnp.float32)
        hf, cf = _lstm_cell(gf, cf, H)
        outf_ref[t] = hf
        # Backward chain: its chunk is stored in original time order, and the
        # chain consumes it back-to-front (output row tb == state after having
        # seen x[T-1 .. global_t]).
        tb = tc - 1 - t
        gb = gxb_ref[tb] + jnp.dot(hb, whh_b, preferred_element_type=jnp.float32)
        hb, cb = _lstm_cell(gb, cb, H)
        outb_ref[tb] = hb
        return hf, cf, hb, cb

    carry0 = (hf_ref[...], cf_ref[...], hb_ref[...], cb_ref[...])
    hf, cf, hb, cb = lax.fori_loop(0, tc, step, carry0, unroll=unroll)
    hf_ref[...] = hf
    cf_ref[...] = cf
    hb_ref[...] = hb
    cb_ref[...] = cb


def bidir_lstm_layer(x_tbd, fwd, bwd, *, chunk_target=32, max_unroll=8):
    """x_tbd: (T, B, Din) time-major.  Returns (out_f, out_b): (T, B, H) each."""
    T, B, Din = x_tbd.shape
    wih_f, whh_f, b_f = fwd
    wih_b, whh_b, b_b = bwd
    H = whh_f.shape[0]
    tc = _pick_chunk(T, chunk_target)
    nc = T // tc

    kernel = functools.partial(_bidir_lstm_layer_kernel, hidden_dim=H,
                               unroll=min(max_unroll, tc))
    # TODO(synk): on v7x the two directions could be sharded across the two
    # TensorCores via pl.core_map instead of interleaved in one loop.
    return pl.pallas_call(
        kernel,
        out_shape=(jax.ShapeDtypeStruct((T, B, H), jnp.float32),
                   jax.ShapeDtypeStruct((T, B, H), jnp.float32)),
        grid=(nc,),
        in_specs=[
            pl.BlockSpec((tc, B, Din), lambda c: (c, 0, 0)),             # fwd view
            pl.BlockSpec((tc, B, Din), lambda c: (nc - 1 - c, 0, 0)),    # bwd view
            _full_spec(wih_f), _full_spec(whh_f), _full_spec(b_f),
            _full_spec(wih_b), _full_spec(whh_b), _full_spec(b_b),
        ],
        out_specs=(
            pl.BlockSpec((tc, B, H), lambda c: (c, 0, 0)),
            pl.BlockSpec((tc, B, H), lambda c: (nc - 1 - c, 0, 0)),
        ),
        scratch_shapes=[
            pltpu.VMEM((B, H), jnp.float32),
            pltpu.VMEM((B, H), jnp.float32),
            pltpu.VMEM((B, H), jnp.float32),
            pltpu.VMEM((B, H), jnp.float32),
            pltpu.VMEM((tc, B, 4 * H), jnp.float32),
            pltpu.VMEM((tc, B, 4 * H), jnp.float32),
        ],
        compiler_params=pltpu.CompilerParams(
            dimension_semantics=("arbitrary",),
            vmem_limit_bytes=32 * 1024 * 1024),
    )(x_tbd, x_tbd, wih_f, whh_f, b_f, wih_b, whh_b, b_b)


# ----------------------------------------------------------------------------
# Kernel 2: final bidirectional layer (only lstm_out[:, -1, :]) fused with head
# ----------------------------------------------------------------------------
def _final_bidir_head_kernel(
        xf_ref, xb_ref,                       # (tc, B, H1): prev layer fwd / bwd halves
        wih_f_ref, whh_f_ref, b_f_ref,        # (2*H1, 4H), (H, 4H), (1, 4H)
        wih_b_ref, b_b_ref,                   # (2*H1, 4H), (1, 4H)   (W_hh_b unused: h0 = 0)
        w1_ref, b1_ref, w2_ref, b2_ref,       # BN-folded head: (2H, Hd), (1, Hd), (Hd, F), (1, F)
        out_ref,                              # (B, F)
        hf_ref, cf_ref, gx_ref,               # (B, H), (B, H), (tc, B, 4H)
        *, hidden_dim, unroll):
    tc, B, H1 = xf_ref.shape
    H = hidden_dim
    c_idx = pl.program_id(0)
    nc = pl.num_programs(0)

    @pl.when(c_idx == 0)
    def _init():
        hf_ref[...] = jnp.zeros_like(hf_ref)
        cf_ref[...] = jnp.zeros_like(cf_ref)

    # Hoisted forward-direction input projection for this chunk
    # (the 2H-wide input is kept as its two H-wide halves -> two half-K matmuls).
    xf2d = xf_ref[...].reshape(tc * B, H1)
    xb2d = xb_ref[...].reshape(tc * B, H1)
    wih_f = wih_f_ref[...]
    gx_ref[...] = (jnp.dot(xf2d, wih_f[:H1], preferred_element_type=jnp.float32)
                   + jnp.dot(xb2d, wih_f[H1:], preferred_element_type=jnp.float32)
                   + b_f_ref[...]).reshape(tc, B, 4 * H)

    whh_f = whh_f_ref[...]

    def step(t, carry):
        hf, cf = carry
        g = gx_ref[t] + jnp.dot(hf, whh_f, preferred_element_type=jnp.float32)
        return _lstm_cell(g, cf, H)

    hf, cf = lax.fori_loop(0, tc, step, (hf_ref[...], cf_ref[...]), unroll=unroll)
    hf_ref[...] = hf
    cf_ref[...] = cf

    @pl.when(c_idx == nc - 1)
    def _finish():
        # Backward direction at output index T-1 is exactly one cell step from
        # (h0, c0) = 0, so h_prev @ W_hh vanishes and only x[T-1] is needed.
        xl_f = xf_ref[tc - 1]
        xl_b = xb_ref[tc - 1]
        wih_b = wih_b_ref[...]
        gb = (jnp.dot(xl_f, wih_b[:H1], preferred_element_type=jnp.float32)
              + jnp.dot(xl_b, wih_b[H1:], preferred_element_type=jnp.float32)
              + b_b_ref[...])
        i_g = jax.nn.sigmoid(gb[:, 0 * H:1 * H])
        g_g = jnp.tanh(gb[:, 2 * H:3 * H])
        o_g = jax.nn.sigmoid(gb[:, 3 * H:4 * H])
        hb = o_g * jnp.tanh(i_g * g_g)                     # c_new = i * g (c0 = 0)

        # Fused head: BN folded into Linear weights at prep time; Dropout = identity.
        w1 = w1_ref[...]
        z = (jnp.dot(hf, w1[:H], preferred_element_type=jnp.float32)
             + jnp.dot(hb, w1[H:], preferred_element_type=jnp.float32)
             + b1_ref[...])
        z = jnp.maximum(z, 0.0)
        y = jnp.dot(z, w2_ref[...], preferred_element_type=jnp.float32) + b2_ref[...]
        out_ref[...] = y.astype(out_ref.dtype)


def final_layer_and_head(out_f, out_b, fwd, bwd_reduced, head_folded, *,
                         chunk_target=32, max_unroll=8):
    T, B, H1 = out_f.shape
    wih_f, whh_f, b_f = fwd
    wih_b, b_b = bwd_reduced
    w1, b1, w2, b2 = head_folded
    H = whh_f.shape[0]
    F = w2.shape[1]
    tc = _pick_chunk(T, chunk_target)
    nc = T // tc

    kernel = functools.partial(_final_bidir_head_kernel, hidden_dim=H,
                               unroll=min(max_unroll, tc))
    return pl.pallas_call(
        kernel,
        out_shape=jax.ShapeDtypeStruct((B, F), jnp.float32),
        grid=(nc,),
        in_specs=[
            pl.BlockSpec((tc, B, H1), lambda c: (c, 0, 0)),
            pl.BlockSpec((tc, B, H1), lambda c: (c, 0, 0)),
            _full_spec(wih_f), _full_spec(whh_f), _full_spec(b_f),
            _full_spec(wih_b), _full_spec(b_b),
            _full_spec(w1), _full_spec(b1), _full_spec(w2), _full_spec(b2),
        ],
        out_specs=pl.BlockSpec((B, F), lambda c: (0, 0)),
        scratch_shapes=[
            pltpu.VMEM((B, H), jnp.float32),
            pltpu.VMEM((B, H), jnp.float32),
            pltpu.VMEM((tc, B, 4 * H), jnp.float32),
        ],
        compiler_params=pltpu.CompilerParams(
            dimension_semantics=("arbitrary",),
            vmem_limit_bytes=32 * 1024 * 1024),
    )(out_f, out_b, wih_f, whh_f, b_f, wih_b, b_b, w1, b1, w2, b2)


# ----------------------------------------------------------------------------
# Forward pass (eval mode)
# ----------------------------------------------------------------------------
def _fold_head(head):
    """Fold eval-mode BatchNorm1d scale/shift into the adjacent Linear layers."""
    s1, t1 = head["bn1_scale"], head["bn1_shift"]      # (1, 2H)
    s2, t2 = head["bn2_scale"], head["bn2_shift"]      # (1, H)
    w1, b1 = head["w1_t"], head["b1"]                  # (2H, H), (1, H)
    w2, b2 = head["w2_t"], head["b2"]                  # (H, F), (1, F)
    w1e = w1 * s1.reshape(-1, 1)
    b1e = b1 + t1 @ w1
    w2e = w2 * s2.reshape(-1, 1)
    b2e = b2 + t2 @ w2
    return w1e, b1e, w2e, b2e


def lstm_encoding_forward(video_embeddings, params):
    """Equivalent of LSTMEncodingModel.forward (eval mode)."""
    x = video_embeddings
    if x.ndim == 2:
        x = x[:, None, :]
    B = x.shape[0]

    # Pad batch to a multiple of 8 so every (B, H) tile is a full (8,128) vreg tile.
    Bp = max(8, ((B + 7) // 8) * 8)
    if Bp != B:
        x = jnp.pad(x, ((0, Bp - B), (0, 0), (0, 0)))
    x = jnp.transpose(x, (1, 0, 2))  # (T, Bp, D) time-major

    layers = params["lstm_layers"]
    if len(layers) < 2:
        # TODO(synk): num_layers == 1 variant not implemented (module default is 2).
        raise NotImplementedError("lstm_encoding_forward requires num_layers >= 2")

    # First layer consumes the raw embeddings.
    out_f, out_b = bidir_lstm_layer(x, layers[0]["fwd"], layers[0]["bwd"])
    # Middle layers (only if num_layers > 2).
    for layer in layers[1:-1]:
        # TODO(synk): inter-layer LSTM dropout (training mode) not modeled; identity in eval.
        h = jnp.concatenate([out_f, out_b], axis=-1)
        out_f, out_b = bidir_lstm_layer(h, layer["fwd"], layer["bwd"])

    # Final layer + head fused; only lstm_out[:, -1, :] is ever consumed.
    last = layers[-1]
    head_folded = _fold_head(params["head"])
    y = final_layer_and_head(out_f, out_b,
                             fwd=last["fwd"],
                             bwd_reduced=(last["bwd"][0], last["bwd"][2]),
                             head_folded=head_folded)
    return y[:B]


# ----------------------------------------------------------------------------
# Deterministic parameter init (mirrors PyTorch defaults)
# ----------------------------------------------------------------------------
def init_params(key, video_embed_dim, hidden_dim, fmri_dim, num_layers=2):
    D, H, F = video_embed_dim, hidden_dim, fmri_dim
    keys = iter(jax.random.split(key, 64))

    def uni(shape, k):
        return jax.random.uniform(next(keys), shape, jnp.float32, -k, k)

    k_lstm = 1.0 / jnp.sqrt(H)

    def direction_params(din):
        w_ih = uni((4 * H, din), k_lstm)     # PyTorch weight_ih: (4H, Din)
        w_hh = uni((4 * H, H), k_lstm)       # PyTorch weight_hh: (4H, H)
        b_ih = uni((4 * H,), k_lstm)
        b_hh = uni((4 * H,), k_lstm)
        return (w_ih.T, w_hh.T, (b_ih + b_hh).reshape(1, 4 * H))

    lstm_layers = []
    for layer in range(num_layers):
        din = D if layer == 0 else 2 * H
        lstm_layers.append({"fwd": direction_params(din),
                            "bwd": direction_params(din)})

    eps = 1e-5

    def bn_affine(dim):
        # BatchNorm1d defaults: gamma=1, beta=0, running_mean=0, running_var=1
        gamma = jnp.ones((dim,), jnp.float32)
        beta = jnp.zeros((dim,), jnp.float32)
        mean = jnp.zeros((dim,), jnp.float32)
        var = jnp.ones((dim,), jnp.float32)
        scale = gamma / jnp.sqrt(var + eps)
        shift = beta - mean * scale
        return scale.reshape(1, dim), shift.reshape(1, dim)

    bn1_scale, bn1_shift = bn_affine(2 * H)
    bn2_scale, bn2_shift = bn_affine(H)

    k1 = 1.0 / jnp.sqrt(2 * H)
    w1 = uni((H, 2 * H), k1)   # nn.Linear(2H, H).weight
    b1 = uni((H,), k1)
    k2 = 1.0 / jnp.sqrt(H)
    w2 = uni((F, H), k2)       # nn.Linear(H, F).weight
    b2 = uni((F,), k2)

    head = {
        "bn1_scale": bn1_scale, "bn1_shift": bn1_shift,
        "w1_t": w1.T, "b1": b1.reshape(1, H),
        "bn2_scale": bn2_scale, "bn2_shift": bn2_shift,
        "w2_t": w2.T, "b2": b2.reshape(1, F),
    }
    return {"lstm_layers": lstm_layers, "head": head}


# ----------------------------------------------------------------------------
# Pure-JAX reference (same math) for correctness checking
# ----------------------------------------------------------------------------
def _ref_lstm_layer(x_tbd, w_ih_t, w_hh_t, bias):
    T, B, _ = x_tbd.shape
    H = w_hh_t.shape[0]

    def step(carry, x_t):
        h, c = carry
        gates = x_t @ w_ih_t + h @ w_hh_t + bias
        i_g = jax.nn.sigmoid(gates[:, 0 * H:1 * H])
        f_g = jax.nn.sigmoid(gates[:, 1 * H:2 * H])
        g_g = jnp.tanh(gates[:, 2 * H:3 * H])
        o_g = jax.nn.sigmoid(gates[:, 3 * H:4 * H])
        c = f_g * c + i_g * g_g
        h = o_g * jnp.tanh(c)
        return (h, c), h

    init = (jnp.zeros((B, H)), jnp.zeros((B, H)))
    _, hs = lax.scan(step, init, x_tbd)
    return hs


def ref_forward(video_embeddings, params):
    x = video_embeddings
    if x.ndim == 2:
        x = x[:, None, :]
    h = jnp.transpose(x, (1, 0, 2))
    for layer in params["lstm_layers"]:
        out_f = _ref_lstm_layer(h, *layer["fwd"])
        out_b = _ref_lstm_layer(h[::-1], *layer["bwd"])[::-1]
        h = jnp.concatenate([out_f, out_b], axis=-1)
    last = h[-1]
    hd = params["head"]
    z = last * hd["bn1_scale"] + hd["bn1_shift"]
    z = jnp.maximum(z @ hd["w1_t"] + hd["b1"], 0.0)
    z = z * hd["bn2_scale"] + hd["bn2_shift"]
    return z @ hd["w2_t"] + hd["b2"]


# ----------------------------------------------------------------------------
if __name__ == "__main__":
    B, T = 4, 8
    video_embed_dim = 128
    hidden_dim = 128
    fmri_dim = 256

    key = jax.random.PRNGKey(0)
    k_params, k_x = jax.random.split(key)
    params = init_params(k_params, video_embed_dim, hidden_dim, fmri_dim)
    video_embeddings = jax.random.normal(k_x, (B, T, video_embed_dim), jnp.float32)

    fwd_fn = jax.jit(lstm_encoding_forward)
    out = jax.block_until_ready(fwd_fn(video_embeddings, params))
    assert out.shape == (B, fmri_dim), out.shape
    assert bool(jnp.all(jnp.isfinite(out)))

    ref = jax.block_until_ready(ref_forward(video_embeddings, params))
    max_err = float(jnp.max(jnp.abs(out - ref)))
    assert max_err < 1e-2, f"max abs error vs reference: {max_err}"

    print("KERNEL_OK")
</pallas_src>

<mosaic_0001>
module attributes {stable_mosaic.version = 11 : i64} {
  func.func @_bidir_lstm_layer_kernel(%arg0: i32, %arg1: memref<8x8x128xf32, #tpu.memory_space<vmem>>, %arg2: memref<8x8x128xf32, #tpu.memory_space<vmem>>, %arg3: memref<128x512xf32, #tpu.memory_space<vmem>>, %arg4: memref<128x512xf32, #tpu.memory_space<vmem>>, %arg5: memref<1x512xf32, #tpu.memory_space<vmem>>, %arg6: memref<128x512xf32, #tpu.memory_space<vmem>>, %arg7: memref<128x512xf32, #tpu.memory_space<vmem>>, %arg8: memref<1x512xf32, #tpu.memory_space<vmem>>, %arg9: memref<8x8x128xf32, #tpu.memory_space<vmem>>, %arg10: memref<8x8x128xf32, #tpu.memory_space<vmem>>, %arg11: memref<8x128xf32, #tpu.memory_space<vmem>>, %arg12: memref<8x128xf32, #tpu.memory_space<vmem>>, %arg13: memref<8x128xf32, #tpu.memory_space<vmem>>, %arg14: memref<8x128xf32, #tpu.memory_space<vmem>>, %arg15: memref<8x8x512xf32, #tpu.memory_space<vmem>>, %arg16: memref<8x8x512xf32, #tpu.memory_space<vmem>>) attributes {dimension_semantics = [#tpu.dimension_semantics<arbitrary>], iteration_bounds = array<i64: 1>, scalar_prefetch = 0 : i64, scratch_operands = 6 : i64, tpu.core_type = #tpu.core_type<tc>, window_params = [{transform_indices = @transform_0, window_bounds = array<i64: 8, 8, 128>}, {transform_indices = @transform_1, window_bounds = array<i64: 8, 8, 128>}, {pipeline_mode = #tpu.pipeline_mode<synchronous>, transform_indices = @transform_2, window_bounds = array<i64: 128, 512>}, {pipeline_mode = #tpu.pipeline_mode<synchronous>, transform_indices = @transform_3, window_bounds = array<i64: 128, 512>}, {pipeline_mode = #tpu.pipeline_mode<synchronous>, transform_indices = @transform_4, window_bounds = array<i64: 1, 512>}, {pipeline_mode = #tpu.pipeline_mode<synchronous>, transform_indices = @transform_5, window_bounds = array<i64: 128, 512>}, {pipeline_mode = #tpu.pipeline_mode<synchronous>, transform_indices = @transform_6, window_bounds = array<i64: 128, 512>}, {pipeline_mode = #tpu.pipeline_mode<synchronous>, transform_indices = @transform_7, window_bounds = array<i64: 1, 512>}, {transform_indices = @transform_8, window_bounds = array<i64: 8, 8, 128>}, {transform_indices = @transform_9, window_bounds = array<i64: 8, 8, 128>}]} {
    %c0_i32 = arith.constant 0 : i32
    %0 = arith.cmpi eq, %arg0, %c0_i32 : i32
    %1 = arith.extui %0 : i1 to i32
    %c0_i32_0 = arith.constant 0 : i32
    %2 = arith.cmpi ne, %1, %c0_i32_0 : i32
    scf.if %2 {
      %cst_178 = arith.constant 0.000000e+00 : f32
      %583 = vector.broadcast %cst_178 : f32 to vector<8x128xf32>
      %c0_179 = arith.constant 0 : index
      %c0_180 = arith.constant 0 : index
      %584 = vector.load %arg11[%c0_179, %c0_180] : memref<8x128xf32, #tpu.memory_space<vmem>>, vector<8x128xf32>
      tpu.vector_store %arg11[%c0_179, %c0_180], %583 {strides = array<i32>} : memref<8x128xf32, #tpu.memory_space<vmem>>, vector<8x128xf32>,
      %cst_181 = arith.constant 0.000000e+00 : f32
      %585 = vector.broadcast %cst_181 : f32 to vector<8x128xf32>
      %c0_182 = arith.constant 0 : index
      %c0_183 = arith.constant 0 : index
      %586 = vector.load %arg12[%c0_182, %c0_183] : memref<8x128xf32, #tpu.memory_space<vmem>>, vector<8x128xf32>
      tpu.vector_store %arg12[%c0_182, %c0_183], %585 {strides = array<i32>} : memref<8x128xf32, #tpu.memory_space<vmem>>, vector<8x128xf32>,
      %cst_184 = arith.constant 0.000000e+00 : f32
      %587 = vector.broadcast %cst_184 : f32 to vector<8x128xf32>
      %c0_185 = arith.constant 0 : index
      %c0_186 = arith.constant 0 : index
      %588 = vector.load %arg13[%c0_185, %c0_186] : memref<8x128xf32, #tpu.memory_space<vmem>>, vector<8x128xf32>
      tpu.vector_store %arg13[%c0_185, %c0_186], %587 {strides = array<i32>} : memref<8x128xf32, #tpu.memory_space<vmem>>, vector<8x128xf32>,
      %cst_187 = arith.constant 0.000000e+00 : f32
      %589 = vector.broadcast %cst_187 : f32 to vector<8x128xf32>
      %c0_188 = arith.constant 0 : index
      %c0_189 = arith.constant 0 : index
      %590 = vector.load %arg14[%c0_188, %c0_189] : memref<8x128xf32, #tpu.memory_space<vmem>>, vector<8x128xf32>
      tpu.vector_store %arg14[%c0_188, %c0_189], %589 {strides = array<i32>} : memref<8x128xf32, #tpu.memory_space<vmem>>, vector<8x128xf32>,
    } else {
    }
    %c0 = arith.constant 0 : index
    %c0_1 = arith.constant 0 : index
    %c0_2 = arith.constant 0 : index
    %3 = vector.load %arg1[%c0, %c0_1, %c0_2] : memref<8x8x128xf32, #tpu.memory_space<vmem>>, vector<8x8x128xf32>
    %4 = vector.shape_cast %3 : vector<8x8x128xf32> to vector<64x128xf32>
    %c0_3 = arith.constant 0 : index
    %c0_4 = arith.constant 0 : index
    %c0_5 = arith.constant 0 : index
    %5 = vector.load %arg2[%c0_3, %c0_4, %c0_5] : memref<8x8x128xf32, #tpu.memory_space<vmem>>, vector<8x8x128xf32>
    %6 = vector.shape_cast %5 : vector<8x8x128xf32> to vector<64x128xf32>
    %c0_6 = arith.constant 0 : index
    %c0_7 = arith.constant 0 : index
    %7 = vector.load %arg3[%c0_6, %c0_7] : memref<128x512xf32, #tpu.memory_space<vmem>>, vector<128x512xf32>
    %cst = arith.constant dense<0.000000e+00> : vector<64x512xf32>
    %8 = tpu.matmul %4, %7, %cst {dimension_numbers = #tpu.dot_dimension_numbers<[1], [0], [0], [1], [0, 0, 1, 1], [], []>} : vector<64x128xf32>, vector<128x512xf32>, vector<64x512xf32> -> vector<64x512xf32>
    %c0_8 = arith.constant 0 : index
    %c0_9 = arith.constant 0 : index
    %9 = vector.load %arg5[%c0_8, %c0_9] : memref<1x512xf32, #tpu.memory_space<vmem>>, vector<1x512xf32>
    %10 = vector.broadcast %9 : vector<1x512xf32> to vector<64x512xf32>
    %11 = arith.addf %8, %10 : vector<64x512xf32>
    %12 = vector.shape_cast %11 : vector<64x512xf32> to vector<8x8x512xf32>
    %c0_10 = arith.constant 0 : index
    %c0_11 = arith.constant 0 : index
    %c0_12 = arith.constant 0 : index
    %13 = vector.load %arg15[%c0_10, %c0_11, %c0_12] : memref<8x8x512xf32, #tpu.memory_space<vmem>>, vector<8x8x512xf32>
    tpu.vector_store %arg15[%c0_10, %c0_11, %c0_12], %12 {strides = array<i32>} : memref<8x8x512xf32, #tpu.memory_space<vmem>>, vector<8x8x512xf32>,
    %c0_13 = arith.constant 0 : index
    %c0_14 = arith.constant 0 : index
    %14 = vector.load %arg6[%c0_13, %c0_14] : memref<128x512xf32, #tpu.memory_space<vmem>>, vector<128x512xf32>
    %cst_15 = arith.constant dense<0.000000e+00> : vector<64x512xf32>
    %15 = tpu.matmul %6, %14, %cst_15 {dimension_numbers = #tpu.dot_dimension_numbers<[1], [0], [0], [1], [0, 0, 1, 1], [], []>} : vector<64x128xf32>, vector<128x512xf32>, vector<64x512xf32> -> vector<64x512xf32>
    %c0_16 = arith.constant 0 : index
    %c0_17 = arith.constant 0 : index
    %16 = vector.load %arg8[%c0_16, %c0_17] : memref<1x512xf32, #tpu.memory_space<vmem>>, vector<1x512xf32>
    %17 = vector.broadcast %16 : vector<1x512xf32> to vector<64x512xf32>
    %18 = arith.addf %15, %17 : vector<64x512xf32>
    %19 = vector.shape_cast %18 : vector<64x512xf32> to vector<8x8x512xf32>
    %c0_18 = arith.constant 0 : index
    %c0_19 = arith.constant 0 : index
    %c0_20 = arith.constant 0 : index
    %20 = vector.load %arg16[%c0_18, %c0_19, %c0_20] : memref<8x8x512xf32, #tpu.memory_space<vmem>>, vector<8x8x512xf32>
    tpu.vector_store %arg16[%c0_18, %c0_19, %c0_20], %19 {strides = array<i32>} : memref<8x8x512xf32, #tpu.memory_space<vmem>>, vector<8x8x512xf32>,
    %c0_21 = arith.constant 0 : index
    %c0_22 = arith.constant 0 : index
    %21 = vector.load %arg4[%c0_21, %c0_22] : memref<128x512xf32, #tpu.memory_space<vmem>>, vector<128x512xf32>
    %c0_23 = arith.constant 0 : index
    %c0_24 = arith.constant 0 : index
    %22 = vector.load %arg7[%c0_23, %c0_24] : memref<128x512xf32, #tpu.memory_space<vmem>>, vector<128x512xf32>
    %c0_25 = arith.constant 0 : index
    %c0_26 = arith.constant 0 : index
    %23 = vector.load %arg11[%c0_25, %c0_26] : memref<8x128xf32, #tpu.memory_space<vmem>>, vector<8x128xf32>
    %c0_27 = arith.constant 0 : index
    %c0_28 = arith.constant 0 : index
    %24 = vector.load %arg12[%c0_27, %c0_28] : memref<8x128xf32, #tpu.memory_space<vmem>>, vector<8x128xf32>
    %c0_29 = arith.constant 0 : index
    %c0_30 = arith.constant 0 : index
    %25 = vector.load %arg13[%c0_29, %c0_30] : memref<8x128xf32, #tpu.memory_space<vmem>>, vector<8x128xf32>
    %c0_31 = arith.constant 0 : index
    %c0_32 = arith.constant 0 : index
    %26 = vector.load %arg14[%c0_31, %c0_32] : memref<8x128xf32, #tpu.memory_space<vmem>>, vector<8x128xf32>
    %c0_i32_33 = arith.constant 0 : i32
    %27 = arith.index_cast %c0_i32_33 : i32 to index
    %c0_34 = arith.constant 0 : index
    %c0_35 = arith.constant 0 : index
    %28 = vector.load %arg15[%27, %c0_34, %c0_35] : memref<8x8x512xf32, #tpu.memory_space<vmem>>, vector<1x8x512xf32>
    %29 = vector.shape_cast %28 : vector<1x8x512xf32> to vector<8x512xf32>
    %cst_36 = arith.constant dense<0.000000e+00> : vector<8x512xf32>
    %30 = tpu.matmul %23, %21, %cst_36 {dimension_numbers = #tpu.dot_dimension_numbers<[1], [0], [0], [1], [0, 0, 1, 1], [], []>} : vector<8x128xf32>, vector<128x512xf32>, vector<8x512xf32> -> vector<8x512xf32>
    %31 = arith.addf %29, %30 : vector<8x512xf32>
    %32 = vector.extract_strided_slice %31 {offsets = [0, 0], sizes = [8, 128], strides = [1, 1]} : vector<8x512xf32> to vector<8x128xf32>
    %33 = arith.negf %32 : vector<8x128xf32>
    %34 = math.exp %33 : vector<8x128xf32>
    %cst_37 = arith.constant 1.000000e+00 : f32
    %35 = vector.broadcast %cst_37 : f32 to vector<8x128xf32>
    %36 = arith.addf %35, %34 : vector<8x128xf32>
    %37 = arith.divf %35, %36 : vector<8x128xf32>
    %38 = vector.extract_strided_slice %31 {offsets = [0, 128], sizes = [8, 128], strides = [1, 1]} : vector<8x512xf32> to vector<8x128xf32>
    %39 = arith.negf %38 : vector<8x128xf32>
    %40 = math.exp %39 : vector<8x128xf32>
    %cst_38 = arith.constant 1.000000e+00 : f32
    %41 = vector.broadcast %cst_38 : f32 to vector<8x128xf32>
    %42 = arith.addf %41, %40 : vector<8x128xf32>
    %43 = arith.divf %41, %42 : vector<8x128xf32>
    %44 = vector.extract_strided_slice %31 {offsets = [0, 256], sizes = [8, 128], strides = [1, 1]} : vector<8x512xf32> to vector<8x128xf32>
    %45 = math.tanh %44 : vector<8x128xf32>
    %46 = vector.extract_strided_slice %31 {offsets = [0, 384], sizes = [8, 128], strides = [1, 1]} : vector<8x512xf32> to vector<8x128xf32>
    %47 = arith.negf %46 : vector<8x128xf32>
    %48 = math.exp %47 : vector<8x128xf32>
    %cst_39 = arith.constant 1.000000e+00 : f32
    %49 = vector.broadcast %cst_39 : f32 to vector<8x128xf32>
    %50 = arith.addf %49, %48 : vector<8x128xf32>
    %51 = arith.divf %49, %50 : vector<8x128xf32>
    %52 = arith.mulf %43, %24 : vector<8x128xf32>
    %53 = arith.mulf %37, %45 : vector<8x128xf32>
    %54 = arith.addf %52, %53 : vector<8x128xf32>
    %55 = math.tanh %54 : vector<8x128xf32>
    %56 = arith.mulf %51, %55 : vector<8x128xf32>
    %57 = arith.index_cast %c0_i32_33 : i32 to index
    %c0_40 = arith.constant 0 : index
    %c0_41 = arith.constant 0 : index
    %58 = vector.load %arg9[%57, %c0_40, %c0_41] : memref<8x8x128xf32, #tpu.memory_space<vmem>>, vector<1x8x128xf32>
    %59 = vector.shape_cast %58 : vector<1x8x128xf32> to vector<8x128xf32>
    %60 = vector.shape_cast %56 : vector<8x128xf32> to vector<1x8x128xf32>
    tpu.vector_store %arg9[%57, %c0_40, %c0_41], %60 {strides = array<i32>} : memref<8x8x128xf32, #tpu.memory_space<vmem>>, vector<1x8x128xf32>,
    %c7_i32 = arith.constant 7 : i32
    %61 = arith.subi %c7_i32, %c0_i32_33 : i32
    %62 = arith.index_cast %61 : i32 to index
    %c0_42 = arith.constant 0 : index
    %c0_43 = arith.constant 0 : index
    %63 = vector.load %arg16[%62, %c0_42, %c0_43] : memref<8x8x512xf32, #tpu.memory_space<vmem>>, vector<1x8x512xf32>
    %64 = vector.shape_cast %63 : vector<1x8x512xf32> to vector<8x512xf32>
    %cst_44 = arith.constant dense<0.000000e+00> : vector<8x512xf32>
    %65 = tpu.matmul %25, %22, %cst_44 {dimension_numbers = #tpu.dot_dimension_numbers<[1], [0], [0], [1], [0, 0, 1, 1], [], []>} : vector<8x128xf32>, vector<128x512xf32>, vector<8x512xf32> -> vector<8x512xf32>
    %66 = arith.addf %64, %65 : vector<8x512xf32>
    %67 = vector.extract_strided_slice %66 {offsets = [0, 0], sizes = [8, 128], strides = [1, 1]} : vector<8x512xf32> to vector<8x128xf32>
    %68 = arith.negf %67 : vector<8x128xf32>
    %69 = math.exp %68 : vector<8x128xf32>
    %cst_45 = arith.constant 1.000000e+00 : f32
    %70 = vector.broadcast %cst_45 : f32 to vector<8x128xf32>
    %71 = arith.addf %70, %69 : vector<8x128xf32>
    %72 = arith.divf %70, %71 : vector<8x128xf32>
    %73 = vector.extract_strided_slice %66 {offsets = [0, 128], sizes = [8, 128], strides = [1, 1]} : vector<8x512xf32> to vector<8x128xf32>
    %74 = arith.negf %73 : vector<8x128xf32>
    %75 = math.exp %74 : vector<8x128xf32>
    %cst_46 = arith.constant 1.000000e+00 : f32
    %76 = vector.broadcast %cst_46 : f32 to vector<8x128xf32>
    %77 = arith.addf %76, %75 : vector<8x128xf32>
    %78 = arith.divf %76, %77 : vector<8x128xf32>
    %79 = vector.extract_strided_slice %66 {offsets = [0, 256], sizes = [8, 128], strides = [1, 1]} : vector<8x512xf32> to vector<8x128xf32>
    %80 = math.tanh %79 : vector<8x128xf32>
    %81 = vector.extract_strided_slice %66 {offsets = [0, 384], sizes = [8, 128], strides = [1, 1]} : vector<8x512xf32> to vector<8x128xf32>
    %82 = arith.negf %81 : vector<8x128xf32>
    %83 = math.exp %82 : vector<8x128xf32>
    %cst_47 = arith.constant 1.000000e+00 : f32
    %84 = vector.broadcast %cst_47 : f32 to vector<8x128xf32>
    %85 = arith.addf %84, %83 : vector<8x128xf32>
    %86 = arith.divf %84, %85 : vector<8x128xf32>
    %87 = arith.mulf %78, %26 : vector<8x128xf32>
    %88 = arith.mulf %72, %80 : vector<8x128xf32>
    %89 = arith.addf %87, %88 : vector<8x128xf32>
    %90 = math.tanh %89 : vector<8x128xf32>
    %91 = arith.mulf %86, %90 : vector<8x128xf32>
    %92 = arith.index_cast %61 : i32 to index
    %c0_48 = arith.constant 0 : index
    %c0_49 = arith.constant 0 : index
    %93 = vector.load %arg10[%92, %c0_48, %c0_49] : memref<8x8x128xf32, #tpu.memory_space<vmem>>, vector<1x8x128xf32>
    %94 = vector.shape_cast %93 : vector<1x8x128xf32> to vector<8x128xf32>
    %95 = vector.shape_cast %91 : vector<8x128xf32> to vector<1x8x128xf32>
    tpu.vector_store %arg10[%92, %c0_48, %c0_49], %95 {strides = array<i32>} : memref<8x8x128xf32, #tpu.memory_space<vmem>>, vector<1x8x128xf32>,
    %c1_i32 = arith.constant 1 : i32
    %96 = arith.index_cast %c1_i32 : i32 to index
    %c0_50 = arith.constant 0 : index
    %c0_51 = arith.constant 0 : index
    %97 = vector.load %arg15[%96, %c0_50, %c0_51] : memref<8x8x512xf32, #tpu.memory_space<vmem>>, vector<1x8x512xf32>
    %98 = vector.shape_cast %97 : vector<1x8x512xf32> to vector<8x512xf32>
    %cst_52 = arith.constant dense<0.000000e+00> : vector<8x512xf32>
    %99 = tpu.matmul %56, %21, %cst_52 {dimension_numbers = #tpu.dot_dimension_numbers<[1], [0], [0], [1], [0, 0, 1, 1], [], []>} : vector<8x128xf32>, vector<128x512xf32>, vector<8x512xf32> -> vector<8x512xf32>
    %100 = arith.addf %98, %99 : vector<8x512xf32>
    %101 = vector.extract_strided_slice %100 {offsets = [0, 0], sizes = [8, 128], strides = [1, 1]} : vector<8x512xf32> to vector<8x128xf32>
    %102 = arith.negf %101 : vector<8x128xf32>
    %103 = math.exp %102 : vector<8x128xf32>
    %cst_53 = arith.constant 1.000000e+00 : f32
    %104 = vector.broadcast %cst_53 : f32 to vector<8x128xf32>
    %105 = arith.addf %104, %103 : vector<8x128xf32>
    %106 = arith.divf %104, %105 : vector<8x128xf32>
    %107 = vector.extract_strided_slice %100 {offsets = [0, 128], sizes = [8, 128], strides = [1, 1]} : vector<8x512xf32> to vector<8x128xf32>
    %108 = arith.negf %107 : vector<8x128xf32>
    %109 = math.exp %108 : vector<8x128xf32>
    %cst_54 = arith.constant 1.000000e+00 : f32
    %110 = vector.broadcast %cst_54 : f32 to vector<8x128xf32>
    %111 = arith.addf %110, %109 : vector<8x128xf32>
    %112 = arith.divf %110, %111 : vector<8x128xf32>
    %113 = vector.extract_strided_slice %100 {offsets = [0, 256], sizes = [8, 128], strides = [1, 1]} : vector<8x512xf32> to vector<8x128xf32>
    %114 = math.tanh %113 : vector<8x128xf32>
    %115 = vector.extract_strided_slice %100 {offsets = [0, 384], sizes = [8, 128], strides = [1, 1]} : vector<8x512xf32> to vector<8x128xf32>
    %116 = arith.negf %115 : vector<8x128xf32>
    %117 = math.exp %116 : vector<8x128xf32>
    %cst_55 = arith.constant 1.000000e+00 : f32
    %118 = vector.broadcast %cst_55 : f32 to vector<8x128xf32>
    %119 = arith.addf %118, %117 : vector<8x128xf32>
    %120 = arith.divf %118, %119 : vector<8x128xf32>
    %121 = arith.mulf %112, %54 : vector<8x128xf32>
    %122 = arith.mulf %106, %114 : vector<8x128xf32>
    %123 = arith.addf %121, %122 : vector<8x128xf32>
    %124 = math.tanh %123 : vector<8x128xf32>
    %125 = arith.mulf %120, %124 : vector<8x128xf32>
    %126 = arith.index_cast %c1_i32 : i32 to index
    %c0_56 = arith.constant 0 : index
    %c0_57 = arith.constant 0 : index
    %127 = vector.load %arg9[%126, %c0_56, %c0_57] : memref<8x8x128xf32, #tpu.memory_space<vmem>>, vector<1x8x128xf32>
    %128 = vector.shape_cast %127 : vector<1x8x128xf32> to vector<8x128xf32>
    %129 = vector.shape_cast %125 : vector<8x128xf32> to vector<1x8x128xf32>
    tpu.vector_store %arg9[%126, %c0_56, %c0_57], %129 {strides = array<i32>} : memref<8x8x128xf32, #tpu.memory_space<vmem>>, vector<1x8x128xf32>,
    %c7_i32_58 = arith.constant 7 : i32
    %130 = arith.subi %c7_i32_58, %c1_i32 : i32
    %131 = arith.index_cast %130 : i32 to index
    %c0_59 = arith.constant 0 : index
    %c0_60 = arith.constant 0 : index
    %132 = vector.load %arg16[%131, %c0_59, %c0_60] : memref<8x8x512xf32, #tpu.memory_space<vmem>>, vector<1x8x512xf32>
    %133 = vector.shape_cast %132 : vector<1x8x512xf32> to vector<8x512xf32>
    %cst_61 = arith.constant dense<0.000000e+00> : vector<8x512xf32>
    %134 = tpu.matmul %91, %22, %cst_61 {dimension_numbers = #tpu.dot_dimension_numbers<[1], [0], [0], [1], [0, 0, 1, 1], [], []>} : vector<8x128xf32>, vector<128x512xf32>, vector<8x512xf32> -> vector<8x512xf32>
    %135 = arith.addf %133, %134 : vector<8x512xf32>
    %136 = vector.extract_strided_slice %135 {offsets = [0, 0], sizes = [8, 128], strides = [1, 1]} : vector<8x512xf32> to vector<8x128xf32>
    %137 = arith.negf %136 : vector<8x128xf32>
    %138 = math.exp %137 : vector<8x128xf32>
    %cst_62 = arith.constant 1.000000e+00 : f32
    %139 = vector.broadcast %cst_62 : f32 to vector<8x128xf32>
    %140 = arith.addf %139, %138 : vector<8x128xf32>
    %141 = arith.divf %139, %140 : vector<8x128xf32>
    %142 = vector.extract_strided_slice %135 {offsets = [0, 128], sizes = [8, 128], strides = [1, 1]} : vector<8x512xf32> to vector<8x128xf32>
    %143 = arith.negf %142 : vector<8x128xf32>
    %144 = math.exp %143 : vector<8x128xf32>
    %cst_63 = arith.constant 1.000000e+00 : f32
    %145 = vector.broadcast %cst_63 : f32 to vector<8x128xf32>
    %146 = arith.addf %145, %144 : vector<8x128xf32>
    %147 = arith.divf %145, %146 : vector<8x128xf32>
    %148 = vector.extract_strided_slice %135 {offsets = [0, 256], sizes = [8, 128], strides = [1, 1]} : vector<8x512xf32> to vector<8x128xf32>
    %149 = math.tanh %148 : vector<8x128xf32>
    %150 = vector.extract_strided_slice %135 {offsets = [0, 384], sizes = [8, 128], strides = [1, 1]} : vector<8x512xf32> to vector<8x128xf32>
    %151 = arith.negf %150 : vector<8x128xf32>
    %152 = math.exp %151 : vector<8x128xf32>
    %cst_64 = arith.constant 1.000000e+00 : f32
    %153 = vector.broadcast %cst_64 : f32 to vector<8x128xf32>
    %154 = arith.addf %153, %152 : vector<8x128xf32>
    %155 = arith.divf %153, %154 : vector<8x128xf32>
    %156 = arith.mulf %147, %89 : vector<8x128xf32>
    %157 = arith.mulf %141, %149 : vector<8x128xf32>
    %158 = arith.addf %156, %157 : vector<8x128xf32>
    %159 = math.tanh %158 : vector<8x128xf32>
    %160 = arith.mulf %155, %159 : vector<8x128xf32>
    %161 = arith.index_cast %130 : i32 to index
    %c0_65 = arith.constant 0 : index
    %c0_66 = arith.constant 0 : index
    %162 = vector.load %arg10[%161, %c0_65, %c0_66] : memref<8x8x128xf32, #tpu.memory_space<vmem>>, vector<1x8x128xf32>
    %163 = vector.shape_cast %162 : vector<1x8x128xf32> to vector<8x128xf32>
    %164 = vector.shape_cast %160 : vector<8x128xf32> to vector<1x8x128xf32>
    tpu.vector_store %arg10[%161, %c0_65, %c0_66], %164 {strides = array<i32>} : memref<8x8x128xf32, #tpu.memory_space<vmem>>, vector<1x8x128xf32>,
    %c2_i32 = arith.constant 2 : i32
    %165 = arith.index_cast %c2_i32 : i32 to index
    %c0_67 = arith.constant 0 : index
    %c0_68 = arith.constant 0 : index
    %166 = vector.load %arg15[%165, %c0_67, %c0_68] : memref<8x8x512xf32, #tpu.memory_space<vmem>>, vector<1x8x512xf32>
    %167 = vector.shape_cast %166 : vector<1x8x512xf32> to vector<8x512xf32>
    %cst_69 = arith.constant dense<0.000000e+00> : vector<8x512xf32>
    %168 = tpu.matmul %125, %21, %cst_69 {dimension_numbers = #tpu.dot_dimension_numbers<[1], [0], [0], [1], [0, 0, 1, 1], [], []>} : vector<8x128xf32>, vector<128x512xf32>, vector<8x512xf32> -> vector<8x512xf32>
    %169 = arith.addf %167, %168 : vector<8x512xf32>
    %170 = vector.extract_strided_slice %169 {offsets = [0, 0], sizes = [8, 128], strides = [1, 1]} : vector<8x512xf32> to vector<8x128xf32>
    %171 = arith.negf %170 : vector<8x128xf32>
    %172 = math.exp %171 : vector<8x128xf32>
    %cst_70 = arith.constant 1.000000e+00 : f32
    %173 = vector.broadcast %cst_70 : f32 to vector<8x128xf32>
    %174 = arith.addf %173, %172 : vector<8x128xf32>
    %175 = arith.divf %173, %174 : vector<8x128xf32>
    %176 = vector.extract_strided_slice %169 {offsets = [0, 128], sizes = [8, 128], strides = [1, 1]} : vector<8x512xf32> to vector<8x128xf32>
    %177 = arith.negf %176 : vector<8x128xf32>
    %178 = math.exp %177 : vector<8x128xf32>
    %cst_71 = arith.constant 1.000000e+00 : f32
    %179 = vector.broadcast %cst_71 : f32 to vector<8x128xf32>
    %180 = arith.addf %179, %178 : vector<8x128xf32>
    %181 = arith.divf %179, %180 : vector<8x128xf32>
    %182 = vector.extract_strided_slice %169 {offsets = [0, 256], sizes = [8, 128], strides = [1, 1]} : vector<8x512xf32> to vector<8x128xf32>
    %183 = math.tanh %182 : vector<8x128xf32>
    %184 = vector.extract_strided_slice %169 {offsets = [0, 384], sizes = [8, 128], strides = [1, 1]} : vector<8x512xf32> to vector<8x128xf32>
    %185 = arith.negf %184 : vector<8x128xf32>
    %186 = math.exp %185 : vector<8x128xf32>
    %cst_72 = arith.constant 1.000000e+00 : f32
    %187 = vector.broadcast %cst_72 : f32 to vector<8x128xf32>
    %188 = arith.addf %187, %186 : vector<8x128xf32>
    %189 = arith.divf %187, %188 : vector<8x128xf32>
    %190 = arith.mulf %181, %123 : vector<8x128xf32>
    %191 = arith.mulf %175, %183 : vector<8x128xf32>
    %192 = arith.addf %190, %191 : vector<8x128xf32>
    %193 = math.tanh %192 : vector<8x128xf32>
    %194 = arith.mulf %189, %193 : vector<8x128xf32>
    %195 = arith.index_cast %c2_i32 : i32 to index
    %c0_73 = arith.constant 0 : index
    %c0_74 = arith.constant 0 : index
    %196 = vector.load %arg9[%195, %c0_73, %c0_74] : memref<8x8x128xf32, #tpu.memory_space<vmem>>, vector<1x8x128xf32>
    %197 = vector.shape_cast %196 : vector<1x8x128xf32> to vector<8x128xf32>
    %198 = vector.shape_cast %194 : vector<8x128xf32> to vector<1x8x128xf32>
    tpu.vector_store %arg9[%195, %c0_73, %c0_74], %198 {strides = array<i32>} : memref<8x8x128xf32, #tpu.memory_space<vmem>>, vector<1x8x128xf32>,
    %c7_i32_75 = arith.constant 7 : i32
    %199 = arith.subi %c7_i32_75, %c2_i32 : i32
    %200 = arith.index_cast %199 : i32 to index
    %c0_76 = arith.constant 0 : index
    %c0_77 = arith.constant 0 : index
    %201 = vector.load %arg16[%200, %c0_76, %c0_77] : memref<8x8x512xf32, #tpu.memory_space<vmem>>, vector<1x8x512xf32>
    %202 = vector.shape_cast %201 : vector<1x8x512xf32> to vector<8x512xf32>
    %cst_78 = arith.constant dense<0.000000e+00> : vector<8x512xf32>
    %203 = tpu.matmul %160, %22, %cst_78 {dimension_numbers = #tpu.dot_dimension_numbers<[1], [0], [0], [1], [0, 0, 1, 1], [], []>} : vector<8x128xf32>, vector<128x512xf32>, vector<8x512xf32> -> vector<8x512xf32>
    %204 = arith.addf %202, %203 : vector<8x512xf32>
    %205 = vector.extract_strided_slice %204 {offsets = [0, 0], sizes = [8, 128], strides = [1, 1]} : vector<8x512xf32> to vector<8x128xf32>
    %206 = arith.negf %205 : vector<8x128xf32>
    %207 = math.exp %206 : vector<8x128xf32>
    %cst_79 = arith.constant 1.000000e+00 : f32
    %208 = vector.broadcast %cst_79 : f32 to vector<8x128xf32>
    %209 = arith.addf %208, %207 : vector<8x128xf32>
    %210 = arith.divf %208, %209 : vector<8x128xf32>
    %211 = vector.extract_strided_slice %204 {offsets = [0, 128], sizes = [8, 128], strides = [1, 1]} : vector<8x512xf32> to vector<8x128xf32>
    %212 = arith.negf %211 : vector<8x128xf32>
    %213 = math.exp %212 : vector<8x128xf32>
    %cst_80 = arith.constant 1.000000e+00 : f32
    %214 = vector.broadcast %cst_80 : f32 to vector<8x128xf32>
    %215 = arith.addf %214, %213 : vector<8x128xf32>
    %216 = arith.divf %214, %215 : vector<8x128xf32>
    %217 = vector.extract_strided_slice %204 {offsets = [0, 256], sizes = [8, 128], strides = [1, 1]} : vector<8x512xf32> to vector<8x128xf32>
    %218 = math.tanh %217 : vector<8x128xf32>
    %219 = vector.extract_strided_slice %204 {offsets = [0, 384], sizes = [8, 128], strides = [1, 1]} : vector<8x512xf32> to vector<8x128xf32>
    %220 = arith.negf %219 : vector<8x128xf32>
    %221 = math.exp %220 : vector<8x128xf32>
    %cst_81 = arith.constant 1.000000e+00 : f32
    %222 = vector.broadcast %cst_81 : f32 to vector<8x128xf32>
    %223 = arith.addf %222, %221 : vector<8x128xf32>
    %224 = arith.divf %222, %223 : vector<8x128xf32>
    %225 = arith.mulf %216, %158 : vector<8x128xf32>
    %226 = arith.mulf %210, %218 : vector<8x128xf32>
    %227 = arith.addf %225, %226 : vector<8x128xf32>
    %228 = math.tanh %227 : vector<8x128xf32>
    %229 = arith.mulf %224, %228 : vector<8x128xf32>
    %230 = arith.index_cast %199 : i32 to index
    %c0_82 = arith.constant 0 : index
    %c0_83 = arith.constant 0 : index
    %231 = vector.load %arg10[%230, %c0_82, %c0_83] : memref<8x8x128xf32, #tpu.memory_space<vmem>>, vector<1x8x128xf32>
    %232 = vector.shape_cast %231 : vector<1x8x128xf32> to vector<8x128xf32>
    %233 = vector.shape_cast %229 : vector<8x128xf32> to vector<1x8x128xf32>
    tpu.vector_store %arg10[%230, %c0_82, %c0_83], %233 {strides = array<i32>} : memref<8x8x128xf32, #tpu.memory_space<vmem>>, vector<1x8x128xf32>,
    %c3_i32 = arith.constant 3 : i32
    %234 = arith.index_cast %c3_i32 : i32 to index
    %c0_84 = arith.constant 0 : index
    %c0_85 = arith.constant 0 : index
    %235 = vector.load %arg15[%234, %c0_84, %c0_85] : memref<8x8x512xf32, #tpu.memory_space<vmem>>, vector<1x8x512xf32>
    %236 = vector.shape_cast %235 : vector<1x8x512xf32> to vector<8x512xf32>
    %cst_86 = arith.constant dense<0.000000e+00> : vector<8x512xf32>
    %237 = tpu.matmul %194, %21, %cst_86 {dimension_numbers = #tpu.dot_dimension_numbers<[1], [0], [0], [1], [0, 0, 1, 1], [], []>} : vector<8x128xf32>, vector<128x512xf32>, vector<8x512xf32> -> vector<8x512xf32>
    %238 = arith.addf %236, %237 : vector<8x512xf32>
    %239 = vector.extract_strided_slice %238 {offsets = [0, 0], sizes = [8, 128], strides = [1, 1]} : vector<8x512xf32> to vector<8x128xf32>
    %240 = arith.negf %239 : vector<8x128xf32>
    %241 = math.exp %240 : vector<8x128xf32>
    %cst_87 = arith.constant 1.000000e+00 : f32
    %242 = vector.broadcast %cst_87 : f32 to vector<8x128xf32>
    %243 = arith.addf %242, %241 : vector<8x128xf32>
    %244 = arith.divf %242, %243 : vector<8x128xf32>
    %245 = vector.extract_strided_slice %238 {offsets = [0, 128], sizes = [8, 128], strides = [1, 1]} : vector<8x512xf32> to vector<8x128xf32>
    %246 = arith.negf %245 : vector<8x128xf32>
    %247 = math.exp %246 : vector<8x128xf32>
    %cst_88 = arith.constant 1.000000e+00 : f32
    %248 = vector.broadcast %cst_88 : f32 to vector<8x128xf32>
    %249 = arith.addf %248, %247 : vector<8x128xf32>
    %250 = arith.divf %248, %249 : vector<8x128xf32>
    %251 = vector.extract_strided_slice %238 {offsets = [0, 256], sizes = [8, 128], strides = [1, 1]} : vector<8x512xf32> to vector<8x128xf32>
    %252 = math.tanh %251 : vector<8x128xf32>
    %253 = vector.extract_strided_slice %238 {offsets = [0, 384], sizes = [8, 128], strides = [1, 1]} : vector<8x512xf32> to vector<8x128xf32>
    %254 = arith.negf %253 : vector<8x128xf32>
    %255 = math.exp %254 : vector<8x128xf32>
    %cst_89 = arith.constant 1.000000e+00 : f32
    %256 = vector.broadcast %cst_89 : f32 to vector<8x128xf32>
    %257 = arith.addf %256, %255 : vector<8x128xf32>
    %258 = arith.divf %256, %257 : vector<8x128xf32>
    %259 = arith.mulf %250, %192 : vector<8x128xf32>
    %260 = arith.mulf %244, %252 : vector<8x128xf32>
    %261 = arith.addf %259, %260 : vector<8x128xf32>
    %262 = math.tanh %261 : vector<8x128xf32>
    %263 = arith.mulf %258, %262 : vector<8x128xf32>
    %264 = arith.index_cast %c3_i32 : i32 to index
    %c0_90 = arith.constant 0 : index
    %c0_91 = arith.constant 0 : index
    %265 = vector.load %arg9[%264, %c0_90, %c0_91] : memref<8x8x128xf32, #tpu.memory_space<vmem>>, vector<1x8x128xf32>
    %266 = vector.shape_cast %265 : vector<1x8x128xf32> to vector<8x128xf32>
    %267 = vector.shape_cast %263 : vector<8x128xf32> to vector<1x8x128xf32>
    tpu.vector_store %arg9[%264, %c0_90, %c0_91], %267 {strides = array<i32>} : memref<8x8x128xf32, #tpu.memory_space<vmem>>, vector<1x8x128xf32>,
    %c7_i32_92 = arith.constant 7 : i32
    %268 = arith.subi %c7_i32_92, %c3_i32 : i32
    %269 = arith.index_cast %268 : i32 to index
    %c0_93 = arith.constant 0 : index
    %c0_94 = arith.constant 0 : index
    %270 = vector.load %arg16[%269, %c0_93, %c0_94] : memref<8x8x512xf32, #tpu.memory_space<vmem>>, vector<1x8x512xf32>
    %271 = vector.shape_cast %270 : vector<1x8x512xf32> to vector<8x512xf32>
    %cst_95 = arith.constant dense<0.000000e+00> : vector<8x512xf32>
    %272 = tpu.matmul %229, %22, %cst_95 {dimension_numbers = #tpu.dot_dimension_numbers<[1], [0], [0], [1], [0, 0, 1, 1], [], []>} : vector<8x128xf32>, vector<128x512xf32>, vector<8x512xf32> -> vector<8x512xf32>
    %273 = arith.addf %271, %272 : vector<8x512xf32>
    %274 = vector.extract_strided_slice %273 {offsets = [0, 0], sizes = [8, 128], strides = [1, 1]} : vector<8x512xf32> to vector<8x128xf32>
    %275 = arith.negf %274 : vector<8x128xf32>
    %276 = math.exp %275 : vector<8x128xf32>
    %cst_96 = arith.constant 1.000000e+00 : f32
    %277 = vector.broadcast %cst_96 : f32 to vector<8x128xf32>
    %278 = arith.addf %277, %276 : vector<8x128xf32>
    %279 = arith.divf %277, %278 : vector<8x128xf32>
    %280 = vector.extract_strided_slice %273 {offsets = [0, 128], sizes = [8, 128], strides = [1, 1]} : vector<8x512xf32> to vector<8x128xf32>
    %281 = arith.negf %280 : vector<8x128xf32>
    %282 = math.exp %281 : vector<8x128xf32>
    %cst_97 = arith.constant 1.000000e+00 : f32
    %283 = vector.broadcast %cst_97 : f32 to vector<8x128xf32>
    %284 = arith.addf %283, %282 : vector<8x128xf32>
    %285 = arith.divf %283, %284 : vector<8x128xf32>
    %286 = vector.extract_strided_slice %273 {offsets = [0, 256], sizes = [8, 128], strides = [1, 1]} : vector<8x512xf32> to vector<8x128xf32>
    %287 = math.tanh %286 : vector<8x128xf32>
    %288 = vector.extract_strided_slice %273 {offsets = [0, 384], sizes = [8, 128], strides = [1, 1]} : vector<8x512xf32> to vector<8x128xf32>
    %289 = arith.negf %288 : vector<8x128xf32>
    %290 = math.exp %289 : vector<8x128xf32>
    %cst_98 = arith.constant 1.000000e+00 : f32
    %291 = vector.broadcast %cst_98 : f32 to vector<8x128xf32>
    %292 = arith.addf %291, %290 : vector<8x128xf32>
    %293 = arith.divf %291, %292 : vector<8x128xf32>
    %294 = arith.mulf %285, %227 : vector<8x128xf32>
    %295 = arith.mulf %279, %287 : vector<8x128xf32>
    %296 = arith.addf %294, %295 : vector<8x128xf32>
    %297 = math.tanh %296 : vector<8x128xf32>
    %298 = arith.mulf %293, %297 : vector<8x128xf32>
    %299 = arith.index_cast %268 : i32 to index
    %c0_99 = arith.constant 0 : index
    %c0_100 = arith.constant 0 : index
    %300 = vector.load %arg10[%299, %c0_99, %c0_100] : memref<8x8x128xf32, #tpu.memory_space<vmem>>, vector<1x8x128xf32>
    %301 = vector.shape_cast %300 : vector<1x8x128xf32> to vector<8x128xf32>
    %302 = vector.shape_cast %298 : vector<8x128xf32> to vector<1x8x128xf32>
    tpu.vector_store %arg10[%299, %c0_99, %c0_100], %302 {strides = array<i32>} : memref<8x8x128xf32, #tpu.memory_space<vmem>>, vector<1x8x128xf32>,
    %c4_i32 = arith.constant 4 : i32
    %303 = arith.index_cast %c4_i32 : i32 to index
    %c0_101 = arith.constant 0 : index
    %c0_102 = arith.constant 0 : index
    %304 = vector.load %arg15[%303, %c0_101, %c0_102] : memref<8x8x512xf32, #tpu.memory_space<vmem>>, vector<1x8x512xf32>
    %305 = vector.shape_cast %304 : vector<1x8x512xf32> to vector<8x512xf32>
    %cst_103 = arith.constant dense<0.000000e+00> : vector<8x512xf32>
    %306 = tpu.matmul %263, %21, %cst_103 {dimension_numbers = #tpu.dot_dimension_numbers<[1], [0], [0], [1], [0, 0, 1, 1], [], []>} : vector<8x128xf32>, vector<128x512xf32>, vector<8x512xf32> -> vector<8x512xf32>
    %307 = arith.addf %305, %306 : vector<8x512xf32>
    %308 = vector.extract_strided_slice %307 {offsets = [0, 0], sizes = [8, 128], strides = [1, 1]} : vector<8x512xf32> to vector<8x128xf32>
    %309 = arith.negf %308 : vector<8x128xf32>
    %310 = math.exp %309 : vector<8x128xf32>
    %cst_104 = arith.constant 1.000000e+00 : f32
    %311 = vector.broadcast %cst_104 : f32 to vector<8x128xf32>
    %312 = arith.addf %311, %310 : vector<8x128xf32>
    %313 = arith.divf %311, %312 : vector<8x128xf32>
    %314 = vector.extract_strided_slice %307 {offsets = [0, 128], sizes = [8, 128], strides = [1, 1]} : vector<8x512xf32> to vector<8x128xf32>
    %315 = arith.negf %314 : vector<8x128xf32>
    %316 = math.exp %315 : vector<8x128xf32>
    %cst_105 = arith.constant 1.000000e+00 : f32
    %317 = vector.broadcast %cst_105 : f32 to vector<8x128xf32>
    %318 = arith.addf %317, %316 : vector<8x128xf32>
    %319 = arith.divf %317, %318 : vector<8x128xf32>
    %320 = vector.extract_strided_slice %307 {offsets = [0, 256], sizes = [8, 128], strides = [1, 1]} : vector<8x512xf32> to vector<8x128xf32>
    %321 = math.tanh %320 : vector<8x128xf32>
    %322 = vector.extract_strided_slice %307 {offsets = [0, 384], sizes = [8, 128], strides = [1, 1]} : vector<8x512xf32> to vector<8x128xf32>
    %323 = arith.negf %322 : vector<8x128xf32>
    %324 = math.exp %323 : vector<8x128xf32>
    %cst_106 = arith.constant 1.000000e+00 : f32
    %325 = vector.broadcast %cst_106 : f32 to vector<8x128xf32>
    %326 = arith.addf %325, %324 : vector<8x128xf32>
    %327 = arith.divf %325, %326 : vector<8x128xf32>
    %328 = arith.mulf %319, %261 : vector<8x128xf32>
    %329 = arith.mulf %313, %321 : vector<8x128xf32>
    %330 = arith.addf %328, %329 : vector<8x128xf32>
    %331 = math.tanh %330 : vector<8x128xf32>
    %332 = arith.mulf %327, %331 : vector<8x128xf32>
    %333 = arith.index_cast %c4_i32 : i32 to index
    %c0_107 = arith.constant 0 : index
    %c0_108 = arith.constant 0 : index
    %334 = vector.load %arg9[%333, %c0_107, %c0_108] : memref<8x8x128xf32, #tpu.memory_space<vmem>>, vector<1x8x128xf32>
    %335 = vector.shape_cast %334 : vector<1x8x128xf32> to vector<8x128xf32>
    %336 = vector.shape_cast %332 : vector<8x128xf32> to vector<1x8x128xf32>
    tpu.vector_store %arg9[%333, %c0_107, %c0_108], %336 {strides = array<i32>} : memref<8x8x128xf32, #tpu.memory_space<vmem>>, vector<1x8x128xf32>,
    %c7_i32_109 = arith.constant 7 : i32
    %337 = arith.subi %c7_i32_109, %c4_i32 : i32
    %338 = arith.index_cast %337 : i32 to index
    %c0_110 = arith.constant 0 : index
    %c0_111 = arith.constant 0 : index
    %339 = vector.load %arg16[%338, %c0_110, %c0_111] : memref<8x8x512xf32, #tpu.memory_space<vmem>>, vector<1x8x512xf32>
    %340 = vector.shape_cast %339 : vector<1x8x512xf32> to vector<8x512xf32>
    %cst_112 = arith.constant dense<0.000000e+00> : vector<8x512xf32>
    %341 = tpu.matmul %298, %22, %cst_112 {dimension_numbers = #tpu.dot_dimension_numbers<[1], [0], [0], [1], [0, 0, 1, 1], [], []>} : vector<8x128xf32>, vector<128x512xf32>, vector<8x512xf32> -> vector<8x512xf32>
    %342 = arith.addf %340, %341 : vector<8x512xf32>
    %343 = vector.extract_strided_slice %342 {offsets = [0, 0], sizes = [8, 128], strides = [1, 1]} : vector<8x512xf32> to vector<8x128xf32>
    %344 = arith.negf %343 : vector<8x128xf32>
    %345 = math.exp %344 : vector<8x128xf32>
    %cst_113 = arith.constant 1.000000e+00 : f32
    %346 = vector.broadcast %cst_113 : f32 to vector<8x128xf32>
    %347 = arith.addf %346, %345 : vector<8x128xf32>
    %348 = arith.divf %346, %347 : vector<8x128xf32>
    %349 = vector.extract_strided_slice %342 {offsets = [0, 128], sizes = [8, 128], strides = [1, 1]} : vector<8x512xf32> to vector<8x128xf32>
    %350 = arith.negf %349 : vector<8x128xf32>
    %351 = math.exp %350 : vector<8x128xf32>
    %cst_114 = arith.constant 1.000000e+00 : f32
    %352 = vector.broadcast %cst_114 : f32 to vector<8x128xf32>
    %353 = arith.addf %352, %351 : vector<8x128xf32>
    %354 = arith.divf %352, %353 : vector<8x128xf32>
    %355 = vector.extract_strided_slice %342 {offsets = [0, 256], sizes = [8, 128], strides = [1, 1]} : vector<8x512xf32> to vector<8x128xf32>
    %356 = math.tanh %355 : vector<8x128xf32>
    %357 = vector.extract_strided_slice %342 {offsets = [0, 384], sizes = [8, 128], strides = [1, 1]} : vector<8x512xf32> to vector<8x128xf32>
    %358 = arith.negf %357 : vector<8x128xf32>
    %359 = math.exp %358 : vector<8x128xf32>
    %cst_115 = arith.constant 1.000000e+00 : f32
    %360 = vector.broadcast %cst_115 : f32 to vector<8x128xf32>
    %361 = arith.addf %360, %359 : vector<8x128xf32>
    %362 = arith.divf %360, %361 : vector<8x128xf32>
    %363 = arith.mulf %354, %296 : vector<8x128xf32>
    %364 = arith.mulf %348, %356 : vector<8x128xf32>
    %365 = arith.addf %363, %364 : vector<8x128xf32>
    %366 = math.tanh %365 : vector<8x128xf32>
    %367 = arith.mulf %362, %366 : vector<8x128xf32>
    %368 = arith.index_cast %337 : i32 to index
    %c0_116 = arith.constant 0 : index
    %c0_117 = arith.constant 0 : index
    %369 = vector.load %arg10[%368, %c0_116, %c0_117] : memref<8x8x128xf32, #tpu.memory_space<vmem>>, vector<1x8x128xf32>
    %370 = vector.shape_cast %369 : vector<1x8x128xf32> to vector<8x128xf32>
    %371 = vector.shape_cast %367 : vector<8x128xf32> to vector<1x8x128xf32>
    tpu.vector_store %arg10[%368, %c0_116, %c0_117], %371 {strides = array<i32>} : memref<8x8x128xf32, #tpu.memory_space<vmem>>, vector<1x8x128xf32>,
    %c5_i32 = arith.constant 5 : i32
    %372 = arith.index_cast %c5_i32 : i32 to index
    %c0_118 = arith.constant 0 : index
    %c0_119 = arith.constant 0 : index
    %373 = vector.load %arg15[%372, %c0_118, %c0_119] : memref<8x8x512xf32, #tpu.memory_space<vmem>>, vector<1x8x512xf32>
    %374 = vector.shape_cast %373 : vector<1x8x512xf32> to vector<8x512xf32>
    %cst_120 = arith.constant dense<0.000000e+00> : vector<8x512xf32>
    %375 = tpu.matmul %332, %21, %cst_120 {dimension_numbers = #tpu.dot_dimension_numbers<[1], [0], [0], [1], [0, 0, 1, 1], [], []>} : vector<8x128xf32>, vector<128x512xf32>, vector<8x512xf32> -> vector<8x512xf32>
    %376 = arith.addf %374, %375 : vector<8x512xf32>
    %377 = vector.extract_strided_slice %376 {offsets = [0, 0], sizes = [8, 128], strides = [1, 1]} : vector<8x512xf32> to vector<8x128xf32>
    %378 = arith.negf %377 : vector<8x128xf32>
    %379 = math.exp %378 : vector<8x128xf32>
    %cst_121 = arith.constant 1.000000e+00 : f32
    %380 = vector.broadcast %cst_121 : f32 to vector<8x128xf32>
    %381 = arith.addf %380, %379 : vector<8x128xf32>
    %382 = arith.divf %380, %381 : vector<8x128xf32>
    %383 = vector.extract_strided_slice %376 {offsets = [0, 128], sizes = [8, 128], strides = [1, 1]} : vector<8x512xf32> to vector<8x128xf32>
    %384 = arith.negf %383 : vector<8x128xf32>
    %385 = math.exp %384 : vector<8x128xf32>
    %cst_122 = arith.constant 1.000000e+00 : f32
    %386 = vector.broadcast %cst_122 : f32 to vector<8x128xf32>
    %387 = arith.addf %386, %385 : vector<8x128xf32>
    %388 = arith.divf %386, %387 : vector<8x128xf32>
    %389 = vector.extract_strided_slice %376 {offsets = [0, 256], sizes = [8, 128], strides = [1, 1]} : vector<8x512xf32> to vector<8x128xf32>
    %390 = math.tanh %389 : vector<8x128xf32>
    %391 = vector.extract_strided_slice %376 {offsets = [0, 384], sizes = [8, 128], strides = [1, 1]} : vector<8x512xf32> to vector<8x128xf32>
    %392 = arith.negf %391 : vector<8x128xf32>
    %393 = math.exp %392 : vector<8x128xf32>
    %cst_123 = arith.constant 1.000000e+00 : f32
    %394 = vector.broadcast %cst_123 : f32 to vector<8x128xf32>
    %395 = arith.addf %394, %393 : vector<8x128xf32>
    %396 = arith.divf %394, %395 : vector<8x128xf32>
    %397 = arith.mulf %388, %330 : vector<8x128xf32>
    %398 = arith.mulf %382, %390 : vector<8x128xf32>
    %399 = arith.addf %397, %398 : vector<8x128xf32>
    %400 = math.tanh %399 : vector<8x128xf32>
    %401 = arith.mulf %396, %400 : vector<8x128xf32>
    %402 = arith.index_cast %c5_i32 : i32 to index
    %c0_124 = arith.constant 0 : index
    %c0_125 = arith.constant 0 : index
    %403 = vector.load %arg9[%402, %c0_124, %c0_125] : memref<8x8x128xf32, #tpu.memory_space<vmem>>, vector<1x8x128xf32>
    %404 = vector.shape_cast %403 : vector<1x8x128xf32> to vector<8x128xf32>
    %405 = vector.shape_cast %401 : vector<8x128xf32> to vector<1x8x128xf32>
    tpu.vector_store %arg9[%402, %c0_124, %c0_125], %405 {strides = array<i32>} : memref<8x8x128xf32, #tpu.memory_space<vmem>>, vector<1x8x128xf32>,
    %c7_i32_126 = arith.constant 7 : i32
    %406 = arith.subi %c7_i32_126, %c5_i32 : i32
    %407 = arith.index_cast %406 : i32 to index
    %c0_127 = arith.constant 0 : index
    %c0_128 = arith.constant 0 : index
    %408 = vector.load %arg16[%407, %c0_127, %c0_128] : memref<8x8x512xf32, #tpu.memory_space<vmem>>, vector<1x8x512xf32>
    %409 = vector.shape_cast %408 : vector<1x8x512xf32> to vector<8x512xf32>
    %cst_129 = arith.constant dense<0.000000e+00> : vector<8x512xf32>
    %410 = tpu.matmul %367, %22, %cst_129 {dimension_numbers = #tpu.dot_dimension_numbers<[1], [0], [0], [1], [0, 0, 1, 1], [], []>} : vector<8x128xf32>, vector<128x512xf32>, vector<8x512xf32> -> vector<8x512xf32>
    %411 = arith.addf %409, %410 : vector<8x512xf32>
    %412 = vector.extract_strided_slice %411 {offsets = [0, 0], sizes = [8, 128], strides = [1, 1]} : vector<8x512xf32> to vector<8x128xf32>
    %413 = arith.negf %412 : vector<8x128xf32>
    %414 = math.exp %413 : vector<8x128xf32>
    %cst_130 = arith.constant 1.000000e+00 : f32
    %415 = vector.broadcast %cst_130 : f32 to vector<8x128xf32>
    %416 = arith.addf %415, %414 : vector<8x128xf32>
    %417 = arith.divf %415, %416 : vector<8x128xf32>
    %418 = vector.extract_strided_slice %411 {offsets = [0, 128], sizes = [8, 128], strides = [1, 1]} : vector<8x512xf32> to vector<8x128xf32>
    %419 = arith.negf %418 : vector<8x128xf32>
    %420 = math.exp %419 : vector<8x128xf32>
    %cst_131 = arith.constant 1.000000e+00 : f32
    %421 = vector.broadcast %cst_131 : f32 to vector<8x128xf32>
    %422 = arith.addf %421, %420 : vector<8x128xf32>
    %423 = arith.divf %421, %422 : vector<8x128xf32>
    %424 = vector.extract_strided_slice %411 {offsets = [0, 256], sizes = [8, 128], strides = [1, 1]} : vector<8x512xf32> to vector<8x128xf32>
    %425 = math.tanh %424 : vector<8x128xf32>
    %426 = vector.extract_strided_slice %411 {offsets = [0, 384], sizes = [8, 128], strides = [1, 1]} : vector<8x512xf32> to vector<8x128xf32>
    %427 = arith.negf %426 : vector<8x128xf32>
    %428 = math.exp %427 : vector<8x128xf32>
    %cst_132 = arith.constant 1.000000e+00 : f32
    %429 = vector.broadcast %cst_132 : f32 to vector<8x128xf32>
    %430 = arith.addf %429, %428 : vector<8x128xf32>
    %431 = arith.divf %429, %430 : vector<8x128xf32>
    %432 = arith.mulf %423, %365 : vector<8x128xf32>
    %433 = arith.mulf %417, %425 : vector<8x128xf32>
    %434 = arith.addf %432, %433 : vector<8x128xf32>
    %435 = math.tanh %434 : vector<8x128xf32>
    %436 = arith.mulf %431, %435 : vector<8x128xf32>
    %437 = arith.index_cast %406 : i32 to index
    %c0_133 = arith.constant 0 : index
    %c0_134 = arith.constant 0 : index
    %438 = vector.load %arg10[%437, %c0_133, %c0_134] : memref<8x8x128xf32, #tpu.memory_space<vmem>>, vector<1x8x128xf32>
    %439 = vector.shape_cast %438 : vector<1x8x128xf32> to vector<8x128xf32>
    %440 = vector.shape_cast %436 : vector<8x128xf32> to vector<1x8x128xf32>
    tpu.vector_store %arg10[%437, %c0_133, %c0_134], %440 {strides = array<i32>} : memref<8x8x128xf32, #tpu.memory_space<vmem>>, vector<1x8x128xf32>,
    %c6_i32 = arith.constant 6 : i32
    %441 = arith.index_cast %c6_i32 : i32 to index
    %c0_135 = arith.constant 0 : index
    %c0_136 = arith.constant 0 : index
    %442 = vector.load %arg15[%441, %c0_135, %c0_136] : memref<8x8x512xf32, #tpu.memory_space<vmem>>, vector<1x8x512xf32>
    %443 = vector.shape_cast %442 : vector<1x8x512xf32> to vector<8x512xf32>
    %cst_137 = arith.constant dense<0.000000e+00> : vector<8x512xf32>
    %444 = tpu.matmul %401, %21, %cst_137 {dimension_numbers = #tpu.dot_dimension_numbers<[1], [0], [0], [1], [0, 0, 1, 1], [], []>} : vector<8x128xf32>, vector<128x512xf32>, vector<8x512xf32> -> vector<8x512xf32>
    %445 = arith.addf %443, %444 : vector<8x512xf32>
    %446 = vector.extract_strided_slice %445 {offsets = [0, 0], sizes = [8, 128], strides = [1, 1]} : vector<8x512xf32> to vector<8x128xf32>
    %447 = arith.negf %446 : vector<8x128xf32>
    %448 = math.exp %447 : vector<8x128xf32>
    %cst_138 = arith.constant 1.000000e+00 : f32
    %449 = vector.broadcast %cst_138 : f32 to vector<8x128xf32>
    %450 = arith.addf %449, %448 : vector<8x128xf32>
    %451 = arith.divf %449, %450 : vector<8x128xf32>
    %452 = vector.extract_strided_slice %445 {offsets = [0, 128], sizes = [8, 128], strides = [1, 1]} : vector<8x512xf32> to vector<8x128xf32>
    %453 = arith.negf %452 : vector<8x128xf32>
    %454 = math.exp %453 : vector<8x128xf32>
    %cst_139 = arith.constant 1.000000e+00 : f32
    %455 = vector.broadcast %cst_139 : f32 to vector<8x128xf32>
    %456 = arith.addf %455, %454 : vector<8x128xf32>
    %457 = arith.divf %455, %456 : vector<8x128xf32>
    %458 = vector.extract_strided_slice %445 {offsets = [0, 256], sizes = [8, 128], strides = [1, 1]} : vector<8x512xf32> to vector<8x128xf32>
    %459 = math.tanh %458 : vector<8x128xf32>
    %460 = vector.extract_strided_slice %445 {offsets = [0, 384], sizes = [8, 128], strides = [1, 1]} : vector<8x512xf32> to vector<8x128xf32>
    %461 = arith.negf %460 : vector<8x128xf32>
    %462 = math.exp %461 : vector<8x128xf32>
    %cst_140 = arith.constant 1.000000e+00 : f32
    %463 = vector.broadcast %cst_140 : f32 to vector<8x128xf32>
    %464 = arith.addf %463, %462 : vector<8x128xf32>
    %465 = arith.divf %463, %464 : vector<8x128xf32>
    %466 = arith.mulf %457, %399 : vector<8x128xf32>
    %467 = arith.mulf %451, %459 : vector<8x128xf32>
    %468 = arith.addf %466, %467 : vector<8x128xf32>
    %469 = math.tanh %468 : vector<8x128xf32>
    %470 = arith.mulf %465, %469 : vector<8x128xf32>
    %471 = arith.index_cast %c6_i32 : i32 to index
    %c0_141 = arith.constant 0 : index
    %c0_142 = arith.constant 0 : index
    %472 = vector.load %arg9[%471, %c0_141, %c0_142] : memref<8x8x128xf32, #tpu.memory_space<vmem>>, vector<1x8x128xf32>
    %473 = vector.shape_cast %472 : vector<1x8x128xf32> to vector<8x128xf32>
    %474 = vector.shape_cast %470 : vector<8x128xf32> to vector<1x8x128xf32>
    tpu.vector_store %arg9[%471, %c0_141, %c0_142], %474 {strides = array<i32>} : memref<8x8x128xf32, #tpu.memory_space<vmem>>, vector<1x8x128xf32>,
    %c7_i32_143 = arith.constant 7 : i32
    %475 = arith.subi %c7_i32_143, %c6_i32 : i32
    %476 = arith.index_cast %475 : i32 to index
    %c0_144 = arith.constant 0 : index
    %c0_145 = arith.constant 0 : index
    %477 = vector.load %arg16[%476, %c0_144, %c0_145] : memref<8x8x512xf32, #tpu.memory_space<vmem>>, vector<1x8x512xf32>
    %478 = vector.shape_cast %477 : vector<1x8x512xf32> to vector<8x512xf32>
    %cst_146 = arith.constant dense<0.000000e+00> : vector<8x512xf32>
    %479 = tpu.matmul %436, %22, %cst_146 {dimension_numbers = #tpu.dot_dimension_numbers<[1], [0], [0], [1], [0, 0, 1, 1], [], []>} : vector<8x128xf32>, vector<128x512xf32>, vector<8x512xf32> -> vector<8x512xf32>
    %480 = arith.addf %478, %479 : vector<8x512xf32>
    %481 = vector.extract_strided_slice %480 {offsets = [0, 0], sizes = [8, 128], strides = [1, 1]} : vector<8x512xf32> to vector<8x128xf32>
    %482 = arith.negf %481 : vector<8x128xf32>
    %483 = math.exp %482 : vector<8x128xf32>
    %cst_147 = arith.constant 1.000000e+00 : f32
    %484 = vector.broadcast %cst_147 : f32 to vector<8x128xf32>
    %485 = arith.addf %484, %483 : vector<8x128xf32>
    %486 = arith.divf %484, %485 : vector<8x128xf32>
    %487 = vector.extract_strided_slice %480 {offsets = [0, 128], sizes = [8, 128], strides = [1, 1]} : vector<8x512xf32> to vector<8x128xf32>
    %488 = arith.negf %487 : vector<8x128xf32>
    %489 = math.exp %488 : vector<8x128xf32>
    %cst_148 = arith.constant 1.000000e+00 : f32
    %490 = vector.broadcast %cst_148 : f32 to vector<8x128xf32>
    %491 = arith.addf %490, %489 : vector<8x128xf32>
    %492 = arith.divf %490, %491 : vector<8x128xf32>
    %493 = vector.extract_strided_slice %480 {offsets = [0, 256], sizes = [8, 128], strides = [1, 1]} : vector<8x512xf32> to vector<8x128xf32>
    %494 = math.tanh %493 : vector<8x128xf32>
    %495 = vector.extract_strided_slice %480 {offsets = [0, 384], sizes = [8, 128], strides = [1, 1]} : vector<8x512xf32> to vector<8x128xf32>
    %496 = arith.negf %495 : vector<8x128xf32>
    %497 = math.exp %496 : vector<8x128xf32>
    %cst_149 = arith.constant 1.000000e+00 : f32
    %498 = vector.broadcast %cst_149 : f32 to vector<8x128xf32>
    %499 = arith.addf %498, %497 : vector<8x128xf32>
    %500 = arith.divf %498, %499 : vector<8x128xf32>
    %501 = arith.mulf %492, %434 : vector<8x128xf32>
    %502 = arith.mulf %486, %494 : vector<8x128xf32>
    %503 = arith.addf %501, %502 : vector<8x128xf32>
    %504 = math.tanh %503 : vector<8x128xf32>
    %505 = arith.mulf %500, %504 : vector<8x128xf32>
    %506 = arith.index_cast %475 : i32 to index
    %c0_150 = arith.constant 0 : index
    %c0_151 = arith.constant 0 : index
    %507 = vector.load %arg10[%506, %c0_150, %c0_151] : memref<8x8x128xf32, #tpu.memory_space<vmem>>, vector<1x8x128xf32>
    %508 = vector.shape_cast %507 : vector<1x8x128xf32> to vector<8x128xf32>
    %509 = vector.shape_cast %505 : vector<8x128xf32> to vector<1x8x128xf32>
    tpu.vector_store %arg10[%506, %c0_150, %c0_151], %509 {strides = array<i32>} : memref<8x8x128xf32, #tpu.memory_space<vmem>>, vector<1x8x128xf32>,
    %c7_i32_152 = arith.constant 7 : i32
    %510 = arith.index_cast %c7_i32_152 : i32 to index
    %c0_153 = arith.constant 0 : index
    %c0_154 = arith.constant 0 : index
    %511 = vector.load %arg15[%510, %c0_153, %c0_154] : memref<8x8x512xf32, #tpu.memory_space<vmem>>, vector<1x8x512xf32>
    %512 = vector.shape_cast %511 : vector<1x8x512xf32> to vector<8x512xf32>
    %cst_155 = arith.constant dense<0.000000e+00> : vector<8x512xf32>
    %513 = tpu.matmul %470, %21, %cst_155 {dimension_numbers = #tpu.dot_dimension_numbers<[1], [0], [0], [1], [0, 0, 1, 1], [], []>} : vector<8x128xf32>, vector<128x512xf32>, vector<8x512xf32> -> vector<8x512xf32>
    %514 = arith.addf %512, %513 : vector<8x512xf32>
    %515 = vector.extract_strided_slice %514 {offsets = [0, 0], sizes = [8, 128], strides = [1, 1]} : vector<8x512xf32> to vector<8x128xf32>
    %516 = arith.negf %515 : vector<8x128xf32>
    %517 = math.exp %516 : vector<8x128xf32>
    %cst_156 = arith.constant 1.000000e+00 : f32
    %518 = vector.broadcast %cst_156 : f32 to vector<8x128xf32>
    %519 = arith.addf %518, %517 : vector<8x128xf32>
    %520 = arith.divf %518, %519 : vector<8x128xf32>
    %521 = vector.extract_strided_slice %514 {offsets = [0, 128], sizes = [8, 128], strides = [1, 1]} : vector<8x512xf32> to vector<8x128xf32>
    %522 = arith.negf %521 : vector<8x128xf32>
    %523 = math.exp %522 : vector<8x128xf32>
    %cst_157 = arith.constant 1.000000e+00 : f32
    %524 = vector.broadcast %cst_157 : f32 to vector<8x128xf32>
    %525 = arith.addf %524, %523 : vector<8x128xf32>
    %526 = arith.divf %524, %525 : vector<8x128xf32>
    %527 = vector.extract_strided_slice %514 {offsets = [0, 256], sizes = [8, 128], strides = [1, 1]} : vector<8x512xf32> to vector<8x128xf32>
    %528 = math.tanh %527 : vector<8x128xf32>
    %529 = vector.extract_strided_slice %514 {offsets = [0, 384], sizes = [8, 128], strides = [1, 1]} : vector<8x512xf32> to vector<8x128xf32>
    %530 = arith.negf %529 : vector<8x128xf32>
    %531 = math.exp %530 : vector<8x128xf32>
    %cst_158 = arith.constant 1.000000e+00 : f32
    %532 = vector.broadcast %cst_158 : f32 to vector<8x128xf32>
    %533 = arith.addf %532, %531 : vector<8x128xf32>
    %534 = arith.divf %532, %533 : vector<8x128xf32>
    %535 = arith.mulf %526, %468 : vector<8x128xf32>
    %536 = arith.mulf %520, %528 : vector<8x128xf32>
    %537 = arith.addf %535, %536 : vector<8x128xf32>
    %538 = math.tanh %537 : vector<8x128xf32>
    %539 = arith.mulf %534, %538 : vector<8x128xf32>
    %540 = arith.index_cast %c7_i32_152 : i32 to index
    %c0_159 = arith.constant 0 : index
    %c0_160 = arith.constant 0 : index
    %541 = vector.load %arg9[%540, %c0_159, %c0_160] : memref<8x8x128xf32, #tpu.memory_space<vmem>>, vector<1x8x128xf32>
    %542 = vector.shape_cast %541 : vector<1x8x128xf32> to vector<8x128xf32>
    %543 = vector.shape_cast %539 : vector<8x128xf32> to vector<1x8x128xf32>
    tpu.vector_store %arg9[%540, %c0_159, %c0_160], %543 {strides = array<i32>} : memref<8x8x128xf32, #tpu.memory_space<vmem>>, vector<1x8x128xf32>,
    %c7_i32_161 = arith.constant 7 : i32
    %544 = arith.subi %c7_i32_161, %c7_i32_152 : i32
    %545 = arith.index_cast %544 : i32 to index
    %c0_162 = arith.constant 0 : index
    %c0_163 = arith.constant 0 : index
    %546 = vector.load %arg16[%545, %c0_162, %c0_163] : memref<8x8x512xf32, #tpu.memory_space<vmem>>, vector<1x8x512xf32>
    %547 = vector.shape_cast %546 : vector<1x8x512xf32> to vector<8x512xf32>
    %cst_164 = arith.constant dense<0.000000e+00> : vector<8x512xf32>
    %548 = tpu.matmul %505, %22, %cst_164 {dimension_numbers = #tpu.dot_dimension_numbers<[1], [0], [0], [1], [0, 0, 1, 1], [], []>} : vector<8x128xf32>, vector<128x512xf32>, vector<8x512xf32> -> vector<8x512xf32>
    %549 = arith.addf %547, %548 : vector<8x512xf32>
    %550 = vector.extract_strided_slice %549 {offsets = [0, 0], sizes = [8, 128], strides = [1, 1]} : vector<8x512xf32> to vector<8x128xf32>
    %551 = arith.negf %550 : vector<8x128xf32>
    %552 = math.exp %551 : vector<8x128xf32>
    %cst_165 = arith.constant 1.000000e+00 : f32
    %553 = vector.broadcast %cst_165 : f32 to vector<8x128xf32>
    %554 = arith.addf %553, %552 : vector<8x128xf32>
    %555 = arith.divf %553, %554 : vector<8x128xf32>
    %556 = vector.extract_strided_slice %549 {offsets = [0, 128], sizes = [8, 128], strides = [1, 1]} : vector<8x512xf32> to vector<8x128xf32>
    %557 = arith.negf %556 : vector<8x128xf32>
    %558 = math.exp %557 : vector<8x128xf32>
    %cst_166 = arith.constant 1.000000e+00 : f32
    %559 = vector.broadcast %cst_166 : f32 to vector<8x128xf32>
    %560 = arith.addf %559, %558 : vector<8x128xf32>
    %561 = arith.divf %559, %560 : vector<8x128xf32>
    %562 = vector.extract_strided_slice %549 {offsets = [0, 256], sizes = [8, 128], strides = [1, 1]} : vector<8x512xf32> to vector<8x128xf32>
    %563 = math.tanh %562 : vector<8x128xf32>
    %564 = vector.extract_strided_slice %549 {offsets = [0, 384], sizes = [8, 128], strides = [1, 1]} : vector<8x512xf32> to vector<8x128xf32>
    %565 = arith.negf %564 : vector<8x128xf32>
    %566 = math.exp %565 : vector<8x128xf32>
    %cst_167 = arith.constant 1.000000e+00 : f32
    %567 = vector.broadcast %cst_167 : f32 to vector<8x128xf32>
    %568 = arith.addf %567, %566 : vector<8x128xf32>
    %569 = arith.divf %567, %568 : vector<8x128xf32>
    %570 = arith.mulf %561, %503 : vector<8x128xf32>
    %571 = arith.mulf %555, %563 : vector<8x128xf32>
    %572 = arith.addf %570, %571 : vector<8x128xf32>
    %573 = math.tanh %572 : vector<8x128xf32>
    %574 = arith.mulf %569, %573 : vector<8x128xf32>
    %575 = arith.index_cast %544 : i32 to index
    %c0_168 = arith.constant 0 : index
    %c0_169 = arith.constant 0 : index
    %576 = vector.load %arg10[%575, %c0_168, %c0_169] : memref<8x8x128xf32, #tpu.memory_space<vmem>>, vector<1x8x128xf32>
    %577 = vector.shape_cast %576 : vector<1x8x128xf32> to vector<8x128xf32>
    %578 = vector.shape_cast %574 : vector<8x128xf32> to vector<1x8x128xf32>
    tpu.vector_store %arg10[%575, %c0_168, %c0_169], %578 {strides = array<i32>} : memref<8x8x128xf32, #tpu.memory_space<vmem>>, vector<1x8x128xf32>,
    %c8_i32 = arith.constant 8 : i32
    %c0_170 = arith.constant 0 : index
    %c0_171 = arith.constant 0 : index
    %579 = vector.load %arg11[%c0_170, %c0_171] : memref<8x128xf32, #tpu.memory_space<vmem>>, vector<8x128xf32>
    tpu.vector_store %arg11[%c0_170, %c0_171], %539 {strides = array<i32>} : memref<8x128xf32, #tpu.memory_space<vmem>>, vector<8x128xf32>,
    %c0_172 = arith.constant 0 : index
    %c0_173 = arith.constant 0 : index
    %580 = vector.load %arg12[%c0_172, %c0_173] : memref<8x128xf32, #tpu.memory_space<vmem>>, vector<8x128xf32>
    tpu.vector_store %arg12[%c0_172, %c0_173], %537 {strides = array<i32>} : memref<8x128xf32, #tpu.memory_space<vmem>>, vector<8x128xf32>,
    %c0_174 = arith.constant 0 : index
    %c0_175 = arith.constant 0 : index
    %581 = vector.load %arg13[%c0_174, %c0_175] : memref<8x128xf32, #tpu.memory_space<vmem>>, vector<8x128xf32>
    tpu.vector_store %arg13[%c0_174, %c0_175], %574 {strides = array<i32>} : memref<8x128xf32, #tpu.memory_space<vmem>>, vector<8x128xf32>,
    %c0_176 = arith.constant 0 : index
    %c0_177 = arith.constant 0 : index
    %582 = vector.load %arg14[%c0_176, %c0_177] : memref<8x128xf32, #tpu.memory_space<vmem>>, vector<8x128xf32>
    tpu.vector_store %arg14[%c0_176, %c0_177], %572 {strides = array<i32>} : memref<8x128xf32, #tpu.memory_space<vmem>>, vector<8x128xf32>,
    return
  }
  func.func @transform_0(%arg0: i32) -> (i32, i32, i32) {
    %c0_i32 = arith.constant 0 : i32
    %c0_i32_0 = arith.constant 0 : i32
    %c0_i32_1 = arith.constant 0 : i32
    return %arg0, %c0_i32, %c0_i32_0 : i32, i32, i32
  }
  func.func @transform_1(%arg0: i32) -> (i32, i32, i32) {
    %c0_i32 = arith.constant 0 : i32
    %0 = arith.subi %c0_i32, %arg0 : i32
    %c0_i32_0 = arith.constant 0 : i32
    %c0_i32_1 = arith.constant 0 : i32
    %c0_i32_2 = arith.constant 0 : i32
    return %0, %c0_i32_0, %c0_i32_1 : i32, i32, i32
  }
  func.func @transform_2(%arg0: i32) -> (i32, i32) {
    %c0_i32 = arith.constant 0 : i32
    %c0_i32_0 = arith.constant 0 : i32
    %c0_i32_1 = arith.constant 0 : i32
    return %c0_i32, %c0_i32_0 : i32, i32
  }
  func.func @transform_3(%arg0: i32) -> (i32, i32) {
    %c0_i32 = arith.constant 0 : i32
    %c0_i32_0 = arith.constant 0 : i32
    %c0_i32_1 = arith.constant 0 : i32
    return %c0_i32, %c0_i32_0 : i32, i32
  }
  func.func @transform_4(%arg0: i32) -> (i32, i32) {
    %c0_i32 = arith.constant 0 : i32
    %c0_i32_0 = arith.constant 0 : i32
    %c0_i32_1 = arith.constant 0 : i32
    return %c0_i32, %c0_i32_0 : i32, i32
  }
  func.func @transform_5(%arg0: i32) -> (i32, i32) {
    %c0_i32 = arith.constant 0 : i32
    %c0_i32_0 = arith.constant 0 : i32
    %c0_i32_1 = arith.constant 0 : i32
    return %c0_i32, %c0_i32_0 : i32, i32
  }
  func.func @transform_6(%arg0: i32) -> (i32, i32) {
    %c0_i32 = arith.constant 0 : i32
    %c0_i32_0 = arith.constant 0 : i32
    %c0_i32_1 = arith.constant 0 : i32
    return %c0_i32, %c0_i32_0 : i32, i32
  }
  func.func @transform_7(%arg0: i32) -> (i32, i32) {
    %c0_i32 = arith.constant 0 : i32
    %c0_i32_0 = arith.constant 0 : i32
    %c0_i32_1 = arith.constant 0 : i32
    return %c0_i32, %c0_i32_0 : i32, i32
  }
  func.func @transform_8(%arg0: i32) -> (i32, i32, i32) {
    %c0_i32 = arith.constant 0 : i32
    %c0_i32_0 = arith.constant 0 : i32
    %c0_i32_1 = arith.constant 0 : i32
    return %arg0, %c0_i32, %c0_i32_0 : i32, i32, i32
  }
  func.func @transform_9(%arg0: i32) -> (i32, i32, i32) {
    %c0_i32 = arith.constant 0 : i32
    %0 = arith.subi %c0_i32, %arg0 : i32
    %c0_i32_0 = arith.constant 0 : i32
    %c0_i32_1 = arith.constant 0 : i32
    %c0_i32_2 = arith.constant 0 : i32
    return %0, %c0_i32_0, %c0_i32_1 : i32, i32, i32
  }
}

module attributes {stable_mosaic.version = 11 : i64} {
  func.func @_final_bidir_head_kernel(%arg0: i32, %arg1: memref<8x8x128xf32, #tpu.memory_space<vmem>>, %arg2: memref<8x8x128xf32, #tpu.memory_space<vmem>>, %arg3: memref<256x512xf32, #tpu.memory_space<vmem>>, %arg4: memref<128x512xf32, #tpu.memory_space<vmem>>, %arg5: memref<1x512xf32, #tpu.memory_space<vmem>>, %arg6: memref<256x512xf32, #tpu.memory_space<vmem>>, %arg7: memref<1x512xf32, #tpu.memory_space<vmem>>, %arg8: memref<256x128xf32, #tpu.memory_space<vmem>>, %arg9: memref<1x128xf32, #tpu.memory_space<vmem>>, %arg10: memref<128x256xf32, #tpu.memory_space<vmem>>, %arg11: memref<1x256xf32, #tpu.memory_space<vmem>>, %arg12: memref<8x256xf32, #tpu.memory_space<vmem>>, %arg13: memref<8x128xf32, #tpu.memory_space<vmem>>, %arg14: memref<8x128xf32, #tpu.memory_space<vmem>>, %arg15: memref<8x8x512xf32, #tpu.memory_space<vmem>>) attributes {dimension_semantics = [#tpu.dimension_semantics<arbitrary>], iteration_bounds = array<i64: 1>, scalar_prefetch = 0 : i64, scratch_operands = 3 : i64, tpu.core_type = #tpu.core_type<tc>, window_params = [{transform_indices = @transform_0, window_bounds = array<i64: 8, 8, 128>}, {transform_indices = @transform_1, window_bounds = array<i64: 8, 8, 128>}, {pipeline_mode = #tpu.pipeline_mode<synchronous>, transform_indices = @transform_2, window_bounds = array<i64: 256, 512>}, {pipeline_mode = #tpu.pipeline_mode<synchronous>, transform_indices = @transform_3, window_bounds = array<i64: 128, 512>}, {pipeline_mode = #tpu.pipeline_mode<synchronous>, transform_indices = @transform_4, window_bounds = array<i64: 1, 512>}, {pipeline_mode = #tpu.pipeline_mode<synchronous>, transform_indices = @transform_5, window_bounds = array<i64: 256, 512>}, {pipeline_mode = #tpu.pipeline_mode<synchronous>, transform_indices = @transform_6, window_bounds = array<i64: 1, 512>}, {pipeline_mode = #tpu.pipeline_mode<synchronous>, transform_indices = @transform_7, window_bounds = array<i64: 256, 128>}, {pipeline_mode = #tpu.pipeline_mode<synchronous>, transform_indices = @transform_8, window_bounds = array<i64: 1, 128>}, {pipeline_mode = #tpu.pipeline_mode<synchronous>, transform_indices = @transform_9, window_bounds = array<i64: 128, 256>}, {pipeline_mode = #tpu.pipeline_mode<synchronous>, transform_indices = @transform_10, window_bounds = array<i64: 1, 256>}, {pipeline_mode = #tpu.pipeline_mode<synchronous>, transform_indices = @transform_11, window_bounds = array<i64: 8, 256>}]} {
    %c0_i32 = arith.constant 0 : i32
    %0 = arith.cmpi eq, %arg0, %c0_i32 : i32
    %1 = arith.extui %0 : i1 to i32
    %c0_i32_0 = arith.constant 0 : i32
    %2 = arith.cmpi ne, %1, %c0_i32_0 : i32
    scf.if %2 {
      %cst_75 = arith.constant 0.000000e+00 : f32
      %266 = vector.broadcast %cst_75 : f32 to vector<8x128xf32>
      %c0_76 = arith.constant 0 : index
      %c0_77 = arith.constant 0 : index
      %267 = vector.load %arg13[%c0_76, %c0_77] : memref<8x128xf32, #tpu.memory_space<vmem>>, vector<8x128xf32>
      tpu.vector_store %arg13[%c0_76, %c0_77], %266 {strides = array<i32>} : memref<8x128xf32, #tpu.memory_space<vmem>>, vector<8x128xf32>,
      %cst_78 = arith.constant 0.000000e+00 : f32
      %268 = vector.broadcast %cst_78 : f32 to vector<8x128xf32>
      %c0_79 = arith.constant 0 : index
      %c0_80 = arith.constant 0 : index
      %269 = vector.load %arg14[%c0_79, %c0_80] : memref<8x128xf32, #tpu.memory_space<vmem>>, vector<8x128xf32>
      tpu.vector_store %arg14[%c0_79, %c0_80], %268 {strides = array<i32>} : memref<8x128xf32, #tpu.memory_space<vmem>>, vector<8x128xf32>,
    } else {
    }
    %c0 = arith.constant 0 : index
    %c0_1 = arith.constant 0 : index
    %c0_2 = arith.constant 0 : index
    %3 = vector.load %arg1[%c0, %c0_1, %c0_2] : memref<8x8x128xf32, #tpu.memory_space<vmem>>, vector<8x8x128xf32>
    %4 = vector.shape_cast %3 : vector<8x8x128xf32> to vector<64x128xf32>
    %c0_3 = arith.constant 0 : index
    %c0_4 = arith.constant 0 : index
    %c0_5 = arith.constant 0 : index
    %5 = vector.load %arg2[%c0_3, %c0_4, %c0_5] : memref<8x8x128xf32, #tpu.memory_space<vmem>>, vector<8x8x128xf32>
    %6 = vector.shape_cast %5 : vector<8x8x128xf32> to vector<64x128xf32>
    %c0_6 = arith.constant 0 : index
    %c0_7 = arith.constant 0 : index
    %7 = vector.load %arg3[%c0_6, %c0_7] : memref<256x512xf32, #tpu.memory_space<vmem>>, vector<256x512xf32>
    %8 = vector.extract_strided_slice %7 {offsets = [0, 0], sizes = [128, 512], strides = [1, 1]} : vector<256x512xf32> to vector<128x512xf32>
    %cst = arith.constant dense<0.000000e+00> : vector<64x512xf32>
    %9 = tpu.matmul %4, %8, %cst {dimension_numbers = #tpu.dot_dimension_numbers<[1], [0], [0], [1], [0, 0, 1, 1], [], []>} : vector<64x128xf32>, vector<128x512xf32>, vector<64x512xf32> -> vector<64x512xf32>
    %10 = vector.extract_strided_slice %7 {offsets = [128, 0], sizes = [128, 512], strides = [1, 1]} : vector<256x512xf32> to vector<128x512xf32>
    %cst_8 = arith.constant dense<0.000000e+00> : vector<64x512xf32>
    %11 = tpu.matmul %6, %10, %cst_8 {dimension_numbers = #tpu.dot_dimension_numbers<[1], [0], [0], [1], [0, 0, 1, 1], [], []>} : vector<64x128xf32>, vector<128x512xf32>, vector<64x512xf32> -> vector<64x512xf32>
    %12 = arith.addf %9, %11 : vector<64x512xf32>
    %c0_9 = arith.constant 0 : index
    %c0_10 = arith.constant 0 : index
    %13 = vector.load %arg5[%c0_9, %c0_10] : memref<1x512xf32, #tpu.memory_space<vmem>>, vector<1x512xf32>
    %14 = vector.broadcast %13 : vector<1x512xf32> to vector<64x512xf32>
    %15 = arith.addf %12, %14 : vector<64x512xf32>
    %16 = vector.shape_cast %15 : vector<64x512xf32> to vector<8x8x512xf32>
    %c0_11 = arith.constant 0 : index
    %c0_12 = arith.constant 0 : index
    %c0_13 = arith.constant 0 : index
    %17 = vector.load %arg15[%c0_11, %c0_12, %c0_13] : memref<8x8x512xf32, #tpu.memory_space<vmem>>, vector<8x8x512xf32>
    tpu.vector_store %arg15[%c0_11, %c0_12, %c0_13], %16 {strides = array<i32>} : memref<8x8x512xf32, #tpu.memory_space<vmem>>, vector<8x8x512xf32>,
    %c0_14 = arith.constant 0 : index
    %c0_15 = arith.constant 0 : index
    %18 = vector.load %arg4[%c0_14, %c0_15] : memref<128x512xf32, #tpu.memory_space<vmem>>, vector<128x512xf32>
    %c0_16 = arith.constant 0 : index
    %c0_17 = arith.constant 0 : index
    %19 = vector.load %arg13[%c0_16, %c0_17] : memref<8x128xf32, #tpu.memory_space<vmem>>, vector<8x128xf32>
    %c0_18 = arith.constant 0 : index
    %c0_19 = arith.constant 0 : index
    %20 = vector.load %arg14[%c0_18, %c0_19] : memref<8x128xf32, #tpu.memory_space<vmem>>, vector<8x128xf32>
    %c0_i32_20 = arith.constant 0 : i32
    %21 = arith.index_cast %c0_i32_20 : i32 to index
    %c0_21 = arith.constant 0 : index
    %c0_22 = arith.constant 0 : index
    %22 = vector.load %arg15[%21, %c0_21, %c0_22] : memref<8x8x512xf32, #tpu.memory_space<vmem>>, vector<1x8x512xf32>
    %23 = vector.shape_cast %22 : vector<1x8x512xf32> to vector<8x512xf32>
    %cst_23 = arith.constant dense<0.000000e+00> : vector<8x512xf32>
    %24 = tpu.matmul %19, %18, %cst_23 {dimension_numbers = #tpu.dot_dimension_numbers<[1], [0], [0], [1], [0, 0, 1, 1], [], []>} : vector<8x128xf32>, vector<128x512xf32>, vector<8x512xf32> -> vector<8x512xf32>
    %25 = arith.addf %23, %24 : vector<8x512xf32>
    %26 = vector.extract_strided_slice %25 {offsets = [0, 0], sizes = [8, 128], strides = [1, 1]} : vector<8x512xf32> to vector<8x128xf32>
    %27 = arith.negf %26 : vector<8x128xf32>
    %28 = math.exp %27 : vector<8x128xf32>
    %cst_24 = arith.constant 1.000000e+00 : f32
    %29 = vector.broadcast %cst_24 : f32 to vector<8x128xf32>
    %30 = arith.addf %29, %28 : vector<8x128xf32>
    %31 = arith.divf %29, %30 : vector<8x128xf32>
    %32 = vector.extract_strided_slice %25 {offsets = [0, 128], sizes = [8, 128], strides = [1, 1]} : vector<8x512xf32> to vector<8x128xf32>
    %33 = arith.negf %32 : vector<8x128xf32>
    %34 = math.exp %33 : vector<8x128xf32>
    %cst_25 = arith.constant 1.000000e+00 : f32
    %35 = vector.broadcast %cst_25 : f32 to vector<8x128xf32>
    %36 = arith.addf %35, %34 : vector<8x128xf32>
    %37 = arith.divf %35, %36 : vector<8x128xf32>
    %38 = vector.extract_strided_slice %25 {offsets = [0, 256], sizes = [8, 128], strides = [1, 1]} : vector<8x512xf32> to vector<8x128xf32>
    %39 = math.tanh %38 : vector<8x128xf32>
    %40 = vector.extract_strided_slice %25 {offsets = [0, 384], sizes = [8, 128], strides = [1, 1]} : vector<8x512xf32> to vector<8x128xf32>
    %41 = arith.negf %40 : vector<8x128xf32>
    %42 = math.exp %41 : vector<8x128xf32>
    %cst_26 = arith.constant 1.000000e+00 : f32
    %43 = vector.broadcast %cst_26 : f32 to vector<8x128xf32>
    %44 = arith.addf %43, %42 : vector<8x128xf32>
    %45 = arith.divf %43, %44 : vector<8x128xf32>
    %46 = arith.mulf %37, %20 : vector<8x128xf32>
    %47 = arith.mulf %31, %39 : vector<8x128xf32>
    %48 = arith.addf %46, %47 : vector<8x128xf32>
    %49 = math.tanh %48 : vector<8x128xf32>
    %50 = arith.mulf %45, %49 : vector<8x128xf32>
    %c1_i32 = arith.constant 1 : i32
    %51 = arith.index_cast %c1_i32 : i32 to index
    %c0_27 = arith.constant 0 : index
    %c0_28 = arith.constant 0 : index
    %52 = vector.load %arg15[%51, %c0_27, %c0_28] : memref<8x8x512xf32, #tpu.memory_space<vmem>>, vector<1x8x512xf32>
    %53 = vector.shape_cast %52 : vector<1x8x512xf32> to vector<8x512xf32>
    %cst_29 = arith.constant dense<0.000000e+00> : vector<8x512xf32>
    %54 = tpu.matmul %50, %18, %cst_29 {dimension_numbers = #tpu.dot_dimension_numbers<[1], [0], [0], [1], [0, 0, 1, 1], [], []>} : vector<8x128xf32>, vector<128x512xf32>, vector<8x512xf32> -> vector<8x512xf32>
    %55 = arith.addf %53, %54 : vector<8x512xf32>
    %56 = vector.extract_strided_slice %55 {offsets = [0, 0], sizes = [8, 128], strides = [1, 1]} : vector<8x512xf32> to vector<8x128xf32>
    %57 = arith.negf %56 : vector<8x128xf32>
    %58 = math.exp %57 : vector<8x128xf32>
    %cst_30 = arith.constant 1.000000e+00 : f32
    %59 = vector.broadcast %cst_30 : f32 to vector<8x128xf32>
    %60 = arith.addf %59, %58 : vector<8x128xf32>
    %61 = arith.divf %59, %60 : vector<8x128xf32>
    %62 = vector.extract_strided_slice %55 {offsets = [0, 128], sizes = [8, 128], strides = [1, 1]} : vector<8x512xf32> to vector<8x128xf32>
    %63 = arith.negf %62 : vector<8x128xf32>
    %64 = math.exp %63 : vector<8x128xf32>
    %cst_31 = arith.constant 1.000000e+00 : f32
    %65 = vector.broadcast %cst_31 : f32 to vector<8x128xf32>
    %66 = arith.addf %65, %64 : vector<8x128xf32>
    %67 = arith.divf %65, %66 : vector<8x128xf32>
    %68 = vector.extract_strided_slice %55 {offsets = [0, 256], sizes = [8, 128], strides = [1, 1]} : vector<8x512xf32> to vector<8x128xf32>
    %69 = math.tanh %68 : vector<8x128xf32>
    %70 = vector.extract_strided_slice %55 {offsets = [0, 384], sizes = [8, 128], strides = [1, 1]} : vector<8x512xf32> to vector<8x128xf32>
    %71 = arith.negf %70 : vector<8x128xf32>
    %72 = math.exp %71 : vector<8x128xf32>
    %cst_32 = arith.constant 1.000000e+00 : f32
    %73 = vector.broadcast %cst_32 : f32 to vector<8x128xf32>
    %74 = arith.addf %73, %72 : vector<8x128xf32>
    %75 = arith.divf %73, %74 : vector<8x128xf32>
    %76 = arith.mulf %67, %48 : vector<8x128xf32>
    %77 = arith.mulf %61, %69 : vector<8x128xf32>
    %78 = arith.addf %76, %77 : vector<8x128xf32>
    %79 = math.tanh %78 : vector<8x128xf32>
    %80 = arith.mulf %75, %79 : vector<8x128xf32>
    %c2_i32 = arith.constant 2 : i32
    %81 = arith.index_cast %c2_i32 : i32 to index
    %c0_33 = arith.constant 0 : index
    %c0_34 = arith.constant 0 : index
    %82 = vector.load %arg15[%81, %c0_33, %c0_34] : memref<8x8x512xf32, #tpu.memory_space<vmem>>, vector<1x8x512xf32>
    %83 = vector.shape_cast %82 : vector<1x8x512xf32> to vector<8x512xf32>
    %cst_35 = arith.constant dense<0.000000e+00> : vector<8x512xf32>
    %84 = tpu.matmul %80, %18, %cst_35 {dimension_numbers = #tpu.dot_dimension_numbers<[1], [0], [0], [1], [0, 0, 1, 1], [], []>} : vector<8x128xf32>, vector<128x512xf32>, vector<8x512xf32> -> vector<8x512xf32>
    %85 = arith.addf %83, %84 : vector<8x512xf32>
    %86 = vector.extract_strided_slice %85 {offsets = [0, 0], sizes = [8, 128], strides = [1, 1]} : vector<8x512xf32> to vector<8x128xf32>
    %87 = arith.negf %86 : vector<8x128xf32>
    %88 = math.exp %87 : vector<8x128xf32>
    %cst_36 = arith.constant 1.000000e+00 : f32
    %89 = vector.broadcast %cst_36 : f32 to vector<8x128xf32>
    %90 = arith.addf %89, %88 : vector<8x128xf32>
    %91 = arith.divf %89, %90 : vector<8x128xf32>
    %92 = vector.extract_strided_slice %85 {offsets = [0, 128], sizes = [8, 128], strides = [1, 1]} : vector<8x512xf32> to vector<8x128xf32>
    %93 = arith.negf %92 : vector<8x128xf32>
    %94 = math.exp %93 : vector<8x128xf32>
    %cst_37 = arith.constant 1.000000e+00 : f32
    %95 = vector.broadcast %cst_37 : f32 to vector<8x128xf32>
    %96 = arith.addf %95, %94 : vector<8x128xf32>
    %97 = arith.divf %95, %96 : vector<8x128xf32>
    %98 = vector.extract_strided_slice %85 {offsets = [0, 256], sizes = [8, 128], strides = [1, 1]} : vector<8x512xf32> to vector<8x128xf32>
    %99 = math.tanh %98 : vector<8x128xf32>
    %100 = vector.extract_strided_slice %85 {offsets = [0, 384], sizes = [8, 128], strides = [1, 1]} : vector<8x512xf32> to vector<8x128xf32>
    %101 = arith.negf %100 : vector<8x128xf32>
    %102 = math.exp %101 : vector<8x128xf32>
    %cst_38 = arith.constant 1.000000e+00 : f32
    %103 = vector.broadcast %cst_38 : f32 to vector<8x128xf32>
    %104 = arith.addf %103, %102 : vector<8x128xf32>
    %105 = arith.divf %103, %104 : vector<8x128xf32>
    %106 = arith.mulf %97, %78 : vector<8x128xf32>
    %107 = arith.mulf %91, %99 : vector<8x128xf32>
    %108 = arith.addf %106, %107 : vector<8x128xf32>
    %109 = math.tanh %108 : vector<8x128xf32>
    %110 = arith.mulf %105, %109 : vector<8x128xf32>
    %c3_i32 = arith.constant 3 : i32
    %111 = arith.index_cast %c3_i32 : i32 to index
    %c0_39 = arith.constant 0 : index
    %c0_40 = arith.constant 0 : index
    %112 = vector.load %arg15[%111, %c0_39, %c0_40] : memref<8x8x512xf32, #tpu.memory_space<vmem>>, vector<1x8x512xf32>
    %113 = vector.shape_cast %112 : vector<1x8x512xf32> to vector<8x512xf32>
    %cst_41 = arith.constant dense<0.000000e+00> : vector<8x512xf32>
    %114 = tpu.matmul %110, %18, %cst_41 {dimension_numbers = #tpu.dot_dimension_numbers<[1], [0], [0], [1], [0, 0, 1, 1], [], []>} : vector<8x128xf32>, vector<128x512xf32>, vector<8x512xf32> -> vector<8x512xf32>
    %115 = arith.addf %113, %114 : vector<8x512xf32>
    %116 = vector.extract_strided_slice %115 {offsets = [0, 0], sizes = [8, 128], strides = [1, 1]} : vector<8x512xf32> to vector<8x128xf32>
    %117 = arith.negf %116 : vector<8x128xf32>
    %118 = math.exp %117 : vector<8x128xf32>
    %cst_42 = arith.constant 1.000000e+00 : f32
    %119 = vector.broadcast %cst_42 : f32 to vector<8x128xf32>
    %120 = arith.addf %119, %118 : vector<8x128xf32>
    %121 = arith.divf %119, %120 : vector<8x128xf32>
    %122 = vector.extract_strided_slice %115 {offsets = [0, 128], sizes = [8, 128], strides = [1, 1]} : vector<8x512xf32> to vector<8x128xf32>
    %123 = arith.negf %122 : vector<8x128xf32>
    %124 = math.exp %123 : vector<8x128xf32>
    %cst_43 = arith.constant 1.000000e+00 : f32
    %125 = vector.broadcast %cst_43 : f32 to vector<8x128xf32>
    %126 = arith.addf %125, %124 : vector<8x128xf32>
    %127 = arith.divf %125, %126 : vector<8x128xf32>
    %128 = vector.extract_strided_slice %115 {offsets = [0, 256], sizes = [8, 128], strides = [1, 1]} : vector<8x512xf32> to vector<8x128xf32>
    %129 = math.tanh %128 : vector<8x128xf32>
    %130 = vector.extract_strided_slice %115 {offsets = [0, 384], sizes = [8, 128], strides = [1, 1]} : vector<8x512xf32> to vector<8x128xf32>
    %131 = arith.negf %130 : vector<8x128xf32>
    %132 = math.exp %131 : vector<8x128xf32>
    %cst_44 = arith.constant 1.000000e+00 : f32
    %133 = vector.broadcast %cst_44 : f32 to vector<8x128xf32>
    %134 = arith.addf %133, %132 : vector<8x128xf32>
    %135 = arith.divf %133, %134 : vector<8x128xf32>
    %136 = arith.mulf %127, %108 : vector<8x128xf32>
    %137 = arith.mulf %121, %129 : vector<8x128xf32>
    %138 = arith.addf %136, %137 : vector<8x128xf32>
    %139 = math.tanh %138 : vector<8x128xf32>
    %140 = arith.mulf %135, %139 : vector<8x128xf32>
    %c4_i32 = arith.constant 4 : i32
    %141 = arith.index_cast %c4_i32 : i32 to index
    %c0_45 = arith.constant 0 : index
    %c0_46 = arith.constant 0 : index
    %142 = vector.load %arg15[%141, %c0_45, %c0_46] : memref<8x8x512xf32, #tpu.memory_space<vmem>>, vector<1x8x512xf32>
    %143 = vector.shape_cast %142 : vector<1x8x512xf32> to vector<8x512xf32>
    %cst_47 = arith.constant dense<0.000000e+00> : vector<8x512xf32>
    %144 = tpu.matmul %140, %18, %cst_47 {dimension_numbers = #tpu.dot_dimension_numbers<[1], [0], [0], [1], [0, 0, 1, 1], [], []>} : vector<8x128xf32>, vector<128x512xf32>, vector<8x512xf32> -> vector<8x512xf32>
    %145 = arith.addf %143, %144 : vector<8x512xf32>
    %146 = vector.extract_strided_slice %145 {offsets = [0, 0], sizes = [8, 128], strides = [1, 1]} : vector<8x512xf32> to vector<8x128xf32>
    %147 = arith.negf %146 : vector<8x128xf32>
    %148 = math.exp %147 : vector<8x128xf32>
    %cst_48 = arith.constant 1.000000e+00 : f32
    %149 = vector.broadcast %cst_48 : f32 to vector<8x128xf32>
    %150 = arith.addf %149, %148 : vector<8x128xf32>
    %151 = arith.divf %149, %150 : vector<8x128xf32>
    %152 = vector.extract_strided_slice %145 {offsets = [0, 128], sizes = [8, 128], strides = [1, 1]} : vector<8x512xf32> to vector<8x128xf32>
    %153 = arith.negf %152 : vector<8x128xf32>
    %154 = math.exp %153 : vector<8x128xf32>
    %cst_49 = arith.constant 1.000000e+00 : f32
    %155 = vector.broadcast %cst_49 : f32 to vector<8x128xf32>
    %156 = arith.addf %155, %154 : vector<8x128xf32>
    %157 = arith.divf %155, %156 : vector<8x128xf32>
    %158 = vector.extract_strided_slice %145 {offsets = [0, 256], sizes = [8, 128], strides = [1, 1]} : vector<8x512xf32> to vector<8x128xf32>
    %159 = math.tanh %158 : vector<8x128xf32>
    %160 = vector.extract_strided_slice %145 {offsets = [0, 384], sizes = [8, 128], strides = [1, 1]} : vector<8x512xf32> to vector<8x128xf32>
    %161 = arith.negf %160 : vector<8x128xf32>
    %162 = math.exp %161 : vector<8x128xf32>
    %cst_50 = arith.constant 1.000000e+00 : f32
    %163 = vector.broadcast %cst_50 : f32 to vector<8x128xf32>
    %164 = arith.addf %163, %162 : vector<8x128xf32>
    %165 = arith.divf %163, %164 : vector<8x128xf32>
    %166 = arith.mulf %157, %138 : vector<8x128xf32>
    %167 = arith.mulf %151, %159 : vector<8x128xf32>
    %168 = arith.addf %166, %167 : vector<8x128xf32>
    %169 = math.tanh %168 : vector<8x128xf32>
    %170 = arith.mulf %165, %169 : vector<8x128xf32>
    %c5_i32 = arith.constant 5 : i32
    %171 = arith.index_cast %c5_i32 : i32 to index
    %c0_51 = arith.constant 0 : index
    %c0_52 = arith.constant 0 : index
    %172 = vector.load %arg15[%171, %c0_51, %c0_52] : memref<8x8x512xf32, #tpu.memory_space<vmem>>, vector<1x8x512xf32>
    %173 = vector.shape_cast %172 : vector<1x8x512xf32> to vector<8x512xf32>
    %cst_53 = arith.constant dense<0.000000e+00> : vector<8x512xf32>
    %174 = tpu.matmul %170, %18, %cst_53 {dimension_numbers = #tpu.dot_dimension_numbers<[1], [0], [0], [1], [0, 0, 1, 1], [], []>} : vector<8x128xf32>, vector<128x512xf32>, vector<8x512xf32> -> vector<8x512xf32>
    %175 = arith.addf %173, %174 : vector<8x512xf32>
    %176 = vector.extract_strided_slice %175 {offsets = [0, 0], sizes = [8, 128], strides = [1, 1]} : vector<8x512xf32> to vector<8x128xf32>
    %177 = arith.negf %176 : vector<8x128xf32>
    %178 = math.exp %177 : vector<8x128xf32>
    %cst_54 = arith.constant 1.000000e+00 : f32
    %179 = vector.broadcast %cst_54 : f32 to vector<8x128xf32>
    %180 = arith.addf %179, %178 : vector<8x128xf32>
    %181 = arith.divf %179, %180 : vector<8x128xf32>
    %182 = vector.extract_strided_slice %175 {offsets = [0, 128], sizes = [8, 128], strides = [1, 1]} : vector<8x512xf32> to vector<8x128xf32>
    %183 = arith.negf %182 : vector<8x128xf32>
    %184 = math.exp %183 : vector<8x128xf32>
    %cst_55 = arith.constant 1.000000e+00 : f32
    %185 = vector.broadcast %cst_55 : f32 to vector<8x128xf32>
    %186 = arith.addf %185, %184 : vector<8x128xf32>
    %187 = arith.divf %185, %186 : vector<8x128xf32>
    %188 = vector.extract_strided_slice %175 {offsets = [0, 256], sizes = [8, 128], strides = [1, 1]} : vector<8x512xf32> to vector<8x128xf32>
    %189 = math.tanh %188 : vector<8x128xf32>
    %190 = vector.extract_strided_slice %175 {offsets = [0, 384], sizes = [8, 128], strides = [1, 1]} : vector<8x512xf32> to vector<8x128xf32>
    %191 = arith.negf %190 : vector<8x128xf32>
    %192 = math.exp %191 : vector<8x128xf32>
    %cst_56 = arith.constant 1.000000e+00 : f32
    %193 = vector.broadcast %cst_56 : f32 to vector<8x128xf32>
    %194 = arith.addf %193, %192 : vector<8x128xf32>
    %195 = arith.divf %193, %194 : vector<8x128xf32>
    %196 = arith.mulf %187, %168 : vector<8x128xf32>
    %197 = arith.mulf %181, %189 : vector<8x128xf32>
    %198 = arith.addf %196, %197 : vector<8x128xf32>
    %199 = math.tanh %198 : vector<8x128xf32>
    %200 = arith.mulf %195, %199 : vector<8x128xf32>
    %c6_i32 = arith.constant 6 : i32
    %201 = arith.index_cast %c6_i32 : i32 to index
    %c0_57 = arith.constant 0 : index
    %c0_58 = arith.constant 0 : index
    %202 = vector.load %arg15[%201, %c0_57, %c0_58] : memref<8x8x512xf32, #tpu.memory_space<vmem>>, vector<1x8x512xf32>
    %203 = vector.shape_cast %202 : vector<1x8x512xf32> to vector<8x512xf32>
    %cst_59 = arith.constant dense<0.000000e+00> : vector<8x512xf32>
    %204 = tpu.matmul %200, %18, %cst_59 {dimension_numbers = #tpu.dot_dimension_numbers<[1], [0], [0], [1], [0, 0, 1, 1], [], []>} : vector<8x128xf32>, vector<128x512xf32>, vector<8x512xf32> -> vector<8x512xf32>
    %205 = arith.addf %203, %204 : vector<8x512xf32>
    %206 = vector.extract_strided_slice %205 {offsets = [0, 0], sizes = [8, 128], strides = [1, 1]} : vector<8x512xf32> to vector<8x128xf32>
    %207 = arith.negf %206 : vector<8x128xf32>
    %208 = math.exp %207 : vector<8x128xf32>
    %cst_60 = arith.constant 1.000000e+00 : f32
    %209 = vector.broadcast %cst_60 : f32 to vector<8x128xf32>
    %210 = arith.addf %209, %208 : vector<8x128xf32>
    %211 = arith.divf %209, %210 : vector<8x128xf32>
    %212 = vector.extract_strided_slice %205 {offsets = [0, 128], sizes = [8, 128], strides = [1, 1]} : vector<8x512xf32> to vector<8x128xf32>
    %213 = arith.negf %212 : vector<8x128xf32>
    %214 = math.exp %213 : vector<8x128xf32>
    %cst_61 = arith.constant 1.000000e+00 : f32
    %215 = vector.broadcast %cst_61 : f32 to vector<8x128xf32>
    %216 = arith.addf %215, %214 : vector<8x128xf32>
    %217 = arith.divf %215, %216 : vector<8x128xf32>
    %218 = vector.extract_strided_slice %205 {offsets = [0, 256], sizes = [8, 128], strides = [1, 1]} : vector<8x512xf32> to vector<8x128xf32>
    %219 = math.tanh %218 : vector<8x128xf32>
    %220 = vector.extract_strided_slice %205 {offsets = [0, 384], sizes = [8, 128], strides = [1, 1]} : vector<8x512xf32> to vector<8x128xf32>
    %221 = arith.negf %220 : vector<8x128xf32>
    %222 = math.exp %221 : vector<8x128xf32>
    %cst_62 = arith.constant 1.000000e+00 : f32
    %223 = vector.broadcast %cst_62 : f32 to vector<8x128xf32>
    %224 = arith.addf %223, %222 : vector<8x128xf32>
    %225 = arith.divf %223, %224 : vector<8x128xf32>
    %226 = arith.mulf %217, %198 : vector<8x128xf32>
    %227 = arith.mulf %211, %219 : vector<8x128xf32>
    %228 = arith.addf %226, %227 : vector<8x128xf32>
    %229 = math.tanh %228 : vector<8x128xf32>
    %230 = arith.mulf %225, %229 : vector<8x128xf32>
    %c7_i32 = arith.constant 7 : i32
    %231 = arith.index_cast %c7_i32 : i32 to index
    %c0_63 = arith.constant 0 : index
    %c0_64 = arith.constant 0 : index
    %232 = vector.load %arg15[%231, %c0_63, %c0_64] : memref<8x8x512xf32, #tpu.memory_space<vmem>>, vector<1x8x512xf32>
    %233 = vector.shape_cast %232 : vector<1x8x512xf32> to vector<8x512xf32>
    %cst_65 = arith.constant dense<0.000000e+00> : vector<8x512xf32>
    %234 = tpu.matmul %230, %18, %cst_65 {dimension_numbers = #tpu.dot_dimension_numbers<[1], [0], [0], [1], [0, 0, 1, 1], [], []>} : vector<8x128xf32>, vector<128x512xf32>, vector<8x512xf32> -> vector<8x512xf32>
    %235 = arith.addf %233, %234 : vector<8x512xf32>
    %236 = vector.extract_strided_slice %235 {offsets = [0, 0], sizes = [8, 128], strides = [1, 1]} : vector<8x512xf32> to vector<8x128xf32>
    %237 = arith.negf %236 : vector<8x128xf32>
    %238 = math.exp %237 : vector<8x128xf32>
    %cst_66 = arith.constant 1.000000e+00 : f32
    %239 = vector.broadcast %cst_66 : f32 to vector<8x128xf32>
    %240 = arith.addf %239, %238 : vector<8x128xf32>
    %241 = arith.divf %239, %240 : vector<8x128xf32>
    %242 = vector.extract_strided_slice %235 {offsets = [0, 128], sizes = [8, 128], strides = [1, 1]} : vector<8x512xf32> to vector<8x128xf32>
    %243 = arith.negf %242 : vector<8x128xf32>
    %244 = math.exp %243 : vector<8x128xf32>
    %cst_67 = arith.constant 1.000000e+00 : f32
    %245 = vector.broadcast %cst_67 : f32 to vector<8x128xf32>
    %246 = arith.addf %245, %244 : vector<8x128xf32>
    %247 = arith.divf %245, %246 : vector<8x128xf32>
    %248 = vector.extract_strided_slice %235 {offsets = [0, 256], sizes = [8, 128], strides = [1, 1]} : vector<8x512xf32> to vector<8x128xf32>
    %249 = math.tanh %248 : vector<8x128xf32>
    %250 = vector.extract_strided_slice %235 {offsets = [0, 384], sizes = [8, 128], strides = [1, 1]} : vector<8x512xf32> to vector<8x128xf32>
    %251 = arith.negf %250 : vector<8x128xf32>
    %252 = math.exp %251 : vector<8x128xf32>
    %cst_68 = arith.constant 1.000000e+00 : f32
    %253 = vector.broadcast %cst_68 : f32 to vector<8x128xf32>
    %254 = arith.addf %253, %252 : vector<8x128xf32>
    %255 = arith.divf %253, %254 : vector<8x128xf32>
    %256 = arith.mulf %247, %228 : vector<8x128xf32>
    %257 = arith.mulf %241, %249 : vector<8x128xf32>
    %258 = arith.addf %256, %257 : vector<8x128xf32>
    %259 = math.tanh %258 : vector<8x128xf32>
    %260 = arith.mulf %255, %259 : vector<8x128xf32>
    %c8_i32 = arith.constant 8 : i32
    %c0_69 = arith.constant 0 : index
    %c0_70 = arith.constant 0 : index
    %261 = vector.load %arg13[%c0_69, %c0_70] : memref<8x128xf32, #tpu.memory_space<vmem>>, vector<8x128xf32>
    tpu.vector_store %arg13[%c0_69, %c0_70], %260 {strides = array<i32>} : memref<8x128xf32, #tpu.memory_space<vmem>>, vector<8x128xf32>,
    %c0_71 = arith.constant 0 : index
    %c0_72 = arith.constant 0 : index
    %262 = vector.load %arg14[%c0_71, %c0_72] : memref<8x128xf32, #tpu.memory_space<vmem>>, vector<8x128xf32>
    tpu.vector_store %arg14[%c0_71, %c0_72], %258 {strides = array<i32>} : memref<8x128xf32, #tpu.memory_space<vmem>>, vector<8x128xf32>,
    %c0_i32_73 = arith.constant 0 : i32
    %263 = arith.cmpi eq, %arg0, %c0_i32_73 : i32
    %264 = arith.extui %263 : i1 to i32
    %c0_i32_74 = arith.constant 0 : i32
    %265 = arith.cmpi ne, %264, %c0_i32_74 : i32
    scf.if %265 {
      %c7 = arith.constant 7 : index
      %c0_75 = arith.constant 0 : index
      %c0_76 = arith.constant 0 : index
      %266 = vector.load %arg1[%c7, %c0_75, %c0_76] : memref<8x8x128xf32, #tpu.memory_space<vmem>>, vector<1x8x128xf32>
      %267 = vector.shape_cast %266 : vector<1x8x128xf32> to vector<8x128xf32>
      %c7_77 = arith.constant 7 : index
      %c0_78 = arith.constant 0 : index
      %c0_79 = arith.constant 0 : index
      %268 = vector.load %arg2[%c7_77, %c0_78, %c0_79] : memref<8x8x128xf32, #tpu.memory_space<vmem>>, vector<1x8x128xf32>
      %269 = vector.shape_cast %268 : vector<1x8x128xf32> to vector<8x128xf32>
      %c0_80 = arith.constant 0 : index
      %c0_81 = arith.constant 0 : index
      %270 = vector.load %arg6[%c0_80, %c0_81] : memref<256x512xf32, #tpu.memory_space<vmem>>, vector<256x512xf32>
      %271 = vector.extract_strided_slice %270 {offsets = [0, 0], sizes = [128, 512], strides = [1, 1]} : vector<256x512xf32> to vector<128x512xf32>
      %cst_82 = arith.constant dense<0.000000e+00> : vector<8x512xf32>
      %272 = tpu.matmul %267, %271, %cst_82 {dimension_numbers = #tpu.dot_dimension_numbers<[1], [0], [0], [1], [0, 0, 1, 1], [], []>} : vector<8x128xf32>, vector<128x512xf32>, vector<8x512xf32> -> vector<8x512xf32>
      %273 = vector.extract_strided_slice %270 {offsets = [128, 0], sizes = [128, 512], strides = [1, 1]} : vector<256x512xf32> to vector<128x512xf32>
      %cst_83 = arith.constant dense<0.000000e+00> : vector<8x512xf32>
      %274 = tpu.matmul %269, %273, %cst_83 {dimension_numbers = #tpu.dot_dimension_numbers<[1], [0], [0], [1], [0, 0, 1, 1], [], []>} : vector<8x128xf32>, vector<128x512xf32>, vector<8x512xf32> -> vector<8x512xf32>
      %275 = arith.addf %272, %274 : vector<8x512xf32>
      %c0_84 = arith.constant 0 : index
      %c0_85 = arith.constant 0 : index
      %276 = vector.load %arg7[%c0_84, %c0_85] : memref<1x512xf32, #tpu.memory_space<vmem>>, vector<1x512xf32>
      %277 = vector.broadcast %276 : vector<1x512xf32> to vector<8x512xf32>
      %278 = arith.addf %275, %277 : vector<8x512xf32>
      %279 = vector.extract_strided_slice %278 {offsets = [0, 0], sizes = [8, 128], strides = [1, 1]} : vector<8x512xf32> to vector<8x128xf32>
      %280 = arith.negf %279 : vector<8x128xf32>
      %281 = math.exp %280 : vector<8x128xf32>
      %cst_86 = arith.constant 1.000000e+00 : f32
      %282 = vector.broadcast %cst_86 : f32 to vector<8x128xf32>
      %283 = arith.addf %282, %281 : vector<8x128xf32>
      %284 = arith.divf %282, %283 : vector<8x128xf32>
      %285 = vector.extract_strided_slice %278 {offsets = [0, 256], sizes = [8, 128], strides = [1, 1]} : vector<8x512xf32> to vector<8x128xf32>
      %286 = math.tanh %285 : vector<8x128xf32>
      %287 = vector.extract_strided_slice %278 {offsets = [0, 384], sizes = [8, 128], strides = [1, 1]} : vector<8x512xf32> to vector<8x128xf32>
      %288 = arith.negf %287 : vector<8x128xf32>
      %289 = math.exp %288 : vector<8x128xf32>
      %cst_87 = arith.constant 1.000000e+00 : f32
      %290 = vector.broadcast %cst_87 : f32 to vector<8x128xf32>
      %291 = arith.addf %290, %289 : vector<8x128xf32>
      %292 = arith.divf %290, %291 : vector<8x128xf32>
      %293 = arith.mulf %284, %286 : vector<8x128xf32>
      %294 = math.tanh %293 : vector<8x128xf32>
      %295 = arith.mulf %292, %294 : vector<8x128xf32>
      %c0_88 = arith.constant 0 : index
      %c0_89 = arith.constant 0 : index
      %296 = vector.load %arg8[%c0_88, %c0_89] : memref<256x128xf32, #tpu.memory_space<vmem>>, vector<256x128xf32>
      %297 = vector.extract_strided_slice %296 {offsets = [0, 0], sizes = [128, 128], strides = [1, 1]} : vector<256x128xf32> to vector<128x128xf32>
      %cst_90 = arith.constant dense<0.000000e+00> : vector<8x128xf32>
      %298 = tpu.matmul %260, %297, %cst_90 {dimension_numbers = #tpu.dot_dimension_numbers<[1], [0], [0], [1], [0, 0, 1, 1], [], []>} : vector<8x128xf32>, vector<128x128xf32>, vector<8x128xf32> -> vector<8x128xf32>
      %299 = vector.extract_strided_slice %296 {offsets = [128, 0], sizes = [128, 128], strides = [1, 1]} : vector<256x128xf32> to vector<128x128xf32>
      %cst_91 = arith.constant dense<0.000000e+00> : vector<8x128xf32>
      %300 = tpu.matmul %295, %299, %cst_91 {dimension_numbers = #tpu.dot_dimension_numbers<[1], [0], [0], [1], [0, 0, 1, 1], [], []>} : vector<8x128xf32>, vector<128x128xf32>, vector<8x128xf32> -> vector<8x128xf32>
      %301 = arith.addf %298, %300 : vector<8x128xf32>
      %c0_92 = arith.constant 0 : index
      %c0_93 = arith.constant 0 : index
      %302 = vector.load %arg9[%c0_92, %c0_93] : memref<1x128xf32, #tpu.memory_space<vmem>>, vector<1x128xf32>
      %303 = vector.broadcast %302 : vector<1x128xf32> to vector<8x128xf32>
      %304 = arith.addf %301, %303 : vector<8x128xf32>
      %cst_94 = arith.constant 0.000000e+00 : f32
      %305 = vector.broadcast %cst_94 : f32 to vector<8x128xf32>
      %306 = arith.maximumf %304, %305 : vector<8x128xf32>
      %c0_95 = arith.constant 0 : index
      %c0_96 = arith.constant 0 : index
      %307 = vector.load %arg10[%c0_95, %c0_96] : memref<128x256xf32, #tpu.memory_space<vmem>>, vector<128x256xf32>
      %cst_97 = arith.constant dense<0.000000e+00> : vector<8x256xf32>
      %308 = tpu.matmul %306, %307, %cst_97 {dimension_numbers = #tpu.dot_dimension_numbers<[1], [0], [0], [1], [0, 0, 1, 1], [], []>} : vector<8x128xf32>, vector<128x256xf32>, vector<8x256xf32> -> vector<8x256xf32>
      %c0_98 = arith.constant 0 : index
      %c0_99 = arith.constant 0 : index
      %309 = vector.load %arg11[%c0_98, %c0_99] : memref<1x256xf32, #tpu.memory_space<vmem>>, vector<1x256xf32>
      %310 = vector.broadcast %309 : vector<1x256xf32> to vector<8x256xf32>
      %311 = arith.addf %308, %310 : vector<8x256xf32>
      %c0_100 = arith.constant 0 : index
      %c0_101 = arith.constant 0 : index
      %312 = vector.load %arg12[%c0_100, %c0_101] : memref<8x256xf32, #tpu.memory_space<vmem>>, vector<8x256xf32>
      tpu.vector_store %arg12[%c0_100, %c0_101], %311 {strides = array<i32>} : memref<8x256xf32, #tpu.memory_space<vmem>>, vector<8x256xf32>,
    } else {
    }
    return
  }
  func.func @transform_0(%arg0: i32) -> (i32, i32, i32) {
    %c0_i32 = arith.constant 0 : i32
    %c0_i32_0 = arith.constant 0 : i32
    %c0_i32_1 = arith.constant 0 : i32
    return %arg0, %c0_i32, %c0_i32_0 : i32, i32, i32
  }
  func.func @transform_1(%arg0: i32) -> (i32, i32, i32) {
    %c0_i32 = arith.constant 0 : i32
    %c0_i32_0 = arith.constant 0 : i32
    %c0_i32_1 = arith.constant 0 : i32
    return %arg0, %c0_i32, %c0_i32_0 : i32, i32, i32
  }
  func.func @transform_2(%arg0: i32) -> (i32, i32) {
    %c0_i32 = arith.constant 0 : i32
    %c0_i32_0 = arith.constant 0 : i32
    %c0_i32_1 = arith.constant 0 : i32
    return %c0_i32, %c0_i32_0 : i32, i32
  }
  func.func @transform_3(%arg0: i32) -> (i32, i32) {
    %c0_i32 = arith.constant 0 : i32
    %c0_i32_0 = arith.constant 0 : i32
    %c0_i32_1 = arith.constant 0 : i32
    return %c0_i32, %c0_i32_0 : i32, i32
  }
  func.func @transform_4(%arg0: i32) -> (i32, i32) {
    %c0_i32 = arith.constant 0 : i32
    %c0_i32_0 = arith.constant 0 : i32
    %c0_i32_1 = arith.constant 0 : i32
    return %c0_i32, %c0_i32_0 : i32, i32
  }
  func.func @transform_5(%arg0: i32) -> (i32, i32) {
    %c0_i32 = arith.constant 0 : i32
    %c0_i32_0 = arith.constant 0 : i32
    %c0_i32_1 = arith.constant 0 : i32
    return %c0_i32, %c0_i32_0 : i32, i32
  }
  func.func @transform_6(%arg0: i32) -> (i32, i32) {
    %c0_i32 = arith.constant 0 : i32
    %c0_i32_0 = arith.constant 0 : i32
    %c0_i32_1 = arith.constant 0 : i32
    return %c0_i32, %c0_i32_0 : i32, i32
  }
  func.func @transform_7(%arg0: i32) -> (i32, i32) {
    %c0_i32 = arith.constant 0 : i32
    %c0_i32_0 = arith.constant 0 : i32
    %c0_i32_1 = arith.constant 0 : i32
    return %c0_i32, %c0_i32_0 : i32, i32
  }
  func.func @transform_8(%arg0: i32) -> (i32, i32) {
    %c0_i32 = arith.constant 0 : i32
    %c0_i32_0 = arith.constant 0 : i32
    %c0_i32_1 = arith.constant 0 : i32
    return %c0_i32, %c0_i32_0 : i32, i32
  }
  func.func @transform_9(%arg0: i32) -> (i32, i32) {
    %c0_i32 = arith.constant 0 : i32
    %c0_i32_0 = arith.constant 0 : i32
    %c0_i32_1 = arith.constant 0 : i32
    return %c0_i32, %c0_i32_0 : i32, i32
  }
  func.func @transform_10(%arg0: i32) -> (i32, i32) {
    %c0_i32 = arith.constant 0 : i32
    %c0_i32_0 = arith.constant 0 : i32
    %c0_i32_1 = arith.constant 0 : i32
    return %c0_i32, %c0_i32_0 : i32, i32
  }
  func.func @transform_11(%arg0: i32) -> (i32, i32) {
    %c0_i32 = arith.constant 0 : i32
    %c0_i32_0 = arith.constant 0 : i32
    %c0_i32_1 = arith.constant 0 : i32
    return %c0_i32, %c0_i32_0 : i32, i32
  }
}

</mosaic_0001>

<llo_original>
// kernel: lstm_encoding_forward.3
$region0: #{lstm_encoding_forward.3}
  #allocation0 [shape = 'u32[]', space=smem, size = 0x4, offset = 0x4, fixed_abs, tag = 'smem constant byte address 0x4 - core index']
  #allocation1 [shape = 'u32[144,128]{1,0:T(1,128)}', space=vmem, size = 0x12000, scoped, tag = 'internal scratch']
  #allocation2 [shape = 'f32[8,128]{1,0:T(8,128)}', space=vmem, size = 0x1000, scoped, tag = 'scratch operand']
  #allocation3 [shape = 'f32[8,128]{1,0:T(8,128)}', space=vmem, size = 0x1000, scoped, tag = 'scratch operand']
  #allocation4 [shape = 'f32[8,8,512]{2,1,0:T(8,128)}', space=vmem, size = 0x20000, scoped, tag = 'scratch operand']
  %s0 = inlined_call_operand.vmem [shape: f32[8,8,128], index: 0, kind: input, shape index: {}]
  %s1 = inlined_call_operand.vmem [shape: f32[8,8,128], index: 1, kind: input, shape index: {}]
  %s2 = inlined_call_operand.vmem [shape: f32[256,512], index: 2, kind: input, shape index: {}]
  %s3 = inlined_call_operand.vmem [shape: f32[128,512], index: 3, kind: input, shape index: {}]
  %s4 = inlined_call_operand.vmem [shape: f32[1,512], index: 4, kind: input, shape index: {}]
  %s5 = inlined_call_operand.vmem [shape: f32[256,512], index: 5, kind: input, shape index: {}]
  %s6 = inlined_call_operand.vmem [shape: f32[1,512], index: 6, kind: input, shape index: {}]
  %s7 = inlined_call_operand.vmem [shape: f32[256,128], index: 7, kind: input, shape index: {}]
  %s8 = inlined_call_operand.vmem [shape: f32[1,128], index: 8, kind: input, shape index: {}]
  %s9 = inlined_call_operand.vmem [shape: f32[128,256], index: 9, kind: input, shape index: {}]
  %s10 = inlined_call_operand.vmem [shape: f32[1,256], index: 10, kind: input, shape index: {}]
  %s11 = inlined_call_operand.vmem [shape: f32[8,256], index: 11, kind: output, shape index: {}]
  %s12 = sld [smem:[#allocation0]]
  $region62: #{lstm_encoding_forward.3} parent=0
    _
  %s14 = ssub.s32 1, %s12
  %s15 = scalar_select 0, %s14, %s12
  // Predicated region
  $region2: #{lstm_encoding_forward.3} parent=0 // pred_check
    _
  $region3: #{lstm_encoding_forward.3} parent=0 // pred_check_branch
    %17 = sbr.rel (0) target = $region5
  $region4: #{lstm_encoding_forward.3} parent=0 // pred_region
    _
  $region5: #{lstm_encoding_forward.3} parent=0 // pred_fallthru
    _
  // Predicated region
  $region6: #{lstm_encoding_forward.3} parent=0 // pred_check
    _
  $region7: #{lstm_encoding_forward.3} parent=0 // pred_check_branch
    %19 = sbr.rel (0) target = $region9
  $region8: #{lstm_encoding_forward.3} parent=0 // pred_region
    _
  $region9: #{lstm_encoding_forward.3} parent=0 // pred_fallthru
    _
  // Predicated region
  $region10: #{lstm_encoding_forward.3} parent=0 // pred_check
    _
  $region11: #{lstm_encoding_forward.3} parent=0 // pred_check_branch
    %21 = sbr.rel (0) target = $region13
  $region12: #{lstm_encoding_forward.3} parent=0 // pred_region
    _
  $region13: #{lstm_encoding_forward.3} parent=0 // pred_fallthru
    _
  // Predicated region
  $region14: #{lstm_encoding_forward.3} parent=0 // pred_check
    _
  $region15: #{lstm_encoding_forward.3} parent=0 // pred_check_branch
    %23 = sbr.rel (0) target = $region17
  $region16: #{lstm_encoding_forward.3} parent=0 // pred_region
    _
  $region17: #{lstm_encoding_forward.3} parent=0 // pred_fallthru
    _
  // Predicated region
  $region18: #{lstm_encoding_forward.3} parent=0 // pred_check
    _
  $region19: #{lstm_encoding_forward.3} parent=0 // pred_check_branch
    %25 = sbr.rel (0) target = $region21
  $region20: #{lstm_encoding_forward.3} parent=0 // pred_region
    _
  $region21: #{lstm_encoding_forward.3} parent=0 // pred_fallthru
    _
  // Predicated region
  $region22: #{lstm_encoding_forward.3} parent=0 // pred_check
    _
  $region23: #{lstm_encoding_forward.3} parent=0 // pred_check_branch
    %27 = sbr.rel (0) target = $region25
  $region24: #{lstm_encoding_forward.3} parent=0 // pred_region
    _
  $region25: #{lstm_encoding_forward.3} parent=0 // pred_fallthru
    _
  // Predicated region
  $region26: #{lstm_encoding_forward.3} parent=0 // pred_check
    _
  $region27: #{lstm_encoding_forward.3} parent=0 // pred_check_branch
    %29 = sbr.rel (0) target = $region29
  $region28: #{lstm_encoding_forward.3} parent=0 // pred_region
    _
  $region29: #{lstm_encoding_forward.3} parent=0 // pred_fallthru
    _
  // Predicated region
  $region30: #{lstm_encoding_forward.3} parent=0 // pred_check
    _
  $region31: #{lstm_encoding_forward.3} parent=0 // pred_check_branch
    %31 = sbr.rel (0) target = $region33
  $region32: #{lstm_encoding_forward.3} parent=0 // pred_region
    _
  $region33: #{lstm_encoding_forward.3} parent=0 // pred_fallthru
    _
  // Predicated region
  $region34: #{lstm_encoding_forward.3} parent=0 // pred_check
    _
  $region35: #{lstm_encoding_forward.3} parent=0 // pred_check_branch
    %33 = sbr.rel (0) target = $region37
  $region36: #{lstm_encoding_forward.3} parent=0 // pred_region
    _
  $region37: #{lstm_encoding_forward.3} parent=0 // pred_fallthru
    _
  // Predicated region
  $region38: #{lstm_encoding_forward.3} parent=0 // pred_check
    _
  $region39: #{lstm_encoding_forward.3} parent=0 // pred_check_branch
    %35 = sbr.rel (0) target = $region41
  $region40: #{lstm_encoding_forward.3} parent=0 // pred_region
    _
  $region41: #{lstm_encoding_forward.3} parent=0 // pred_fallthru
    _
  // Predicated region
  $region42: #{lstm_encoding_forward.3} parent=0 // pred_check
    _
  $region43: #{lstm_encoding_forward.3} parent=0 // pred_check_branch
    %37 = sbr.rel (0) target = $region45
  $region44: #{lstm_encoding_forward.3} parent=0 // pred_region
    _
  $region45: #{lstm_encoding_forward.3} parent=0 // pred_fallthru
    _
  %p38 = scmp.eq.s32.totalorder 0, 0
  // Predicated region
  $region46: #{lstm_encoding_forward.3} parent=0 // pred_check
    %p39 = pneg %p38
  $region47: #{lstm_encoding_forward.3} parent=0 // pred_check_branch
    %41 = sbr.rel (%p39) target = $region49
  $region48: #{lstm_encoding_forward.3} parent=0 // pred_region
    %42 = vst [vmem:[#allocation2] sm:$0xff] 0.0
    %43 = vst [vmem:[#allocation3] sm:$0xff] 0.0
  $region49: #{lstm_encoding_forward.3} parent=0 // pred_fallthru
    _
  %v44 = vld [vmem:[%s0] sm:$0xff]
  %v45 = vld [vmem:[%s0 + $0x8] sm:$0xff]
  %v46 = vld [vmem:[%s0 + $0x10] sm:$0xff]
  %v47 = vld [vmem:[%s0 + $0x18] sm:$0xff]
  %v48 = vld [vmem:[%s0 + $0x20] sm:$0xff]
  %v49 = vld [vmem:[%s0 + $0x28] sm:$0xff]
  %v50 = vld [vmem:[%s0 + $0x30] sm:$0xff]
  %v51 = vld [vmem:[%s0 + $0x38] sm:$0xff]
  %v52 = vld [vmem:[%s1] sm:$0xff]
  %v53 = vld [vmem:[%s1 + $0x8] sm:$0xff]
  %v54 = vld [vmem:[%s1 + $0x10] sm:$0xff]
  %v55 = vld [vmem:[%s1 + $0x18] sm:$0xff]
  %v56 = vld [vmem:[%s1 + $0x20] sm:$0xff]
  %v57 = vld [vmem:[%s1 + $0x28] sm:$0xff]
  %v58 = vld [vmem:[%s1 + $0x30] sm:$0xff]
  %v59 = vld [vmem:[%s1 + $0x38] sm:$0xff]
  %v60 = vld [vmem:[%s2] sm:$0xff]
  %v61 = vld [vmem:[%s2 + $0x8] sm:$0xff]
  %v62 = vld [vmem:[%s2 + $0x10] sm:$0xff]
  %v63 = vld [vmem:[%s2 + $0x18] sm:$0xff]
  %v64 = vld [vmem:[%s2 + $0x20] sm:$0xff]
  %v65 = vld [vmem:[%s2 + $0x28] sm:$0xff]
  %v66 = vld [vmem:[%s2 + $0x30] sm:$0xff]
  %v67 = vld [vmem:[%s2 + $0x38] sm:$0xff]
  %v68 = vld [vmem:[%s2 + $0x40] sm:$0xff]
  %v69 = vld [vmem:[%s2 + $0x48] sm:$0xff]
  %v70 = vld [vmem:[%s2 + $0x50] sm:$0xff]
  %v71 = vld [vmem:[%s2 + $0x58] sm:$0xff]
  %v72 = vld [vmem:[%s2 + $0x60] sm:$0xff]
  %v73 = vld [vmem:[%s2 + $0x68] sm:$0xff]
  %v74 = vld [vmem:[%s2 + $0x70] sm:$0xff]
  %v75 = vld [vmem:[%s2 + $0x78] sm:$0xff]
  %v76 = vld [vmem:[%s2 + $0x80] sm:$0xff]
  %v77 = vld [vmem:[%s2 + $0x88] sm:$0xff]
  %v78 = vld [vmem:[%s2 + $0x90] sm:$0xff]
  %v79 = vld [vmem:[%s2 + $0x98] sm:$0xff]
  %v80 = vld [vmem:[%s2 + $0xa0] sm:$0xff]
  %v81 = vld [vmem:[%s2 + $0xa8] sm:$0xff]
  %v82 = vld [vmem:[%s2 + $0xb0] sm:$0xff]
  %v83 = vld [vmem:[%s2 + $0xb8] sm:$0xff]
  %v84 = vld [vmem:[%s2 + $0xc0] sm:$0xff]
  %v85 = vld [vmem:[%s2 + $0xc8] sm:$0xff]
  %v86 = vld [vmem:[%s2 + $0xd0] sm:$0xff]
  %v87 = vld [vmem:[%s2 + $0xd8] sm:$0xff]
  %v88 = vld [vmem:[%s2 + $0xe0] sm:$0xff]
  %v89 = vld [vmem:[%s2 + $0xe8] sm:$0xff]
  %v90 = vld [vmem:[%s2 + $0xf0] sm:$0xff]
  %v91 = vld [vmem:[%s2 + $0xf8] sm:$0xff]
  %v92 = vld [vmem:[%s2 + $0x100] sm:$0xff]
  %v93 = vld [vmem:[%s2 + $0x108] sm:$0xff]
  %v94 = vld [vmem:[%s2 + $0x110] sm:$0xff]
  %v95 = vld [vmem:[%s2 + $0x118] sm:$0xff]
  %v96 = vld [vmem:[%s2 + $0x120] sm:$0xff]
  %v97 = vld [vmem:[%s2 + $0x128] sm:$0xff]
  %v98 = vld [vmem:[%s2 + $0x130] sm:$0xff]
  %v99 = vld [vmem:[%s2 + $0x138] sm:$0xff]
  %v100 = vld [vmem:[%s2 + $0x140] sm:$0xff]
  %v101 = vld [vmem:[%s2 + $0x148] sm:$0xff]
  %v102 = vld [vmem:[%s2 + $0x150] sm:$0xff]
  %v103 = vld [vmem:[%s2 + $0x158] sm:$0xff]
  %v104 = vld [vmem:[%s2 + $0x160] sm:$0xff]
  %v105 = vld [vmem:[%s2 + $0x168] sm:$0xff]
  %v106 = vld [vmem:[%s2 + $0x170] sm:$0xff]
  %v107 = vld [vmem:[%s2 + $0x178] sm:$0xff]
  %v108 = vld [vmem:[%s2 + $0x180] sm:$0xff]
  %v109 = vld [vmem:[%s2 + $0x188] sm:$0xff]
  %v110 = vld [vmem:[%s2 + $0x190] sm:$0xff]
  %v111 = vld [vmem:[%s2 + $0x198] sm:$0xff]
  %v112 = vld [vmem:[%s2 + $0x1a0] sm:$0xff]
  %v113 = vld [vmem:[%s2 + $0x1a8] sm:$0xff]
  %v114 = vld [vmem:[%s2 + $0x1b0] sm:$0xff]
  %v115 = vld [vmem:[%s2 + $0x1b8] sm:$0xff]
  %v116 = vld [vmem:[%s2 + $0x1c0] sm:$0xff]
  %v117 = vld [vmem:[%s2 + $0x1c8] sm:$0xff]
  %v118 = vld [vmem:[%s2 + $0x1d0] sm:$0xff]
  %v119 = vld [vmem:[%s2 + $0x1d8] sm:$0xff]
  %v120 = vld [vmem:[%s2 + $0x1e0] sm:$0xff]
  %v121 = vld [vmem:[%s2 + $0x1e8] sm:$0xff]
  %v122 = vld [vmem:[%s2 + $0x1f0] sm:$0xff]
  %v123 = vld [vmem:[%s2 + $0x1f8] sm:$0xff]
  %v124 = vld [vmem:[%s2 + $0x200] sm:$0xff]
  %v125 = vld [vmem:[%s2 + $0x208] sm:$0xff]
  %v126 = vld [vmem:[%s2 + $0x210] sm:$0xff]
  %v127 = vld [vmem:[%s2 + $0x218] sm:$0xff]
  %v128 = vld [vmem:[%s2 + $0x220] sm:$0xff]
  %v129 = vld [vmem:[%s2 + $0x228] sm:$0xff]
  %v130 = vld [vmem:[%s2 + $0x230] sm:$0xff]
  %v131 = vld [vmem:[%s2 + $0x238] sm:$0xff]
  %v132 = vld [vmem:[%s2 + $0x240] sm:$0xff]
  %v133 = vld [vmem:[%s2 + $0x248] sm:$0xff]
  %v134 = vld [vmem:[%s2 + $0x250] sm:$0xff]
  %v135 = vld [vmem:[%s2 + $0x258] sm:$0xff]
  %v136 = vld [vmem:[%s2 + $0x260] sm:$0xff]
  %v137 = vld [vmem:[%s2 + $0x268] sm:$0xff]
  %v138 = vld [vmem:[%s2 + $0x270] sm:$0xff]
  %v139 = vld [vmem:[%s2 + $0x278] sm:$0xff]
  %v140 = vld [vmem:[%s2 + $0x280] sm:$0xff]
  %v141 = vld [vmem:[%s2 + $0x288] sm:$0xff]
  %v142 = vld [vmem:[%s2 + $0x290] sm:$0xff]
  %v143 = vld [vmem:[%s2 + $0x298] sm:$0xff]
  %v144 = vld [vmem:[%s2 + $0x2a0] sm:$0xff]
  %v145 = vld [vmem:[%s2 + $0x2a8] sm:$0xff]
  %v146 = vld [vmem:[%s2 + $0x2b0] sm:$0xff]
  %v147 = vld [vmem:[%s2 + $0x2b8] sm:$0xff]
  %v148 = vld [vmem:[%s2 + $0x2c0] sm:$0xff]
  %v149 = vld [vmem:[%s2 + $0x2c8] sm:$0xff]
  %v150 = vld [vmem:[%s2 + $0x2d0] sm:$0xff]
  %v151 = vld [vmem:[%s2 + $0x2d8] sm:$0xff]
  %v152 = vld [vmem:[%s2 + $0x2e0] sm:$0xff]
  %v153 = vld [vmem:[%s2 + $0x2e8] sm:$0xff]
  %v154 = vld [vmem:[%s2 + $0x2f0] sm:$0xff]
  %v155 = vld [vmem:[%s2 + $0x2f8] sm:$0xff]
  %v156 = vld [vmem:[%s2 + $0x300] sm:$0xff]
  %v157 = vld [vmem:[%s2 + $0x308] sm:$0xff]
  %v158 = vld [vmem:[%s2 + $0x310] sm:$0xff]
  %v159 = vld [vmem:[%s2 + $0x318] sm:$0xff]
  %v160 = vld [vmem:[%s2 + $0x320] sm:$0xff]
  %v161 = vld [vmem:[%s2 + $0x328] sm:$0xff]
  %v162 = vld [vmem:[%s2 + $0x330] sm:$0xff]
  %v163 = vld [vmem:[%s2 + $0x338] sm:$0xff]
  %v164 = vld [vmem:[%s2 + $0x340] sm:$0xff]
  %v165 = vld [vmem:[%s2 + $0x348] sm:$0xff]
  %v166 = vld [vmem:[%s2 + $0x350] sm:$0xff]
  %v167 = vld [vmem:[%s2 + $0x358] sm:$0xff]
  %v168 = vld [vmem:[%s2 + $0x360] sm:$0xff]
  %v169 = vld [vmem:[%s2 + $0x368] sm:$0xff]
  %v170 = vld [vmem:[%s2 + $0x370] sm:$0xff]
  %v171 = vld [vmem:[%s2 + $0x378] sm:$0xff]
  %v172 = vld [vmem:[%s2 + $0x380] sm:$0xff]
  %v173 = vld [vmem:[%s2 + $0x388] sm:$0xff]
  %v174 = vld [vmem:[%s2 + $0x390] sm:$0xff]
  %v175 = vld [vmem:[%s2 + $0x398] sm:$0xff]
  %v176 = vld [vmem:[%s2 + $0x3a0] sm:$0xff]
  %v177 = vld [vmem:[%s2 + $0x3a8] sm:$0xff]
  %v178 = vld [vmem:[%s2 + $0x3b0] sm:$0xff]
  %v179 = vld [vmem:[%s2 + $0x3b8] sm:$0xff]
  %v180 = vld [vmem:[%s2 + $0x3c0] sm:$0xff]
  %v181 = vld [vmem:[%s2 + $0x3c8] sm:$0xff]
  %v182 = vld [vmem:[%s2 + $0x3d0] sm:$0xff]
  %v183 = vld [vmem:[%s2 + $0x3d8] sm:$0xff]
  %v184 = vld [vmem:[%s2 + $0x3e0] sm:$0xff]
  %v185 = vld [vmem:[%s2 + $0x3e8] sm:$0xff]
  %v186 = vld [vmem:[%s2 + $0x3f0] sm:$0xff]
  %v187 = vld [vmem:[%s2 + $0x3f8] sm:$0xff]
  %188 = vmatprep.subr.mxu0 %v185
  %189 = vmatpush1.msra.mxu0 %v184
  %190 = vmatprep.subr.mxu0 %v181
  %191 = vmatpush1.msra.mxu0 %v180
  %192 = vmatprep.subr.mxu0 %v177
  %193 = vmatpush1.msra.mxu0 %v176
  %194 = vmatprep.subr.mxu0 %v173
  %195 = vmatpush1.msra.mxu0 %v172
  %196 = vmatprep.subr.mxu0 %v169
  %197 = vmatpush1.msra.mxu0 %v168
  %198 = vmatprep.subr.mxu0 %v165
  %199 = vmatpush1.msra.mxu0 %v164
  %200 = vmatprep.subr.mxu0 %v161
  %201 = vmatpush1.msra.mxu0 %v160
  %202 = vmatprep.subr.mxu0 %v157
  %203 = vmatpush1.msra.mxu0 %v156
  %204 = vmatprep.subr.mxu0 %v153
  %205 = vmatpush1.msra.mxu0 %v152
  %206 = vmatprep.subr.mxu0 %v149
  %207 = vmatpush1.msra.mxu0 %v148
  %208 = vmatprep.subr.mxu0 %v145
  %209 = vmatpush1.msra.mxu0 %v144
  %210 = vmatprep.subr.mxu0 %v141
  %211 = vmatpush1.msra.mxu0 %v140
  %212 = vmatprep.subr.mxu0 %v137
  %213 = vmatpush1.msra.mxu0 %v136
  %214 = vmatprep.subr.mxu0 %v133
  %215 = vmatpush1.msra.mxu0 %v132
  %216 = vmatprep.subr.mxu0 %v129
  %217 = vmatpush1.msra.mxu0 %v128
  %218 = vmatprep.subr.mxu0 %v125
  %219 = vmatpush1.msra.mxu0 %v124
  %220 = vmatprep.subr.mxu0 0.0
  %221 = vmatpush2.msra.mxu0 0.0
  %222 = vmatprep.subr.mxu0 0.0
  %223 = vmatpush2.msra.mxu0 0.0
  %224 = vmatprep.subr.mxu0 0.0
  %225 = vmatpush2.msra.mxu0 0.0
  %226 = vmatprep.subr.mxu0 0.0
  %227 = vmatpush2.msra.mxu0 0.0
  %228 = vmatprep.subr.mxu0 0.0
  %229 = vmatpush2.msra.mxu0 0.0
  %230 = vmatprep.subr.mxu0 0.0
  %231 = vmatpush2.msra.mxu0 0.0
  %232 = vmatprep.subr.mxu0 0.0
  %233 = vmatpush2.msra.mxu0 0.0
  %234 = vmatprep.subr.mxu0 0.0
  %235 = vmatpush2.msra.mxu0 0.0
  %236 = vmatprep.subr.mxu0 0.0
  %237 = vmatpush2.msra.mxu0 0.0
  %238 = vmatprep.subr.mxu0 0.0
  %239 = vmatpush2.msra.mxu0 0.0
  %240 = vmatprep.subr.mxu0 0.0
  %241 = vmatpush2.msra.mxu0 0.0
  %242 = vmatprep.subr.mxu0 0.0
  %243 = vmatpush2.msra.mxu0 0.0
  %244 = vmatprep.subr.mxu0 0.0
  %245 = vmatpush2.msra.mxu0 0.0
  %246 = vmatprep.subr.mxu0 0.0
  %247 = vmatpush2.msra.mxu0 0.0
  %248 = vmatprep.subr.mxu0 0.0
  %249 = vmatpush2.msra.mxu0 0.0
  %250 = vmatprep.subr.mxu0 0.0
  %251 = vmatpush2.msra.mxu0 0.0
  %252 = vmatprep.mubr.f32.mxu0 0.0
  %253 = vmatmul.mubr.f32.gmra.mxu0 %v52
  %v254 = vpop.f32.mrf.mxu0
  %v255 = vadd.f32 0.0, %v254
  %v256 = vpop.f32.mrf.mxu0
  %v257 = vadd.f32 0.0, %v256
  %258 = vmatprep.mubr.f32.mxu0 0.0
  %259 = vmatmul.mubr.f32.gmra.mxu0 %v53
  %v260 = vpop.f32.mrf.mxu0
  %v261 = vadd.f32 0.0, %v260
  %v262 = vpop.f32.mrf.mxu0
  %v263 = vadd.f32 0.0, %v262
  %264 = vmatprep.mubr.f32.mxu0 0.0
  %265 = vmatmul.mubr.f32.gmra.mxu0 %v54
  %v266 = vpop.f32.mrf.mxu0
  %v267 = vadd.f32 0.0, %v266
  %v268 = vpop.f32.mrf.mxu0
  %v269 = vadd.f32 0.0, %v268
  %270 = vmatprep.mubr.f32.mxu0 0.0
  %271 = vmatmul.mubr.f32.gmra.mxu0 %v55
  %v272 = vpop.f32.mrf.mxu0
  %v273 = vadd.f32 0.0, %v272
  %v274 = vpop.f32.mrf.mxu0
  %v275 = vadd.f32 0.0, %v274
  %276 = vmatprep.mubr.f32.mxu0 0.0
  %277 = vmatmul.mubr.f32.gmra.mxu0 %v56
  %v278 = vpop.f32.mrf.mxu0
  %v279 = vadd.f32 0.0, %v278
  %v280 = vpop.f32.mrf.mxu0
  %v281 = vadd.f32 0.0, %v280
  %282 = vmatprep.mubr.f32.mxu0 0.0
  %283 = vmatmul.mubr.f32.gmra.mxu0 %v57
  %v284 = vpop.f32.mrf.mxu0
  %v285 = vadd.f32 0.0, %v284
  %v286 = vpop.f32.mrf.mxu0
  %v287 = vadd.f32 0.0, %v286
  %288 = vmatprep.mubr.f32.mxu0 0.0
  %289 = vmatmul.mubr.f32.gmra.mxu0 %v58
  %v290 = vpop.f32.mrf.mxu0
  %v291 = vadd.f32 0.0, %v290
  %v292 = vpop.f32.mrf.mxu0
  %v293 = vadd.f32 0.0, %v292
  %294 = vmatprep.mubr.f32.mxu0 0.0
  %295 = vmatmul.mubr.f32.gmra.mxu0 %v59
  %v296 = vpop.f32.mrf.mxu0
  %v297 = vadd.f32 0.0, %v296
  %v298 = vpop.f32.mrf.mxu0
  %v299 = vadd.f32 0.0, %v298
  %300 = vdwg.mxu0
  %301 = vmatprep.subr.mxu0 %v187
  %302 = vmatpush1.msra.mxu0 %v186
  %303 = vmatprep.subr.mxu0 %v183
  %304 = vmatpush1.msra.mxu0 %v182
  %305 = vmatprep.subr.mxu0 %v179
  %306 = vmatpush1.msra.mxu0 %v178
  %307 = vmatprep.subr.mxu0 %v175
  %308 = vmatpush1.msra.mxu0 %v174
  %309 = vmatprep.subr.mxu0 %v171
  %310 = vmatpush1.msra.mxu0 %v170
  %311 = vmatprep.subr.mxu0 %v167
  %312 = vmatpush1.msra.mxu0 %v166
  %313 = vmatprep.subr.mxu0 %v163
  %314 = vmatpush1.msra.mxu0 %v162
  %315 = vmatprep.subr.mxu0 %v159
  %316 = vmatpush1.msra.mxu0 %v158
  %317 = vmatprep.subr.mxu0 %v155
  %318 = vmatpush1.msra.mxu0 %v154
  %319 = vmatprep.subr.mxu0 %v151
  %320 = vmatpush1.msra.mxu0 %v150
  %321 = vmatprep.subr.mxu0 %v147
  %322 = vmatpush1.msra.mxu0 %v146
  %323 = vmatprep.subr.mxu0 %v143
  %324 = vmatpush1.msra.mxu0 %v142
  %325 = vmatprep.subr.mxu0 %v139
  %326 = vmatpush1.msra.mxu0 %v138
  %327 = vmatprep.subr.mxu0 %v135
  %328 = vmatpush1.msra.mxu0 %v134
  %329 = vmatprep.subr.mxu0 %v131
  %330 = vmatpush1.msra.mxu0 %v130
  %331 = vmatprep.subr.mxu0 %v127
  %332 = vmatpush1.msra.mxu0 %v126
  %333 = vmatprep.subr.mxu0 0.0
  %334 = vmatpush2.msra.mxu0 0.0
  %335 = vmatprep.subr.mxu0 0.0
  %336 = vmatpush2.msra.mxu0 0.0
  %337 = vmatprep.subr.mxu0 0.0
  %338 = vmatpush2.msra.mxu0 0.0
  %339 = vmatprep.subr.mxu0 0.0
  %340 = vmatpush2.msra.mxu0 0.0
  %341 = vmatprep.subr.mxu0 0.0
  %342 = vmatpush2.msra.mxu0 0.0
  %343 = vmatprep.subr.mxu0 0.0
  %344 = vmatpush2.msra.mxu0 0.0
  %345 = vmatprep.subr.mxu0 0.0
  %346 = vmatpush2.msra.mxu0 0.0
  %347 = vmatprep.subr.mxu0 0.0
  %348 = vmatpush2.msra.mxu0 0.0
  %349 = vmatprep.subr.mxu0 0.0
  %350 = vmatpush2.msra.mxu0 0.0
  %351 = vmatprep.subr.mxu0 0.0
  %352 = vmatpush2.msra.mxu0 0.0
  %353 = vmatprep.subr.mxu0 0.0
  %354 = vmatpush2.msra.mxu0 0.0
  %355 = vmatprep.subr.mxu0 0.0
  %356 = vmatpush2.msra.mxu0 0.0
  %357 = vmatprep.subr.mxu0 0.0
  %358 = vmatpush2.msra.mxu0 0.0
  %359 = vmatprep.subr.mxu0 0.0
  %360 = vmatpush2.msra.mxu0 0.0
  %361 = vmatprep.subr.mxu0 0.0
  %362 = vmatpush2.msra.mxu0 0.0
  %363 = vmatprep.subr.mxu0 0.0
  %364 = vmatpush2.msra.mxu0 0.0
  %365 = vmatprep.mubr.f32.mxu0 0.0
  %366 = vmatmul.mubr.f32.gmra.mxu0 %v52
  %v367 = vpop.f32.mrf.mxu0
  %v368 = vadd.f32 0.0, %v367
  %v369 = vpop.f32.mrf.mxu0
  %v370 = vadd.f32 0.0, %v369
  %371 = vmatprep.mubr.f32.mxu0 0.0
  %372 = vmatmul.mubr.f32.gmra.mxu0 %v53
  %v373 = vpop.f32.mrf.mxu0
  %v374 = vadd.f32 0.0, %v373
  %v375 = vpop.f32.mrf.mxu0
  %v376 = vadd.f32 0.0, %v375
  %377 = vmatprep.mubr.f32.mxu0 0.0
  %378 = vmatmul.mubr.f32.gmra.mxu0 %v54
  %v379 = vpop.f32.mrf.mxu0
  %v380 = vadd.f32 0.0, %v379
  %v381 = vpop.f32.mrf.mxu0
  %v382 = vadd.f32 0.0, %v381
  %383 = vmatprep.mubr.f32.mxu0 0.0
  %384 = vmatmul.mubr.f32.gmra.mxu0 %v55
  %v385 = vpop.f32.mrf.mxu0
  %v386 = vadd.f32 0.0, %v385
  %v387 = vpop.f32.mrf.mxu0
  %v388 = vadd.f32 0.0, %v387
  %389 = vmatprep.mubr.f32.mxu0 0.0
  %390 = vmatmul.mubr.f32.gmra.mxu0 %v56
  %v391 = vpop.f32.mrf.mxu0
  %v392 = vadd.f32 0.0, %v391
  %v393 = vpop.f32.mrf.mxu0
  %v394 = vadd.f32 0.0, %v393
  %395 = vmatprep.mubr.f32.mxu0 0.0
  %396 = vmatmul.mubr.f32.gmra.mxu0 %v57
  %v397 = vpop.f32.mrf.mxu0
  %v398 = vadd.f32 0.0, %v397
  %v399 = vpop.f32.mrf.mxu0
  %v400 = vadd.f32 0.0, %v399
  %401 = vmatprep.mubr.f32.mxu0 0.0
  %402 = vmatmul.mubr.f32.gmra.mxu0 %v58
  %v403 = vpop.f32.mrf.mxu0
  %v404 = vadd.f32 0.0, %v403
  %v405 = vpop.f32.mrf.mxu0
  %v406 = vadd.f32 0.0, %v405
  %407 = vmatprep.mubr.f32.mxu0 0.0
  %408 = vmatmul.mubr.f32.gmra.mxu0 %v59
  %v409 = vpop.f32.mrf.mxu0
  %v410 = vadd.f32 0.0, %v409
  %v411 = vpop.f32.mrf.mxu0
  %v412 = vadd.f32 0.0, %v411
  %413 = vdwg.mxu0
  %414 = vmatprep.subr.mxu0 %v121
  %415 = vmatpush1.msra.mxu0 %v120
  %416 = vmatprep.subr.mxu0 %v117
  %417 = vmatpush1.msra.mxu0 %v116
  %418 = vmatprep.subr.mxu0 %v113
  %419 = vmatpush1.msra.mxu0 %v112
  %420 = vmatprep.subr.mxu0 %v109
  %421 = vmatpush1.msra.mxu0 %v108
  %422 = vmatprep.subr.mxu0 %v105
  %423 = vmatpush1.msra.mxu0 %v104
  %424 = vmatprep.subr.mxu0 %v101
  %425 = vmatpush1.msra.mxu0 %v100
  %426 = vmatprep.subr.mxu0 %v97
  %427 = vmatpush1.msra.mxu0 %v96
  %428 = vmatprep.subr.mxu0 %v93
  %429 = vmatpush1.msra.mxu0 %v92
  %430 = vmatprep.subr.mxu0 %v89
  %431 = vmatpush1.msra.mxu0 %v88
  %432 = vmatprep.subr.mxu0 %v85
  %433 = vmatpush1.msra.mxu0 %v84
  %434 = vmatprep.subr.mxu0 %v81
  %435 = vmatpush1.msra.mxu0 %v80
  %436 = vmatprep.subr.mxu0 %v77
  %437 = vmatpush1.msra.mxu0 %v76
  %438 = vmatprep.subr.mxu0 %v73
  %439 = vmatpush1.msra.mxu0 %v72
  %440 = vmatprep.subr.mxu0 %v69
  %441 = vmatpush1.msra.mxu0 %v68
  %442 = vmatprep.subr.mxu0 %v65
  %443 = vmatpush1.msra.mxu0 %v64
  %444 = vmatprep.subr.mxu0 %v61
  %445 = vmatpush1.msra.mxu0 %v60
  %446 = vmatprep.subr.mxu0 0.0
  %447 = vmatpush2.msra.mxu0 0.0
  %448 = vmatprep.subr.mxu0 0.0
  %449 = vmatpush2.msra.mxu0 0.0
  %450 = vmatprep.subr.mxu0 0.0
  %451 = vmatpush2.msra.mxu0 0.0
  %452 = vmatprep.subr.mxu0 0.0
  %453 = vmatpush2.msra.mxu0 0.0
  %454 = vmatprep.subr.mxu0 0.0
  %455 = vmatpush2.msra.mxu0 0.0
  %456 = vmatprep.subr.mxu0 0.0
  %457 = vmatpush2.msra.mxu0 0.0
  %458 = vmatprep.subr.mxu0 0.0
  %459 = vmatpush2.msra.mxu0 0.0
  %460 = vmatprep.subr.mxu0 0.0
  %461 = vmatpush2.msra.mxu0 0.0
  %462 = vmatprep.subr.mxu0 0.0
  %463 = vmatpush2.msra.mxu0 0.0
  %464 = vmatprep.subr.mxu0 0.0
  %465 = vmatpush2.msra.mxu0 0.0
  %466 = vmatprep.subr.mxu0 0.0
  %467 = vmatpush2.msra.mxu0 0.0
  %468 = vmatprep.subr.mxu0 0.0
  %469 = vmatpush2.msra.mxu0 0.0
  %470 = vmatprep.subr.mxu0 0.0
  %471 = vmatpush2.msra.mxu0 0.0
  %472 = vmatprep.subr.mxu0 0.0
  %473 = vmatpush2.msra.mxu0 0.0
  %474 = vmatprep.subr.mxu0 0.0
  %475 = vmatpush2.msra.mxu0 0.0
  %476 = vmatprep.subr.mxu0 0.0
  %477 = vmatpush2.msra.mxu0 0.0
  %478 = vmatprep.mubr.f32.mxu0 0.0
  %479 = vmatmul.mubr.f32.gmra.mxu0 %v44
  %v480 = vpop.f32.mrf.mxu0
  %v481 = vadd.f32 %v255, %v480
  %v482 = vpop.f32.mrf.mxu0
  %v483 = vadd.f32 %v257, %v482
  %484 = vmatprep.mubr.f32.mxu0 0.0
  %485 = vmatmul.mubr.f32.gmra.mxu0 %v45
  %v486 = vpop.f32.mrf.mxu0
  %v487 = vadd.f32 %v261, %v486
  %v488 = vpop.f32.mrf.mxu0
  %v489 = vadd.f32 %v263, %v488
  %490 = vmatprep.mubr.f32.mxu0 0.0
  %491 = vmatmul.mubr.f32.gmra.mxu0 %v46
  %v492 = vpop.f32.mrf.mxu0
  %v493 = vadd.f32 %v267, %v492
  %v494 = vpop.f32.mrf.mxu0
  %v495 = vadd.f32 %v269, %v494
  %496 = vmatprep.mubr.f32.mxu0 0.0
  %497 = vmatmul.mubr.f32.gmra.mxu0 %v47
  %v498 = vpop.f32.mrf.mxu0
  %v499 = vadd.f32 %v273, %v498
  %v500 = vpop.f32.mrf.mxu0
  %v501 = vadd.f32 %v275, %v500
  %502 = vmatprep.mubr.f32.mxu0 0.0
  %503 = vmatmul.mubr.f32.gmra.mxu0 %v48
  %v504 = vpop.f32.mrf.mxu0
  %v505 = vadd.f32 %v279, %v504
  %v506 = vpop.f32.mrf.mxu0
  %v507 = vadd.f32 %v281, %v506
  %508 = vmatprep.mubr.f32.mxu0 0.0
  %509 = vmatmul.mubr.f32.gmra.mxu0 %v49
  %v510 = vpop.f32.mrf.mxu0
  %v511 = vadd.f32 %v285, %v510
  %v512 = vpop.f32.mrf.mxu0
  %v513 = vadd.f32 %v287, %v512
  %514 = vmatprep.mubr.f32.mxu0 0.0
  %515 = vmatmul.mubr.f32.gmra.mxu0 %v50
  %v516 = vpop.f32.mrf.mxu0
  %v517 = vadd.f32 %v291, %v516
  %v518 = vpop.f32.mrf.mxu0
  %v519 = vadd.f32 %v293, %v518
  %520 = vmatprep.mubr.f32.mxu0 0.0
  %521 = vmatmul.mubr.f32.gmra.mxu0 %v51
  %v522 = vpop.f32.mrf.mxu0
  %v523 = vadd.f32 %v297, %v522
  %v524 = vpop.f32.mrf.mxu0
  %v525 = vadd.f32 %v299, %v524
  %526 = vdwg.mxu0
  %527 = vmatprep.subr.mxu0 %v123
  %528 = vmatpush1.msra.mxu0 %v122
  %529 = vmatprep.subr.mxu0 %v119
  %530 = vmatpush1.msra.mxu0 %v118
  %531 = vmatprep.subr.mxu0 %v115
  %532 = vmatpush1.msra.mxu0 %v114
  %533 = vmatprep.subr.mxu0 %v111
  %534 = vmatpush1.msra.mxu0 %v110
  %535 = vmatprep.subr.mxu0 %v107
  %536 = vmatpush1.msra.mxu0 %v106
  %537 = vmatprep.subr.mxu0 %v103
  %538 = vmatpush1.msra.mxu0 %v102
  %539 = vmatprep.subr.mxu0 %v99
  %540 = vmatpush1.msra.mxu0 %v98
  %541 = vmatprep.subr.mxu0 %v95
  %542 = vmatpush1.msra.mxu0 %v94
  %543 = vmatprep.subr.mxu0 %v91
  %544 = vmatpush1.msra.mxu0 %v90
  %545 = vmatprep.subr.mxu0 %v87
  %546 = vmatpush1.msra.mxu0 %v86
  %547 = vmatprep.subr.mxu0 %v83
  %548 = vmatpush1.msra.mxu0 %v82
  %549 = vmatprep.subr.mxu0 %v79
  %550 = vmatpush1.msra.mxu0 %v78
  %551 = vmatprep.subr.mxu0 %v75
  %552 = vmatpush1.msra.mxu0 %v74
  %553 = vmatprep.subr.mxu0 %v71
  %554 = vmatpush1.msra.mxu0 %v70
  %555 = vmatprep.subr.mxu0 %v67
  %556 = vmatpush1.msra.mxu0 %v66
  %557 = vmatprep.subr.mxu0 %v63
  %558 = vmatpush1.msra.mxu0 %v62
  %559 = vmatprep.subr.mxu0 0.0
  %560 = vmatpush2.msra.mxu0 0.0
  %561 = vmatprep.subr.mxu0 0.0
  %562 = vmatpush2.msra.mxu0 0.0
  %563 = vmatprep.subr.mxu0 0.0
  %564 = vmatpush2.msra.mxu0 0.0
  %565 = vmatprep.subr.mxu0 0.0
  %566 = vmatpush2.msra.mxu0 0.0
  %567 = vmatprep.subr.mxu0 0.0
  %568 = vmatpush2.msra.mxu0 0.0
  %569 = vmatprep.subr.mxu0 0.0
  %570 = vmatpush2.msra.mxu0 0.0
  %571 = vmatprep.subr.mxu0 0.0
  %572 = vmatpush2.msra.mxu0 0.0
  %573 = vmatprep.subr.mxu0 0.0
  %574 = vmatpush2.msra.mxu0 0.0
  %575 = vmatprep.subr.mxu0 0.0
  %576 = vmatpush2.msra.mxu0 0.0
  %577 = vmatprep.subr.mxu0 0.0
  %578 = vmatpush2.msra.mxu0 0.0
  %579 = vmatprep.subr.mxu0 0.0
  %580 = vmatpush2.msra.mxu0 0.0
  %581 = vmatprep.subr.mxu0 0.0
  %582 = vmatpush2.msra.mxu0 0.0
  %583 = vmatprep.subr.mxu0 0.0
  %584 = vmatpush2.msra.mxu0 0.0
  %585 = vmatprep.subr.mxu0 0.0
  %586 = vmatpush2.msra.mxu0 0.0
  %587 = vmatprep.subr.mxu0 0.0
  %588 = vmatpush2.msra.mxu0 0.0
  %589 = vmatprep.subr.mxu0 0.0
  %590 = vmatpush2.msra.mxu0 0.0
  %591 = vmatprep.mubr.f32.mxu0 0.0
  %592 = vmatmul.mubr.f32.gmra.mxu0 %v44
  %v593 = vpop.f32.mrf.mxu0
  %v594 = vadd.f32 %v368, %v593
  %v595 = vpop.f32.mrf.mxu0
  %v596 = vadd.f32 %v370, %v595
  %597 = vmatprep.mubr.f32.mxu0 0.0
  %598 = vmatmul.mubr.f32.gmra.mxu0 %v45
  %v599 = vpop.f32.mrf.mxu0
  %v600 = vadd.f32 %v374, %v599
  %v601 = vpop.f32.mrf.mxu0
  %v602 = vadd.f32 %v376, %v601
  %603 = vmatprep.mubr.f32.mxu0 0.0
  %604 = vmatmul.mubr.f32.gmra.mxu0 %v46
  %v605 = vpop.f32.mrf.mxu0
  %v606 = vadd.f32 %v380, %v605
  %v607 = vpop.f32.mrf.mxu0
  %v608 = vadd.f32 %v382, %v607
  %609 = vmatprep.mubr.f32.mxu0 0.0
  %610 = vmatmul.mubr.f32.gmra.mxu0 %v47
  %v611 = vpop.f32.mrf.mxu0
  %v612 = vadd.f32 %v386, %v611
  %v613 = vpop.f32.mrf.mxu0
  %v614 = vadd.f32 %v388, %v613
  %615 = vmatprep.mubr.f32.mxu0 0.0
  %616 = vmatmul.mubr.f32.gmra.mxu0 %v48
  %v617 = vpop.f32.mrf.mxu0
  %v618 = vadd.f32 %v392, %v617
  %v619 = vpop.f32.mrf.mxu0
  %v620 = vadd.f32 %v394, %v619
  %621 = vmatprep.mubr.f32.mxu0 0.0
  %622 = vmatmul.mubr.f32.gmra.mxu0 %v49
  %v623 = vpop.f32.mrf.mxu0
  %v624 = vadd.f32 %v398, %v623
  %v625 = vpop.f32.mrf.mxu0
  %v626 = vadd.f32 %v400, %v625
  %627 = vmatprep.mubr.f32.mxu0 0.0
  %628 = vmatmul.mubr.f32.gmra.mxu0 %v50
  %v629 = vpop.f32.mrf.mxu0
  %v630 = vadd.f32 %v404, %v629
  %v631 = vpop.f32.mrf.mxu0
  %v632 = vadd.f32 %v406, %v631
  %633 = vmatprep.mubr.f32.mxu0 0.0
  %634 = vmatmul.mubr.f32.gmra.mxu0 %v51
  %v635 = vpop.f32.mrf.mxu0
  %v636 = vadd.f32 %v410, %v635
  %v637 = vpop.f32.mrf.mxu0
  %v638 = vadd.f32 %v412, %v637
  %639 = vdwg.mxu0
  %v640 = vld [vmem:[%s4] sm:$0xf]
  %v642 = vlaneseq
  %v643 = vshrl.u32 %v642, 7
  %v644 = vsub.s32 0, %v643
  %v645 = vrot.slane %v640, %v644
  %v646 = vlaneseq
  %v647 = vshrl.u32 %v646, 7
  %v648 = vsub.s32 1, %v647
  %v649 = vrot.slane %v640, %v648
  %v650 = vlaneseq
  %v651 = vshrl.u32 %v650, 7
  %v652 = vsub.s32 2, %v651
  %v653 = vrot.slane %v640, %v652
  %v654 = vlaneseq
  %v655 = vshrl.u32 %v654, 7
  %v656 = vsub.s32 3, %v655
  %v657 = vrot.slane %v640, %v656
  %v662 = vadd.f32 %v481, %v645
  %v663 = vadd.f32 %v483, %v649
  %v664 = vadd.f32 %v594, %v653
  %v665 = vadd.f32 %v596, %v657
  %v666 = vadd.f32 %v487, %v645
  %v667 = vadd.f32 %v489, %v649
  %v668 = vadd.f32 %v600, %v653
  %v669 = vadd.f32 %v602, %v657
  %v670 = vadd.f32 %v493, %v645
  %v671 = vadd.f32 %v495, %v649
  %v672 = vadd.f32 %v606, %v653
  %v673 = vadd.f32 %v608, %v657
  %v674 = vadd.f32 %v499, %v645
  %v675 = vadd.f32 %v501, %v649
  %v676 = vadd.f32 %v612, %v653
  %v677 = vadd.f32 %v614, %v657
  %v678 = vadd.f32 %v505, %v645
  %v679 = vadd.f32 %v507, %v649
  %v680 = vadd.f32 %v618, %v653
  %v681 = vadd.f32 %v620, %v657
  %v682 = vadd.f32 %v511, %v645
  %v683 = vadd.f32 %v513, %v649
  %v684 = vadd.f32 %v624, %v653
  %v685 = vadd.f32 %v626, %v657
  %v686 = vadd.f32 %v517, %v645
  %v687 = vadd.f32 %v519, %v649
  %v688 = vadd.f32 %v630, %v653
  %v689 = vadd.f32 %v632, %v657
  %v690 = vadd.f32 %v523, %v645
  %v691 = vadd.f32 %v525, %v649
  %v692 = vadd.f32 %v636, %v653
  %v693 = vadd.f32 %v638, %v657
  %694 = vst [vmem:[#allocation4] sm:$0xff] %v662
  %695 = vst [vmem:[#allocation4 + $0x8] sm:$0xff] %v663
  %696 = vst [vmem:[#allocation4 + $0x10] sm:$0xff] %v664
  %697 = vst [vmem:[#allocation4 + $0x18] sm:$0xff] %v665
  %698 = vst [vmem:[#allocation4 + $0x20] sm:$0xff] %v666
  %699 = vst [vmem:[#allocation4 + $0x28] sm:$0xff] %v667
  %700 = vst [vmem:[#allocation4 + $0x30] sm:$0xff] %v668
  %701 = vst [vmem:[#allocation4 + $0x38] sm:$0xff] %v669
  %702 = vst [vmem:[#allocation4 + $0x40] sm:$0xff] %v670
  %703 = vst [vmem:[#allocation4 + $0x48] sm:$0xff] %v671
  %704 = vst [vmem:[#allocation4 + $0x50] sm:$0xff] %v672
  %705 = vst [vmem:[#allocation4 + $0x58] sm:$0xff] %v673
  %706 = vst [vmem:[#allocation4 + $0x60] sm:$0xff] %v674
  %707 = vst [vmem:[#allocation4 + $0x68] sm:$0xff] %v675
  %708 = vst [vmem:[#allocation4 + $0x70] sm:$0xff] %v676
  %709 = vst [vmem:[#allocation4 + $0x78] sm:$0xff] %v677
  %710 = vst [vmem:[#allocation4 + $0x80] sm:$0xff] %v678
  %711 = vst [vmem:[#allocation4 + $0x88] sm:$0xff] %v679
  %712 = vst [vmem:[#allocation4 + $0x90] sm:$0xff] %v680
  %713 = vst [vmem:[#allocation4 + $0x98] sm:$0xff] %v681
  %714 = vst [vmem:[#allocation4 + $0xa0] sm:$0xff] %v682
  %715 = vst [vmem:[#allocation4 + $0xa8] sm:$0xff] %v683
  %716 = vst [vmem:[#allocation4 + $0xb0] sm:$0xff] %v684
  %717 = vst [vmem:[#allocation4 + $0xb8] sm:$0xff] %v685
  %718 = vst [vmem:[#allocation4 + $0xc0] sm:$0xff] %v686
  %719 = vst [vmem:[#allocation4 + $0xc8] sm:$0xff] %v687
  %720 = vst [vmem:[#allocation4 + $0xd0] sm:$0xff] %v688
  %721 = vst [vmem:[#allocation4 + $0xd8] sm:$0xff] %v689
  %722 = vst [vmem:[#allocation4 + $0xe0] sm:$0xff] %v690
  %723 = vst [vmem:[#allocation4 + $0xe8] sm:$0xff] %v691
  %724 = vst [vmem:[#allocation4 + $0xf0] sm:$0xff] %v692
  %725 = vst [vmem:[#allocation4 + $0xf8] sm:$0xff] %v693
  %v726 = vld [vmem:[%s3] sm:$0xff]
  %v727 = vld [vmem:[%s3 + $0x8] sm:$0xff]
  %v728 = vld [vmem:[%s3 + $0x10] sm:$0xff]
  %v729 = vld [vmem:[%s3 + $0x18] sm:$0xff]
  %v730 = vld [vmem:[%s3 + $0x20] sm:$0xff]
  %v731 = vld [vmem:[%s3 + $0x28] sm:$0xff]
  %v732 = vld [vmem:[%s3 + $0x30] sm:$0xff]
  %v733 = vld [vmem:[%s3 + $0x38] sm:$0xff]
  %v734 = vld [vmem:[%s3 + $0x40] sm:$0xff]
  %v735 = vld [vmem:[%s3 + $0x48] sm:$0xff]
  %v736 = vld [vmem:[%s3 + $0x50] sm:$0xff]
  %v737 = vld [vmem:[%s3 + $0x58] sm:$0xff]
  %v738 = vld [vmem:[%s3 + $0x60] sm:$0xff]
  %v739 = vld [vmem:[%s3 + $0x68] sm:$0xff]
  %v740 = vld [vmem:[%s3 + $0x70] sm:$0xff]
  %v741 = vld [vmem:[%s3 + $0x78] sm:$0xff]
  %v742 = vld [vmem:[%s3 + $0x80] sm:$0xff]
  %v743 = vld [vmem:[%s3 + $0x88] sm:$0xff]
  %v744 = vld [vmem:[%s3 + $0x90] sm:$0xff]
  %v745 = vld [vmem:[%s3 + $0x98] sm:$0xff]
  %v746 = vld [vmem:[%s3 + $0xa0] sm:$0xff]
  %v747 = vld [vmem:[%s3 + $0xa8] sm:$0xff]
  %v748 = vld [vmem:[%s3 + $0xb0] sm:$0xff]
  %v749 = vld [vmem:[%s3 + $0xb8] sm:$0xff]
  %v750 = vld [vmem:[%s3 + $0xc0] sm:$0xff]
  %v751 = vld [vmem:[%s3 + $0xc8] sm:$0xff]
  %v752 = vld [vmem:[%s3 + $0xd0] sm:$0xff]
  %v753 = vld [vmem:[%s3 + $0xd8] sm:$0xff]
  %v754 = vld [vmem:[%s3 + $0xe0] sm:$0xff]
  %v755 = vld [vmem:[%s3 + $0xe8] sm:$0xff]
  %v756 = vld [vmem:[%s3 + $0xf0] sm:$0xff]
  %v757 = vld [vmem:[%s3 + $0xf8] sm:$0xff]
  %v758 = vld [vmem:[%s3 + $0x100] sm:$0xff]
  %v759 = vld [vmem:[%s3 + $0x108] sm:$0xff]
  %v760 = vld [vmem:[%s3 + $0x110] sm:$0xff]
  %v761 = vld [vmem:[%s3 + $0x118] sm:$0xff]
  %v762 = vld [vmem:[%s3 + $0x120] sm:$0xff]
  %v763 = vld [vmem:[%s3 + $0x128] sm:$0xff]
  %v764 = vld [vmem:[%s3 + $0x130] sm:$0xff]
  %v765 = vld [vmem:[%s3 + $0x138] sm:$0xff]
  %v766 = vld [vmem:[%s3 + $0x140] sm:$0xff]
  %v767 = vld [vmem:[%s3 + $0x148] sm:$0xff]
  %v768 = vld [vmem:[%s3 + $0x150] sm:$0xff]
  %v769 = vld [vmem:[%s3 + $0x158] sm:$0xff]
  %v770 = vld [vmem:[%s3 + $0x160] sm:$0xff]
  %v771 = vld [vmem:[%s3 + $0x168] sm:$0xff]
  %v772 = vld [vmem:[%s3 + $0x170] sm:$0xff]
  %v773 = vld [vmem:[%s3 + $0x178] sm:$0xff]
  %v774 = vld [vmem:[%s3 + $0x180] sm:$0xff]
  %v775 = vld [vmem:[%s3 + $0x188] sm:$0xff]
  %v776 = vld [vmem:[%s3 + $0x190] sm:$0xff]
  %v777 = vld [vmem:[%s3 + $0x198] sm:$0xff]
  %v778 = vld [vmem:[%s3 + $0x1a0] sm:$0xff]
  %v779 = vld [vmem:[%s3 + $0x1a8] sm:$0xff]
  %v780 = vld [vmem:[%s3 + $0x1b0] sm:$0xff]
  %v781 = vld [vmem:[%s3 + $0x1b8] sm:$0xff]
  %v782 = vld [vmem:[%s3 + $0x1c0] sm:$0xff]
  %v783 = vld [vmem:[%s3 + $0x1c8] sm:$0xff]
  %v784 = vld [vmem:[%s3 + $0x1d0] sm:$0xff]
  %v785 = vld [vmem:[%s3 + $0x1d8] sm:$0xff]
  %v786 = vld [vmem:[%s3 + $0x1e0] sm:$0xff]
  %v787 = vld [vmem:[%s3 + $0x1e8] sm:$0xff]
  %v788 = vld [vmem:[%s3 + $0x1f0] sm:$0xff]
  %v789 = vld [vmem:[%s3 + $0x1f8] sm:$0xff]
  %v790 = vld [vmem:[#allocation2] sm:$0xff]
  %v791 = vld [vmem:[#allocation3] sm:$0xff]
  %v792 = vld [vmem:[#allocation4] sm:$0xff]
  %v793 = vld [vmem:[#allocation4 + $0x8] sm:$0xff]
  %v794 = vld [vmem:[#allocation4 + $0x10] sm:$0xff]
  %v795 = vld [vmem:[#allocation4 + $0x18] sm:$0xff]
  %796 = vmatprep.subr.mxu0 %v787
  %797 = vmatpush1.msra.mxu0 %v786
  %798 = vmatprep.subr.mxu0 %v783
  %799 = vmatpush1.msra.mxu0 %v782
  %800 = vmatprep.subr.mxu0 %v779
  %801 = vmatpush1.msra.mxu0 %v778
  %802 = vmatprep.subr.mxu0 %v775
  %803 = vmatpush1.msra.mxu0 %v774
  %804 = vmatprep.subr.mxu0 %v771
  %805 = vmatpush1.msra.mxu0 %v770
  %806 = vmatprep.subr.mxu0 %v767
  %807 = vmatpush1.msra.mxu0 %v766
  %808 = vmatprep.subr.mxu0 %v763
  %809 = vmatpush1.msra.mxu0 %v762
  %810 = vmatprep.subr.mxu0 %v759
  %811 = vmatpush1.msra.mxu0 %v758
  %812 = vmatprep.subr.mxu0 %v755
  %813 = vmatpush1.msra.mxu0 %v754
  %814 = vmatprep.subr.mxu0 %v751
  %815 = vmatpush1.msra.mxu0 %v750
  %816 = vmatprep.subr.mxu0 %v747
  %817 = vmatpush1.msra.mxu0 %v746
  %818 = vmatprep.subr.mxu0 %v743
  %819 = vmatpush1.msra.mxu0 %v742
  %820 = vmatprep.subr.mxu0 %v739
  %821 = vmatpush1.msra.mxu0 %v738
  %822 = vmatprep.subr.mxu0 %v735
  %823 = vmatpush1.msra.mxu0 %v734
  %824 = vmatprep.subr.mxu0 %v731
  %825 = vmatpush1.msra.mxu0 %v730
  %826 = vmatprep.subr.mxu0 %v727
  %827 = vmatpush1.msra.mxu0 %v726
  %828 = vmatprep.subr.mxu0 0.0
  %829 = vmatpush2.msra.mxu0 0.0
  %830 = vmatprep.subr.mxu0 0.0
  %831 = vmatpush2.msra.mxu0 0.0
  %832 = vmatprep.subr.mxu0 0.0
  %833 = vmatpush2.msra.mxu0 0.0
  %834 = vmatprep.subr.mxu0 0.0
  %835 = vmatpush2.msra.mxu0 0.0
  %836 = vmatprep.subr.mxu0 0.0
  %837 = vmatpush2.msra.mxu0 0.0
  %838 = vmatprep.subr.mxu0 0.0
  %839 = vmatpush2.msra.mxu0 0.0
  %840 = vmatprep.subr.mxu0 0.0
  %841 = vmatpush2.msra.mxu0 0.0
  %842 = vmatprep.subr.mxu0 0.0
  %843 = vmatpush2.msra.mxu0 0.0
  %844 = vmatprep.subr.mxu0 0.0
  %845 = vmatpush2.msra.mxu0 0.0
  %846 = vmatprep.subr.mxu0 0.0
  %847 = vmatpush2.msra.mxu0 0.0
  %848 = vmatprep.subr.mxu0 0.0
  %849 = vmatpush2.msra.mxu0 0.0
  %850 = vmatprep.subr.mxu0 0.0
  %851 = vmatpush2.msra.mxu0 0.0
  %852 = vmatprep.subr.mxu0 0.0
  %853 = vmatpush2.msra.mxu0 0.0
  %854 = vmatprep.subr.mxu0 0.0
  %855 = vmatpush2.msra.mxu0 0.0
  %856 = vmatprep.subr.mxu0 0.0
  %857 = vmatpush2.msra.mxu0 0.0
  %858 = vmatprep.subr.mxu0 0.0
  %859 = vmatpush2.msra.mxu0 0.0
  %860 = vmatprep.mubr.f32.mxu0 0.0
  %861 = vmatmul.mubr.f32.gmra.mxu0 %v790
  %v862 = vpop.f32.mrf.mxu0
  %v863 = vadd.f32 0.0, %v862
  %v864 = vpop.f32.mrf.mxu0
  %v865 = vadd.f32 0.0, %v864
  %866 = vdwg.mxu0
  %867 = vmatprep.subr.mxu0 %v789
  %868 = vmatpush1.msra.mxu0 %v788
  %869 = vmatprep.subr.mxu0 %v785
  %870 = vmatpush1.msra.mxu0 %v784
  %871 = vmatprep.subr.mxu0 %v781
  %872 = vmatpush1.msra.mxu0 %v780
  %873 = vmatprep.subr.mxu0 %v777
  %874 = vmatpush1.msra.mxu0 %v776
  %875 = vmatprep.subr.mxu0 %v773
  %876 = vmatpush1.msra.mxu0 %v772
  %877 = vmatprep.subr.mxu0 %v769
  %878 = vmatpush1.msra.mxu0 %v768
  %879 = vmatprep.subr.mxu0 %v765
  %880 = vmatpush1.msra.mxu0 %v764
  %881 = vmatprep.subr.mxu0 %v761
  %882 = vmatpush1.msra.mxu0 %v760
  %883 = vmatprep.subr.mxu0 %v757
  %884 = vmatpush1.msra.mxu0 %v756
  %885 = vmatprep.subr.mxu0 %v753
  %886 = vmatpush1.msra.mxu0 %v752
  %887 = vmatprep.subr.mxu0 %v749
  %888 = vmatpush1.msra.mxu0 %v748
  %889 = vmatprep.subr.mxu0 %v745
  %890 = vmatpush1.msra.mxu0 %v744
  %891 = vmatprep.subr.mxu0 %v741
  %892 = vmatpush1.msra.mxu0 %v740
  %893 = vmatprep.subr.mxu0 %v737
  %894 = vmatpush1.msra.mxu0 %v736
  %895 = vmatprep.subr.mxu0 %v733
  %896 = vmatpush1.msra.mxu0 %v732
  %897 = vmatprep.subr.mxu0 %v729
  %898 = vmatpush1.msra.mxu0 %v728
  %899 = vmatprep.subr.mxu0 0.0
  %900 = vmatpush2.msra.mxu0 0.0
  %901 = vmatprep.subr.mxu0 0.0
  %902 = vmatpush2.msra.mxu0 0.0
  %903 = vmatprep.subr.mxu0 0.0
  %904 = vmatpush2.msra.mxu0 0.0
  %905 = vmatprep.subr.mxu0 0.0
  %906 = vmatpush2.msra.mxu0 0.0
  %907 = vmatprep.subr.mxu0 0.0
  %908 = vmatpush2.msra.mxu0 0.0
  %909 = vmatprep.subr.mxu0 0.0
  %910 = vmatpush2.msra.mxu0 0.0
  %911 = vmatprep.subr.mxu0 0.0
  %912 = vmatpush2.msra.mxu0 0.0
  %913 = vmatprep.subr.mxu0 0.0
  %914 = vmatpush2.msra.mxu0 0.0
  %915 = vmatprep.subr.mxu0 0.0
  %916 = vmatpush2.msra.mxu0 0.0
  %917 = vmatprep.subr.mxu0 0.0
  %918 = vmatpush2.msra.mxu0 0.0
  %919 = vmatprep.subr.mxu0 0.0
  %920 = vmatpush2.msra.mxu0 0.0
  %921 = vmatprep.subr.mxu0 0.0
  %922 = vmatpush2.msra.mxu0 0.0
  %923 = vmatprep.subr.mxu0 0.0
  %924 = vmatpush2.msra.mxu0 0.0
  %925 = vmatprep.subr.mxu0 0.0
  %926 = vmatpush2.msra.mxu0 0.0
  %927 = vmatprep.subr.mxu0 0.0
  %928 = vmatpush2.msra.mxu0 0.0
  %929 = vmatprep.subr.mxu0 0.0
  %930 = vmatpush2.msra.mxu0 0.0
  %931 = vmatprep.mubr.f32.mxu0 0.0
  %932 = vmatmul.mubr.f32.gmra.mxu0 %v790
  %v933 = vpop.f32.mrf.mxu0
  %v934 = vadd.f32 0.0, %v933
  %v935 = vpop.f32.mrf.mxu0
  %v936 = vadd.f32 0.0, %v935
  %937 = vdwg.mxu0
  %v938 = vadd.f32 %v792, %v863
  %v939 = vadd.f32 %v793, %v865
  %v940 = vadd.f32 %v794, %v934
  %v941 = vadd.f32 %v795, %v936
  %v942 = vxor.u32 %v938, 2147483648
  %v943 = vmul.f32 %v942, 1.442695
  %v944 = vpow.pop %v943
  %v945 = vadd.f32 %v944, 1.0
  %v946 = vrcp.pop %v945
  %v947 = vmul.f32 1.0, %v946
  %v948 = vxor.u32 %v939, 2147483648
  %v949 = vmul.f32 %v948, 1.442695
  %v950 = vpow.pop %v949
  %v951 = vadd.f32 %v950, 1.0
  %v952 = vrcp.pop %v951
  %v953 = vmul.f32 1.0, %v952
  %v954 = vtanh.pop %v940
  %v955 = vxor.u32 %v941, 2147483648
  %v956 = vmul.f32 %v955, 1.442695
  %v957 = vpow.pop %v956
  %v958 = vadd.f32 %v957, 1.0
  %v959 = vrcp.pop %v958
  %v960 = vmul.f32 1.0, %v959
  %v961 = vmul.f32 %v953, %v791
  %v962 = vmul.f32 %v947, %v954
  %v963 = vadd.f32 %v961, %v962
  %v964 = vtanh.pop %v963
  %v965 = vmul.f32 %v960, %v964
  %s966 = scalar_lea.vmem [#allocation4], 32
  %v967 = vld [vmem:[%s966] sm:$0xff]
  %v968 = vld [vmem:[%s966 + $0x8] sm:$0xff]
  %v969 = vld [vmem:[%s966 + $0x10] sm:$0xff]
  %v970 = vld [vmem:[%s966 + $0x18] sm:$0xff]
  %971 = vmatprep.subr.mxu0 %v787
  %972 = vmatpush1.msra.mxu0 %v786
  %973 = vmatprep.subr.mxu0 %v783
  %974 = vmatpush1.msra.mxu0 %v782
  %975 = vmatprep.subr.mxu0 %v779
  %976 = vmatpush1.msra.mxu0 %v778
  %977 = vmatprep.subr.mxu0 %v775
  %978 = vmatpush1.msra.mxu0 %v774
  %979 = vmatprep.subr.mxu0 %v771
  %980 = vmatpush1.msra.mxu0 %v770
  %981 = vmatprep.subr.mxu0 %v767
  %982 = vmatpush1.msra.mxu0 %v766
  %983 = vmatprep.subr.mxu0 %v763
  %984 = vmatpush1.msra.mxu0 %v762
  %985 = vmatprep.subr.mxu0 %v759
  %986 = vmatpush1.msra.mxu0 %v758
  %987 = vmatprep.subr.mxu0 %v755
  %988 = vmatpush1.msra.mxu0 %v754
  %989 = vmatprep.subr.mxu0 %v751
  %990 = vmatpush1.msra.mxu0 %v750
  %991 = vmatprep.subr.mxu0 %v747
  %992 = vmatpush1.msra.mxu0 %v746
  %993 = vmatprep.subr.mxu0 %v743
  %994 = vmatpush1.msra.mxu0 %v742
  %995 = vmatprep.subr.mxu0 %v739
  %996 = vmatpush1.msra.mxu0 %v738
  %997 = vmatprep.subr.mxu0 %v735
  %998 = vmatpush1.msra.mxu0 %v734
  %999 = vmatprep.subr.mxu0 %v731
  %1000 = vmatpush1.msra.mxu0 %v730
  %1001 = vmatprep.subr.mxu0 %v727
  %1002 = vmatpush1.msra.mxu0 %v726
  %1003 = vmatprep.subr.mxu0 0.0
  %1004 = vmatpush2.msra.mxu0 0.0
  %1005 = vmatprep.subr.mxu0 0.0
  %1006 = vmatpush2.msra.mxu0 0.0
  %1007 = vmatprep.subr.mxu0 0.0
  %1008 = vmatpush2.msra.mxu0 0.0
  %1009 = vmatprep.subr.mxu0 0.0
  %1010 = vmatpush2.msra.mxu0 0.0
  %1011 = vmatprep.subr.mxu0 0.0
  %1012 = vmatpush2.msra.mxu0 0.0
  %1013 = vmatprep.subr.mxu0 0.0
  %1014 = vmatpush2.msra.mxu0 0.0
  %1015 = vmatprep.subr.mxu0 0.0
  %1016 = vmatpush2.msra.mxu0 0.0
  %1017 = vmatprep.subr.mxu0 0.0
  %1018 = vmatpush2.msra.mxu0 0.0
  %1019 = vmatprep.subr.mxu0 0.0
  %1020 = vmatpush2.msra.mxu0 0.0
  %1021 = vmatprep.subr.mxu0 0.0
  %1022 = vmatpush2.msra.mxu0 0.0
  %1023 = vmatprep.subr.mxu0 0.0
  %1024 = vmatpush2.msra.mxu0 0.0
  %1025 = vmatprep.subr.mxu0 0.0
  %1026 = vmatpush2.msra.mxu0 0.0
  %1027 = vmatprep.subr.mxu0 0.0
  %1028 = vmatpush2.msra.mxu0 0.0
  %1029 = vmatprep.subr.mxu0 0.0
  %1030 = vmatpush2.msra.mxu0 0.0
  %1031 = vmatprep.subr.mxu0 0.0
  %1032 = vmatpush2.msra.mxu0 0.0
  %1033 = vmatprep.subr.mxu0 0.0
  %1034 = vmatpush2.msra.mxu0 0.0
  %1035 = vmatprep.mubr.f32.mxu0 0.0
  %1036 = vmatmul.mubr.f32.gmra.mxu0 %v965
  %v1037 = vpop.f32.mrf.mxu0
  %v1038 = vadd.f32 0.0, %v1037
  %v1039 = vpop.f32.mrf.mxu0
  %v1040 = vadd.f32 0.0, %v1039
  %1041 = vdwg.mxu0
  %1042 = vmatprep.subr.mxu0 %v789
  %1043 = vmatpush1.msra.mxu0 %v788
  %1044 = vmatprep.subr.mxu0 %v785
  %1045 = vmatpush1.msra.mxu0 %v784
  %1046 = vmatprep.subr.mxu0 %v781
  %1047 = vmatpush1.msra.mxu0 %v780
  %1048 = vmatprep.subr.mxu0 %v777
  %1049 = vmatpush1.msra.mxu0 %v776
  %1050 = vmatprep.subr.mxu0 %v773
  %1051 = vmatpush1.msra.mxu0 %v772
  %1052 = vmatprep.subr.mxu0 %v769
  %1053 = vmatpush1.msra.mxu0 %v768
  %1054 = vmatprep.subr.mxu0 %v765
  %1055 = vmatpush1.msra.mxu0 %v764
  %1056 = vmatprep.subr.mxu0 %v761
  %1057 = vmatpush1.msra.mxu0 %v760
  %1058 = vmatprep.subr.mxu0 %v757
  %1059 = vmatpush1.msra.mxu0 %v756
  %1060 = vmatprep.subr.mxu0 %v753
  %1061 = vmatpush1.msra.mxu0 %v752
  %1062 = vmatprep.subr.mxu0 %v749
  %1063 = vmatpush1.msra.mxu0 %v748
  %1064 = vmatprep.subr.mxu0 %v745
  %1065 = vmatpush1.msra.mxu0 %v744
  %1066 = vmatprep.subr.mxu0 %v741
  %1067 = vmatpush1.msra.mxu0 %v740
  %1068 = vmatprep.subr.mxu0 %v737
  %1069 = vmatpush1.msra.mxu0 %v736
  %1070 = vmatprep.subr.mxu0 %v733
  %1071 = vmatpush1.msra.mxu0 %v732
  %1072 = vmatprep.subr.mxu0 %v729
  %1073 = vmatpush1.msra.mxu0 %v728
  %1074 = vmatprep.subr.mxu0 0.0
  %1075 = vmatpush2.msra.mxu0 0.0
  %1076 = vmatprep.subr.mxu0 0.0
  %1077 = vmatpush2.msra.mxu0 0.0
  %1078 = vmatprep.subr.mxu0 0.0
  %1079 = vmatpush2.msra.mxu0 0.0
  %1080 = vmatprep.subr.mxu0 0.0
  %1081 = vmatpush2.msra.mxu0 0.0
  %1082 = vmatprep.subr.mxu0 0.0
  %1083 = vmatpush2.msra.mxu0 0.0
  %1084 = vmatprep.subr.mxu0 0.0
  %1085 = vmatpush2.msra.mxu0 0.0
  %1086 = vmatprep.subr.mxu0 0.0
  %1087 = vmatpush2.msra.mxu0 0.0
  %1088 = vmatprep.subr.mxu0 0.0
  %1089 = vmatpush2.msra.mxu0 0.0
  %1090 = vmatprep.subr.mxu0 0.0
  %1091 = vmatpush2.msra.mxu0 0.0
  %1092 = vmatprep.subr.mxu0 0.0
  %1093 = vmatpush2.msra.mxu0 0.0
  %1094 = vmatprep.subr.mxu0 0.0
  %1095 = vmatpush2.msra.mxu0 0.0
  %1096 = vmatprep.subr.mxu0 0.0
  %1097 = vmatpush2.msra.mxu0 0.0
  %1098 = vmatprep.subr.mxu0 0.0
  %1099 = vmatpush2.msra.mxu0 0.0
  %1100 = vmatprep.subr.mxu0 0.0
  %1101 = vmatpush2.msra.mxu0 0.0
  %1102 = vmatprep.subr.mxu0 0.0
  %1103 = vmatpush2.msra.mxu0 0.0
  %1104 = vmatprep.subr.mxu0 0.0
  %1105 = vmatpush2.msra.mxu0 0.0
  %1106 = vmatprep.mubr.f32.mxu0 0.0
  %1107 = vmatmul.mubr.f32.gmra.mxu0 %v965
  %v1108 = vpop.f32.mrf.mxu0
  %v1109 = vadd.f32 0.0, %v1108
  %v1110 = vpop.f32.mrf.mxu0
  %v1111 = vadd.f32 0.0, %v1110
  %1112 = vdwg.mxu0
  %v1113 = vadd.f32 %v967, %v1038
  %v1114 = vadd.f32 %v968, %v1040
  %v1115 = vadd.f32 %v969, %v1109
  %v1116 = vadd.f32 %v970, %v1111
  %v1117 = vxor.u32 %v1113, 2147483648
  %v1118 = vmul.f32 %v1117, 1.442695
  %v1119 = vpow.pop %v1118
  %v1120 = vadd.f32 %v1119, 1.0
  %v1121 = vrcp.pop %v1120
  %v1122 = vmul.f32 1.0, %v1121
  %v1123 = vxor.u32 %v1114, 2147483648
  %v1124 = vmul.f32 %v1123, 1.442695
  %v1125 = vpow.pop %v1124
  %v1126 = vadd.f32 %v1125, 1.0
  %v1127 = vrcp.pop %v1126
  %v1128 = vmul.f32 1.0, %v1127
  %v1129 = vtanh.pop %v1115
  %v1130 = vxor.u32 %v1116, 2147483648
  %v1131 = vmul.f32 %v1130, 1.442695
  %v1132 = vpow.pop %v1131
  %v1133 = vadd.f32 %v1132, 1.0
  %v1134 = vrcp.pop %v1133
  %v1135 = vmul.f32 1.0, %v1134
  %v1136 = vmul.f32 %v1128, %v963
  %v1137 = vmul.f32 %v1122, %v1129
  %v1138 = vadd.f32 %v1136, %v1137
  %v1139 = vtanh.pop %v1138
  %v1140 = vmul.f32 %v1135, %v1139
  %s1141 = scalar_lea.vmem [#allocation4], 64
  %v1142 = vld [vmem:[%s1141] sm:$0xff]
  %v1143 = vld [vmem:[%s1141 + $0x8] sm:$0xff]
  %v1144 = vld [vmem:[%s1141 + $0x10] sm:$0xff]
  %v1145 = vld [vmem:[%s1141 + $0x18] sm:$0xff]
  %1146 = vmatprep.subr.mxu0 %v787
  %1147 = vmatpush1.msra.mxu0 %v786
  %1148 = vmatprep.subr.mxu0 %v783
  %1149 = vmatpush1.msra.mxu0 %v782
  %1150 = vmatprep.subr.mxu0 %v779
  %1151 = vmatpush1.msra.mxu0 %v778
  %1152 = vmatprep.subr.mxu0 %v775
  %1153 = vmatpush1.msra.mxu0 %v774
  %1154 = vmatprep.subr.mxu0 %v771
  %1155 = vmatpush1.msra.mxu0 %v770
  %1156 = vmatprep.subr.mxu0 %v767
  %1157 = vmatpush1.msra.mxu0 %v766
  %1158 = vmatprep.subr.mxu0 %v763
  %1159 = vmatpush1.msra.mxu0 %v762
  %1160 = vmatprep.subr.mxu0 %v759
  %1161 = vmatpush1.msra.mxu0 %v758
  %1162 = vmatprep.subr.mxu0 %v755
  %1163 = vmatpush1.msra.mxu0 %v754
  %1164 = vmatprep.subr.mxu0 %v751
  %1165 = vmatpush1.msra.mxu0 %v750
  %1166 = vmatprep.subr.mxu0 %v747
  %1167 = vmatpush1.msra.mxu0 %v746
  %1168 = vmatprep.subr.mxu0 %v743
  %1169 = vmatpush1.msra.mxu0 %v742
  %1170 = vmatprep.subr.mxu0 %v739
  %1171 = vmatpush1.msra.mxu0 %v738
  %1172 = vmatprep.subr.mxu0 %v735
  %1173 = vmatpush1.msra.mxu0 %v734
  %1174 = vmatprep.subr.mxu0 %v731
  %1175 = vmatpush1.msra.mxu0 %v730
  %1176 = vmatprep.subr.mxu0 %v727
  %1177 = vmatpush1.msra.mxu0 %v726
  %1178 = vmatprep.subr.mxu0 0.0
  %1179 = vmatpush2.msra.mxu0 0.0
  %1180 = vmatprep.subr.mxu0 0.0
  %1181 = vmatpush2.msra.mxu0 0.0
  %1182 = vmatprep.subr.mxu0 0.0
  %1183 = vmatpush2.msra.mxu0 0.0
  %1184 = vmatprep.subr.mxu0 0.0
  %1185 = vmatpush2.msra.mxu0 0.0
  %1186 = vmatprep.subr.mxu0 0.0
  %1187 = vmatpush2.msra.mxu0 0.0
  %1188 = vmatprep.subr.mxu0 0.0
  %1189 = vmatpush2.msra.mxu0 0.0
  %1190 = vmatprep.subr.mxu0 0.0
  %1191 = vmatpush2.msra.mxu0 0.0
  %1192 = vmatprep.subr.mxu0 0.0
  %1193 = vmatpush2.msra.mxu0 0.0
  %1194 = vmatprep.subr.mxu0 0.0
  %1195 = vmatpush2.msra.mxu0 0.0
  %1196 = vmatprep.subr.mxu0 0.0
  %1197 = vmatpush2.msra.mxu0 0.0
  %1198 = vmatprep.subr.mxu0 0.0
  %1199 = vmatpush2.msra.mxu0 0.0
  %1200 = vmatprep.subr.mxu0 0.0
  %1201 = vmatpush2.msra.mxu0 0.0
  %1202 = vmatprep.subr.mxu0 0.0
  %1203 = vmatpush2.msra.mxu0 0.0
  %1204 = vmatprep.subr.mxu0 0.0
  %1205 = vmatpush2.msra.mxu0 0.0
  %1206 = vmatprep.subr.mxu0 0.0
  %1207 = vmatpush2.msra.mxu0 0.0
  %1208 = vmatprep.subr.mxu0 0.0
  %1209 = vmatpush2.msra.mxu0 0.0
  %1210 = vmatprep.mubr.f32.mxu0 0.0
  %1211 = vmatmul.mubr.f32.gmra.mxu0 %v1140
  %v1212 = vpop.f32.mrf.mxu0
  %v1213 = vadd.f32 0.0, %v1212
  %v1214 = vpop.f32.mrf.mxu0
  %v1215 = vadd.f32 0.0, %v1214
  %1216 = vdwg.mxu0
  %1217 = vmatprep.subr.mxu0 %v789
  %1218 = vmatpush1.msra.mxu0 %v788
  %1219 = vmatprep.subr.mxu0 %v785
  %1220 = vmatpush1.msra.mxu0 %v784
  %1221 = vmatprep.subr.mxu0 %v781
  %1222 = vmatpush1.msra.mxu0 %v780
  %1223 = vmatprep.subr.mxu0 %v777
  %1224 = vmatpush1.msra.mxu0 %v776
  %1225 = vmatprep.subr.mxu0 %v773
  %1226 = vmatpush1.msra.mxu0 %v772
  %1227 = vmatprep.subr.mxu0 %v769
  %1228 = vmatpush1.msra.mxu0 %v768
  %1229 = vmatprep.subr.mxu0 %v765
  %1230 = vmatpush1.msra.mxu0 %v764
  %1231 = vmatprep.subr.mxu0 %v761
  %1232 = vmatpush1.msra.mxu0 %v760
  %1233 = vmatprep.subr.mxu0 %v757
  %1234 = vmatpush1.msra.mxu0 %v756
  %1235 = vmatprep.subr.mxu0 %v753
  %1236 = vmatpush1.msra.mxu0 %v752
  %1237 = vmatprep.subr.mxu0 %v749
  %1238 = vmatpush1.msra.mxu0 %v748
  %1239 = vmatprep.subr.mxu0 %v745
  %1240 = vmatpush1.msra.mxu0 %v744
  %1241 = vmatprep.subr.mxu0 %v741
  %1242 = vmatpush1.msra.mxu0 %v740
  %1243 = vmatprep.subr.mxu0 %v737
  %1244 = vmatpush1.msra.mxu0 %v736
  %1245 = vmatprep.subr.mxu0 %v733
  %1246 = vmatpush1.msra.mxu0 %v732
  %1247 = vmatprep.subr.mxu0 %v729
  %1248 = vmatpush1.msra.mxu0 %v728
  %1249 = vmatprep.subr.mxu0 0.0
  %1250 = vmatpush2.msra.mxu0 0.0
  %1251 = vmatprep.subr.mxu0 0.0
  %1252 = vmatpush2.msra.mxu0 0.0
  %1253 = vmatprep.subr.mxu0 0.0
  %1254 = vmatpush2.msra.mxu0 0.0
  %1255 = vmatprep.subr.mxu0 0.0
  %1256 = vmatpush2.msra.mxu0 0.0
  %1257 = vmatprep.subr.mxu0 0.0
  %1258 = vmatpush2.msra.mxu0 0.0
  %1259 = vmatprep.subr.mxu0 0.0
  %1260 = vmatpush2.msra.mxu0 0.0
  %1261 = vmatprep.subr.mxu0 0.0
  %1262 = vmatpush2.msra.mxu0 0.0
  %1263 = vmatprep.subr.mxu0 0.0
  %1264 = vmatpush2.msra.mxu0 0.0
  %1265 = vmatprep.subr.mxu0 0.0
  %1266 = vmatpush2.msra.mxu0 0.0
  %1267 = vmatprep.subr.mxu0 0.0
  %1268 = vmatpush2.msra.mxu0 0.0
  %1269 = vmatprep.subr.mxu0 0.0
  %1270 = vmatpush2.msra.mxu0 0.0
  %1271 = vmatprep.subr.mxu0 0.0
  %1272 = vmatpush2.msra.mxu0 0.0
  %1273 = vmatprep.subr.mxu0 0.0
  %1274 = vmatpush2.msra.mxu0 0.0
  %1275 = vmatprep.subr.mxu0 0.0
  %1276 = vmatpush2.msra.mxu0 0.0
  %1277 = vmatprep.subr.mxu0 0.0
  %1278 = vmatpush2.msra.mxu0 0.0
  %1279 = vmatprep.subr.mxu0 0.0
  %1280 = vmatpush2.msra.mxu0 0.0
  %1281 = vmatprep.mubr.f32.mxu0 0.0
  %1282 = vmatmul.mubr.f32.gmra.mxu0 %v1140
  %v1283 = vpop.f32.mrf.mxu0
  %v1284 = vadd.f32 0.0, %v1283
  %v1285 = vpop.f32.mrf.mxu0
  %v1286 = vadd.f32 0.0, %v1285
  %1287 = vdwg.mxu0
  %v1288 = vadd.f32 %v1142, %v1213
  %v1289 = vadd.f32 %v1143, %v1215
  %v1290 = vadd.f32 %v1144, %v1284
  %v1291 = vadd.f32 %v1145, %v1286
  %v1292 = vxor.u32 %v1288, 2147483648
  %v1293 = vmul.f32 %v1292, 1.442695
  %v1294 = vpow.pop %v1293
  %v1295 = vadd.f32 %v1294, 1.0
  %v1296 = vrcp.pop %v1295
  %v1297 = vmul.f32 1.0, %v1296
  %v1298 = vxor.u32 %v1289, 2147483648
  %v1299 = vmul.f32 %v1298, 1.442695
  %v1300 = vpow.pop %v1299
  %v1301 = vadd.f32 %v1300, 1.0
  %v1302 = vrcp.pop %v1301
  %v1303 = vmul.f32 1.0, %v1302
  %v1304 = vtanh.pop %v1290
  %v1305 = vxor.u32 %v1291, 2147483648
  %v1306 = vmul.f32 %v1305, 1.442695
  %v1307 = vpow.pop %v1306
  %v1308 = vadd.f32 %v1307, 1.0
  %v1309 = vrcp.pop %v1308
  %v1310 = vmul.f32 1.0, %v1309
  %v1311 = vmul.f32 %v1303, %v1138
  %v1312 = vmul.f32 %v1297, %v1304
  %v1313 = vadd.f32 %v1311, %v1312
  %v1314 = vtanh.pop %v1313
  %v1315 = vmul.f32 %v1310, %v1314
  %s1316 = scalar_lea.vmem [#allocation4], 96
  %v1317 = vld [vmem:[%s1316] sm:$0xff]
  %v1318 = vld [vmem:[%s1316 + $0x8] sm:$0xff]
  %v1319 = vld [vmem:[%s1316 + $0x10] sm:$0xff]
  %v1320 = vld [vmem:[%s1316 + $0x18] sm:$0xff]
  %1321 = vmatprep.subr.mxu0 %v787
  %1322 = vmatpush1.msra.mxu0 %v786
  %1323 = vmatprep.subr.mxu0 %v783
  %1324 = vmatpush1.msra.mxu0 %v782
  %1325 = vmatprep.subr.mxu0 %v779
  %1326 = vmatpush1.msra.mxu0 %v778
  %1327 = vmatprep.subr.mxu0 %v775
  %1328 = vmatpush1.msra.mxu0 %v774
  %1329 = vmatprep.subr.mxu0 %v771
  %1330 = vmatpush1.msra.mxu0 %v770
  %1331 = vmatprep.subr.mxu0 %v767
  %1332 = vmatpush1.msra.mxu0 %v766
  %1333 = vmatprep.subr.mxu0 %v763
  %1334 = vmatpush1.msra.mxu0 %v762
  %1335 = vmatprep.subr.mxu0 %v759
  %1336 = vmatpush1.msra.mxu0 %v758
  %1337 = vmatprep.subr.mxu0 %v755
  %1338 = vmatpush1.msra.mxu0 %v754
  %1339 = vmatprep.subr.mxu0 %v751
  %1340 = vmatpush1.msra.mxu0 %v750
  %1341 = vmatprep.subr.mxu0 %v747
  %1342 = vmatpush1.msra.mxu0 %v746
  %1343 = vmatprep.subr.mxu0 %v743
  %1344 = vmatpush1.msra.mxu0 %v742
  %1345 = vmatprep.subr.mxu0 %v739
  %1346 = vmatpush1.msra.mxu0 %v738
  %1347 = vmatprep.subr.mxu0 %v735
  %1348 = vmatpush1.msra.mxu0 %v734
  %1349 = vmatprep.subr.mxu0 %v731
  %1350 = vmatpush1.msra.mxu0 %v730
  %1351 = vmatprep.subr.mxu0 %v727
  %1352 = vmatpush1.msra.mxu0 %v726
  %1353 = vmatprep.subr.mxu0 0.0
  %1354 = vmatpush2.msra.mxu0 0.0
  %1355 = vmatprep.subr.mxu0 0.0
  %1356 = vmatpush2.msra.mxu0 0.0
  %1357 = vmatprep.subr.mxu0 0.0
  %1358 = vmatpush2.msra.mxu0 0.0
  %1359 = vmatprep.subr.mxu0 0.0
  %1360 = vmatpush2.msra.mxu0 0.0
  %1361 = vmatprep.subr.mxu0 0.0
  %1362 = vmatpush2.msra.mxu0 0.0
  %1363 = vmatprep.subr.mxu0 0.0
  %1364 = vmatpush2.msra.mxu0 0.0
  %1365 = vmatprep.subr.mxu0 0.0
  %1366 = vmatpush2.msra.mxu0 0.0
  %1367 = vmatprep.subr.mxu0 0.0
  %1368 = vmatpush2.msra.mxu0 0.0
  %1369 = vmatprep.subr.mxu0 0.0
  %1370 = vmatpush2.msra.mxu0 0.0
  %1371 = vmatprep.subr.mxu0 0.0
  %1372 = vmatpush2.msra.mxu0 0.0
  %1373 = vmatprep.subr.mxu0 0.0
  %1374 = vmatpush2.msra.mxu0 0.0
  %1375 = vmatprep.subr.mxu0 0.0
  %1376 = vmatpush2.msra.mxu0 0.0
  %1377 = vmatprep.subr.mxu0 0.0
  %1378 = vmatpush2.msra.mxu0 0.0
  %1379 = vmatprep.subr.mxu0 0.0
  %1380 = vmatpush2.msra.mxu0 0.0
  %1381 = vmatprep.subr.mxu0 0.0
  %1382 = vmatpush2.msra.mxu0 0.0
  %1383 = vmatprep.subr.mxu0 0.0
  %1384 = vmatpush2.msra.mxu0 0.0
  %1385 = vmatprep.mubr.f32.mxu0 0.0
  %1386 = vmatmul.mubr.f32.gmra.mxu0 %v1315
  %v1387 = vpop.f32.mrf.mxu0
  %v1388 = vadd.f32 0.0, %v1387
  %v1389 = vpop.f32.mrf.mxu0
  %v1390 = vadd.f32 0.0, %v1389
  %1391 = vdwg.mxu0
  %1392 = vmatprep.subr.mxu0 %v789
  %1393 = vmatpush1.msra.mxu0 %v788
  %1394 = vmatprep.subr.mxu0 %v785
  %1395 = vmatpush1.msra.mxu0 %v784
  %1396 = vmatprep.subr.mxu0 %v781
  %1397 = vmatpush1.msra.mxu0 %v780
  %1398 = vmatprep.subr.mxu0 %v777
  %1399 = vmatpush1.msra.mxu0 %v776
  %1400 = vmatprep.subr.mxu0 %v773
  %1401 = vmatpush1.msra.mxu0 %v772
  %1402 = vmatprep.subr.mxu0 %v769
  %1403 = vmatpush1.msra.mxu0 %v768
  %1404 = vmatprep.subr.mxu0 %v765
  %1405 = vmatpush1.msra.mxu0 %v764
  %1406 = vmatprep.subr.mxu0 %v761
  %1407 = vmatpush1.msra.mxu0 %v760
  %1408 = vmatprep.subr.mxu0 %v757
  %1409 = vmatpush1.msra.mxu0 %v756
  %1410 = vmatprep.subr.mxu0 %v753
  %1411 = vmatpush1.msra.mxu0 %v752
  %1412 = vmatprep.subr.mxu0 %v749
  %1413 = vmatpush1.msra.mxu0 %v748
  %1414 = vmatprep.subr.mxu0 %v745
  %1415 = vmatpush1.msra.mxu0 %v744
  %1416 = vmatprep.subr.mxu0 %v741
  %1417 = vmatpush1.msra.mxu0 %v740
  %1418 = vmatprep.subr.mxu0 %v737
  %1419 = vmatpush1.msra.mxu0 %v736
  %1420 = vmatprep.subr.mxu0 %v733
  %1421 = vmatpush1.msra.mxu0 %v732
  %1422 = vmatprep.subr.mxu0 %v729
  %1423 = vmatpush1.msra.mxu0 %v728
  %1424 = vmatprep.subr.mxu0 0.0
  %1425 = vmatpush2.msra.mxu0 0.0
  %1426 = vmatprep.subr.mxu0 0.0
  %1427 = vmatpush2.msra.mxu0 0.0
  %1428 = vmatprep.subr.mxu0 0.0
  %1429 = vmatpush2.msra.mxu0 0.0
  %1430 = vmatprep.subr.mxu0 0.0
  %1431 = vmatpush2.msra.mxu0 0.0
  %1432 = vmatprep.subr.mxu0 0.0
  %1433 = vmatpush2.msra.mxu0 0.0
  %1434 = vmatprep.subr.mxu0 0.0
  %1435 = vmatpush2.msra.mxu0 0.0
  %1436 = vmatprep.subr.mxu0 0.0
  %1437 = vmatpush2.msra.mxu0 0.0
  %1438 = vmatprep.subr.mxu0 0.0
  %1439 = vmatpush2.msra.mxu0 0.0
  %1440 = vmatprep.subr.mxu0 0.0
  %1441 = vmatpush2.msra.mxu0 0.0
  %1442 = vmatprep.subr.mxu0 0.0
  %1443 = vmatpush2.msra.mxu0 0.0
  %1444 = vmatprep.subr.mxu0 0.0
  %1445 = vmatpush2.msra.mxu0 0.0
  %1446 = vmatprep.subr.mxu0 0.0
  %1447 = vmatpush2.msra.mxu0 0.0
  %1448 = vmatprep.subr.mxu0 0.0
  %1449 = vmatpush2.msra.mxu0 0.0
  %1450 = vmatprep.subr.mxu0 0.0
  %1451 = vmatpush2.msra.mxu0 0.0
  %1452 = vmatprep.subr.mxu0 0.0
  %1453 = vmatpush2.msra.mxu0 0.0
  %1454 = vmatprep.subr.mxu0 0.0
  %1455 = vmatpush2.msra.mxu0 0.0
  %1456 = vmatprep.mubr.f32.mxu0 0.0
  %1457 = vmatmul.mubr.f32.gmra.mxu0 %v1315
  %v1458 = vpop.f32.mrf.mxu0
  %v1459 = vadd.f32 0.0, %v1458
  %v1460 = vpop.f32.mrf.mxu0
  %v1461 = vadd.f32 0.0, %v1460
  %1462 = vdwg.mxu0
  %v1463 = vadd.f32 %v1317, %v1388
  %v1464 = vadd.f32 %v1318, %v1390
  %v1465 = vadd.f32 %v1319, %v1459
  %v1466 = vadd.f32 %v1320, %v1461
  %v1467 = vxor.u32 %v1463, 2147483648
  %v1468 = vmul.f32 %v1467, 1.442695
  %v1469 = vpow.pop %v1468
  %v1470 = vadd.f32 %v1469, 1.0
  %v1471 = vrcp.pop %v1470
  %v1472 = vmul.f32 1.0, %v1471
  %v1473 = vxor.u32 %v1464, 2147483648
  %v1474 = vmul.f32 %v1473, 1.442695
  %v1475 = vpow.pop %v1474
  %v1476 = vadd.f32 %v1475, 1.0
  %v1477 = vrcp.pop %v1476
  %v1478 = vmul.f32 1.0, %v1477
  %v1479 = vtanh.pop %v1465
  %v1480 = vxor.u32 %v1466, 2147483648
  %v1481 = vmul.f32 %v1480, 1.442695
  %v1482 = vpow.pop %v1481
  %v1483 = vadd.f32 %v1482, 1.0
  %v1484 = vrcp.pop %v1483
  %v1485 = vmul.f32 1.0, %v1484
  %v1486 = vmul.f32 %v1478, %v1313
  %v1487 = vmul.f32 %v1472, %v1479
  %v1488 = vadd.f32 %v1486, %v1487
  %v1489 = vtanh.pop %v1488
  %v1490 = vmul.f32 %v1485, %v1489
  %s1491 = scalar_lea.vmem [#allocation4], 128
  %v1492 = vld [vmem:[%s1491] sm:$0xff]
  %v1493 = vld [vmem:[%s1491 + $0x8] sm:$0xff]
  %v1494 = vld [vmem:[%s1491 + $0x10] sm:$0xff]
  %v1495 = vld [vmem:[%s1491 + $0x18] sm:$0xff]
  %1496 = vmatprep.subr.mxu0 %v787
  %1497 = vmatpush1.msra.mxu0 %v786
  %1498 = vmatprep.subr.mxu0 %v783
  %1499 = vmatpush1.msra.mxu0 %v782
  %1500 = vmatprep.subr.mxu0 %v779
  %1501 = vmatpush1.msra.mxu0 %v778
  %1502 = vmatprep.subr.mxu0 %v775
  %1503 = vmatpush1.msra.mxu0 %v774
  %1504 = vmatprep.subr.mxu0 %v771
  %1505 = vmatpush1.msra.mxu0 %v770
  %1506 = vmatprep.subr.mxu0 %v767
  %1507 = vmatpush1.msra.mxu0 %v766
  %1508 = vmatprep.subr.mxu0 %v763
  %1509 = vmatpush1.msra.mxu0 %v762
  %1510 = vmatprep.subr.mxu0 %v759
  %1511 = vmatpush1.msra.mxu0 %v758
  %1512 = vmatprep.subr.mxu0 %v755
  %1513 = vmatpush1.msra.mxu0 %v754
  %1514 = vmatprep.subr.mxu0 %v751
  %1515 = vmatpush1.msra.mxu0 %v750
  %1516 = vmatprep.subr.mxu0 %v747
  %1517 = vmatpush1.msra.mxu0 %v746
  %1518 = vmatprep.subr.mxu0 %v743
  %1519 = vmatpush1.msra.mxu0 %v742
  %1520 = vmatprep.subr.mxu0 %v739
  %1521 = vmatpush1.msra.mxu0 %v738
  %1522 = vmatprep.subr.mxu0 %v735
  %1523 = vmatpush1.msra.mxu0 %v734
  %1524 = vmatprep.subr.mxu0 %v731
  %1525 = vmatpush1.msra.mxu0 %v730
  %1526 = vmatprep.subr.mxu0 %v727
  %1527 = vmatpush1.msra.mxu0 %v726
  %1528 = vmatprep.subr.mxu0 0.0
  %1529 = vmatpush2.msra.mxu0 0.0
  %1530 = vmatprep.subr.mxu0 0.0
  %1531 = vmatpush2.msra.mxu0 0.0
  %1532 = vmatprep.subr.mxu0 0.0
  %1533 = vmatpush2.msra.mxu0 0.0
  %1534 = vmatprep.subr.mxu0 0.0
  %1535 = vmatpush2.msra.mxu0 0.0
  %1536 = vmatprep.subr.mxu0 0.0
  %1537 = vmatpush2.msra.mxu0 0.0
  %1538 = vmatprep.subr.mxu0 0.0
  %1539 = vmatpush2.msra.mxu0 0.0
  %1540 = vmatprep.subr.mxu0 0.0
  %1541 = vmatpush2.msra.mxu0 0.0
  %1542 = vmatprep.subr.mxu0 0.0
  %1543 = vmatpush2.msra.mxu0 0.0
  %1544 = vmatprep.subr.mxu0 0.0
  %1545 = vmatpush2.msra.mxu0 0.0
  %1546 = vmatprep.subr.mxu0 0.0
  %1547 = vmatpush2.msra.mxu0 0.0
  %1548 = vmatprep.subr.mxu0 0.0
  %1549 = vmatpush2.msra.mxu0 0.0
  %1550 = vmatprep.subr.mxu0 0.0
  %1551 = vmatpush2.msra.mxu0 0.0
  %1552 = vmatprep.subr.mxu0 0.0
  %1553 = vmatpush2.msra.mxu0 0.0
  %1554 = vmatprep.subr.mxu0 0.0
  %1555 = vmatpush2.msra.mxu0 0.0
  %1556 = vmatprep.subr.mxu0 0.0
  %1557 = vmatpush2.msra.mxu0 0.0
  %1558 = vmatprep.subr.mxu0 0.0
  %1559 = vmatpush2.msra.mxu0 0.0
  %1560 = vmatprep.mubr.f32.mxu0 0.0
  %1561 = vmatmul.mubr.f32.gmra.mxu0 %v1490
  %v1562 = vpop.f32.mrf.mxu0
  %v1563 = vadd.f32 0.0, %v1562
  %v1564 = vpop.f32.mrf.mxu0
  %v1565 = vadd.f32 0.0, %v1564
  %1566 = vdwg.mxu0
  %1567 = vmatprep.subr.mxu0 %v789
  %1568 = vmatpush1.msra.mxu0 %v788
  %1569 = vmatprep.subr.mxu0 %v785
  %1570 = vmatpush1.msra.mxu0 %v784
  %1571 = vmatprep.subr.mxu0 %v781
  %1572 = vmatpush1.msra.mxu0 %v780
  %1573 = vmatprep.subr.mxu0 %v777
  %1574 = vmatpush1.msra.mxu0 %v776
  %1575 = vmatprep.subr.mxu0 %v773
  %1576 = vmatpush1.msra.mxu0 %v772
  %1577 = vmatprep.subr.mxu0 %v769
  %1578 = vmatpush1.msra.mxu0 %v768
  %1579 = vmatprep.subr.mxu0 %v765
  %1580 = vmatpush1.msra.mxu0 %v764
  %1581 = vmatprep.subr.mxu0 %v761
  %1582 = vmatpush1.msra.mxu0 %v760
  %1583 = vmatprep.subr.mxu0 %v757
  %1584 = vmatpush1.msra.mxu0 %v756
  %1585 = vmatprep.subr.mxu0 %v753
  %1586 = vmatpush1.msra.mxu0 %v752
  %1587 = vmatprep.subr.mxu0 %v749
  %1588 = vmatpush1.msra.mxu0 %v748
  %1589 = vmatprep.subr.mxu0 %v745
  %1590 = vmatpush1.msra.mxu0 %v744
  %1591 = vmatprep.subr.mxu0 %v741
  %1592 = vmatpush1.msra.mxu0 %v740
  %1593 = vmatprep.subr.mxu0 %v737
  %1594 = vmatpush1.msra.mxu0 %v736
  %1595 = vmatprep.subr.mxu0 %v733
  %1596 = vmatpush1.msra.mxu0 %v732
  %1597 = vmatprep.subr.mxu0 %v729
  %1598 = vmatpush1.msra.mxu0 %v728
  %1599 = vmatprep.subr.mxu0 0.0
  %1600 = vmatpush2.msra.mxu0 0.0
  %1601 = vmatprep.subr.mxu0 0.0
  %1602 = vmatpush2.msra.mxu0 0.0
  %1603 = vmatprep.subr.mxu0 0.0
  %1604 = vmatpush2.msra.mxu0 0.0
  %1605 = vmatprep.subr.mxu0 0.0
  %1606 = vmatpush2.msra.mxu0 0.0
  %1607 = vmatprep.subr.mxu0 0.0
  %1608 = vmatpush2.msra.mxu0 0.0
  %1609 = vmatprep.subr.mxu0 0.0
  %1610 = vmatpush2.msra.mxu0 0.0
  %1611 = vmatprep.subr.mxu0 0.0
  %1612 = vmatpush2.msra.mxu0 0.0
  %1613 = vmatprep.subr.mxu0 0.0
  %1614 = vmatpush2.msra.mxu0 0.0
  %1615 = vmatprep.subr.mxu0 0.0
  %1616 = vmatpush2.msra.mxu0 0.0
  %1617 = vmatprep.subr.mxu0 0.0
  %1618 = vmatpush2.msra.mxu0 0.0
  %1619 = vmatprep.subr.mxu0 0.0
  %1620 = vmatpush2.msra.mxu0 0.0
  %1621 = vmatprep.subr.mxu0 0.0
  %1622 = vmatpush2.msra.mxu0 0.0
  %1623 = vmatprep.subr.mxu0 0.0
  %1624 = vmatpush2.msra.mxu0 0.0
  %1625 = vmatprep.subr.mxu0 0.0
  %1626 = vmatpush2.msra.mxu0 0.0
  %1627 = vmatprep.subr.mxu0 0.0
  %1628 = vmatpush2.msra.mxu0 0.0
  %1629 = vmatprep.subr.mxu0 0.0
  %1630 = vmatpush2.msra.mxu0 0.0
  %1631 = vmatprep.mubr.f32.mxu0 0.0
  %1632 = vmatmul.mubr.f32.gmra.mxu0 %v1490
  %v1633 = vpop.f32.mrf.mxu0
  %v1634 = vadd.f32 0.0, %v1633
  %v1635 = vpop.f32.mrf.mxu0
  %v1636 = vadd.f32 0.0, %v1635
  %1637 = vdwg.mxu0
  %v1638 = vadd.f32 %v1492, %v1563
  %v1639 = vadd.f32 %v1493, %v1565
  %v1640 = vadd.f32 %v1494, %v1634
  %v1641 = vadd.f32 %v1495, %v1636
  %v1642 = vxor.u32 %v1638, 2147483648
  %v1643 = vmul.f32 %v1642, 1.442695
  %v1644 = vpow.pop %v1643
  %v1645 = vadd.f32 %v1644, 1.0
  %v1646 = vrcp.pop %v1645
  %v1647 = vmul.f32 1.0, %v1646
  %v1648 = vxor.u32 %v1639, 2147483648
  %v1649 = vmul.f32 %v1648, 1.442695
  %v1650 = vpow.pop %v1649
  %v1651 = vadd.f32 %v1650, 1.0
  %v1652 = vrcp.pop %v1651
  %v1653 = vmul.f32 1.0, %v1652
  %v1654 = vtanh.pop %v1640
  %v1655 = vxor.u32 %v1641, 2147483648
  %v1656 = vmul.f32 %v1655, 1.442695
  %v1657 = vpow.pop %v1656
  %v1658 = vadd.f32 %v1657, 1.0
  %v1659 = vrcp.pop %v1658
  %v1660 = vmul.f32 1.0, %v1659
  %v1661 = vmul.f32 %v1653, %v1488
  %v1662 = vmul.f32 %v1647, %v1654
  %v1663 = vadd.f32 %v1661, %v1662
  %v1664 = vtanh.pop %v1663
  %v1665 = vmul.f32 %v1660, %v1664
  %s1666 = scalar_lea.vmem [#allocation4], 160
  %v1667 = vld [vmem:[%s1666] sm:$0xff]
  %v1668 = vld [vmem:[%s1666 + $0x8] sm:$0xff]
  %v1669 = vld [vmem:[%s1666 + $0x10] sm:$0xff]
  %v1670 = vld [vmem:[%s1666 + $0x18] sm:$0xff]
  %1671 = vmatprep.subr.mxu0 %v787
  %1672 = vmatpush1.msra.mxu0 %v786
  %1673 = vmatprep.subr.mxu0 %v783
  %1674 = vmatpush1.msra.mxu0 %v782
  %1675 = vmatprep.subr.mxu0 %v779
  %1676 = vmatpush1.msra.mxu0 %v778
  %1677 = vmatprep.subr.mxu0 %v775
  %1678 = vmatpush1.msra.mxu0 %v774
  %1679 = vmatprep.subr.mxu0 %v771
  %1680 = vmatpush1.msra.mxu0 %v770
  %1681 = vmatprep.subr.mxu0 %v767
  %1682 = vmatpush1.msra.mxu0 %v766
  %1683 = vmatprep.subr.mxu0 %v763
  %1684 = vmatpush1.msra.mxu0 %v762
  %1685 = vmatprep.subr.mxu0 %v759
  %1686 = vmatpush1.msra.mxu0 %v758
  %1687 = vmatprep.subr.mxu0 %v755
  %1688 = vmatpush1.msra.mxu0 %v754
  %1689 = vmatprep.subr.mxu0 %v751
  %1690 = vmatpush1.msra.mxu0 %v750
  %1691 = vmatprep.subr.mxu0 %v747
  %1692 = vmatpush1.msra.mxu0 %v746
  %1693 = vmatprep.subr.mxu0 %v743
  %1694 = vmatpush1.msra.mxu0 %v742
  %1695 = vmatprep.subr.mxu0 %v739
  %1696 = vmatpush1.msra.mxu0 %v738
  %1697 = vmatprep.subr.mxu0 %v735
  %1698 = vmatpush1.msra.mxu0 %v734
  %1699 = vmatprep.subr.mxu0 %v731
  %1700 = vmatpush1.msra.mxu0 %v730
  %1701 = vmatprep.subr.mxu0 %v727
  %1702 = vmatpush1.msra.mxu0 %v726
  %1703 = vmatprep.subr.mxu0 0.0
  %1704 = vmatpush2.msra.mxu0 0.0
  %1705 = vmatprep.subr.mxu0 0.0
  %1706 = vmatpush2.msra.mxu0 0.0
  %1707 = vmatprep.subr.mxu0 0.0
  %1708 = vmatpush2.msra.mxu0 0.0
  %1709 = vmatprep.subr.mxu0 0.0
  %1710 = vmatpush2.msra.mxu0 0.0
  %1711 = vmatprep.subr.mxu0 0.0
  %1712 = vmatpush2.msra.mxu0 0.0
  %1713 = vmatprep.subr.mxu0 0.0
  %1714 = vmatpush2.msra.mxu0 0.0
  %1715 = vmatprep.subr.mxu0 0.0
  %1716 = vmatpush2.msra.mxu0 0.0
  %1717 = vmatprep.subr.mxu0 0.0
  %1718 = vmatpush2.msra.mxu0 0.0
  %1719 = vmatprep.subr.mxu0 0.0
  %1720 = vmatpush2.msra.mxu0 0.0
  %1721 = vmatprep.subr.mxu0 0.0
  %1722 = vmatpush2.msra.mxu0 0.0
  %1723 = vmatprep.subr.mxu0 0.0
  %1724 = vmatpush2.msra.mxu0 0.0
  %1725 = vmatprep.subr.mxu0 0.0
  %1726 = vmatpush2.msra.mxu0 0.0
  %1727 = vmatprep.subr.mxu0 0.0
  %1728 = vmatpush2.msra.mxu0 0.0
  %1729 = vmatprep.subr.mxu0 0.0
  %1730 = vmatpush2.msra.mxu0 0.0
  %1731 = vmatprep.subr.mxu0 0.0
  %1732 = vmatpush2.msra.mxu0 0.0
  %1733 = vmatprep.subr.mxu0 0.0
  %1734 = vmatpush2.msra.mxu0 0.0
  %1735 = vmatprep.mubr.f32.mxu0 0.0
  %1736 = vmatmul.mubr.f32.gmra.mxu0 %v1665
  %v1737 = vpop.f32.mrf.mxu0
  %v1738 = vadd.f32 0.0, %v1737
  %v1739 = vpop.f32.mrf.mxu0
  %v1740 = vadd.f32 0.0, %v1739
  %1741 = vdwg.mxu0
  %1742 = vmatprep.subr.mxu0 %v789
  %1743 = vmatpush1.msra.mxu0 %v788
  %1744 = vmatprep.subr.mxu0 %v785
  %1745 = vmatpush1.msra.mxu0 %v784
  %1746 = vmatprep.subr.mxu0 %v781
  %1747 = vmatpush1.msra.mxu0 %v780
  %1748 = vmatprep.subr.mxu0 %v777
  %1749 = vmatpush1.msra.mxu0 %v776
  %1750 = vmatprep.subr.mxu0 %v773
  %1751 = vmatpush1.msra.mxu0 %v772
  %1752 = vmatprep.subr.mxu0 %v769
  %1753 = vmatpush1.msra.mxu0 %v768
  %1754 = vmatprep.subr.mxu0 %v765
  %1755 = vmatpush1.msra.mxu0 %v764
  %1756 = vmatprep.subr.mxu0 %v761
  %1757 = vmatpush1.msra.mxu0 %v760
  %1758 = vmatprep.subr.mxu0 %v757
  %1759 = vmatpush1.msra.mxu0 %v756
  %1760 = vmatprep.subr.mxu0 %v753
  %1761 = vmatpush1.msra.mxu0 %v752
  %1762 = vmatprep.subr.mxu0 %v749
  %1763 = vmatpush1.msra.mxu0 %v748
  %1764 = vmatprep.subr.mxu0 %v745
  %1765 = vmatpush1.msra.mxu0 %v744
  %1766 = vmatprep.subr.mxu0 %v741
  %1767 = vmatpush1.msra.mxu0 %v740
  %1768 = vmatprep.subr.mxu0 %v737
  %1769 = vmatpush1.msra.mxu0 %v736
  %1770 = vmatprep.subr.mxu0 %v733
  %1771 = vmatpush1.msra.mxu0 %v732
  %1772 = vmatprep.subr.mxu0 %v729
  %1773 = vmatpush1.msra.mxu0 %v728
  %1774 = vmatprep.subr.mxu0 0.0
  %1775 = vmatpush2.msra.mxu0 0.0
  %1776 = vmatprep.subr.mxu0 0.0
  %1777 = vmatpush2.msra.mxu0 0.0
  %1778 = vmatprep.subr.mxu0 0.0
  %1779 = vmatpush2.msra.mxu0 0.0
  %1780 = vmatprep.subr.mxu0 0.0
  %1781 = vmatpush2.msra.mxu0 0.0
  %1782 = vmatprep.subr.mxu0 0.0
  %1783 = vmatpush2.msra.mxu0 0.0
  %1784 = vmatprep.subr.mxu0 0.0
  %1785 = vmatpush2.msra.mxu0 0.0
  %1786 = vmatprep.subr.mxu0 0.0
  %1787 = vmatpush2.msra.mxu0 0.0
  %1788 = vmatprep.subr.mxu0 0.0
  %1789 = vmatpush2.msra.mxu0 0.0
  %1790 = vmatprep.subr.mxu0 0.0
  %1791 = vmatpush2.msra.mxu0 0.0
  %1792 = vmatprep.subr.mxu0 0.0
  %1793 = vmatpush2.msra.mxu0 0.0
  %1794 = vmatprep.subr.mxu0 0.0
  %1795 = vmatpush2.msra.mxu0 0.0
  %1796 = vmatprep.subr.mxu0 0.0
  %1797 = vmatpush2.msra.mxu0 0.0
  %1798 = vmatprep.subr.mxu0 0.0
  %1799 = vmatpush2.msra.mxu0 0.0
  %1800 = vmatprep.subr.mxu0 0.0
  %1801 = vmatpush2.msra.mxu0 0.0
  %1802 = vmatprep.subr.mxu0 0.0
  %1803 = vmatpush2.msra.mxu0 0.0
  %1804 = vmatprep.subr.mxu0 0.0
  %1805 = vmatpush2.msra.mxu0 0.0
  %1806 = vmatprep.mubr.f32.mxu0 0.0
  %1807 = vmatmul.mubr.f32.gmra.mxu0 %v1665
  %v1808 = vpop.f32.mrf.mxu0
  %v1809 = vadd.f32 0.0, %v1808
  %v1810 = vpop.f32.mrf.mxu0
  %v1811 = vadd.f32 0.0, %v1810
  %1812 = vdwg.mxu0
  %v1813 = vadd.f32 %v1667, %v1738
  %v1814 = vadd.f32 %v1668, %v1740
  %v1815 = vadd.f32 %v1669, %v1809
  %v1816 = vadd.f32 %v1670, %v1811
  %v1817 = vxor.u32 %v1813, 2147483648
  %v1818 = vmul.f32 %v1817, 1.442695
  %v1819 = vpow.pop %v1818
  %v1820 = vadd.f32 %v1819, 1.0
  %v1821 = vrcp.pop %v1820
  %v1822 = vmul.f32 1.0, %v1821
  %v1823 = vxor.u32 %v1814, 2147483648
  %v1824 = vmul.f32 %v1823, 1.442695
  %v1825 = vpow.pop %v1824
  %v1826 = vadd.f32 %v1825, 1.0
  %v1827 = vrcp.pop %v1826
  %v1828 = vmul.f32 1.0, %v1827
  %v1829 = vtanh.pop %v1815
  %v1830 = vxor.u32 %v1816, 2147483648
  %v1831 = vmul.f32 %v1830, 1.442695
  %v1832 = vpow.pop %v1831
  %v1833 = vadd.f32 %v1832, 1.0
  %v1834 = vrcp.pop %v1833
  %v1835 = vmul.f32 1.0, %v1834
  %v1836 = vmul.f32 %v1828, %v1663
  %v1837 = vmul.f32 %v1822, %v1829
  %v1838 = vadd.f32 %v1836, %v1837
  %v1839 = vtanh.pop %v1838
  %v1840 = vmul.f32 %v1835, %v1839
  %s1841 = scalar_lea.vmem [#allocation4], 192
  %v1842 = vld [vmem:[%s1841] sm:$0xff]
  %v1843 = vld [vmem:[%s1841 + $0x8] sm:$0xff]
  %v1844 = vld [vmem:[%s1841 + $0x10] sm:$0xff]
  %v1845 = vld [vmem:[%s1841 + $0x18] sm:$0xff]
  %1846 = vmatprep.subr.mxu0 %v787
  %1847 = vmatpush1.msra.mxu0 %v786
  %1848 = vmatprep.subr.mxu0 %v783
  %1849 = vmatpush1.msra.mxu0 %v782
  %1850 = vmatprep.subr.mxu0 %v779
  %1851 = vmatpush1.msra.mxu0 %v778
  %1852 = vmatprep.subr.mxu0 %v775
  %1853 = vmatpush1.msra.mxu0 %v774
  %1854 = vmatprep.subr.mxu0 %v771
  %1855 = vmatpush1.msra.mxu0 %v770
  %1856 = vmatprep.subr.mxu0 %v767
  %1857 = vmatpush1.msra.mxu0 %v766
  %1858 = vmatprep.subr.mxu0 %v763
  %1859 = vmatpush1.msra.mxu0 %v762
  %1860 = vmatprep.subr.mxu0 %v759
  %1861 = vmatpush1.msra.mxu0 %v758
  %1862 = vmatprep.subr.mxu0 %v755
  %1863 = vmatpush1.msra.mxu0 %v754
  %1864 = vmatprep.subr.mxu0 %v751
  %1865 = vmatpush1.msra.mxu0 %v750
  %1866 = vmatprep.subr.mxu0 %v747
  %1867 = vmatpush1.msra.mxu0 %v746
  %1868 = vmatprep.subr.mxu0 %v743
  %1869 = vmatpush1.msra.mxu0 %v742
  %1870 = vmatprep.subr.mxu0 %v739
  %1871 = vmatpush1.msra.mxu0 %v738
  %1872 = vmatprep.subr.mxu0 %v735
  %1873 = vmatpush1.msra.mxu0 %v734
  %1874 = vmatprep.subr.mxu0 %v731
  %1875 = vmatpush1.msra.mxu0 %v730
  %1876 = vmatprep.subr.mxu0 %v727
  %1877 = vmatpush1.msra.mxu0 %v726
  %1878 = vmatprep.subr.mxu0 0.0
  %1879 = vmatpush2.msra.mxu0 0.0
  %1880 = vmatprep.subr.mxu0 0.0
  %1881 = vmatpush2.msra.mxu0 0.0
  %1882 = vmatprep.subr.mxu0 0.0
  %1883 = vmatpush2.msra.mxu0 0.0
  %1884 = vmatprep.subr.mxu0 0.0
  %1885 = vmatpush2.msra.mxu0 0.0
  %1886 = vmatprep.subr.mxu0 0.0
  %1887 = vmatpush2.msra.mxu0 0.0
  %1888 = vmatprep.subr.mxu0 0.0
  %1889 = vmatpush2.msra.mxu0 0.0
  %1890 = vmatprep.subr.mxu0 0.0
  %1891 = vmatpush2.msra.mxu0 0.0
  %1892 = vmatprep.subr.mxu0 0.0
  %1893 = vmatpush2.msra.mxu0 0.0
  %1894 = vmatprep.subr.mxu0 0.0
  %1895 = vmatpush2.msra.mxu0 0.0
  %1896 = vmatprep.subr.mxu0 0.0
  %1897 = vmatpush2.msra.mxu0 0.0
  %1898 = vmatprep.subr.mxu0 0.0
  %1899 = vmatpush2.msra.mxu0 0.0
  %1900 = vmatprep.subr.mxu0 0.0
  %1901 = vmatpush2.msra.mxu0 0.0
  %1902 = vmatprep.subr.mxu0 0.0
  %1903 = vmatpush2.msra.mxu0 0.0
  %1904 = vmatprep.subr.mxu0 0.0
  %1905 = vmatpush2.msra.mxu0 0.0
  %1906 = vmatprep.subr.mxu0 0.0
  %1907 = vmatpush2.msra.mxu0 0.0
  %1908 = vmatprep.subr.mxu0 0.0
  %1909 = vmatpush2.msra.mxu0 0.0
  %1910 = vmatprep.mubr.f32.mxu0 0.0
  %1911 = vmatmul.mubr.f32.gmra.mxu0 %v1840
  %v1912 = vpop.f32.mrf.mxu0
  %v1913 = vadd.f32 0.0, %v1912
  %v1914 = vpop.f32.mrf.mxu0
  %v1915 = vadd.f32 0.0, %v1914
  %1916 = vdwg.mxu0
  %1917 = vmatprep.subr.mxu0 %v789
  %1918 = vmatpush1.msra.mxu0 %v788
  %1919 = vmatprep.subr.mxu0 %v785
  %1920 = vmatpush1.msra.mxu0 %v784
  %1921 = vmatprep.subr.mxu0 %v781
  %1922 = vmatpush1.msra.mxu0 %v780
  %1923 = vmatprep.subr.mxu0 %v777
  %1924 = vmatpush1.msra.mxu0 %v776
  %1925 = vmatprep.subr.mxu0 %v773
  %1926 = vmatpush1.msra.mxu0 %v772
  %1927 = vmatprep.subr.mxu0 %v769
  %1928 = vmatpush1.msra.mxu0 %v768
  %1929 = vmatprep.subr.mxu0 %v765
  %1930 = vmatpush1.msra.mxu0 %v764
  %1931 = vmatprep.subr.mxu0 %v761
  %1932 = vmatpush1.msra.mxu0 %v760
  %1933 = vmatprep.subr.mxu0 %v757
  %1934 = vmatpush1.msra.mxu0 %v756
  %1935 = vmatprep.subr.mxu0 %v753
  %1936 = vmatpush1.msra.mxu0 %v752
  %1937 = vmatprep.subr.mxu0 %v749
  %1938 = vmatpush1.msra.mxu0 %v748
  %1939 = vmatprep.subr.mxu0 %v745
  %1940 = vmatpush1.msra.mxu0 %v744
  %1941 = vmatprep.subr.mxu0 %v741
  %1942 = vmatpush1.msra.mxu0 %v740
  %1943 = vmatprep.subr.mxu0 %v737
  %1944 = vmatpush1.msra.mxu0 %v736
  %1945 = vmatprep.subr.mxu0 %v733
  %1946 = vmatpush1.msra.mxu0 %v732
  %1947 = vmatprep.subr.mxu0 %v729
  %1948 = vmatpush1.msra.mxu0 %v728
  %1949 = vmatprep.subr.mxu0 0.0
  %1950 = vmatpush2.msra.mxu0 0.0
  %1951 = vmatprep.subr.mxu0 0.0
  %1952 = vmatpush2.msra.mxu0 0.0
  %1953 = vmatprep.subr.mxu0 0.0
  %1954 = vmatpush2.msra.mxu0 0.0
  %1955 = vmatprep.subr.mxu0 0.0
  %1956 = vmatpush2.msra.mxu0 0.0
  %1957 = vmatprep.subr.mxu0 0.0
  %1958 = vmatpush2.msra.mxu0 0.0
  %1959 = vmatprep.subr.mxu0 0.0
  %1960 = vmatpush2.msra.mxu0 0.0
  %1961 = vmatprep.subr.mxu0 0.0
  %1962 = vmatpush2.msra.mxu0 0.0
  %1963 = vmatprep.subr.mxu0 0.0
  %1964 = vmatpush2.msra.mxu0 0.0
  %1965 = vmatprep.subr.mxu0 0.0
  %1966 = vmatpush2.msra.mxu0 0.0
  %1967 = vmatprep.subr.mxu0 0.0
  %1968 = vmatpush2.msra.mxu0 0.0
  %1969 = vmatprep.subr.mxu0 0.0
  %1970 = vmatpush2.msra.mxu0 0.0
  %1971 = vmatprep.subr.mxu0 0.0
  %1972 = vmatpush2.msra.mxu0 0.0
  %1973 = vmatprep.subr.mxu0 0.0
  %1974 = vmatpush2.msra.mxu0 0.0
  %1975 = vmatprep.subr.mxu0 0.0
  %1976 = vmatpush2.msra.mxu0 0.0
  %1977 = vmatprep.subr.mxu0 0.0
  %1978 = vmatpush2.msra.mxu0 0.0
  %1979 = vmatprep.subr.mxu0 0.0
  %1980 = vmatpush2.msra.mxu0 0.0
  %1981 = vmatprep.mubr.f32.mxu0 0.0
  %1982 = vmatmul.mubr.f32.gmra.mxu0 %v1840
  %v1983 = vpop.f32.mrf.mxu0
  %v1984 = vadd.f32 0.0, %v1983
  %v1985 = vpop.f32.mrf.mxu0
  %v1986 = vadd.f32 0.0, %v1985
  %1987 = vdwg.mxu0
  %v1988 = vadd.f32 %v1842, %v1913
  %v1989 = vadd.f32 %v1843, %v1915
  %v1990 = vadd.f32 %v1844, %v1984
  %v1991 = vadd.f32 %v1845, %v1986
  %v1992 = vxor.u32 %v1988, 2147483648
  %v1993 = vmul.f32 %v1992, 1.442695
  %v1994 = vpow.pop %v1993
  %v1995 = vadd.f32 %v1994, 1.0
  %v1996 = vrcp.pop %v1995
  %v1997 = vmul.f32 1.0, %v1996
  %v1998 = vxor.u32 %v1989, 2147483648
  %v1999 = vmul.f32 %v1998, 1.442695
  %v2000 = vpow.pop %v1999
  %v2001 = vadd.f32 %v2000, 1.0
  %v2002 = vrcp.pop %v2001
  %v2003 = vmul.f32 1.0, %v2002
  %v2004 = vtanh.pop %v1990
  %v2005 = vxor.u32 %v1991, 2147483648
  %v2006 = vmul.f32 %v2005, 1.442695
  %v2007 = vpow.pop %v2006
  %v2008 = vadd.f32 %v2007, 1.0
  %v2009 = vrcp.pop %v2008
  %v2010 = vmul.f32 1.0, %v2009
  %v2011 = vmul.f32 %v2003, %v1838
  %v2012 = vmul.f32 %v1997, %v2004
  %v2013 = vadd.f32 %v2011, %v2012
  %v2014 = vtanh.pop %v2013
  %v2015 = vmul.f32 %v2010, %v2014
  %s2016 = scalar_lea.vmem [#allocation4], 224
  %v2017 = vld [vmem:[%s2016] sm:$0xff]
  %v2018 = vld [vmem:[%s2016 + $0x8] sm:$0xff]
  %v2019 = vld [vmem:[%s2016 + $0x10] sm:$0xff]
  %v2020 = vld [vmem:[%s2016 + $0x18] sm:$0xff]
  %2021 = vmatprep.subr.mxu0 %v787
  %2022 = vmatpush1.msra.mxu0 %v786
  %2023 = vmatprep.subr.mxu0 %v783
  %2024 = vmatpush1.msra.mxu0 %v782
  %2025 = vmatprep.subr.mxu0 %v779
  %2026 = vmatpush1.msra.mxu0 %v778
  %2027 = vmatprep.subr.mxu0 %v775
  %2028 = vmatpush1.msra.mxu0 %v774
  %2029 = vmatprep.subr.mxu0 %v771
  %2030 = vmatpush1.msra.mxu0 %v770
  %2031 = vmatprep.subr.mxu0 %v767
  %2032 = vmatpush1.msra.mxu0 %v766
  %2033 = vmatprep.subr.mxu0 %v763
  %2034 = vmatpush1.msra.mxu0 %v762
  %2035 = vmatprep.subr.mxu0 %v759
  %2036 = vmatpush1.msra.mxu0 %v758
  %2037 = vmatprep.subr.mxu0 %v755
  %2038 = vmatpush1.msra.mxu0 %v754
  %2039 = vmatprep.subr.mxu0 %v751
  %2040 = vmatpush1.msra.mxu0 %v750
  %2041 = vmatprep.subr.mxu0 %v747
  %2042 = vmatpush1.msra.mxu0 %v746
  %2043 = vmatprep.subr.mxu0 %v743
  %2044 = vmatpush1.msra.mxu0 %v742
  %2045 = vmatprep.subr.mxu0 %v739
  %2046 = vmatpush1.msra.mxu0 %v738
  %2047 = vmatprep.subr.mxu0 %v735
  %2048 = vmatpush1.msra.mxu0 %v734
  %2049 = vmatprep.subr.mxu0 %v731
  %2050 = vmatpush1.msra.mxu0 %v730
  %2051 = vmatprep.subr.mxu0 %v727
  %2052 = vmatpush1.msra.mxu0 %v726
  %2053 = vmatprep.subr.mxu0 0.0
  %2054 = vmatpush2.msra.mxu0 0.0
  %2055 = vmatprep.subr.mxu0 0.0
  %2056 = vmatpush2.msra.mxu0 0.0
  %2057 = vmatprep.subr.mxu0 0.0
  %2058 = vmatpush2.msra.mxu0 0.0
  %2059 = vmatprep.subr.mxu0 0.0
  %2060 = vmatpush2.msra.mxu0 0.0
  %2061 = vmatprep.subr.mxu0 0.0
  %2062 = vmatpush2.msra.mxu0 0.0
  %2063 = vmatprep.subr.mxu0 0.0
  %2064 = vmatpush2.msra.mxu0 0.0
  %2065 = vmatprep.subr.mxu0 0.0
  %2066 = vmatpush2.msra.mxu0 0.0
  %2067 = vmatprep.subr.mxu0 0.0
  %2068 = vmatpush2.msra.mxu0 0.0
  %2069 = vmatprep.subr.mxu0 0.0
  %2070 = vmatpush2.msra.mxu0 0.0
  %2071 = vmatprep.subr.mxu0 0.0
  %2072 = vmatpush2.msra.mxu0 0.0
  %2073 = vmatprep.subr.mxu0 0.0
  %2074 = vmatpush2.msra.mxu0 0.0
  %2075 = vmatprep.subr.mxu0 0.0
  %2076 = vmatpush2.msra.mxu0 0.0
  %2077 = vmatprep.subr.mxu0 0.0
  %2078 = vmatpush2.msra.mxu0 0.0
  %2079 = vmatprep.subr.mxu0 0.0
  %2080 = vmatpush2.msra.mxu0 0.0
  %2081 = vmatprep.subr.mxu0 0.0
  %2082 = vmatpush2.msra.mxu0 0.0
  %2083 = vmatprep.subr.mxu0 0.0
  %2084 = vmatpush2.msra.mxu0 0.0
  %2085 = vmatprep.mubr.f32.mxu0 0.0
  %2086 = vmatmul.mubr.f32.gmra.mxu0 %v2015
  %v2087 = vpop.f32.mrf.mxu0
  %v2088 = vadd.f32 0.0, %v2087
  %v2089 = vpop.f32.mrf.mxu0
  %v2090 = vadd.f32 0.0, %v2089
  %2091 = vdwg.mxu0
  %2092 = vmatprep.subr.mxu0 %v789
  %2093 = vmatpush1.msra.mxu0 %v788
  %2094 = vmatprep.subr.mxu0 %v785
  %2095 = vmatpush1.msra.mxu0 %v784
  %2096 = vmatprep.subr.mxu0 %v781
  %2097 = vmatpush1.msra.mxu0 %v780
  %2098 = vmatprep.subr.mxu0 %v777
  %2099 = vmatpush1.msra.mxu0 %v776
  %2100 = vmatprep.subr.mxu0 %v773
  %2101 = vmatpush1.msra.mxu0 %v772
  %2102 = vmatprep.subr.mxu0 %v769
  %2103 = vmatpush1.msra.mxu0 %v768
  %2104 = vmatprep.subr.mxu0 %v765
  %2105 = vmatpush1.msra.mxu0 %v764
  %2106 = vmatprep.subr.mxu0 %v761
  %2107 = vmatpush1.msra.mxu0 %v760
  %2108 = vmatprep.subr.mxu0 %v757
  %2109 = vmatpush1.msra.mxu0 %v756
  %2110 = vmatprep.subr.mxu0 %v753
  %2111 = vmatpush1.msra.mxu0 %v752
  %2112 = vmatprep.subr.mxu0 %v749
  %2113 = vmatpush1.msra.mxu0 %v748
  %2114 = vmatprep.subr.mxu0 %v745
  %2115 = vmatpush1.msra.mxu0 %v744
  %2116 = vmatprep.subr.mxu0 %v741
  %2117 = vmatpush1.msra.mxu0 %v740
  %2118 = vmatprep.subr.mxu0 %v737
  %2119 = vmatpush1.msra.mxu0 %v736
  %2120 = vmatprep.subr.mxu0 %v733
  %2121 = vmatpush1.msra.mxu0 %v732
  %2122 = vmatprep.subr.mxu0 %v729
  %2123 = vmatpush1.msra.mxu0 %v728
  %2124 = vmatprep.subr.mxu0 0.0
  %2125 = vmatpush2.msra.mxu0 0.0
  %2126 = vmatprep.subr.mxu0 0.0
  %2127 = vmatpush2.msra.mxu0 0.0
  %2128 = vmatprep.subr.mxu0 0.0
  %2129 = vmatpush2.msra.mxu0 0.0
  %2130 = vmatprep.subr.mxu0 0.0
  %2131 = vmatpush2.msra.mxu0 0.0
  %2132 = vmatprep.subr.mxu0 0.0
  %2133 = vmatpush2.msra.mxu0 0.0
  %2134 = vmatprep.subr.mxu0 0.0
  %2135 = vmatpush2.msra.mxu0 0.0
  %2136 = vmatprep.subr.mxu0 0.0
  %2137 = vmatpush2.msra.mxu0 0.0
  %2138 = vmatprep.subr.mxu0 0.0
  %2139 = vmatpush2.msra.mxu0 0.0
  %2140 = vmatprep.subr.mxu0 0.0
  %2141 = vmatpush2.msra.mxu0 0.0
  %2142 = vmatprep.subr.mxu0 0.0
  %2143 = vmatpush2.msra.mxu0 0.0
  %2144 = vmatprep.subr.mxu0 0.0
  %2145 = vmatpush2.msra.mxu0 0.0
  %2146 = vmatprep.subr.mxu0 0.0
  %2147 = vmatpush2.msra.mxu0 0.0
  %2148 = vmatprep.subr.mxu0 0.0
  %2149 = vmatpush2.msra.mxu0 0.0
  %2150 = vmatprep.subr.mxu0 0.0
  %2151 = vmatpush2.msra.mxu0 0.0
  %2152 = vmatprep.subr.mxu0 0.0
  %2153 = vmatpush2.msra.mxu0 0.0
  %2154 = vmatprep.subr.mxu0 0.0
  %2155 = vmatpush2.msra.mxu0 0.0
  %2156 = vmatprep.mubr.f32.mxu0 0.0
  %2157 = vmatmul.mubr.f32.gmra.mxu0 %v2015
  %v2158 = vpop.f32.mrf.mxu0
  %v2159 = vadd.f32 0.0, %v2158
  %v2160 = vpop.f32.mrf.mxu0
  %v2161 = vadd.f32 0.0, %v2160
  %2162 = vdwg.mxu0
  %v2163 = vadd.f32 %v2017, %v2088
  %v2164 = vadd.f32 %v2018, %v2090
  %v2165 = vadd.f32 %v2019, %v2159
  %v2166 = vadd.f32 %v2020, %v2161
  %v2167 = vxor.u32 %v2163, 2147483648
  %v2168 = vmul.f32 %v2167, 1.442695
  %v2169 = vpow.pop %v2168
  %v2170 = vadd.f32 %v2169, 1.0
  %v2171 = vrcp.pop %v2170
  %v2172 = vmul.f32 1.0, %v2171
  %v2173 = vxor.u32 %v2164, 2147483648
  %v2174 = vmul.f32 %v2173, 1.442695
  %v2175 = vpow.pop %v2174
  %v2176 = vadd.f32 %v2175, 1.0
  %v2177 = vrcp.pop %v2176
  %v2178 = vmul.f32 1.0, %v2177
  %v2179 = vtanh.pop %v2165
  %v2180 = vxor.u32 %v2166, 2147483648
  %v2181 = vmul.f32 %v2180, 1.442695
  %v2182 = vpow.pop %v2181
  %v2183 = vadd.f32 %v2182, 1.0
  %v2184 = vrcp.pop %v2183
  %v2185 = vmul.f32 1.0, %v2184
  %v2186 = vmul.f32 %v2178, %v2013
  %v2187 = vmul.f32 %v2172, %v2179
  %v2188 = vadd.f32 %v2186, %v2187
  %v2189 = vtanh.pop %v2188
  %v2190 = vmul.f32 %v2185, %v2189
  %2191 = vst [vmem:[#allocation2] sm:$0xff] %v2190
  %2192 = vst [vmem:[#allocation3] sm:$0xff] %v2188
  // Predicated region
  $region50: #{lstm_encoding_forward.3} parent=0 // pred_check
    %p2193 = pneg %p38
  $region51: #{lstm_encoding_forward.3} parent=0 // pred_check_branch
    %2195 = sbr.rel (%p2193) target = $region53
  $region52: #{lstm_encoding_forward.3} parent=0 // pred_region
    %s2196 = scalar_lea.vmem %s0, 56
    %v2197 = vld [vmem:[%s2196] sm:$0xff]
    %s2198 = scalar_lea.vmem %s1, 56
    %v2199 = vld [vmem:[%s2198] sm:$0xff]
    %v2200 = vld [vmem:[%s5] sm:$0xff]
    %v2201 = vld [vmem:[%s5 + $0x8] sm:$0xff]
    %v2202 = vld [vmem:[%s5 + $0x10] sm:$0xff]
    %v2203 = vld [vmem:[%s5 + $0x18] sm:$0xff]
    %v2204 = vld [vmem:[%s5 + $0x20] sm:$0xff]
    %v2205 = vld [vmem:[%s5 + $0x28] sm:$0xff]
    %v2206 = vld [vmem:[%s5 + $0x30] sm:$0xff]
    %v2207 = vld [vmem:[%s5 + $0x38] sm:$0xff]
    %v2208 = vld [vmem:[%s5 + $0x40] sm:$0xff]
    %v2209 = vld [vmem:[%s5 + $0x48] sm:$0xff]
    %v2210 = vld [vmem:[%s5 + $0x50] sm:$0xff]
    %v2211 = vld [vmem:[%s5 + $0x58] sm:$0xff]
    %v2212 = vld [vmem:[%s5 + $0x60] sm:$0xff]
    %v2213 = vld [vmem:[%s5 + $0x68] sm:$0xff]
    %v2214 = vld [vmem:[%s5 + $0x70] sm:$0xff]
    %v2215 = vld [vmem:[%s5 + $0x78] sm:$0xff]
    %v2216 = vld [vmem:[%s5 + $0x80] sm:$0xff]
    %v2217 = vld [vmem:[%s5 + $0x88] sm:$0xff]
    %v2218 = vld [vmem:[%s5 + $0x90] sm:$0xff]
    %v2219 = vld [vmem:[%s5 + $0x98] sm:$0xff]
    %v2220 = vld [vmem:[%s5 + $0xa0] sm:$0xff]
    %v2221 = vld [vmem:[%s5 + $0xa8] sm:$0xff]
    %v2222 = vld [vmem:[%s5 + $0xb0] sm:$0xff]
    %v2223 = vld [vmem:[%s5 + $0xb8] sm:$0xff]
    %v2224 = vld [vmem:[%s5 + $0xc0] sm:$0xff]
    %v2225 = vld [vmem:[%s5 + $0xc8] sm:$0xff]
    %v2226 = vld [vmem:[%s5 + $0xd0] sm:$0xff]
    %v2227 = vld [vmem:[%s5 + $0xd8] sm:$0xff]
    %v2228 = vld [vmem:[%s5 + $0xe0] sm:$0xff]
    %v2229 = vld [vmem:[%s5 + $0xe8] sm:$0xff]
    %v2230 = vld [vmem:[%s5 + $0xf0] sm:$0xff]
    %v2231 = vld [vmem:[%s5 + $0xf8] sm:$0xff]
    %v2232 = vld [vmem:[%s5 + $0x100] sm:$0xff]
    %v2233 = vld [vmem:[%s5 + $0x108] sm:$0xff]
    %v2234 = vld [vmem:[%s5 + $0x110] sm:$0xff]
    %v2235 = vld [vmem:[%s5 + $0x118] sm:$0xff]
    %v2236 = vld [vmem:[%s5 + $0x120] sm:$0xff]
    %v2237 = vld [vmem:[%s5 + $0x128] sm:$0xff]
    %v2238 = vld [vmem:[%s5 + $0x130] sm:$0xff]
    %v2239 = vld [vmem:[%s5 + $0x138] sm:$0xff]
    %v2240 = vld [vmem:[%s5 + $0x140] sm:$0xff]
    %v2241 = vld [vmem:[%s5 + $0x148] sm:$0xff]
    %v2242 = vld [vmem:[%s5 + $0x150] sm:$0xff]
    %v2243 = vld [vmem:[%s5 + $0x158] sm:$0xff]
    %v2244 = vld [vmem:[%s5 + $0x160] sm:$0xff]
    %v2245 = vld [vmem:[%s5 + $0x168] sm:$0xff]
    %v2246 = vld [vmem:[%s5 + $0x170] sm:$0xff]
    %v2247 = vld [vmem:[%s5 + $0x178] sm:$0xff]
    %v2248 = vld [vmem:[%s5 + $0x180] sm:$0xff]
    %v2249 = vld [vmem:[%s5 + $0x188] sm:$0xff]
    %v2250 = vld [vmem:[%s5 + $0x190] sm:$0xff]
    %v2251 = vld [vmem:[%s5 + $0x198] sm:$0xff]
    %v2252 = vld [vmem:[%s5 + $0x1a0] sm:$0xff]
    %v2253 = vld [vmem:[%s5 + $0x1a8] sm:$0xff]
    %v2254 = vld [vmem:[%s5 + $0x1b0] sm:$0xff]
    %v2255 = vld [vmem:[%s5 + $0x1b8] sm:$0xff]
    %v2256 = vld [vmem:[%s5 + $0x1c0] sm:$0xff]
    %v2257 = vld [vmem:[%s5 + $0x1c8] sm:$0xff]
    %v2258 = vld [vmem:[%s5 + $0x1d0] sm:$0xff]
    %v2259 = vld [vmem:[%s5 + $0x1d8] sm:$0xff]
    %v2260 = vld [vmem:[%s5 + $0x1e0] sm:$0xff]
    %v2261 = vld [vmem:[%s5 + $0x1e8] sm:$0xff]
    %v2262 = vld [vmem:[%s5 + $0x1f0] sm:$0xff]
    %v2263 = vld [vmem:[%s5 + $0x1f8] sm:$0xff]
    %v2264 = vld [vmem:[%s5 + $0x200] sm:$0xff]
    %v2265 = vld [vmem:[%s5 + $0x208] sm:$0xff]
    %v2266 = vld [vmem:[%s5 + $0x210] sm:$0xff]
    %v2267 = vld [vmem:[%s5 + $0x218] sm:$0xff]
    %v2268 = vld [vmem:[%s5 + $0x220] sm:$0xff]
    %v2269 = vld [vmem:[%s5 + $0x228] sm:$0xff]
    %v2270 = vld [vmem:[%s5 + $0x230] sm:$0xff]
    %v2271 = vld [vmem:[%s5 + $0x238] sm:$0xff]
    %v2272 = vld [vmem:[%s5 + $0x240] sm:$0xff]
    %v2273 = vld [vmem:[%s5 + $0x248] sm:$0xff]
    %v2274 = vld [vmem:[%s5 + $0x250] sm:$0xff]
    %v2275 = vld [vmem:[%s5 + $0x258] sm:$0xff]
    %v2276 = vld [vmem:[%s5 + $0x260] sm:$0xff]
    %v2277 = vld [vmem:[%s5 + $0x268] sm:$0xff]
    %v2278 = vld [vmem:[%s5 + $0x270] sm:$0xff]
    %v2279 = vld [vmem:[%s5 + $0x278] sm:$0xff]
    %v2280 = vld [vmem:[%s5 + $0x280] sm:$0xff]
    %v2281 = vld [vmem:[%s5 + $0x288] sm:$0xff]
    %v2282 = vld [vmem:[%s5 + $0x290] sm:$0xff]
    %v2283 = vld [vmem:[%s5 + $0x298] sm:$0xff]
    %v2284 = vld [vmem:[%s5 + $0x2a0] sm:$0xff]
    %v2285 = vld [vmem:[%s5 + $0x2a8] sm:$0xff]
    %v2286 = vld [vmem:[%s5 + $0x2b0] sm:$0xff]
    %v2287 = vld [vmem:[%s5 + $0x2b8] sm:$0xff]
    %v2288 = vld [vmem:[%s5 + $0x2c0] sm:$0xff]
    %v2289 = vld [vmem:[%s5 + $0x2c8] sm:$0xff]
    %v2290 = vld [vmem:[%s5 + $0x2d0] sm:$0xff]
    %v2291 = vld [vmem:[%s5 + $0x2d8] sm:$0xff]
    %v2292 = vld [vmem:[%s5 + $0x2e0] sm:$0xff]
    %v2293 = vld [vmem:[%s5 + $0x2e8] sm:$0xff]
    %v2294 = vld [vmem:[%s5 + $0x2f0] sm:$0xff]
    %v2295 = vld [vmem:[%s5 + $0x2f8] sm:$0xff]
    %v2296 = vld [vmem:[%s5 + $0x300] sm:$0xff]
    %v2297 = vld [vmem:[%s5 + $0x308] sm:$0xff]
    %v2298 = vld [vmem:[%s5 + $0x310] sm:$0xff]
    %v2299 = vld [vmem:[%s5 + $0x318] sm:$0xff]
    %v2300 = vld [vmem:[%s5 + $0x320] sm:$0xff]
    %v2301 = vld [vmem:[%s5 + $0x328] sm:$0xff]
    %v2302 = vld [vmem:[%s5 + $0x330] sm:$0xff]
    %v2303 = vld [vmem:[%s5 + $0x338] sm:$0xff]
    %v2304 = vld [vmem:[%s5 + $0x340] sm:$0xff]
    %v2305 = vld [vmem:[%s5 + $0x348] sm:$0xff]
    %v2306 = vld [vmem:[%s5 + $0x350] sm:$0xff]
    %v2307 = vld [vmem:[%s5 + $0x358] sm:$0xff]
    %v2308 = vld [vmem:[%s5 + $0x360] sm:$0xff]
    %v2309 = vld [vmem:[%s5 + $0x368] sm:$0xff]
    %v2310 = vld [vmem:[%s5 + $0x370] sm:$0xff]
    %v2311 = vld [vmem:[%s5 + $0x378] sm:$0xff]
    %v2312 = vld [vmem:[%s5 + $0x380] sm:$0xff]
    %v2313 = vld [vmem:[%s5 + $0x388] sm:$0xff]
    %v2314 = vld [vmem:[%s5 + $0x390] sm:$0xff]
    %v2315 = vld [vmem:[%s5 + $0x398] sm:$0xff]
    %v2316 = vld [vmem:[%s5 + $0x3a0] sm:$0xff]
    %v2317 = vld [vmem:[%s5 + $0x3a8] sm:$0xff]
    %v2318 = vld [vmem:[%s5 + $0x3b0] sm:$0xff]
    %v2319 = vld [vmem:[%s5 + $0x3b8] sm:$0xff]
    %v2320 = vld [vmem:[%s5 + $0x3c0] sm:$0xff]
    %v2321 = vld [vmem:[%s5 + $0x3c8] sm:$0xff]
    %v2322 = vld [vmem:[%s5 + $0x3d0] sm:$0xff]
    %v2323 = vld [vmem:[%s5 + $0x3d8] sm:$0xff]
    %v2324 = vld [vmem:[%s5 + $0x3e0] sm:$0xff]
    %v2325 = vld [vmem:[%s5 + $0x3e8] sm:$0xff]
    %v2326 = vld [vmem:[%s5 + $0x3f0] sm:$0xff]
    %v2327 = vld [vmem:[%s5 + $0x3f8] sm:$0xff]
    %2328 = vmatprep.subr.mxu0 %v2325
    %2329 = vmatpush1.msra.mxu0 %v2324
    %2330 = vmatprep.subr.mxu0 %v2321
    %2331 = vmatpush1.msra.mxu0 %v2320
    %2332 = vmatprep.subr.mxu0 %v2317
    %2333 = vmatpush1.msra.mxu0 %v2316
    %2334 = vmatprep.subr.mxu0 %v2313
    %2335 = vmatpush1.msra.mxu0 %v2312
    %2336 = vmatprep.subr.mxu0 %v2309
    %2337 = vmatpush1.msra.mxu0 %v2308
    %2338 = vmatprep.subr.mxu0 %v2305
    %2339 = vmatpush1.msra.mxu0 %v2304
    %2340 = vmatprep.subr.mxu0 %v2301
    %2341 = vmatpush1.msra.mxu0 %v2300
    %2342 = vmatprep.subr.mxu0 %v2297
    %2343 = vmatpush1.msra.mxu0 %v2296
    %2344 = vmatprep.subr.mxu0 %v2293
    %2345 = vmatpush1.msra.mxu0 %v2292
    %2346 = vmatprep.subr.mxu0 %v2289
    %2347 = vmatpush1.msra.mxu0 %v2288
    %2348 = vmatprep.subr.mxu0 %v2285
    %2349 = vmatpush1.msra.mxu0 %v2284
    %2350 = vmatprep.subr.mxu0 %v2281
    %2351 = vmatpush1.msra.mxu0 %v2280
    %2352 = vmatprep.subr.mxu0 %v2277
    %2353 = vmatpush1.msra.mxu0 %v2276
    %2354 = vmatprep.subr.mxu0 %v2273
    %2355 = vmatpush1.msra.mxu0 %v2272
    %2356 = vmatprep.subr.mxu0 %v2269
    %2357 = vmatpush1.msra.mxu0 %v2268
    %2358 = vmatprep.subr.mxu0 %v2265
    %2359 = vmatpush1.msra.mxu0 %v2264
    %2360 = vmatprep.subr.mxu0 0.0
    %2361 = vmatpush2.msra.mxu0 0.0
    %2362 = vmatprep.subr.mxu0 0.0
    %2363 = vmatpush2.msra.mxu0 0.0
    %2364 = vmatprep.subr.mxu0 0.0
    %2365 = vmatpush2.msra.mxu0 0.0
    %2366 = vmatprep.subr.mxu0 0.0
    %2367 = vmatpush2.msra.mxu0 0.0
    %2368 = vmatprep.subr.mxu0 0.0
    %2369 = vmatpush2.msra.mxu0 0.0
    %2370 = vmatprep.subr.mxu0 0.0
    %2371 = vmatpush2.msra.mxu0 0.0
    %2372 = vmatprep.subr.mxu0 0.0
    %2373 = vmatpush2.msra.mxu0 0.0
    %2374 = vmatprep.subr.mxu0 0.0
    %2375 = vmatpush2.msra.mxu0 0.0
    %2376 = vmatprep.subr.mxu0 0.0
    %2377 = vmatpush2.msra.mxu0 0.0
    %2378 = vmatprep.subr.mxu0 0.0
    %2379 = vmatpush2.msra.mxu0 0.0
    %2380 = vmatprep.subr.mxu0 0.0
    %2381 = vmatpush2.msra.mxu0 0.0
    %2382 = vmatprep.subr.mxu0 0.0
    %2383 = vmatpush2.msra.mxu0 0.0
    %2384 = vmatprep.subr.mxu0 0.0
    %2385 = vmatpush2.msra.mxu0 0.0
    %2386 = vmatprep.subr.mxu0 0.0
    %2387 = vmatpush2.msra.mxu0 0.0
    %2388 = vmatprep.subr.mxu0 0.0
    %2389 = vmatpush2.msra.mxu0 0.0
    %2390 = vmatprep.subr.mxu0 0.0
    %2391 = vmatpush2.msra.mxu0 0.0
    %2392 = vmatprep.mubr.f32.mxu0 0.0
    %2393 = vmatmul.mubr.f32.gmra.mxu0 %v2199
    %v2394 = vpop.f32.mrf.mxu0
    %v2395 = vadd.f32 0.0, %v2394
    %v2396 = vpop.f32.mrf.mxu0
    %2397 = vdwg.mxu0
    %2398 = vmatprep.subr.mxu0 %v2327
    %2399 = vmatpush1.msra.mxu0 %v2326
    %2400 = vmatprep.subr.mxu0 %v2323
    %2401 = vmatpush1.msra.mxu0 %v2322
    %2402 = vmatprep.subr.mxu0 %v2319
    %2403 = vmatpush1.msra.mxu0 %v2318
    %2404 = vmatprep.subr.mxu0 %v2315
    %2405 = vmatpush1.msra.mxu0 %v2314
    %2406 = vmatprep.subr.mxu0 %v2311
    %2407 = vmatpush1.msra.mxu0 %v2310
    %2408 = vmatprep.subr.mxu0 %v2307
    %2409 = vmatpush1.msra.mxu0 %v2306
    %2410 = vmatprep.subr.mxu0 %v2303
    %2411 = vmatpush1.msra.mxu0 %v2302
    %2412 = vmatprep.subr.mxu0 %v2299
    %2413 = vmatpush1.msra.mxu0 %v2298
    %2414 = vmatprep.subr.mxu0 %v2295
    %2415 = vmatpush1.msra.mxu0 %v2294
    %2416 = vmatprep.subr.mxu0 %v2291
    %2417 = vmatpush1.msra.mxu0 %v2290
    %2418 = vmatprep.subr.mxu0 %v2287
    %2419 = vmatpush1.msra.mxu0 %v2286
    %2420 = vmatprep.subr.mxu0 %v2283
    %2421 = vmatpush1.msra.mxu0 %v2282
    %2422 = vmatprep.subr.mxu0 %v2279
    %2423 = vmatpush1.msra.mxu0 %v2278
    %2424 = vmatprep.subr.mxu0 %v2275
    %2425 = vmatpush1.msra.mxu0 %v2274
    %2426 = vmatprep.subr.mxu0 %v2271
    %2427 = vmatpush1.msra.mxu0 %v2270
    %2428 = vmatprep.subr.mxu0 %v2267
    %2429 = vmatpush1.msra.mxu0 %v2266
    %2430 = vmatprep.subr.mxu0 0.0
    %2431 = vmatpush2.msra.mxu0 0.0
    %2432 = vmatprep.subr.mxu0 0.0
    %2433 = vmatpush2.msra.mxu0 0.0
    %2434 = vmatprep.subr.mxu0 0.0
    %2435 = vmatpush2.msra.mxu0 0.0
    %2436 = vmatprep.subr.mxu0 0.0
    %2437 = vmatpush2.msra.mxu0 0.0
    %2438 = vmatprep.subr.mxu0 0.0
    %2439 = vmatpush2.msra.mxu0 0.0
    %2440 = vmatprep.subr.mxu0 0.0
    %2441 = vmatpush2.msra.mxu0 0.0
    %2442 = vmatprep.subr.mxu0 0.0
    %2443 = vmatpush2.msra.mxu0 0.0
    %2444 = vmatprep.subr.mxu0 0.0
    %2445 = vmatpush2.msra.mxu0 0.0
    %2446 = vmatprep.subr.mxu0 0.0
    %2447 = vmatpush2.msra.mxu0 0.0
    %2448 = vmatprep.subr.mxu0 0.0
    %2449 = vmatpush2.msra.mxu0 0.0
    %2450 = vmatprep.subr.mxu0 0.0
    %2451 = vmatpush2.msra.mxu0 0.0
    %2452 = vmatprep.subr.mxu0 0.0
    %2453 = vmatpush2.msra.mxu0 0.0
    %2454 = vmatprep.subr.mxu0 0.0
    %2455 = vmatpush2.msra.mxu0 0.0
    %2456 = vmatprep.subr.mxu0 0.0
    %2457 = vmatpush2.msra.mxu0 0.0
    %2458 = vmatprep.subr.mxu0 0.0
    %2459 = vmatpush2.msra.mxu0 0.0
    %2460 = vmatprep.subr.mxu0 0.0
    %2461 = vmatpush2.msra.mxu0 0.0
    %2462 = vmatprep.mubr.f32.mxu0 0.0
    %2463 = vmatmul.mubr.f32.gmra.mxu0 %v2199
    %v2464 = vpop.f32.mrf.mxu0
    %v2465 = vadd.f32 0.0, %v2464
    %v2466 = vpop.f32.mrf.mxu0
    %v2467 = vadd.f32 0.0, %v2466
    %2468 = vdwg.mxu0
    %2469 = vmatprep.subr.mxu0 %v2261
    %2470 = vmatpush1.msra.mxu0 %v2260
    %2471 = vmatprep.subr.mxu0 %v2257
    %2472 = vmatpush1.msra.mxu0 %v2256
    %2473 = vmatprep.subr.mxu0 %v2253
    %2474 = vmatpush1.msra.mxu0 %v2252
    %2475 = vmatprep.subr.mxu0 %v2249
    %2476 = vmatpush1.msra.mxu0 %v2248
    %2477 = vmatprep.subr.mxu0 %v2245
    %2478 = vmatpush1.msra.mxu0 %v2244
    %2479 = vmatprep.subr.mxu0 %v2241
    %2480 = vmatpush1.msra.mxu0 %v2240
    %2481 = vmatprep.subr.mxu0 %v2237
    %2482 = vmatpush1.msra.mxu0 %v2236
    %2483 = vmatprep.subr.mxu0 %v2233
    %2484 = vmatpush1.msra.mxu0 %v2232
    %2485 = vmatprep.subr.mxu0 %v2229
    %2486 = vmatpush1.msra.mxu0 %v2228
    %2487 = vmatprep.subr.mxu0 %v2225
    %2488 = vmatpush1.msra.mxu0 %v2224
    %2489 = vmatprep.subr.mxu0 %v2221
    %2490 = vmatpush1.msra.mxu0 %v2220
    %2491 = vmatprep.subr.mxu0 %v2217
    %2492 = vmatpush1.msra.mxu0 %v2216
    %2493 = vmatprep.subr.mxu0 %v2213
    %2494 = vmatpush1.msra.mxu0 %v2212
    %2495 = vmatprep.subr.mxu0 %v2209
    %2496 = vmatpush1.msra.mxu0 %v2208
    %2497 = vmatprep.subr.mxu0 %v2205
    %2498 = vmatpush1.msra.mxu0 %v2204
    %2499 = vmatprep.subr.mxu0 %v2201
    %2500 = vmatpush1.msra.mxu0 %v2200
    %2501 = vmatprep.subr.mxu0 0.0
    %2502 = vmatpush2.msra.mxu0 0.0
    %2503 = vmatprep.subr.mxu0 0.0
    %2504 = vmatpush2.msra.mxu0 0.0
    %2505 = vmatprep.subr.mxu0 0.0
    %2506 = vmatpush2.msra.mxu0 0.0
    %2507 = vmatprep.subr.mxu0 0.0
    %2508 = vmatpush2.msra.mxu0 0.0
    %2509 = vmatprep.subr.mxu0 0.0
    %2510 = vmatpush2.msra.mxu0 0.0
    %2511 = vmatprep.subr.mxu0 0.0
    %2512 = vmatpush2.msra.mxu0 0.0
    %2513 = vmatprep.subr.mxu0 0.0
    %2514 = vmatpush2.msra.mxu0 0.0
    %2515 = vmatprep.subr.mxu0 0.0
    %2516 = vmatpush2.msra.mxu0 0.0
    %2517 = vmatprep.subr.mxu0 0.0
    %2518 = vmatpush2.msra.mxu0 0.0
    %2519 = vmatprep.subr.mxu0 0.0
    %2520 = vmatpush2.msra.mxu0 0.0
    %2521 = vmatprep.subr.mxu0 0.0
    %2522 = vmatpush2.msra.mxu0 0.0
    %2523 = vmatprep.subr.mxu0 0.0
    %2524 = vmatpush2.msra.mxu0 0.0
    %2525 = vmatprep.subr.mxu0 0.0
    %2526 = vmatpush2.msra.mxu0 0.0
    %2527 = vmatprep.subr.mxu0 0.0
    %2528 = vmatpush2.msra.mxu0 0.0
    %2529 = vmatprep.subr.mxu0 0.0
    %2530 = vmatpush2.msra.mxu0 0.0
    %2531 = vmatprep.subr.mxu0 0.0
    %2532 = vmatpush2.msra.mxu0 0.0
    %2533 = vmatprep.mubr.f32.mxu0 0.0
    %2534 = vmatmul.mubr.f32.gmra.mxu0 %v2197
    %v2535 = vpop.f32.mrf.mxu0
    %v2536 = vadd.f32 %v2395, %v2535
    %v2537 = vpop.f32.mrf.mxu0
    %2538 = vdwg.mxu0
    %2539 = vmatprep.subr.mxu0 %v2263
    %2540 = vmatpush1.msra.mxu0 %v2262
    %2541 = vmatprep.subr.mxu0 %v2259
    %2542 = vmatpush1.msra.mxu0 %v2258
    %2543 = vmatprep.subr.mxu0 %v2255
    %2544 = vmatpush1.msra.mxu0 %v2254
    %2545 = vmatprep.subr.mxu0 %v2251
    %2546 = vmatpush1.msra.mxu0 %v2250
    %2547 = vmatprep.subr.mxu0 %v2247
    %2548 = vmatpush1.msra.mxu0 %v2246
    %2549 = vmatprep.subr.mxu0 %v2243
    %2550 = vmatpush1.msra.mxu0 %v2242
    %2551 = vmatprep.subr.mxu0 %v2239
    %2552 = vmatpush1.msra.mxu0 %v2238
    %2553 = vmatprep.subr.mxu0 %v2235
    %2554 = vmatpush1.msra.mxu0 %v2234
    %2555 = vmatprep.subr.mxu0 %v2231
    %2556 = vmatpush1.msra.mxu0 %v2230
    %2557 = vmatprep.subr.mxu0 %v2227
    %2558 = vmatpush1.msra.mxu0 %v2226
    %2559 = vmatprep.subr.mxu0 %v2223
    %2560 = vmatpush1.msra.mxu0 %v2222
    %2561 = vmatprep.subr.mxu0 %v2219
    %2562 = vmatpush1.msra.mxu0 %v2218
    %2563 = vmatprep.subr.mxu0 %v2215
    %2564 = vmatpush1.msra.mxu0 %v2214
    %2565 = vmatprep.subr.mxu0 %v2211
    %2566 = vmatpush1.msra.mxu0 %v2210
    %2567 = vmatprep.subr.mxu0 %v2207
    %2568 = vmatpush1.msra.mxu0 %v2206
    %2569 = vmatprep.subr.mxu0 %v2203
    %2570 = vmatpush1.msra.mxu0 %v2202
    %2571 = vmatprep.subr.mxu0 0.0
    %2572 = vmatpush2.msra.mxu0 0.0
    %2573 = vmatprep.subr.mxu0 0.0
    %2574 = vmatpush2.msra.mxu0 0.0
    %2575 = vmatprep.subr.mxu0 0.0
    %2576 = vmatpush2.msra.mxu0 0.0
    %2577 = vmatprep.subr.mxu0 0.0
    %2578 = vmatpush2.msra.mxu0 0.0
    %2579 = vmatprep.subr.mxu0 0.0
    %2580 = vmatpush2.msra.mxu0 0.0
    %2581 = vmatprep.subr.mxu0 0.0
    %2582 = vmatpush2.msra.mxu0 0.0
    %2583 = vmatprep.subr.mxu0 0.0
    %2584 = vmatpush2.msra.mxu0 0.0
    %2585 = vmatprep.subr.mxu0 0.0
    %2586 = vmatpush2.msra.mxu0 0.0
    %2587 = vmatprep.subr.mxu0 0.0
    %2588 = vmatpush2.msra.mxu0 0.0
    %2589 = vmatprep.subr.mxu0 0.0
    %2590 = vmatpush2.msra.mxu0 0.0
    %2591 = vmatprep.subr.mxu0 0.0
    %2592 = vmatpush2.msra.mxu0 0.0
    %2593 = vmatprep.subr.mxu0 0.0
    %2594 = vmatpush2.msra.mxu0 0.0
    %2595 = vmatprep.subr.mxu0 0.0
    %2596 = vmatpush2.msra.mxu0 0.0
    %2597 = vmatprep.subr.mxu0 0.0
    %2598 = vmatpush2.msra.mxu0 0.0
    %2599 = vmatprep.subr.mxu0 0.0
    %2600 = vmatpush2.msra.mxu0 0.0
    %2601 = vmatprep.subr.mxu0 0.0
    %2602 = vmatpush2.msra.mxu0 0.0
    %2603 = vmatprep.mubr.f32.mxu0 0.0
    %2604 = vmatmul.mubr.f32.gmra.mxu0 %v2197
    %v2605 = vpop.f32.mrf.mxu0
    %v2606 = vadd.f32 %v2465, %v2605
    %v2607 = vpop.f32.mrf.mxu0
    %v2608 = vadd.f32 %v2467, %v2607
    %2609 = vdwg.mxu0
    %v2610 = vld [vmem:[%s6] sm:$0xf]
    %v2612 = vlaneseq
    %v2613 = vshrl.u32 %v2612, 7
    %v2614 = vsub.s32 0, %v2613
    %v2615 = vrot.slane %v2610, %v2614
    %v2616 = vlaneseq
    %v2617 = vshrl.u32 %v2616, 7
    %v2618 = vsub.s32 2, %v2617
    %v2619 = vrot.slane %v2610, %v2618
    %v2620 = vlaneseq
    %v2621 = vshrl.u32 %v2620, 7
    %v2622 = vsub.s32 3, %v2621
    %v2623 = vrot.slane %v2610, %v2622
    %v2627 = vadd.f32 %v2536, %v2615
    %v2628 = vadd.f32 %v2606, %v2619
    %v2629 = vadd.f32 %v2608, %v2623
    %v2630 = vxor.u32 %v2627, 2147483648
    %v2631 = vmul.f32 %v2630, 1.442695
    %v2632 = vpow.pop %v2631
    %v2633 = vadd.f32 %v2632, 1.0
    %v2634 = vrcp.pop %v2633
    %v2635 = vmul.f32 1.0, %v2634
    %v2636 = vtanh.pop %v2628
    %v2637 = vxor.u32 %v2629, 2147483648
    %v2638 = vmul.f32 %v2637, 1.442695
    %v2639 = vpow.pop %v2638
    %v2640 = vadd.f32 %v2639, 1.0
    %v2641 = vrcp.pop %v2640
    %v2642 = vmul.f32 1.0, %v2641
    %v2643 = vmul.f32 %v2635, %v2636
    %v2644 = vtanh.pop %v2643
    %v2645 = vmul.f32 %v2642, %v2644
    %v2646 = vld [vmem:[%s7] sm:$0xff]
    %v2647 = vld [vmem:[%s7 + $0x8] sm:$0xff]
    %v2648 = vld [vmem:[%s7 + $0x10] sm:$0xff]
    %v2649 = vld [vmem:[%s7 + $0x18] sm:$0xff]
    %v2650 = vld [vmem:[%s7 + $0x20] sm:$0xff]
    %v2651 = vld [vmem:[%s7 + $0x28] sm:$0xff]
    %v2652 = vld [vmem:[%s7 + $0x30] sm:$0xff]
    %v2653 = vld [vmem:[%s7 + $0x38] sm:$0xff]
    %v2654 = vld [vmem:[%s7 + $0x40] sm:$0xff]
    %v2655 = vld [vmem:[%s7 + $0x48] sm:$0xff]
    %v2656 = vld [vmem:[%s7 + $0x50] sm:$0xff]
    %v2657 = vld [vmem:[%s7 + $0x58] sm:$0xff]
    %v2658 = vld [vmem:[%s7 + $0x60] sm:$0xff]
    %v2659 = vld [vmem:[%s7 + $0x68] sm:$0xff]
    %v2660 = vld [vmem:[%s7 + $0x70] sm:$0xff]
    %v2661 = vld [vmem:[%s7 + $0x78] sm:$0xff]
    %v2662 = vld [vmem:[%s7 + $0x80] sm:$0xff]
    %v2663 = vld [vmem:[%s7 + $0x88] sm:$0xff]
    %v2664 = vld [vmem:[%s7 + $0x90] sm:$0xff]
    %v2665 = vld [vmem:[%s7 + $0x98] sm:$0xff]
    %v2666 = vld [vmem:[%s7 + $0xa0] sm:$0xff]
    %v2667 = vld [vmem:[%s7 + $0xa8] sm:$0xff]
    %v2668 = vld [vmem:[%s7 + $0xb0] sm:$0xff]
    %v2669 = vld [vmem:[%s7 + $0xb8] sm:$0xff]
    %v2670 = vld [vmem:[%s7 + $0xc0] sm:$0xff]
    %v2671 = vld [vmem:[%s7 + $0xc8] sm:$0xff]
    %v2672 = vld [vmem:[%s7 + $0xd0] sm:$0xff]
    %v2673 = vld [vmem:[%s7 + $0xd8] sm:$0xff]
    %v2674 = vld [vmem:[%s7 + $0xe0] sm:$0xff]
    %v2675 = vld [vmem:[%s7 + $0xe8] sm:$0xff]
    %v2676 = vld [vmem:[%s7 + $0xf0] sm:$0xff]
    %v2677 = vld [vmem:[%s7 + $0xf8] sm:$0xff]
    %2678 = vmatprep.subr.mxu0 0.0
    %2679 = vmatpush1.msra.mxu0 %v2677
    %2680 = vmatprep.subr.mxu0 0.0
    %2681 = vmatpush1.msra.mxu0 %v2676
    %2682 = vmatprep.subr.mxu0 0.0
    %2683 = vmatpush1.msra.mxu0 %v2675
    %2684 = vmatprep.subr.mxu0 0.0
    %2685 = vmatpush1.msra.mxu0 %v2674
    %2686 = vmatprep.subr.mxu0 0.0
    %2687 = vmatpush1.msra.mxu0 %v2673
    %2688 = vmatprep.subr.mxu0 0.0
    %2689 = vmatpush1.msra.mxu0 %v2672
    %2690 = vmatprep.subr.mxu0 0.0
    %2691 = vmatpush1.msra.mxu0 %v2671
    %2692 = vmatprep.subr.mxu0 0.0
    %2693 = vmatpush1.msra.mxu0 %v2670
    %2694 = vmatprep.subr.mxu0 0.0
    %2695 = vmatpush1.msra.mxu0 %v2669
    %2696 = vmatprep.subr.mxu0 0.0
    %2697 = vmatpush1.msra.mxu0 %v2668
    %2698 = vmatprep.subr.mxu0 0.0
    %2699 = vmatpush1.msra.mxu0 %v2667
    %2700 = vmatprep.subr.mxu0 0.0
    %2701 = vmatpush1.msra.mxu0 %v2666
    %2702 = vmatprep.subr.mxu0 0.0
    %2703 = vmatpush1.msra.mxu0 %v2665
    %2704 = vmatprep.subr.mxu0 0.0
    %2705 = vmatpush1.msra.mxu0 %v2664
    %2706 = vmatprep.subr.mxu0 0.0
    %2707 = vmatpush1.msra.mxu0 %v2663
    %2708 = vmatprep.subr.mxu0 0.0
    %2709 = vmatpush1.msra.mxu0 %v2662
    %2710 = vmatprep.subr.mxu0 0.0
    %2711 = vmatpush2.msra.mxu0 0.0
    %2712 = vmatprep.subr.mxu0 0.0
    %2713 = vmatpush2.msra.mxu0 0.0
    %2714 = vmatprep.subr.mxu0 0.0
    %2715 = vmatpush2.msra.mxu0 0.0
    %2716 = vmatprep.subr.mxu0 0.0
    %2717 = vmatpush2.msra.mxu0 0.0
    %2718 = vmatprep.subr.mxu0 0.0
    %2719 = vmatpush2.msra.mxu0 0.0
    %2720 = vmatprep.subr.mxu0 0.0
    %2721 = vmatpush2.msra.mxu0 0.0
    %2722 = vmatprep.subr.mxu0 0.0
    %2723 = vmatpush2.msra.mxu0 0.0
    %2724 = vmatprep.subr.mxu0 0.0
    %2725 = vmatpush2.msra.mxu0 0.0
    %2726 = vmatprep.subr.mxu0 0.0
    %2727 = vmatpush2.msra.mxu0 0.0
    %2728 = vmatprep.subr.mxu0 0.0
    %2729 = vmatpush2.msra.mxu0 0.0
    %2730 = vmatprep.subr.mxu0 0.0
    %2731 = vmatpush2.msra.mxu0 0.0
    %2732 = vmatprep.subr.mxu0 0.0
    %2733 = vmatpush2.msra.mxu0 0.0
    %2734 = vmatprep.subr.mxu0 0.0
    %2735 = vmatpush2.msra.mxu0 0.0
    %2736 = vmatprep.subr.mxu0 0.0
    %2737 = vmatpush2.msra.mxu0 0.0
    %2738 = vmatprep.subr.mxu0 0.0
    %2739 = vmatpush2.msra.mxu0 0.0
    %2740 = vmatprep.subr.mxu0 0.0
    %2741 = vmatpush2.msra.mxu0 0.0
    %2742 = vmatprep.mubr.f32.mxu0 0.0
    %2743 = vmatmul.mubr.f32.gmra.mxu0 %v2645
    %v2744 = vpop.f32.mrf.mxu0
    %v2745 = vadd.f32 0.0, %v2744
    %v2746 = vpop.f32.mrf.mxu0
    %2747 = vdwg.mxu0
    %2748 = vmatprep.subr.mxu0 0.0
    %2749 = vmatpush1.msra.mxu0 %v2661
    %2750 = vmatprep.subr.mxu0 0.0
    %2751 = vmatpush1.msra.mxu0 %v2660
    %2752 = vmatprep.subr.mxu0 0.0
    %2753 = vmatpush1.msra.mxu0 %v2659
    %2754 = vmatprep.subr.mxu0 0.0
    %2755 = vmatpush1.msra.mxu0 %v2658
    %2756 = vmatprep.subr.mxu0 0.0
    %2757 = vmatpush1.msra.mxu0 %v2657
    %2758 = vmatprep.subr.mxu0 0.0
    %2759 = vmatpush1.msra.mxu0 %v2656
    %2760 = vmatprep.subr.mxu0 0.0
    %2761 = vmatpush1.msra.mxu0 %v2655
    %2762 = vmatprep.subr.mxu0 0.0
    %2763 = vmatpush1.msra.mxu0 %v2654
    %2764 = vmatprep.subr.mxu0 0.0
    %2765 = vmatpush1.msra.mxu0 %v2653
    %2766 = vmatprep.subr.mxu0 0.0
    %2767 = vmatpush1.msra.mxu0 %v2652
    %2768 = vmatprep.subr.mxu0 0.0
    %2769 = vmatpush1.msra.mxu0 %v2651
    %2770 = vmatprep.subr.mxu0 0.0
    %2771 = vmatpush1.msra.mxu0 %v2650
    %2772 = vmatprep.subr.mxu0 0.0
    %2773 = vmatpush1.msra.mxu0 %v2649
    %2774 = vmatprep.subr.mxu0 0.0
    %2775 = vmatpush1.msra.mxu0 %v2648
    %2776 = vmatprep.subr.mxu0 0.0
    %2777 = vmatpush1.msra.mxu0 %v2647
    %2778 = vmatprep.subr.mxu0 0.0
    %2779 = vmatpush1.msra.mxu0 %v2646
    %2780 = vmatprep.subr.mxu0 0.0
    %2781 = vmatpush2.msra.mxu0 0.0
    %2782 = vmatprep.subr.mxu0 0.0
    %2783 = vmatpush2.msra.mxu0 0.0
    %2784 = vmatprep.subr.mxu0 0.0
    %2785 = vmatpush2.msra.mxu0 0.0
    %2786 = vmatprep.subr.mxu0 0.0
    %2787 = vmatpush2.msra.mxu0 0.0
    %2788 = vmatprep.subr.mxu0 0.0
    %2789 = vmatpush2.msra.mxu0 0.0
    %2790 = vmatprep.subr.mxu0 0.0
    %2791 = vmatpush2.msra.mxu0 0.0
    %2792 = vmatprep.subr.mxu0 0.0
    %2793 = vmatpush2.msra.mxu0 0.0
    %2794 = vmatprep.subr.mxu0 0.0
    %2795 = vmatpush2.msra.mxu0 0.0
    %2796 = vmatprep.subr.mxu0 0.0
    %2797 = vmatpush2.msra.mxu0 0.0
    %2798 = vmatprep.subr.mxu0 0.0
    %2799 = vmatpush2.msra.mxu0 0.0
    %2800 = vmatprep.subr.mxu0 0.0
    %2801 = vmatpush2.msra.mxu0 0.0
    %2802 = vmatprep.subr.mxu0 0.0
    %2803 = vmatpush2.msra.mxu0 0.0
    %2804 = vmatprep.subr.mxu0 0.0
    %2805 = vmatpush2.msra.mxu0 0.0
    %2806 = vmatprep.subr.mxu0 0.0
    %2807 = vmatpush2.msra.mxu0 0.0
    %2808 = vmatprep.subr.mxu0 0.0
    %2809 = vmatpush2.msra.mxu0 0.0
    %2810 = vmatprep.subr.mxu0 0.0
    %2811 = vmatpush2.msra.mxu0 0.0
    %2812 = vmatprep.mubr.f32.mxu0 0.0
    %2813 = vmatmul.mubr.f32.gmra.mxu0 %v2190
    %v2814 = vpop.f32.mrf.mxu0
    %v2815 = vadd.f32 %v2745, %v2814
    %v2816 = vpop.f32.mrf.mxu0
    %2817 = vdwg.mxu0
    %v2818 = vld [vmem:[%s8] sm:$0x1]
    %v2820 = vlaneseq
    %v2821 = vshrl.u32 %v2820, 7
    %v2822 = vsub.s32 0, %v2821
    %v2823 = vrot.slane %v2818, %v2822
    %v2825 = vadd.f32 %v2815, %v2823
    %v2826 = vmax.f32 %v2825, 0.0
    %v2827 = vld [vmem:[%s9] sm:$0xff]
    %v2828 = vld [vmem:[%s9 + $0x8] sm:$0xff]
    %v2829 = vld [vmem:[%s9 + $0x10] sm:$0xff]
    %v2830 = vld [vmem:[%s9 + $0x18] sm:$0xff]
    %v2831 = vld [vmem:[%s9 + $0x20] sm:$0xff]
    %v2832 = vld [vmem:[%s9 + $0x28] sm:$0xff]
    %v2833 = vld [vmem:[%s9 + $0x30] sm:$0xff]
    %v2834 = vld [vmem:[%s9 + $0x38] sm:$0xff]
    %v2835 = vld [vmem:[%s9 + $0x40] sm:$0xff]
    %v2836 = vld [vmem:[%s9 + $0x48] sm:$0xff]
    %v2837 = vld [vmem:[%s9 + $0x50] sm:$0xff]
    %v2838 = vld [vmem:[%s9 + $0x58] sm:$0xff]
    %v2839 = vld [vmem:[%s9 + $0x60] sm:$0xff]
    %v2840 = vld [vmem:[%s9 + $0x68] sm:$0xff]
    %v2841 = vld [vmem:[%s9 + $0x70] sm:$0xff]
    %v2842 = vld [vmem:[%s9 + $0x78] sm:$0xff]
    %v2843 = vld [vmem:[%s9 + $0x80] sm:$0xff]
    %v2844 = vld [vmem:[%s9 + $0x88] sm:$0xff]
    %v2845 = vld [vmem:[%s9 + $0x90] sm:$0xff]
    %v2846 = vld [vmem:[%s9 + $0x98] sm:$0xff]
    %v2847 = vld [vmem:[%s9 + $0xa0] sm:$0xff]
    %v2848 = vld [vmem:[%s9 + $0xa8] sm:$0xff]
    %v2849 = vld [vmem:[%s9 + $0xb0] sm:$0xff]
    %v2850 = vld [vmem:[%s9 + $0xb8] sm:$0xff]
    %v2851 = vld [vmem:[%s9 + $0xc0] sm:$0xff]
    %v2852 = vld [vmem:[%s9 + $0xc8] sm:$0xff]
    %v2853 = vld [vmem:[%s9 + $0xd0] sm:$0xff]
    %v2854 = vld [vmem:[%s9 + $0xd8] sm:$0xff]
    %v2855 = vld [vmem:[%s9 + $0xe0] sm:$0xff]
    %v2856 = vld [vmem:[%s9 + $0xe8] sm:$0xff]
    %v2857 = vld [vmem:[%s9 + $0xf0] sm:$0xff]
    %v2858 = vld [vmem:[%s9 + $0xf8] sm:$0xff]
    %v2859 = vld [vmem:[%s10] sm:$0x3]
    %v2861 = vlaneseq
    %v2862 = vshrl.u32 %v2861, 7
    %v2863 = vsub.s32 0, %v2862
    %v2864 = vrot.slane %v2859, %v2863
    %v2865 = vlaneseq
    %v2866 = vshrl.u32 %v2865, 7
    %v2867 = vsub.s32 1, %v2866
    %v2868 = vrot.slane %v2859, %v2867
    %2871 = vmatprep.subr.mxu0 %v2858
    %2872 = vmatpush1.msra.mxu0 %v2857
    %2873 = vmatprep.subr.mxu0 %v2856
    %2874 = vmatpush1.msra.mxu0 %v2855
    %2875 = vmatprep.subr.mxu0 %v2854
    %2876 = vmatpush1.msra.mxu0 %v2853
    %2877 = vmatprep.subr.mxu0 %v2852
    %2878 = vmatpush1.msra.mxu0 %v2851
    %2879 = vmatprep.subr.mxu0 %v2850
    %2880 = vmatpush1.msra.mxu0 %v2849
    %2881 = vmatprep.subr.mxu0 %v2848
    %2882 = vmatpush1.msra.mxu0 %v2847
    %2883 = vmatprep.subr.mxu0 %v2846
    %2884 = vmatpush1.msra.mxu0 %v2845
    %2885 = vmatprep.subr.mxu0 %v2844
    %2886 = vmatpush1.msra.mxu0 %v2843
    %2887 = vmatprep.subr.mxu0 %v2842
    %2888 = vmatpush1.msra.mxu0 %v2841
    %2889 = vmatprep.subr.mxu0 %v2840
    %2890 = vmatpush1.msra.mxu0 %v2839
    %2891 = vmatprep.subr.mxu0 %v2838
    %2892 = vmatpush1.msra.mxu0 %v2837
    %2893 = vmatprep.subr.mxu0 %v2836
    %2894 = vmatpush1.msra.mxu0 %v2835
    %2895 = vmatprep.subr.mxu0 %v2834
    %2896 = vmatpush1.msra.mxu0 %v2833
    %2897 = vmatprep.subr.mxu0 %v2832
    %2898 = vmatpush1.msra.mxu0 %v2831
    %2899 = vmatprep.subr.mxu0 %v2830
    %2900 = vmatpush1.msra.mxu0 %v2829
    %2901 = vmatprep.subr.mxu0 %v2828
    %2902 = vmatpush1.msra.mxu0 %v2827
    %2903 = vmatprep.subr.mxu0 0.0
    %2904 = vmatpush2.msra.mxu0 0.0
    %2905 = vmatprep.subr.mxu0 0.0
    %2906 = vmatpush2.msra.mxu0 0.0
    %2907 = vmatprep.subr.mxu0 0.0
    %2908 = vmatpush2.msra.mxu0 0.0
    %2909 = vmatprep.subr.mxu0 0.0
    %2910 = vmatpush2.msra.mxu0 0.0
    %2911 = vmatprep.subr.mxu0 0.0
    %2912 = vmatpush2.msra.mxu0 0.0
    %2913 = vmatprep.subr.mxu0 0.0
    %2914 = vmatpush2.msra.mxu0 0.0
    %2915 = vmatprep.subr.mxu0 0.0
    %2916 = vmatpush2.msra.mxu0 0.0
    %2917 = vmatprep.subr.mxu0 0.0
    %2918 = vmatpush2.msra.mxu0 0.0
    %2919 = vmatprep.subr.mxu0 0.0
    %2920 = vmatpush2.msra.mxu0 0.0
    %2921 = vmatprep.subr.mxu0 0.0
    %2922 = vmatpush2.msra.mxu0 0.0
    %2923 = vmatprep.subr.mxu0 0.0
    %2924 = vmatpush2.msra.mxu0 0.0
    %2925 = vmatprep.subr.mxu0 0.0
    %2926 = vmatpush2.msra.mxu0 0.0
    %2927 = vmatprep.subr.mxu0 0.0
    %2928 = vmatpush2.msra.mxu0 0.0
    %2929 = vmatprep.subr.mxu0 0.0
    %2930 = vmatpush2.msra.mxu0 0.0
    %2931 = vmatprep.subr.mxu0 0.0
    %2932 = vmatpush2.msra.mxu0 0.0
    %2933 = vmatprep.subr.mxu0 0.0
    %2934 = vmatpush2.msra.mxu0 0.0
    %2935 = vmatprep.mubr.f32.mxu0 0.0
    %2936 = vmatmul.mubr.f32.gmra.mxu0 %v2826
    %v2937 = vpop.f32.mrf.mxu0
    %v2938 = vadd.f32 %v2864, %v2937
    %v2939 = vpop.f32.mrf.mxu0
    %v2940 = vadd.f32 %v2868, %v2939
    %2941 = vdwg.mxu0
    %2942 = vst [vmem:[%s11] sm:$0xff] %v2938
    %2943 = vst [vmem:[%s11 + $0x8] sm:$0xff] %v2940
  $region53: #{lstm_encoding_forward.3} parent=0 // pred_fallthru
    _
  // Predicated region
  $region54: #{lstm_encoding_forward.3} parent=0 // pred_check
    _
  $region55: #{lstm_encoding_forward.3} parent=0 // pred_check_branch
    %2945 = sbr.rel (0) target = $region57
  $region56: #{lstm_encoding_forward.3} parent=0 // pred_region
    _
  $region57: #{lstm_encoding_forward.3} parent=0 // pred_fallthru
    _
  // Predicated region
  $region58: #{lstm_encoding_forward.3} parent=0 // pred_check
    _
  $region59: #{lstm_encoding_forward.3} parent=0 // pred_check_branch
    %2947 = sbr.rel (0) target = $region61
  $region60: #{lstm_encoding_forward.3} parent=0 // pred_region
    _
  $region61: #{lstm_encoding_forward.3} parent=0 // pred_fallthru
    _

// kernel: lstm_encoding_forward.2
$region0: #{lstm_encoding_forward.2}
  #allocation0 [shape = 'u32[]', space=smem, size = 0x4, offset = 0x4, fixed_abs, tag = 'smem constant byte address 0x4 - core index']
  #allocation1 [shape = 'u32[144,128]{1,0:T(1,128)}', space=vmem, size = 0x12000, scoped, tag = 'internal scratch']
  #allocation2 [shape = 'f32[8,128]{1,0:T(8,128)}', space=vmem, size = 0x1000, scoped, tag = 'scratch operand']
  #allocation3 [shape = 'f32[8,128]{1,0:T(8,128)}', space=vmem, size = 0x1000, scoped, tag = 'scratch operand']
  #allocation4 [shape = 'f32[8,128]{1,0:T(8,128)}', space=vmem, size = 0x1000, scoped, tag = 'scratch operand']
  #allocation5 [shape = 'f32[8,128]{1,0:T(8,128)}', space=vmem, size = 0x1000, scoped, tag = 'scratch operand']
  #allocation6 [shape = 'f32[8,8,512]{2,1,0:T(8,128)}', space=vmem, size = 0x20000, scoped, tag = 'scratch operand']
  #allocation7 [shape = 'f32[8,8,512]{2,1,0:T(8,128)}', space=vmem, size = 0x20000, scoped, tag = 'scratch operand']
  %s0 = inlined_call_operand.vmem [shape: f32[8,8,128], index: 0, kind: input, shape index: {}, may-alias: {0,1}]
  %s1 = inlined_call_operand.vmem [shape: f32[8,8,128], index: 1, kind: input, shape index: {}, may-alias: {0,1}]
  %s2 = inlined_call_operand.hbm [shape: f32[128,512], index: 2, kind: input, shape index: {}]
  %s3 = inlined_call_operand.hbm [shape: f32[128,512], index: 3, kind: input, shape index: {}]
  %s4 = inlined_call_operand.vmem [shape: f32[1,512], index: 4, kind: input, shape index: {}]
  %s5 = inlined_call_operand.hbm [shape: f32[128,512], index: 5, kind: input, shape index: {}]
  %s6 = inlined_call_operand.hbm [shape: f32[128,512], index: 6, kind: input, shape index: {}]
  %s7 = inlined_call_operand.vmem [shape: f32[1,512], index: 7, kind: input, shape index: {}]
  %s8 = inlined_call_operand.vmem [shape: f32[8,8,128], index: 8, kind: output, shape index: {0}]
  %s9 = inlined_call_operand.vmem [shape: f32[8,8,128], index: 9, kind: output, shape index: {1}]
  %10 = xla_tuple %s8, %s9
  %s11 = sld [smem:[#allocation0]]
  $region70: #{lstm_encoding_forward.2} parent=0
    _
  %s13 = ssub.s32 1, %s11
  %s14 = scalar_select 0, %s13, %s11
  $region1: #{lstm_encoding_forward.2} parent=0
    #allocation8 [shape = 'u8[262144]{0}', space=vmem, size = 0x40000, scoped, tag = 'input window, operand 2, single buffered']
    #allocation9 [shape = 's32[1]{0}', space=sflag, size = 0x4, scoped, tag = 'scoped memory for lstm_encoding_forward.2']
    #allocation10 [shape = 'u8[262144]{0}', space=vmem, size = 0x40000, scoped, tag = 'input window, operand 3, single buffered']
    #allocation11 [shape = 's32[1]{0}', space=sflag, size = 0x4, scoped, tag = 'scoped memory for lstm_encoding_forward.2']
    #allocation12 [shape = 'u8[262144]{0}', space=vmem, size = 0x40000, scoped, tag = 'input window, operand 5, single buffered']
    #allocation13 [shape = 'u8[262144]{0}', space=vmem, size = 0x40000, scoped, tag = 'input window, operand 6, single buffered']
    #allocation14 [shape = 's32[1]{0}', space=sflag, size = 0x4, scoped, tag = 'scoped memory for lstm_encoding_forward.2']
    %15 = vsyncpa [#allocation9], 0
    %16 = vsyncpa [#allocation11], 0
    %17 = vsyncpa [#allocation14], 0
    // Predicated region
    $region2: #{lstm_encoding_forward.2} parent=1 // pred_check
      _
    $region3: #{lstm_encoding_forward.2} parent=1 // pred_check_branch
      %19 = sbr.rel (0) target = $region5
    $region4: #{lstm_encoding_forward.2} parent=1 // pred_region
      _
    $region5: #{lstm_encoding_forward.2} parent=1 // pred_fallthru
      _
    // Predicated region
    $region6: #{lstm_encoding_forward.2} parent=1 // pred_check
      _
    $region7: #{lstm_encoding_forward.2} parent=1 // pred_check_branch
      %21 = sbr.rel (0) target = $region9
    $region8: #{lstm_encoding_forward.2} parent=1 // pred_region
      %s22 = ssub.s32 0, 0
      %s23 = smul.u32 8, %s22
      %p24 = scmp.lt.s32.totalorder %s23, 7
      %s25 = scalar_select %p24, %s23, 7
      %s26 = smul.addr %s25, 8
      %s27 = scalar_lea.vmem %s1, %s26
      %s28 = ssub.s32 0, 0
      %s29 = smul.u32 8, %s28
    $region9: #{lstm_encoding_forward.2} parent=1 // pred_fallthru
      _
    // Predicated region
    $region10: #{lstm_encoding_forward.2} parent=1 // pred_check
      _
    $region11: #{lstm_encoding_forward.2} parent=1 // pred_check_branch
      %31 = sbr.rel (0) target = $region13
    $region12: #{lstm_encoding_forward.2} parent=1 // pred_region
      %s33 = ssub.s32 8192, 8192
      %34 = vsyncadd [#allocation9], %s33
      %s35 = sshll.u32 [#allocation8], 4
      %s36 = int_to_ptr.vmem [resolvable:$true] %s35
      %41 = dma.hbm_to_vmem [thread:$0]  %s2, 8192, %s36, [#allocation9], 512, 512, 32
    $region13: #{lstm_encoding_forward.2} parent=1 // pred_fallthru
      _
    // Predicated region
    $region14: #{lstm_encoding_forward.2} parent=1 // pred_check
      _
    $region15: #{lstm_encoding_forward.2} parent=1 // pred_check_branch
      %43 = sbr.rel (0) target = $region17
    $region16: #{lstm_encoding_forward.2} parent=1 // pred_region
      %s45 = ssub.s32 8192, 8192
      %46 = vsyncadd [#allocation11], %s45
      %s47 = sshll.u32 [#allocation10], 4
      %s48 = int_to_ptr.vmem [resolvable:$true] %s47
      %53 = dma.hbm_to_vmem [thread:$0]  %s3, 8192, %s48, [#allocation11], 512, 512, 32
    $region17: #{lstm_encoding_forward.2} parent=1 // pred_fallthru
      _
    // Predicated region
    $region18: #{lstm_encoding_forward.2} parent=1 // pred_check
      _
    $region19: #{lstm_encoding_forward.2} parent=1 // pred_check_branch
      %55 = sbr.rel (0) target = $region21
    $region20: #{lstm_encoding_forward.2} parent=1 // pred_region
      _
    $region21: #{lstm_encoding_forward.2} parent=1 // pred_fallthru
      _
    // Predicated region
    $region22: #{lstm_encoding_forward.2} parent=1 // pred_check
      _
    $region23: #{lstm_encoding_forward.2} parent=1 // pred_check_branch
      %57 = sbr.rel (0) target = $region25
    $region24: #{lstm_encoding_forward.2} parent=1 // pred_region
      %s59 = ssub.s32 8192, 8192
      %60 = vsyncadd [#allocation11], %s59
      %s61 = sshll.u32 [#allocation12], 4
      %s62 = int_to_ptr.vmem [resolvable:$true] %s61
      %67 = dma.hbm_to_vmem [thread:$0]  %s5, 8192, %s62, [#allocation11], 512, 512, 32
    $region25: #{lstm_encoding_forward.2} parent=1 // pred_fallthru
      _
    // Predicated region
    $region26: #{lstm_encoding_forward.2} parent=1 // pred_check
      _
    $region27: #{lstm_encoding_forward.2} parent=1 // pred_check_branch
      %69 = sbr.rel (0) target = $region29
    $region28: #{lstm_encoding_forward.2} parent=1 // pred_region
      %s71 = ssub.s32 8192, 8192
      %72 = vsyncadd [#allocation14], %s71
      %s73 = sshll.u32 [#allocation13], 4
      %s74 = int_to_ptr.vmem [resolvable:$true] %s73
      %79 = dma.hbm_to_vmem [thread:$0]  %s6, 8192, %s74, [#allocation14], 512, 512, 32
    $region29: #{lstm_encoding_forward.2} parent=1 // pred_fallthru
      _
    // Predicated region
    $region30: #{lstm_encoding_forward.2} parent=1 // pred_check
      _
    $region31: #{lstm_encoding_forward.2} parent=1 // pred_check_branch
      %81 = sbr.rel (0) target = $region33
    $region32: #{lstm_encoding_forward.2} parent=1 // pred_region
      _
    $region33: #{lstm_encoding_forward.2} parent=1 // pred_fallthru
      _
    // Predicated region
    $region34: #{lstm_encoding_forward.2} parent=1 // pred_check
      _
    $region35: #{lstm_encoding_forward.2} parent=1 // pred_check_branch
      %83 = sbr.rel (0) target = $region37
    $region36: #{lstm_encoding_forward.2} parent=1 // pred_region
      %84 = dma.done [#allocation9], 8192
    $region37: #{lstm_encoding_forward.2} parent=1 // pred_fallthru
      _
    // Predicated region
    $region38: #{lstm_encoding_forward.2} parent=1 // pred_check
      _
    $region39: #{lstm_encoding_forward.2} parent=1 // pred_check_branch
      %86 = sbr.rel (0) target = $region41
    $region40: #{lstm_encoding_forward.2} parent=1 // pred_region
      %87 = dma.done [#allocation11], 8192
    $region41: #{lstm_encoding_forward.2} parent=1 // pred_fallthru
      _
    // Predicated region
    $region42: #{lstm_encoding_forward.2} parent=1 // pred_check
      _
    $region43: #{lstm_encoding_forward.2} parent=1 // pred_check_branch
      %89 = sbr.rel (0) target = $region45
    $region44: #{lstm_encoding_forward.2} parent=1 // pred_region
      %90 = dma.done [#allocation11], 8192
    $region45: #{lstm_encoding_forward.2} parent=1 // pred_fallthru
      _
    // Predicated region
    $region46: #{lstm_encoding_forward.2} parent=1 // pred_check
      _
    $region47: #{lstm_encoding_forward.2} parent=1 // pred_check_branch
      %92 = sbr.rel (0) target = $region49
    $region48: #{lstm_encoding_forward.2} parent=1 // pred_region
      %93 = dma.done [#allocation14], 8192
    $region49: #{lstm_encoding_forward.2} parent=1 // pred_fallthru
      _
    %s94 = ssub.s32 0, 0
    %s95 = smul.u32 8, %s94
    %p96 = scmp.lt.s32.totalorder %s95, 7
    %s97 = scalar_select %p96, %s95, 7
    %s98 = smul.addr %s97, 8
    %s99 = scalar_lea.vmem %s1, %s98
    %s100 = ssub.s32 0, 0
    %s101 = smul.u32 8, %s100
    %p102 = scmp.lt.s32.totalorder %s101, 7
    %s103 = scalar_select %p102, %s101, 7
    %s104 = smul.addr %s103, 8
    %s105 = scalar_lea.vmem %s9, %s104
    %s106 = ssub.s32 0, 0
    %s107 = smul.u32 8, %s106
    %p108 = scmp.lt.s32.totalorder %s107, 7
    %s109 = scalar_select %p108, %s107, 7
    %s110 = smul.addr %s109, 8
    %s111 = scalar_lea.vmem %s1, %s110
    %s112 = ssub.s32 0, 0
    %s113 = smul.u32 8, %s112
    %s114 = ssub.s32 0, 0
    %s115 = smul.u32 8, %s114
    %p116 = scmp.lt.s32.totalorder %s115, 7
    %s117 = scalar_select %p116, %s115, 7
    %s118 = smul.addr %s117, 8
    %s119 = scalar_lea.vmem %s9, %s118
    %s120 = ssub.s32 0, 0
    %s121 = smul.u32 8, %s120
    %p122 = scmp.eq.s32.totalorder 0, 0
    // Predicated region
    $region50: #{lstm_encoding_forward.2} parent=1 // pred_check
      %p123 = pneg %p122
    $region51: #{lstm_encoding_forward.2} parent=1 // pred_check_branch
      %125 = sbr.rel (%p123) target = $region53
    $region52: #{lstm_encoding_forward.2} parent=1 // pred_region
      %126 = vst [vmem:[#allocation2] sm:$0xff] 0.0
      %127 = vst [vmem:[#allocation3] sm:$0xff] 0.0
      %128 = vst [vmem:[#allocation4] sm:$0xff] 0.0
      %129 = vst [vmem:[#allocation5] sm:$0xff] 0.0
    $region53: #{lstm_encoding_forward.2} parent=1 // pred_fallthru
      _
    %v130 = vld [vmem:[%s0] sm:$0xff]
    %v131 = vld [vmem:[%s0 + $0x8] sm:$0xff]
    %v132 = vld [vmem:[%s0 + $0x10] sm:$0xff]
    %v133 = vld [vmem:[%s0 + $0x18] sm:$0xff]
    %v134 = vld [vmem:[%s0 + $0x20] sm:$0xff]
    %v135 = vld [vmem:[%s0 + $0x28] sm:$0xff]
    %v136 = vld [vmem:[%s0 + $0x30] sm:$0xff]
    %v137 = vld [vmem:[%s0 + $0x38] sm:$0xff]
    %v138 = vld [vmem:[%s111] sm:$0xff]
    %v139 = vld [vmem:[%s111 + $0x8] sm:$0xff]
    %v140 = vld [vmem:[%s111 + $0x10] sm:$0xff]
    %v141 = vld [vmem:[%s111 + $0x18] sm:$0xff]
    %v142 = vld [vmem:[%s111 + $0x20] sm:$0xff]
    %v143 = vld [vmem:[%s111 + $0x28] sm:$0xff]
    %v144 = vld [vmem:[%s111 + $0x30] sm:$0xff]
    %v145 = vld [vmem:[%s111 + $0x38] sm:$0xff]
    %v146 = vld [vmem:[#allocation8] sm:$0xff]
    %v147 = vld [vmem:[#allocation8 + $0x8] sm:$0xff]
    %v148 = vld [vmem:[#allocation8 + $0x10] sm:$0xff]
    %v149 = vld [vmem:[#allocation8 + $0x18] sm:$0xff]
    %v150 = vld [vmem:[#allocation8 + $0x20] sm:$0xff]
    %v151 = vld [vmem:[#allocation8 + $0x28] sm:$0xff]
    %v152 = vld [vmem:[#allocation8 + $0x30] sm:$0xff]
    %v153 = vld [vmem:[#allocation8 + $0x38] sm:$0xff]
    %v154 = vld [vmem:[#allocation8 + $0x40] sm:$0xff]
    %v155 = vld [vmem:[#allocation8 + $0x48] sm:$0xff]
    %v156 = vld [vmem:[#allocation8 + $0x50] sm:$0xff]
    %v157 = vld [vmem:[#allocation8 + $0x58] sm:$0xff]
    %v158 = vld [vmem:[#allocation8 + $0x60] sm:$0xff]
    %v159 = vld [vmem:[#allocation8 + $0x68] sm:$0xff]
    %v160 = vld [vmem:[#allocation8 + $0x70] sm:$0xff]
    %v161 = vld [vmem:[#allocation8 + $0x78] sm:$0xff]
    %v162 = vld [vmem:[#allocation8 + $0x80] sm:$0xff]
    %v163 = vld [vmem:[#allocation8 + $0x88] sm:$0xff]
    %v164 = vld [vmem:[#allocation8 + $0x90] sm:$0xff]
    %v165 = vld [vmem:[#allocation8 + $0x98] sm:$0xff]
    %v166 = vld [vmem:[#allocation8 + $0xa0] sm:$0xff]
    %v167 = vld [vmem:[#allocation8 + $0xa8] sm:$0xff]
    %v168 = vld [vmem:[#allocation8 + $0xb0] sm:$0xff]
    %v169 = vld [vmem:[#allocation8 + $0xb8] sm:$0xff]
    %v170 = vld [vmem:[#allocation8 + $0xc0] sm:$0xff]
    %v171 = vld [vmem:[#allocation8 + $0xc8] sm:$0xff]
    %v172 = vld [vmem:[#allocation8 + $0xd0] sm:$0xff]
    %v173 = vld [vmem:[#allocation8 + $0xd8] sm:$0xff]
    %v174 = vld [vmem:[#allocation8 + $0xe0] sm:$0xff]
    %v175 = vld [vmem:[#allocation8 + $0xe8] sm:$0xff]
    %v176 = vld [vmem:[#allocation8 + $0xf0] sm:$0xff]
    %v177 = vld [vmem:[#allocation8 + $0xf8] sm:$0xff]
    %v178 = vld [vmem:[#allocation8 + $0x100] sm:$0xff]
    %v179 = vld [vmem:[#allocation8 + $0x108] sm:$0xff]
    %v180 = vld [vmem:[#allocation8 + $0x110] sm:$0xff]
    %v181 = vld [vmem:[#allocation8 + $0x118] sm:$0xff]
    %v182 = vld [vmem:[#allocation8 + $0x120] sm:$0xff]
    %v183 = vld [vmem:[#allocation8 + $0x128] sm:$0xff]
    %v184 = vld [vmem:[#allocation8 + $0x130] sm:$0xff]
    %v185 = vld [vmem:[#allocation8 + $0x138] sm:$0xff]
    %v186 = vld [vmem:[#allocation8 + $0x140] sm:$0xff]
    %v187 = vld [vmem:[#allocation8 + $0x148] sm:$0xff]
    %v188 = vld [vmem:[#allocation8 + $0x150] sm:$0xff]
    %v189 = vld [vmem:[#allocation8 + $0x158] sm:$0xff]
    %v190 = vld [vmem:[#allocation8 + $0x160] sm:$0xff]
    %v191 = vld [vmem:[#allocation8 + $0x168] sm:$0xff]
    %v192 = vld [vmem:[#allocation8 + $0x170] sm:$0xff]
    %v193 = vld [vmem:[#allocation8 + $0x178] sm:$0xff]
    %v194 = vld [vmem:[#allocation8 + $0x180] sm:$0xff]
    %v195 = vld [vmem:[#allocation8 + $0x188] sm:$0xff]
    %v196 = vld [vmem:[#allocation8 + $0x190] sm:$0xff]
    %v197 = vld [vmem:[#allocation8 + $0x198] sm:$0xff]
    %v198 = vld [vmem:[#allocation8 + $0x1a0] sm:$0xff]
    %v199 = vld [vmem:[#allocation8 + $0x1a8] sm:$0xff]
    %v200 = vld [vmem:[#allocation8 + $0x1b0] sm:$0xff]
    %v201 = vld [vmem:[#allocation8 + $0x1b8] sm:$0xff]
    %v202 = vld [vmem:[#allocation8 + $0x1c0] sm:$0xff]
    %v203 = vld [vmem:[#allocation8 + $0x1c8] sm:$0xff]
    %v204 = vld [vmem:[#allocation8 + $0x1d0] sm:$0xff]
    %v205 = vld [vmem:[#allocation8 + $0x1d8] sm:$0xff]
    %v206 = vld [vmem:[#allocation8 + $0x1e0] sm:$0xff]
    %v207 = vld [vmem:[#allocation8 + $0x1e8] sm:$0xff]
    %v208 = vld [vmem:[#allocation8 + $0x1f0] sm:$0xff]
    %v209 = vld [vmem:[#allocation8 + $0x1f8] sm:$0xff]
    %v210 = vld [vmem:[%s4] sm:$0xf]
    %v212 = vlaneseq
    %v213 = vshrl.u32 %v212, 7
    %v214 = vsub.s32 0, %v213
    %v215 = vrot.slane %v210, %v214
    %v216 = vlaneseq
    %v217 = vshrl.u32 %v216, 7
    %v218 = vsub.s32 1, %v217
    %v219 = vrot.slane %v210, %v218
    %v220 = vlaneseq
    %v221 = vshrl.u32 %v220, 7
    %v222 = vsub.s32 2, %v221
    %v223 = vrot.slane %v210, %v222
    %v224 = vlaneseq
    %v225 = vshrl.u32 %v224, 7
    %v226 = vsub.s32 3, %v225
    %v227 = vrot.slane %v210, %v226
    %232 = vmatprep.subr.mxu0 %v207
    %233 = vmatpush1.msra.mxu0 %v206
    %234 = vmatprep.subr.mxu0 %v203
    %235 = vmatpush1.msra.mxu0 %v202
    %236 = vmatprep.subr.mxu0 %v199
    %237 = vmatpush1.msra.mxu0 %v198
    %238 = vmatprep.subr.mxu0 %v195
    %239 = vmatpush1.msra.mxu0 %v194
    %240 = vmatprep.subr.mxu0 %v191
    %241 = vmatpush1.msra.mxu0 %v190
    %242 = vmatprep.subr.mxu0 %v187
    %243 = vmatpush1.msra.mxu0 %v186
    %244 = vmatprep.subr.mxu0 %v183
    %245 = vmatpush1.msra.mxu0 %v182
    %246 = vmatprep.subr.mxu0 %v179
    %247 = vmatpush1.msra.mxu0 %v178
    %248 = vmatprep.subr.mxu0 %v175
    %249 = vmatpush1.msra.mxu0 %v174
    %250 = vmatprep.subr.mxu0 %v171
    %251 = vmatpush1.msra.mxu0 %v170
    %252 = vmatprep.subr.mxu0 %v167
    %253 = vmatpush1.msra.mxu0 %v166
    %254 = vmatprep.subr.mxu0 %v163
    %255 = vmatpush1.msra.mxu0 %v162
    %256 = vmatprep.subr.mxu0 %v159
    %257 = vmatpush1.msra.mxu0 %v158
    %258 = vmatprep.subr.mxu0 %v155
    %259 = vmatpush1.msra.mxu0 %v154
    %260 = vmatprep.subr.mxu0 %v151
    %261 = vmatpush1.msra.mxu0 %v150
    %262 = vmatprep.subr.mxu0 %v147
    %263 = vmatpush1.msra.mxu0 %v146
    %264 = vmatprep.subr.mxu0 0.0
    %265 = vmatpush2.msra.mxu0 0.0
    %266 = vmatprep.subr.mxu0 0.0
    %267 = vmatpush2.msra.mxu0 0.0
    %268 = vmatprep.subr.mxu0 0.0
    %269 = vmatpush2.msra.mxu0 0.0
    %270 = vmatprep.subr.mxu0 0.0
    %271 = vmatpush2.msra.mxu0 0.0
    %272 = vmatprep.subr.mxu0 0.0
    %273 = vmatpush2.msra.mxu0 0.0
    %274 = vmatprep.subr.mxu0 0.0
    %275 = vmatpush2.msra.mxu0 0.0
    %276 = vmatprep.subr.mxu0 0.0
    %277 = vmatpush2.msra.mxu0 0.0
    %278 = vmatprep.subr.mxu0 0.0
    %279 = vmatpush2.msra.mxu0 0.0
    %280 = vmatprep.subr.mxu0 0.0
    %281 = vmatpush2.msra.mxu0 0.0
    %282 = vmatprep.subr.mxu0 0.0
    %283 = vmatpush2.msra.mxu0 0.0
    %284 = vmatprep.subr.mxu0 0.0
    %285 = vmatpush2.msra.mxu0 0.0
    %286 = vmatprep.subr.mxu0 0.0
    %287 = vmatpush2.msra.mxu0 0.0
    %288 = vmatprep.subr.mxu0 0.0
    %289 = vmatpush2.msra.mxu0 0.0
    %290 = vmatprep.subr.mxu0 0.0
    %291 = vmatpush2.msra.mxu0 0.0
    %292 = vmatprep.subr.mxu0 0.0
    %293 = vmatpush2.msra.mxu0 0.0
    %294 = vmatprep.subr.mxu0 0.0
    %295 = vmatpush2.msra.mxu0 0.0
    %296 = vmatprep.mubr.f32.mxu0 0.0
    %297 = vmatmul.mubr.f32.gmra.mxu0 %v130
    %v298 = vpop.f32.mrf.mxu0
    %v299 = vadd.f32 %v215, %v298
    %v300 = vpop.f32.mrf.mxu0
    %v301 = vadd.f32 %v219, %v300
    %302 = vmatprep.mubr.f32.mxu0 0.0
    %303 = vmatmul.mubr.f32.gmra.mxu0 %v131
    %v304 = vpop.f32.mrf.mxu0
    %v305 = vadd.f32 %v215, %v304
    %v306 = vpop.f32.mrf.mxu0
    %v307 = vadd.f32 %v219, %v306
    %308 = vmatprep.mubr.f32.mxu0 0.0
    %309 = vmatmul.mubr.f32.gmra.mxu0 %v132
    %v310 = vpop.f32.mrf.mxu0
    %v311 = vadd.f32 %v215, %v310
    %v312 = vpop.f32.mrf.mxu0
    %v313 = vadd.f32 %v219, %v312
    %314 = vmatprep.mubr.f32.mxu0 0.0
    %315 = vmatmul.mubr.f32.gmra.mxu0 %v133
    %v316 = vpop.f32.mrf.mxu0
    %v317 = vadd.f32 %v215, %v316
    %v318 = vpop.f32.mrf.mxu0
    %v319 = vadd.f32 %v219, %v318
    %320 = vmatprep.mubr.f32.mxu0 0.0
    %321 = vmatmul.mubr.f32.gmra.mxu0 %v134
    %v322 = vpop.f32.mrf.mxu0
    %v323 = vadd.f32 %v215, %v322
    %v324 = vpop.f32.mrf.mxu0
    %v325 = vadd.f32 %v219, %v324
    %326 = vmatprep.mubr.f32.mxu0 0.0
    %327 = vmatmul.mubr.f32.gmra.mxu0 %v135
    %v328 = vpop.f32.mrf.mxu0
    %v329 = vadd.f32 %v215, %v328
    %v330 = vpop.f32.mrf.mxu0
    %v331 = vadd.f32 %v219, %v330
    %332 = vmatprep.mubr.f32.mxu0 0.0
    %333 = vmatmul.mubr.f32.gmra.mxu0 %v136
    %v334 = vpop.f32.mrf.mxu0
    %v335 = vadd.f32 %v215, %v334
    %v336 = vpop.f32.mrf.mxu0
    %v337 = vadd.f32 %v219, %v336
    %338 = vmatprep.mubr.f32.mxu0 0.0
    %339 = vmatmul.mubr.f32.gmra.mxu0 %v137
    %v340 = vpop.f32.mrf.mxu0
    %v341 = vadd.f32 %v215, %v340
    %v342 = vpop.f32.mrf.mxu0
    %v343 = vadd.f32 %v219, %v342
    %344 = vdwg.mxu0
    %345 = vmatprep.subr.mxu0 %v209
    %346 = vmatpush1.msra.mxu0 %v208
    %347 = vmatprep.subr.mxu0 %v205
    %348 = vmatpush1.msra.mxu0 %v204
    %349 = vmatprep.subr.mxu0 %v201
    %350 = vmatpush1.msra.mxu0 %v200
    %351 = vmatprep.subr.mxu0 %v197
    %352 = vmatpush1.msra.mxu0 %v196
    %353 = vmatprep.subr.mxu0 %v193
    %354 = vmatpush1.msra.mxu0 %v192
    %355 = vmatprep.subr.mxu0 %v189
    %356 = vmatpush1.msra.mxu0 %v188
    %357 = vmatprep.subr.mxu0 %v185
    %358 = vmatpush1.msra.mxu0 %v184
    %359 = vmatprep.subr.mxu0 %v181
    %360 = vmatpush1.msra.mxu0 %v180
    %361 = vmatprep.subr.mxu0 %v177
    %362 = vmatpush1.msra.mxu0 %v176
    %363 = vmatprep.subr.mxu0 %v173
    %364 = vmatpush1.msra.mxu0 %v172
    %365 = vmatprep.subr.mxu0 %v169
    %366 = vmatpush1.msra.mxu0 %v168
    %367 = vmatprep.subr.mxu0 %v165
    %368 = vmatpush1.msra.mxu0 %v164
    %369 = vmatprep.subr.mxu0 %v161
    %370 = vmatpush1.msra.mxu0 %v160
    %371 = vmatprep.subr.mxu0 %v157
    %372 = vmatpush1.msra.mxu0 %v156
    %373 = vmatprep.subr.mxu0 %v153
    %374 = vmatpush1.msra.mxu0 %v152
    %375 = vmatprep.subr.mxu0 %v149
    %376 = vmatpush1.msra.mxu0 %v148
    %377 = vmatprep.subr.mxu0 0.0
    %378 = vmatpush2.msra.mxu0 0.0
    %379 = vmatprep.subr.mxu0 0.0
    %380 = vmatpush2.msra.mxu0 0.0
    %381 = vmatprep.subr.mxu0 0.0
    %382 = vmatpush2.msra.mxu0 0.0
    %383 = vmatprep.subr.mxu0 0.0
    %384 = vmatpush2.msra.mxu0 0.0
    %385 = vmatprep.subr.mxu0 0.0
    %386 = vmatpush2.msra.mxu0 0.0
    %387 = vmatprep.subr.mxu0 0.0
    %388 = vmatpush2.msra.mxu0 0.0
    %389 = vmatprep.subr.mxu0 0.0
    %390 = vmatpush2.msra.mxu0 0.0
    %391 = vmatprep.subr.mxu0 0.0
    %392 = vmatpush2.msra.mxu0 0.0
    %393 = vmatprep.subr.mxu0 0.0
    %394 = vmatpush2.msra.mxu0 0.0
    %395 = vmatprep.subr.mxu0 0.0
    %396 = vmatpush2.msra.mxu0 0.0
    %397 = vmatprep.subr.mxu0 0.0
    %398 = vmatpush2.msra.mxu0 0.0
    %399 = vmatprep.subr.mxu0 0.0
    %400 = vmatpush2.msra.mxu0 0.0
    %401 = vmatprep.subr.mxu0 0.0
    %402 = vmatpush2.msra.mxu0 0.0
    %403 = vmatprep.subr.mxu0 0.0
    %404 = vmatpush2.msra.mxu0 0.0
    %405 = vmatprep.subr.mxu0 0.0
    %406 = vmatpush2.msra.mxu0 0.0
    %407 = vmatprep.subr.mxu0 0.0
    %408 = vmatpush2.msra.mxu0 0.0
    %409 = vmatprep.mubr.f32.mxu0 0.0
    %410 = vmatmul.mubr.f32.gmra.mxu0 %v130
    %v411 = vpop.f32.mrf.mxu0
    %v412 = vadd.f32 %v223, %v411
    %v413 = vpop.f32.mrf.mxu0
    %v414 = vadd.f32 %v227, %v413
    %415 = vmatprep.mubr.f32.mxu0 0.0
    %416 = vmatmul.mubr.f32.gmra.mxu0 %v131
    %v417 = vpop.f32.mrf.mxu0
    %v418 = vadd.f32 %v223, %v417
    %v419 = vpop.f32.mrf.mxu0
    %v420 = vadd.f32 %v227, %v419
    %421 = vmatprep.mubr.f32.mxu0 0.0
    %422 = vmatmul.mubr.f32.gmra.mxu0 %v132
    %v423 = vpop.f32.mrf.mxu0
    %v424 = vadd.f32 %v223, %v423
    %v425 = vpop.f32.mrf.mxu0
    %v426 = vadd.f32 %v227, %v425
    %427 = vmatprep.mubr.f32.mxu0 0.0
    %428 = vmatmul.mubr.f32.gmra.mxu0 %v133
    %v429 = vpop.f32.mrf.mxu0
    %v430 = vadd.f32 %v223, %v429
    %v431 = vpop.f32.mrf.mxu0
    %v432 = vadd.f32 %v227, %v431
    %433 = vmatprep.mubr.f32.mxu0 0.0
    %434 = vmatmul.mubr.f32.gmra.mxu0 %v134
    %v435 = vpop.f32.mrf.mxu0
    %v436 = vadd.f32 %v223, %v435
    %v437 = vpop.f32.mrf.mxu0
    %v438 = vadd.f32 %v227, %v437
    %439 = vmatprep.mubr.f32.mxu0 0.0
    %440 = vmatmul.mubr.f32.gmra.mxu0 %v135
    %v441 = vpop.f32.mrf.mxu0
    %v442 = vadd.f32 %v223, %v441
    %v443 = vpop.f32.mrf.mxu0
    %v444 = vadd.f32 %v227, %v443
    %445 = vmatprep.mubr.f32.mxu0 0.0
    %446 = vmatmul.mubr.f32.gmra.mxu0 %v136
    %v447 = vpop.f32.mrf.mxu0
    %v448 = vadd.f32 %v223, %v447
    %v449 = vpop.f32.mrf.mxu0
    %v450 = vadd.f32 %v227, %v449
    %451 = vmatprep.mubr.f32.mxu0 0.0
    %452 = vmatmul.mubr.f32.gmra.mxu0 %v137
    %v453 = vpop.f32.mrf.mxu0
    %v454 = vadd.f32 %v223, %v453
    %v455 = vpop.f32.mrf.mxu0
    %v456 = vadd.f32 %v227, %v455
    %457 = vdwg.mxu0
    %458 = vst [vmem:[#allocation6] sm:$0xff] %v299
    %459 = vst [vmem:[#allocation6 + $0x8] sm:$0xff] %v301
    %460 = vst [vmem:[#allocation6 + $0x10] sm:$0xff] %v412
    %461 = vst [vmem:[#allocation6 + $0x18] sm:$0xff] %v414
    %462 = vst [vmem:[#allocation6 + $0x20] sm:$0xff] %v305
    %463 = vst [vmem:[#allocation6 + $0x28] sm:$0xff] %v307
    %464 = vst [vmem:[#allocation6 + $0x30] sm:$0xff] %v418
    %465 = vst [vmem:[#allocation6 + $0x38] sm:$0xff] %v420
    %466 = vst [vmem:[#allocation6 + $0x40] sm:$0xff] %v311
    %467 = vst [vmem:[#allocation6 + $0x48] sm:$0xff] %v313
    %468 = vst [vmem:[#allocation6 + $0x50] sm:$0xff] %v424
    %469 = vst [vmem:[#allocation6 + $0x58] sm:$0xff] %v426
    %470 = vst [vmem:[#allocation6 + $0x60] sm:$0xff] %v317
    %471 = vst [vmem:[#allocation6 + $0x68] sm:$0xff] %v319
    %472 = vst [vmem:[#allocation6 + $0x70] sm:$0xff] %v430
    %473 = vst [vmem:[#allocation6 + $0x78] sm:$0xff] %v432
    %474 = vst [vmem:[#allocation6 + $0x80] sm:$0xff] %v323
    %475 = vst [vmem:[#allocation6 + $0x88] sm:$0xff] %v325
    %476 = vst [vmem:[#allocation6 + $0x90] sm:$0xff] %v436
    %477 = vst [vmem:[#allocation6 + $0x98] sm:$0xff] %v438
    %478 = vst [vmem:[#allocation6 + $0xa0] sm:$0xff] %v329
    %479 = vst [vmem:[#allocation6 + $0xa8] sm:$0xff] %v331
    %480 = vst [vmem:[#allocation6 + $0xb0] sm:$0xff] %v442
    %481 = vst [vmem:[#allocation6 + $0xb8] sm:$0xff] %v444
    %482 = vst [vmem:[#allocation6 + $0xc0] sm:$0xff] %v335
    %483 = vst [vmem:[#allocation6 + $0xc8] sm:$0xff] %v337
    %484 = vst [vmem:[#allocation6 + $0xd0] sm:$0xff] %v448
    %485 = vst [vmem:[#allocation6 + $0xd8] sm:$0xff] %v450
    %486 = vst [vmem:[#allocation6 + $0xe0] sm:$0xff] %v341
    %487 = vst [vmem:[#allocation6 + $0xe8] sm:$0xff] %v343
    %488 = vst [vmem:[#allocation6 + $0xf0] sm:$0xff] %v454
    %489 = vst [vmem:[#allocation6 + $0xf8] sm:$0xff] %v456
    %v490 = vld [vmem:[#allocation12] sm:$0xff]
    %v491 = vld [vmem:[#allocation12 + $0x8] sm:$0xff]
    %v492 = vld [vmem:[#allocation12 + $0x10] sm:$0xff]
    %v493 = vld [vmem:[#allocation12 + $0x18] sm:$0xff]
    %v494 = vld [vmem:[#allocation12 + $0x20] sm:$0xff]
    %v495 = vld [vmem:[#allocation12 + $0x28] sm:$0xff]
    %v496 = vld [vmem:[#allocation12 + $0x30] sm:$0xff]
    %v497 = vld [vmem:[#allocation12 + $0x38] sm:$0xff]
    %v498 = vld [vmem:[#allocation12 + $0x40] sm:$0xff]
    %v499 = vld [vmem:[#allocation12 + $0x48] sm:$0xff]
    %v500 = vld [vmem:[#allocation12 + $0x50] sm:$0xff]
    %v501 = vld [vmem:[#allocation12 + $0x58] sm:$0xff]
    %v502 = vld [vmem:[#allocation12 + $0x60] sm:$0xff]
    %v503 = vld [vmem:[#allocation12 + $0x68] sm:$0xff]
    %v504 = vld [vmem:[#allocation12 + $0x70] sm:$0xff]
    %v505 = vld [vmem:[#allocation12 + $0x78] sm:$0xff]
    %v506 = vld [vmem:[#allocation12 + $0x80] sm:$0xff]
    %v507 = vld [vmem:[#allocation12 + $0x88] sm:$0xff]
    %v508 = vld [vmem:[#allocation12 + $0x90] sm:$0xff]
    %v509 = vld [vmem:[#allocation12 + $0x98] sm:$0xff]
    %v510 = vld [vmem:[#allocation12 + $0xa0] sm:$0xff]
    %v511 = vld [vmem:[#allocation12 + $0xa8] sm:$0xff]
    %v512 = vld [vmem:[#allocation12 + $0xb0] sm:$0xff]
    %v513 = vld [vmem:[#allocation12 + $0xb8] sm:$0xff]
    %v514 = vld [vmem:[#allocation12 + $0xc0] sm:$0xff]
    %v515 = vld [vmem:[#allocation12 + $0xc8] sm:$0xff]
    %v516 = vld [vmem:[#allocation12 + $0xd0] sm:$0xff]
    %v517 = vld [vmem:[#allocation12 + $0xd8] sm:$0xff]
    %v518 = vld [vmem:[#allocation12 + $0xe0] sm:$0xff]
    %v519 = vld [vmem:[#allocation12 + $0xe8] sm:$0xff]
    %v520 = vld [vmem:[#allocation12 + $0xf0] sm:$0xff]
    %v521 = vld [vmem:[#allocation12 + $0xf8] sm:$0xff]
    %v522 = vld [vmem:[#allocation12 + $0x100] sm:$0xff]
    %v523 = vld [vmem:[#allocation12 + $0x108] sm:$0xff]
    %v524 = vld [vmem:[#allocation12 + $0x110] sm:$0xff]
    %v525 = vld [vmem:[#allocation12 + $0x118] sm:$0xff]
    %v526 = vld [vmem:[#allocation12 + $0x120] sm:$0xff]
    %v527 = vld [vmem:[#allocation12 + $0x128] sm:$0xff]
    %v528 = vld [vmem:[#allocation12 + $0x130] sm:$0xff]
    %v529 = vld [vmem:[#allocation12 + $0x138] sm:$0xff]
    %v530 = vld [vmem:[#allocation12 + $0x140] sm:$0xff]
    %v531 = vld [vmem:[#allocation12 + $0x148] sm:$0xff]
    %v532 = vld [vmem:[#allocation12 + $0x150] sm:$0xff]
    %v533 = vld [vmem:[#allocation12 + $0x158] sm:$0xff]
    %v534 = vld [vmem:[#allocation12 + $0x160] sm:$0xff]
    %v535 = vld [vmem:[#allocation12 + $0x168] sm:$0xff]
    %v536 = vld [vmem:[#allocation12 + $0x170] sm:$0xff]
    %v537 = vld [vmem:[#allocation12 + $0x178] sm:$0xff]
    %v538 = vld [vmem:[#allocation12 + $0x180] sm:$0xff]
    %v539 = vld [vmem:[#allocation12 + $0x188] sm:$0xff]
    %v540 = vld [vmem:[#allocation12 + $0x190] sm:$0xff]
    %v541 = vld [vmem:[#allocation12 + $0x198] sm:$0xff]
    %v542 = vld [vmem:[#allocation12 + $0x1a0] sm:$0xff]
    %v543 = vld [vmem:[#allocation12 + $0x1a8] sm:$0xff]
    %v544 = vld [vmem:[#allocation12 + $0x1b0] sm:$0xff]
    %v545 = vld [vmem:[#allocation12 + $0x1b8] sm:$0xff]
    %v546 = vld [vmem:[#allocation12 + $0x1c0] sm:$0xff]
    %v547 = vld [vmem:[#allocation12 + $0x1c8] sm:$0xff]
    %v548 = vld [vmem:[#allocation12 + $0x1d0] sm:$0xff]
    %v549 = vld [vmem:[#allocation12 + $0x1d8] sm:$0xff]
    %v550 = vld [vmem:[#allocation12 + $0x1e0] sm:$0xff]
    %v551 = vld [vmem:[#allocation12 + $0x1e8] sm:$0xff]
    %v552 = vld [vmem:[#allocation12 + $0x1f0] sm:$0xff]
    %v553 = vld [vmem:[#allocation12 + $0x1f8] sm:$0xff]
    %v554 = vld [vmem:[%s7] sm:$0xf]
    %v556 = vlaneseq
    %v557 = vshrl.u32 %v556, 7
    %v558 = vsub.s32 0, %v557
    %v559 = vrot.slane %v554, %v558
    %v560 = vlaneseq
    %v561 = vshrl.u32 %v560, 7
    %v562 = vsub.s32 1, %v561
    %v563 = vrot.slane %v554, %v562
    %v564 = vlaneseq
    %v565 = vshrl.u32 %v564, 7
    %v566 = vsub.s32 2, %v565
    %v567 = vrot.slane %v554, %v566
    %v568 = vlaneseq
    %v569 = vshrl.u32 %v568, 7
    %v570 = vsub.s32 3, %v569
    %v571 = vrot.slane %v554, %v570
    %576 = vmatprep.subr.mxu0 %v551
    %577 = vmatpush1.msra.mxu0 %v550
    %578 = vmatprep.subr.mxu0 %v547
    %579 = vmatpush1.msra.mxu0 %v546
    %580 = vmatprep.subr.mxu0 %v543
    %581 = vmatpush1.msra.mxu0 %v542
    %582 = vmatprep.subr.mxu0 %v539
    %583 = vmatpush1.msra.mxu0 %v538
    %584 = vmatprep.subr.mxu0 %v535
    %585 = vmatpush1.msra.mxu0 %v534
    %586 = vmatprep.subr.mxu0 %v531
    %587 = vmatpush1.msra.mxu0 %v530
    %588 = vmatprep.subr.mxu0 %v527
    %589 = vmatpush1.msra.mxu0 %v526
    %590 = vmatprep.subr.mxu0 %v523
    %591 = vmatpush1.msra.mxu0 %v522
    %592 = vmatprep.subr.mxu0 %v519
    %593 = vmatpush1.msra.mxu0 %v518
    %594 = vmatprep.subr.mxu0 %v515
    %595 = vmatpush1.msra.mxu0 %v514
    %596 = vmatprep.subr.mxu0 %v511
    %597 = vmatpush1.msra.mxu0 %v510
    %598 = vmatprep.subr.mxu0 %v507
    %599 = vmatpush1.msra.mxu0 %v506
    %600 = vmatprep.subr.mxu0 %v503
    %601 = vmatpush1.msra.mxu0 %v502
    %602 = vmatprep.subr.mxu0 %v499
    %603 = vmatpush1.msra.mxu0 %v498
    %604 = vmatprep.subr.mxu0 %v495
    %605 = vmatpush1.msra.mxu0 %v494
    %606 = vmatprep.subr.mxu0 %v491
    %607 = vmatpush1.msra.mxu0 %v490
    %608 = vmatprep.subr.mxu0 0.0
    %609 = vmatpush2.msra.mxu0 0.0
    %610 = vmatprep.subr.mxu0 0.0
    %611 = vmatpush2.msra.mxu0 0.0
    %612 = vmatprep.subr.mxu0 0.0
    %613 = vmatpush2.msra.mxu0 0.0
    %614 = vmatprep.subr.mxu0 0.0
    %615 = vmatpush2.msra.mxu0 0.0
    %616 = vmatprep.subr.mxu0 0.0
    %617 = vmatpush2.msra.mxu0 0.0
    %618 = vmatprep.subr.mxu0 0.0
    %619 = vmatpush2.msra.mxu0 0.0
    %620 = vmatprep.subr.mxu0 0.0
    %621 = vmatpush2.msra.mxu0 0.0
    %622 = vmatprep.subr.mxu0 0.0
    %623 = vmatpush2.msra.mxu0 0.0
    %624 = vmatprep.subr.mxu0 0.0
    %625 = vmatpush2.msra.mxu0 0.0
    %626 = vmatprep.subr.mxu0 0.0
    %627 = vmatpush2.msra.mxu0 0.0
    %628 = vmatprep.subr.mxu0 0.0
    %629 = vmatpush2.msra.mxu0 0.0
    %630 = vmatprep.subr.mxu0 0.0
    %631 = vmatpush2.msra.mxu0 0.0
    %632 = vmatprep.subr.mxu0 0.0
    %633 = vmatpush2.msra.mxu0 0.0
    %634 = vmatprep.subr.mxu0 0.0
    %635 = vmatpush2.msra.mxu0 0.0
    %636 = vmatprep.subr.mxu0 0.0
    %637 = vmatpush2.msra.mxu0 0.0
    %638 = vmatprep.subr.mxu0 0.0
    %639 = vmatpush2.msra.mxu0 0.0
    %640 = vmatprep.mubr.f32.mxu0 0.0
    %641 = vmatmul.mubr.f32.gmra.mxu0 %v138
    %v642 = vpop.f32.mrf.mxu0
    %v643 = vadd.f32 %v559, %v642
    %v644 = vpop.f32.mrf.mxu0
    %v645 = vadd.f32 %v563, %v644
    %646 = vmatprep.mubr.f32.mxu0 0.0
    %647 = vmatmul.mubr.f32.gmra.mxu0 %v139
    %v648 = vpop.f32.mrf.mxu0
    %v649 = vadd.f32 %v559, %v648
    %v650 = vpop.f32.mrf.mxu0
    %v651 = vadd.f32 %v563, %v650
    %652 = vmatprep.mubr.f32.mxu0 0.0
    %653 = vmatmul.mubr.f32.gmra.mxu0 %v140
    %v654 = vpop.f32.mrf.mxu0
    %v655 = vadd.f32 %v559, %v654
    %v656 = vpop.f32.mrf.mxu0
    %v657 = vadd.f32 %v563, %v656
    %658 = vmatprep.mubr.f32.mxu0 0.0
    %659 = vmatmul.mubr.f32.gmra.mxu0 %v141
    %v660 = vpop.f32.mrf.mxu0
    %v661 = vadd.f32 %v559, %v660
    %v662 = vpop.f32.mrf.mxu0
    %v663 = vadd.f32 %v563, %v662
    %664 = vmatprep.mubr.f32.mxu0 0.0
    %665 = vmatmul.mubr.f32.gmra.mxu0 %v142
    %v666 = vpop.f32.mrf.mxu0
    %v667 = vadd.f32 %v559, %v666
    %v668 = vpop.f32.mrf.mxu0
    %v669 = vadd.f32 %v563, %v668
    %670 = vmatprep.mubr.f32.mxu0 0.0
    %671 = vmatmul.mubr.f32.gmra.mxu0 %v143
    %v672 = vpop.f32.mrf.mxu0
    %v673 = vadd.f32 %v559, %v672
    %v674 = vpop.f32.mrf.mxu0
    %v675 = vadd.f32 %v563, %v674
    %676 = vmatprep.mubr.f32.mxu0 0.0
    %677 = vmatmul.mubr.f32.gmra.mxu0 %v144
    %v678 = vpop.f32.mrf.mxu0
    %v679 = vadd.f32 %v559, %v678
    %v680 = vpop.f32.mrf.mxu0
    %v681 = vadd.f32 %v563, %v680
    %682 = vmatprep.mubr.f32.mxu0 0.0
    %683 = vmatmul.mubr.f32.gmra.mxu0 %v145
    %v684 = vpop.f32.mrf.mxu0
    %v685 = vadd.f32 %v559, %v684
    %v686 = vpop.f32.mrf.mxu0
    %v687 = vadd.f32 %v563, %v686
    %688 = vdwg.mxu0
    %689 = vmatprep.subr.mxu0 %v553
    %690 = vmatpush1.msra.mxu0 %v552
    %691 = vmatprep.subr.mxu0 %v549
    %692 = vmatpush1.msra.mxu0 %v548
    %693 = vmatprep.subr.mxu0 %v545
    %694 = vmatpush1.msra.mxu0 %v544
    %695 = vmatprep.subr.mxu0 %v541
    %696 = vmatpush1.msra.mxu0 %v540
    %697 = vmatprep.subr.mxu0 %v537
    %698 = vmatpush1.msra.mxu0 %v536
    %699 = vmatprep.subr.mxu0 %v533
    %700 = vmatpush1.msra.mxu0 %v532
    %701 = vmatprep.subr.mxu0 %v529
    %702 = vmatpush1.msra.mxu0 %v528
    %703 = vmatprep.subr.mxu0 %v525
    %704 = vmatpush1.msra.mxu0 %v524
    %705 = vmatprep.subr.mxu0 %v521
    %706 = vmatpush1.msra.mxu0 %v520
    %707 = vmatprep.subr.mxu0 %v517
    %708 = vmatpush1.msra.mxu0 %v516
    %709 = vmatprep.subr.mxu0 %v513
    %710 = vmatpush1.msra.mxu0 %v512
    %711 = vmatprep.subr.mxu0 %v509
    %712 = vmatpush1.msra.mxu0 %v508
    %713 = vmatprep.subr.mxu0 %v505
    %714 = vmatpush1.msra.mxu0 %v504
    %715 = vmatprep.subr.mxu0 %v501
    %716 = vmatpush1.msra.mxu0 %v500
    %717 = vmatprep.subr.mxu0 %v497
    %718 = vmatpush1.msra.mxu0 %v496
    %719 = vmatprep.subr.mxu0 %v493
    %720 = vmatpush1.msra.mxu0 %v492
    %721 = vmatprep.subr.mxu0 0.0
    %722 = vmatpush2.msra.mxu0 0.0
    %723 = vmatprep.subr.mxu0 0.0
    %724 = vmatpush2.msra.mxu0 0.0
    %725 = vmatprep.subr.mxu0 0.0
    %726 = vmatpush2.msra.mxu0 0.0
    %727 = vmatprep.subr.mxu0 0.0
    %728 = vmatpush2.msra.mxu0 0.0
    %729 = vmatprep.subr.mxu0 0.0
    %730 = vmatpush2.msra.mxu0 0.0
    %731 = vmatprep.subr.mxu0 0.0
    %732 = vmatpush2.msra.mxu0 0.0
    %733 = vmatprep.subr.mxu0 0.0
    %734 = vmatpush2.msra.mxu0 0.0
    %735 = vmatprep.subr.mxu0 0.0
    %736 = vmatpush2.msra.mxu0 0.0
    %737 = vmatprep.subr.mxu0 0.0
    %738 = vmatpush2.msra.mxu0 0.0
    %739 = vmatprep.subr.mxu0 0.0
    %740 = vmatpush2.msra.mxu0 0.0
    %741 = vmatprep.subr.mxu0 0.0
    %742 = vmatpush2.msra.mxu0 0.0
    %743 = vmatprep.subr.mxu0 0.0
    %744 = vmatpush2.msra.mxu0 0.0
    %745 = vmatprep.subr.mxu0 0.0
    %746 = vmatpush2.msra.mxu0 0.0
    %747 = vmatprep.subr.mxu0 0.0
    %748 = vmatpush2.msra.mxu0 0.0
    %749 = vmatprep.subr.mxu0 0.0
    %750 = vmatpush2.msra.mxu0 0.0
    %751 = vmatprep.subr.mxu0 0.0
    %752 = vmatpush2.msra.mxu0 0.0
    %753 = vmatprep.mubr.f32.mxu0 0.0
    %754 = vmatmul.mubr.f32.gmra.mxu0 %v138
    %v755 = vpop.f32.mrf.mxu0
    %v756 = vadd.f32 %v567, %v755
    %v757 = vpop.f32.mrf.mxu0
    %v758 = vadd.f32 %v571, %v757
    %759 = vmatprep.mubr.f32.mxu0 0.0
    %760 = vmatmul.mubr.f32.gmra.mxu0 %v139
    %v761 = vpop.f32.mrf.mxu0
    %v762 = vadd.f32 %v567, %v761
    %v763 = vpop.f32.mrf.mxu0
    %v764 = vadd.f32 %v571, %v763
    %765 = vmatprep.mubr.f32.mxu0 0.0
    %766 = vmatmul.mubr.f32.gmra.mxu0 %v140
    %v767 = vpop.f32.mrf.mxu0
    %v768 = vadd.f32 %v567, %v767
    %v769 = vpop.f32.mrf.mxu0
    %v770 = vadd.f32 %v571, %v769
    %771 = vmatprep.mubr.f32.mxu0 0.0
    %772 = vmatmul.mubr.f32.gmra.mxu0 %v141
    %v773 = vpop.f32.mrf.mxu0
    %v774 = vadd.f32 %v567, %v773
    %v775 = vpop.f32.mrf.mxu0
    %v776 = vadd.f32 %v571, %v775
    %777 = vmatprep.mubr.f32.mxu0 0.0
    %778 = vmatmul.mubr.f32.gmra.mxu0 %v142
    %v779 = vpop.f32.mrf.mxu0
    %v780 = vadd.f32 %v567, %v779
    %v781 = vpop.f32.mrf.mxu0
    %v782 = vadd.f32 %v571, %v781
    %783 = vmatprep.mubr.f32.mxu0 0.0
    %784 = vmatmul.mubr.f32.gmra.mxu0 %v143
    %v785 = vpop.f32.mrf.mxu0
    %v786 = vadd.f32 %v567, %v785
    %v787 = vpop.f32.mrf.mxu0
    %v788 = vadd.f32 %v571, %v787
    %789 = vmatprep.mubr.f32.mxu0 0.0
    %790 = vmatmul.mubr.f32.gmra.mxu0 %v144
    %v791 = vpop.f32.mrf.mxu0
    %v792 = vadd.f32 %v567, %v791
    %v793 = vpop.f32.mrf.mxu0
    %v794 = vadd.f32 %v571, %v793
    %795 = vmatprep.mubr.f32.mxu0 0.0
    %796 = vmatmul.mubr.f32.gmra.mxu0 %v145
    %v797 = vpop.f32.mrf.mxu0
    %v798 = vadd.f32 %v567, %v797
    %v799 = vpop.f32.mrf.mxu0
    %v800 = vadd.f32 %v571, %v799
    %801 = vdwg.mxu0
    %802 = vst [vmem:[#allocation7] sm:$0xff] %v643
    %803 = vst [vmem:[#allocation7 + $0x8] sm:$0xff] %v645
    %804 = vst [vmem:[#allocation7 + $0x10] sm:$0xff] %v756
    %805 = vst [vmem:[#allocation7 + $0x18] sm:$0xff] %v758
    %806 = vst [vmem:[#allocation7 + $0x20] sm:$0xff] %v649
    %807 = vst [vmem:[#allocation7 + $0x28] sm:$0xff] %v651
    %808 = vst [vmem:[#allocation7 + $0x30] sm:$0xff] %v762
    %809 = vst [vmem:[#allocation7 + $0x38] sm:$0xff] %v764
    %810 = vst [vmem:[#allocation7 + $0x40] sm:$0xff] %v655
    %811 = vst [vmem:[#allocation7 + $0x48] sm:$0xff] %v657
    %812 = vst [vmem:[#allocation7 + $0x50] sm:$0xff] %v768
    %813 = vst [vmem:[#allocation7 + $0x58] sm:$0xff] %v770
    %814 = vst [vmem:[#allocation7 + $0x60] sm:$0xff] %v661
    %815 = vst [vmem:[#allocation7 + $0x68] sm:$0xff] %v663
    %816 = vst [vmem:[#allocation7 + $0x70] sm:$0xff] %v774
    %817 = vst [vmem:[#allocation7 + $0x78] sm:$0xff] %v776
    %818 = vst [vmem:[#allocation7 + $0x80] sm:$0xff] %v667
    %819 = vst [vmem:[#allocation7 + $0x88] sm:$0xff] %v669
    %820 = vst [vmem:[#allocation7 + $0x90] sm:$0xff] %v780
    %821 = vst [vmem:[#allocation7 + $0x98] sm:$0xff] %v782
    %822 = vst [vmem:[#allocation7 + $0xa0] sm:$0xff] %v673
    %823 = vst [vmem:[#allocation7 + $0xa8] sm:$0xff] %v675
    %824 = vst [vmem:[#allocation7 + $0xb0] sm:$0xff] %v786
    %825 = vst [vmem:[#allocation7 + $0xb8] sm:$0xff] %v788
    %826 = vst [vmem:[#allocation7 + $0xc0] sm:$0xff] %v679
    %827 = vst [vmem:[#allocation7 + $0xc8] sm:$0xff] %v681
    %828 = vst [vmem:[#allocation7 + $0xd0] sm:$0xff] %v792
    %829 = vst [vmem:[#allocation7 + $0xd8] sm:$0xff] %v794
    %830 = vst [vmem:[#allocation7 + $0xe0] sm:$0xff] %v685
    %831 = vst [vmem:[#allocation7 + $0xe8] sm:$0xff] %v687
    %832 = vst [vmem:[#allocation7 + $0xf0] sm:$0xff] %v798
    %833 = vst [vmem:[#allocation7 + $0xf8] sm:$0xff] %v800
    %v834 = vld [vmem:[#allocation10] sm:$0xff]
    %v835 = vld [vmem:[#allocation10 + $0x8] sm:$0xff]
    %v836 = vld [vmem:[#allocation10 + $0x10] sm:$0xff]
    %v837 = vld [vmem:[#allocation10 + $0x18] sm:$0xff]
    %v838 = vld [vmem:[#allocation10 + $0x20] sm:$0xff]
    %v839 = vld [vmem:[#allocation10 + $0x28] sm:$0xff]
    %v840 = vld [vmem:[#allocation10 + $0x30] sm:$0xff]
    %v841 = vld [vmem:[#allocation10 + $0x38] sm:$0xff]
    %v842 = vld [vmem:[#allocation10 + $0x40] sm:$0xff]
    %v843 = vld [vmem:[#allocation10 + $0x48] sm:$0xff]
    %v844 = vld [vmem:[#allocation10 + $0x50] sm:$0xff]
    %v845 = vld [vmem:[#allocation10 + $0x58] sm:$0xff]
    %v846 = vld [vmem:[#allocation10 + $0x60] sm:$0xff]
    %v847 = vld [vmem:[#allocation10 + $0x68] sm:$0xff]
    %v848 = vld [vmem:[#allocation10 + $0x70] sm:$0xff]
    %v849 = vld [vmem:[#allocation10 + $0x78] sm:$0xff]
    %v850 = vld [vmem:[#allocation10 + $0x80] sm:$0xff]
    %v851 = vld [vmem:[#allocation10 + $0x88] sm:$0xff]
    %v852 = vld [vmem:[#allocation10 + $0x90] sm:$0xff]
    %v853 = vld [vmem:[#allocation10 + $0x98] sm:$0xff]
    %v854 = vld [vmem:[#allocation10 + $0xa0] sm:$0xff]
    %v855 = vld [vmem:[#allocation10 + $0xa8] sm:$0xff]
    %v856 = vld [vmem:[#allocation10 + $0xb0] sm:$0xff]
    %v857 = vld [vmem:[#allocation10 + $0xb8] sm:$0xff]
    %v858 = vld [vmem:[#allocation10 + $0xc0] sm:$0xff]
    %v859 = vld [vmem:[#allocation10 + $0xc8] sm:$0xff]
    %v860 = vld [vmem:[#allocation10 + $0xd0] sm:$0xff]
    %v861 = vld [vmem:[#allocation10 + $0xd8] sm:$0xff]
    %v862 = vld [vmem:[#allocation10 + $0xe0] sm:$0xff]
    %v863 = vld [vmem:[#allocation10 + $0xe8] sm:$0xff]
    %v864 = vld [vmem:[#allocation10 + $0xf0] sm:$0xff]
    %v865 = vld [vmem:[#allocation10 + $0xf8] sm:$0xff]
    %v866 = vld [vmem:[#allocation10 + $0x100] sm:$0xff]
    %v867 = vld [vmem:[#allocation10 + $0x108] sm:$0xff]
    %v868 = vld [vmem:[#allocation10 + $0x110] sm:$0xff]
    %v869 = vld [vmem:[#allocation10 + $0x118] sm:$0xff]
    %v870 = vld [vmem:[#allocation10 + $0x120] sm:$0xff]
    %v871 = vld [vmem:[#allocation10 + $0x128] sm:$0xff]
    %v872 = vld [vmem:[#allocation10 + $0x130] sm:$0xff]
    %v873 = vld [vmem:[#allocation10 + $0x138] sm:$0xff]
    %v874 = vld [vmem:[#allocation10 + $0x140] sm:$0xff]
    %v875 = vld [vmem:[#allocation10 + $0x148] sm:$0xff]
    %v876 = vld [vmem:[#allocation10 + $0x150] sm:$0xff]
    %v877 = vld [vmem:[#allocation10 + $0x158] sm:$0xff]
    %v878 = vld [vmem:[#allocation10 + $0x160] sm:$0xff]
    %v879 = vld [vmem:[#allocation10 + $0x168] sm:$0xff]
    %v880 = vld [vmem:[#allocation10 + $0x170] sm:$0xff]
    %v881 = vld [vmem:[#allocation10 + $0x178] sm:$0xff]
    %v882 = vld [vmem:[#allocation10 + $0x180] sm:$0xff]
    %v883 = vld [vmem:[#allocation10 + $0x188] sm:$0xff]
    %v884 = vld [vmem:[#allocation10 + $0x190] sm:$0xff]
    %v885 = vld [vmem:[#allocation10 + $0x198] sm:$0xff]
    %v886 = vld [vmem:[#allocation10 + $0x1a0] sm:$0xff]
    %v887 = vld [vmem:[#allocation10 + $0x1a8] sm:$0xff]
    %v888 = vld [vmem:[#allocation10 + $0x1b0] sm:$0xff]
    %v889 = vld [vmem:[#allocation10 + $0x1b8] sm:$0xff]
    %v890 = vld [vmem:[#allocation10 + $0x1c0] sm:$0xff]
    %v891 = vld [vmem:[#allocation10 + $0x1c8] sm:$0xff]
    %v892 = vld [vmem:[#allocation10 + $0x1d0] sm:$0xff]
    %v893 = vld [vmem:[#allocation10 + $0x1d8] sm:$0xff]
    %v894 = vld [vmem:[#allocation10 + $0x1e0] sm:$0xff]
    %v895 = vld [vmem:[#allocation10 + $0x1e8] sm:$0xff]
    %v896 = vld [vmem:[#allocation10 + $0x1f0] sm:$0xff]
    %v897 = vld [vmem:[#allocation10 + $0x1f8] sm:$0xff]
    %v898 = vld [vmem:[#allocation13] sm:$0xff]
    %v899 = vld [vmem:[#allocation13 + $0x8] sm:$0xff]
    %v900 = vld [vmem:[#allocation13 + $0x10] sm:$0xff]
    %v901 = vld [vmem:[#allocation13 + $0x18] sm:$0xff]
    %v902 = vld [vmem:[#allocation13 + $0x20] sm:$0xff]
    %v903 = vld [vmem:[#allocation13 + $0x28] sm:$0xff]
    %v904 = vld [vmem:[#allocation13 + $0x30] sm:$0xff]
    %v905 = vld [vmem:[#allocation13 + $0x38] sm:$0xff]
    %v906 = vld [vmem:[#allocation13 + $0x40] sm:$0xff]
    %v907 = vld [vmem:[#allocation13 + $0x48] sm:$0xff]
    %v908 = vld [vmem:[#allocation13 + $0x50] sm:$0xff]
    %v909 = vld [vmem:[#allocation13 + $0x58] sm:$0xff]
    %v910 = vld [vmem:[#allocation13 + $0x60] sm:$0xff]
    %v911 = vld [vmem:[#allocation13 + $0x68] sm:$0xff]
    %v912 = vld [vmem:[#allocation13 + $0x70] sm:$0xff]
    %v913 = vld [vmem:[#allocation13 + $0x78] sm:$0xff]
    %v914 = vld [vmem:[#allocation13 + $0x80] sm:$0xff]
    %v915 = vld [vmem:[#allocation13 + $0x88] sm:$0xff]
    %v916 = vld [vmem:[#allocation13 + $0x90] sm:$0xff]
    %v917 = vld [vmem:[#allocation13 + $0x98] sm:$0xff]
    %v918 = vld [vmem:[#allocation13 + $0xa0] sm:$0xff]
    %v919 = vld [vmem:[#allocation13 + $0xa8] sm:$0xff]
    %v920 = vld [vmem:[#allocation13 + $0xb0] sm:$0xff]
    %v921 = vld [vmem:[#allocation13 + $0xb8] sm:$0xff]
    %v922 = vld [vmem:[#allocation13 + $0xc0] sm:$0xff]
    %v923 = vld [vmem:[#allocation13 + $0xc8] sm:$0xff]
    %v924 = vld [vmem:[#allocation13 + $0xd0] sm:$0xff]
    %v925 = vld [vmem:[#allocation13 + $0xd8] sm:$0xff]
    %v926 = vld [vmem:[#allocation13 + $0xe0] sm:$0xff]
    %v927 = vld [vmem:[#allocation13 + $0xe8] sm:$0xff]
    %v928 = vld [vmem:[#allocation13 + $0xf0] sm:$0xff]
    %v929 = vld [vmem:[#allocation13 + $0xf8] sm:$0xff]
    %v930 = vld [vmem:[#allocation13 + $0x100] sm:$0xff]
    %v931 = vld [vmem:[#allocation13 + $0x108] sm:$0xff]
    %v932 = vld [vmem:[#allocation13 + $0x110] sm:$0xff]
    %v933 = vld [vmem:[#allocation13 + $0x118] sm:$0xff]
    %v934 = vld [vmem:[#allocation13 + $0x120] sm:$0xff]
    %v935 = vld [vmem:[#allocation13 + $0x128] sm:$0xff]
    %v936 = vld [vmem:[#allocation13 + $0x130] sm:$0xff]
    %v937 = vld [vmem:[#allocation13 + $0x138] sm:$0xff]
    %v938 = vld [vmem:[#allocation13 + $0x140] sm:$0xff]
    %v939 = vld [vmem:[#allocation13 + $0x148] sm:$0xff]
    %v940 = vld [vmem:[#allocation13 + $0x150] sm:$0xff]
    %v941 = vld [vmem:[#allocation13 + $0x158] sm:$0xff]
    %v942 = vld [vmem:[#allocation13 + $0x160] sm:$0xff]
    %v943 = vld [vmem:[#allocation13 + $0x168] sm:$0xff]
    %v944 = vld [vmem:[#allocation13 + $0x170] sm:$0xff]
    %v945 = vld [vmem:[#allocation13 + $0x178] sm:$0xff]
    %v946 = vld [vmem:[#allocation13 + $0x180] sm:$0xff]
    %v947 = vld [vmem:[#allocation13 + $0x188] sm:$0xff]
    %v948 = vld [vmem:[#allocation13 + $0x190] sm:$0xff]
    %v949 = vld [vmem:[#allocation13 + $0x198] sm:$0xff]
    %v950 = vld [vmem:[#allocation13 + $0x1a0] sm:$0xff]
    %v951 = vld [vmem:[#allocation13 + $0x1a8] sm:$0xff]
    %v952 = vld [vmem:[#allocation13 + $0x1b0] sm:$0xff]
    %v953 = vld [vmem:[#allocation13 + $0x1b8] sm:$0xff]
    %v954 = vld [vmem:[#allocation13 + $0x1c0] sm:$0xff]
    %v955 = vld [vmem:[#allocation13 + $0x1c8] sm:$0xff]
    %v956 = vld [vmem:[#allocation13 + $0x1d0] sm:$0xff]
    %v957 = vld [vmem:[#allocation13 + $0x1d8] sm:$0xff]
    %v958 = vld [vmem:[#allocation13 + $0x1e0] sm:$0xff]
    %v959 = vld [vmem:[#allocation13 + $0x1e8] sm:$0xff]
    %v960 = vld [vmem:[#allocation13 + $0x1f0] sm:$0xff]
    %v961 = vld [vmem:[#allocation13 + $0x1f8] sm:$0xff]
    %v962 = vld [vmem:[#allocation2] sm:$0xff]
    %v963 = vld [vmem:[#allocation3] sm:$0xff]
    %v964 = vld [vmem:[#allocation4] sm:$0xff]
    %v965 = vld [vmem:[#allocation5] sm:$0xff]
    %v966 = vld [vmem:[#allocation6] sm:$0xff]
    %v967 = vld [vmem:[#allocation6 + $0x8] sm:$0xff]
    %v968 = vld [vmem:[#allocation6 + $0x10] sm:$0xff]
    %v969 = vld [vmem:[#allocation6 + $0x18] sm:$0xff]
    %970 = vmatprep.subr.mxu0 %v895
    %971 = vmatpush1.msra.mxu0 %v894
    %972 = vmatprep.subr.mxu0 %v891
    %973 = vmatpush1.msra.mxu0 %v890
    %974 = vmatprep.subr.mxu0 %v887
    %975 = vmatpush1.msra.mxu0 %v886
    %976 = vmatprep.subr.mxu0 %v883
    %977 = vmatpush1.msra.mxu0 %v882
    %978 = vmatprep.subr.mxu0 %v879
    %979 = vmatpush1.msra.mxu0 %v878
    %980 = vmatprep.subr.mxu0 %v875
    %981 = vmatpush1.msra.mxu0 %v874
    %982 = vmatprep.subr.mxu0 %v871
    %983 = vmatpush1.msra.mxu0 %v870
    %984 = vmatprep.subr.mxu0 %v867
    %985 = vmatpush1.msra.mxu0 %v866
    %986 = vmatprep.subr.mxu0 %v863
    %987 = vmatpush1.msra.mxu0 %v862
    %988 = vmatprep.subr.mxu0 %v859
    %989 = vmatpush1.msra.mxu0 %v858
    %990 = vmatprep.subr.mxu0 %v855
    %991 = vmatpush1.msra.mxu0 %v854
    %992 = vmatprep.subr.mxu0 %v851
    %993 = vmatpush1.msra.mxu0 %v850
    %994 = vmatprep.subr.mxu0 %v847
    %995 = vmatpush1.msra.mxu0 %v846
    %996 = vmatprep.subr.mxu0 %v843
    %997 = vmatpush1.msra.mxu0 %v842
    %998 = vmatprep.subr.mxu0 %v839
    %999 = vmatpush1.msra.mxu0 %v838
    %1000 = vmatprep.subr.mxu0 %v835
    %1001 = vmatpush1.msra.mxu0 %v834
    %1002 = vmatprep.subr.mxu0 0.0
    %1003 = vmatpush2.msra.mxu0 0.0
    %1004 = vmatprep.subr.mxu0 0.0
    %1005 = vmatpush2.msra.mxu0 0.0
    %1006 = vmatprep.subr.mxu0 0.0
    %1007 = vmatpush2.msra.mxu0 0.0
    %1008 = vmatprep.subr.mxu0 0.0
    %1009 = vmatpush2.msra.mxu0 0.0
    %1010 = vmatprep.subr.mxu0 0.0
    %1011 = vmatpush2.msra.mxu0 0.0
    %1012 = vmatprep.subr.mxu0 0.0
    %1013 = vmatpush2.msra.mxu0 0.0
    %1014 = vmatprep.subr.mxu0 0.0
    %1015 = vmatpush2.msra.mxu0 0.0
    %1016 = vmatprep.subr.mxu0 0.0
    %1017 = vmatpush2.msra.mxu0 0.0
    %1018 = vmatprep.subr.mxu0 0.0
    %1019 = vmatpush2.msra.mxu0 0.0
    %1020 = vmatprep.subr.mxu0 0.0
    %1021 = vmatpush2.msra.mxu0 0.0
    %1022 = vmatprep.subr.mxu0 0.0
    %1023 = vmatpush2.msra.mxu0 0.0
    %1024 = vmatprep.subr.mxu0 0.0
    %1025 = vmatpush2.msra.mxu0 0.0
    %1026 = vmatprep.subr.mxu0 0.0
    %1027 = vmatpush2.msra.mxu0 0.0
    %1028 = vmatprep.subr.mxu0 0.0
    %1029 = vmatpush2.msra.mxu0 0.0
    %1030 = vmatprep.subr.mxu0 0.0
    %1031 = vmatpush2.msra.mxu0 0.0
    %1032 = vmatprep.subr.mxu0 0.0
    %1033 = vmatpush2.msra.mxu0 0.0
    %1034 = vmatprep.mubr.f32.mxu0 0.0
    %1035 = vmatmul.mubr.f32.gmra.mxu0 %v962
    %v1036 = vpop.f32.mrf.mxu0
    %v1037 = vadd.f32 0.0, %v1036
    %v1038 = vpop.f32.mrf.mxu0
    %v1039 = vadd.f32 0.0, %v1038
    %1040 = vdwg.mxu0
    %1041 = vmatprep.subr.mxu0 %v897
    %1042 = vmatpush1.msra.mxu0 %v896
    %1043 = vmatprep.subr.mxu0 %v893
    %1044 = vmatpush1.msra.mxu0 %v892
    %1045 = vmatprep.subr.mxu0 %v889
    %1046 = vmatpush1.msra.mxu0 %v888
    %1047 = vmatprep.subr.mxu0 %v885
    %1048 = vmatpush1.msra.mxu0 %v884
    %1049 = vmatprep.subr.mxu0 %v881
    %1050 = vmatpush1.msra.mxu0 %v880
    %1051 = vmatprep.subr.mxu0 %v877
    %1052 = vmatpush1.msra.mxu0 %v876
    %1053 = vmatprep.subr.mxu0 %v873
    %1054 = vmatpush1.msra.mxu0 %v872
    %1055 = vmatprep.subr.mxu0 %v869
    %1056 = vmatpush1.msra.mxu0 %v868
    %1057 = vmatprep.subr.mxu0 %v865
    %1058 = vmatpush1.msra.mxu0 %v864
    %1059 = vmatprep.subr.mxu0 %v861
    %1060 = vmatpush1.msra.mxu0 %v860
    %1061 = vmatprep.subr.mxu0 %v857
    %1062 = vmatpush1.msra.mxu0 %v856
    %1063 = vmatprep.subr.mxu0 %v853
    %1064 = vmatpush1.msra.mxu0 %v852
    %1065 = vmatprep.subr.mxu0 %v849
    %1066 = vmatpush1.msra.mxu0 %v848
    %1067 = vmatprep.subr.mxu0 %v845
    %1068 = vmatpush1.msra.mxu0 %v844
    %1069 = vmatprep.subr.mxu0 %v841
    %1070 = vmatpush1.msra.mxu0 %v840
    %1071 = vmatprep.subr.mxu0 %v837
    %1072 = vmatpush1.msra.mxu0 %v836
    %1073 = vmatprep.subr.mxu0 0.0
    %1074 = vmatpush2.msra.mxu0 0.0
    %1075 = vmatprep.subr.mxu0 0.0
    %1076 = vmatpush2.msra.mxu0 0.0
    %1077 = vmatprep.subr.mxu0 0.0
    %1078 = vmatpush2.msra.mxu0 0.0
    %1079 = vmatprep.subr.mxu0 0.0
    %1080 = vmatpush2.msra.mxu0 0.0
    %1081 = vmatprep.subr.mxu0 0.0
    %1082 = vmatpush2.msra.mxu0 0.0
    %1083 = vmatprep.subr.mxu0 0.0
    %1084 = vmatpush2.msra.mxu0 0.0
    %1085 = vmatprep.subr.mxu0 0.0
    %1086 = vmatpush2.msra.mxu0 0.0
    %1087 = vmatprep.subr.mxu0 0.0
    %1088 = vmatpush2.msra.mxu0 0.0
    %1089 = vmatprep.subr.mxu0 0.0
    %1090 = vmatpush2.msra.mxu0 0.0
    %1091 = vmatprep.subr.mxu0 0.0
    %1092 = vmatpush2.msra.mxu0 0.0
    %1093 = vmatprep.subr.mxu0 0.0
    %1094 = vmatpush2.msra.mxu0 0.0
    %1095 = vmatprep.subr.mxu0 0.0
    %1096 = vmatpush2.msra.mxu0 0.0
    %1097 = vmatprep.subr.mxu0 0.0
    %1098 = vmatpush2.msra.mxu0 0.0
    %1099 = vmatprep.subr.mxu0 0.0
    %1100 = vmatpush2.msra.mxu0 0.0
    %1101 = vmatprep.subr.mxu0 0.0
    %1102 = vmatpush2.msra.mxu0 0.0
    %1103 = vmatprep.subr.mxu0 0.0
    %1104 = vmatpush2.msra.mxu0 0.0
    %1105 = vmatprep.mubr.f32.mxu0 0.0
    %1106 = vmatmul.mubr.f32.gmra.mxu0 %v962
    %v1107 = vpop.f32.mrf.mxu0
    %v1108 = vadd.f32 0.0, %v1107
    %v1109 = vpop.f32.mrf.mxu0
    %v1110 = vadd.f32 0.0, %v1109
    %1111 = vdwg.mxu0
    %v1112 = vadd.f32 %v966, %v1037
    %v1113 = vadd.f32 %v967, %v1039
    %v1114 = vadd.f32 %v968, %v1108
    %v1115 = vadd.f32 %v969, %v1110
    %v1116 = vxor.u32 %v1112, 2147483648
    %v1117 = vmul.f32 %v1116, 1.442695
    %v1118 = vpow.pop %v1117
    %v1119 = vadd.f32 %v1118, 1.0
    %v1120 = vrcp.pop %v1119
    %v1121 = vmul.f32 1.0, %v1120
    %v1122 = vxor.u32 %v1113, 2147483648
    %v1123 = vmul.f32 %v1122, 1.442695
    %v1124 = vpow.pop %v1123
    %v1125 = vadd.f32 %v1124, 1.0
    %v1126 = vrcp.pop %v1125
    %v1127 = vmul.f32 1.0, %v1126
    %v1128 = vtanh.pop %v1114
    %v1129 = vxor.u32 %v1115, 2147483648
    %v1130 = vmul.f32 %v1129, 1.442695
    %v1131 = vpow.pop %v1130
    %v1132 = vadd.f32 %v1131, 1.0
    %v1133 = vrcp.pop %v1132
    %v1134 = vmul.f32 1.0, %v1133
    %v1135 = vmul.f32 %v1127, %v963
    %v1136 = vmul.f32 %v1121, %v1128
    %v1137 = vadd.f32 %v1135, %v1136
    %v1138 = vtanh.pop %v1137
    %v1139 = vmul.f32 %v1134, %v1138
    %1140 = vst [vmem:[%s8] sm:$0xff] %v1139
    %s1141 = scalar_lea.vmem [#allocation7], 224
    %v1142 = vld [vmem:[%s1141] sm:$0xff]
    %v1143 = vld [vmem:[%s1141 + $0x8] sm:$0xff]
    %v1144 = vld [vmem:[%s1141 + $0x10] sm:$0xff]
    %v1145 = vld [vmem:[%s1141 + $0x18] sm:$0xff]
    %1146 = vmatprep.subr.mxu0 %v959
    %1147 = vmatpush1.msra.mxu0 %v958
    %1148 = vmatprep.subr.mxu0 %v955
    %1149 = vmatpush1.msra.mxu0 %v954
    %1150 = vmatprep.subr.mxu0 %v951
    %1151 = vmatpush1.msra.mxu0 %v950
    %1152 = vmatprep.subr.mxu0 %v947
    %1153 = vmatpush1.msra.mxu0 %v946
    %1154 = vmatprep.subr.mxu0 %v943
    %1155 = vmatpush1.msra.mxu0 %v942
    %1156 = vmatprep.subr.mxu0 %v939
    %1157 = vmatpush1.msra.mxu0 %v938
    %1158 = vmatprep.subr.mxu0 %v935
    %1159 = vmatpush1.msra.mxu0 %v934
    %1160 = vmatprep.subr.mxu0 %v931
    %1161 = vmatpush1.msra.mxu0 %v930
    %1162 = vmatprep.subr.mxu0 %v927
    %1163 = vmatpush1.msra.mxu0 %v926
    %1164 = vmatprep.subr.mxu0 %v923
    %1165 = vmatpush1.msra.mxu0 %v922
    %1166 = vmatprep.subr.mxu0 %v919
    %1167 = vmatpush1.msra.mxu0 %v918
    %1168 = vmatprep.subr.mxu0 %v915
    %1169 = vmatpush1.msra.mxu0 %v914
    %1170 = vmatprep.subr.mxu0 %v911
    %1171 = vmatpush1.msra.mxu0 %v910
    %1172 = vmatprep.subr.mxu0 %v907
    %1173 = vmatpush1.msra.mxu0 %v906
    %1174 = vmatprep.subr.mxu0 %v903
    %1175 = vmatpush1.msra.mxu0 %v902
    %1176 = vmatprep.subr.mxu0 %v899
    %1177 = vmatpush1.msra.mxu0 %v898
    %1178 = vmatprep.subr.mxu0 0.0
    %1179 = vmatpush2.msra.mxu0 0.0
    %1180 = vmatprep.subr.mxu0 0.0
    %1181 = vmatpush2.msra.mxu0 0.0
    %1182 = vmatprep.subr.mxu0 0.0
    %1183 = vmatpush2.msra.mxu0 0.0
    %1184 = vmatprep.subr.mxu0 0.0
    %1185 = vmatpush2.msra.mxu0 0.0
    %1186 = vmatprep.subr.mxu0 0.0
    %1187 = vmatpush2.msra.mxu0 0.0
    %1188 = vmatprep.subr.mxu0 0.0
    %1189 = vmatpush2.msra.mxu0 0.0
    %1190 = vmatprep.subr.mxu0 0.0
    %1191 = vmatpush2.msra.mxu0 0.0
    %1192 = vmatprep.subr.mxu0 0.0
    %1193 = vmatpush2.msra.mxu0 0.0
    %1194 = vmatprep.subr.mxu0 0.0
    %1195 = vmatpush2.msra.mxu0 0.0
    %1196 = vmatprep.subr.mxu0 0.0
    %1197 = vmatpush2.msra.mxu0 0.0
    %1198 = vmatprep.subr.mxu0 0.0
    %1199 = vmatpush2.msra.mxu0 0.0
    %1200 = vmatprep.subr.mxu0 0.0
    %1201 = vmatpush2.msra.mxu0 0.0
    %1202 = vmatprep.subr.mxu0 0.0
    %1203 = vmatpush2.msra.mxu0 0.0
    %1204 = vmatprep.subr.mxu0 0.0
    %1205 = vmatpush2.msra.mxu0 0.0
    %1206 = vmatprep.subr.mxu0 0.0
    %1207 = vmatpush2.msra.mxu0 0.0
    %1208 = vmatprep.subr.mxu0 0.0
    %1209 = vmatpush2.msra.mxu0 0.0
    %1210 = vmatprep.mubr.f32.mxu0 0.0
    %1211 = vmatmul.mubr.f32.gmra.mxu0 %v964
    %v1212 = vpop.f32.mrf.mxu0
    %v1213 = vadd.f32 0.0, %v1212
    %v1214 = vpop.f32.mrf.mxu0
    %v1215 = vadd.f32 0.0, %v1214
    %1216 = vdwg.mxu0
    %1217 = vmatprep.subr.mxu0 %v961
    %1218 = vmatpush1.msra.mxu0 %v960
    %1219 = vmatprep.subr.mxu0 %v957
    %1220 = vmatpush1.msra.mxu0 %v956
    %1221 = vmatprep.subr.mxu0 %v953
    %1222 = vmatpush1.msra.mxu0 %v952
    %1223 = vmatprep.subr.mxu0 %v949
    %1224 = vmatpush1.msra.mxu0 %v948
    %1225 = vmatprep.subr.mxu0 %v945
    %1226 = vmatpush1.msra.mxu0 %v944
    %1227 = vmatprep.subr.mxu0 %v941
    %1228 = vmatpush1.msra.mxu0 %v940
    %1229 = vmatprep.subr.mxu0 %v937
    %1230 = vmatpush1.msra.mxu0 %v936
    %1231 = vmatprep.subr.mxu0 %v933
    %1232 = vmatpush1.msra.mxu0 %v932
    %1233 = vmatprep.subr.mxu0 %v929
    %1234 = vmatpush1.msra.mxu0 %v928
    %1235 = vmatprep.subr.mxu0 %v925
    %1236 = vmatpush1.msra.mxu0 %v924
    %1237 = vmatprep.subr.mxu0 %v921
    %1238 = vmatpush1.msra.mxu0 %v920
    %1239 = vmatprep.subr.mxu0 %v917
    %1240 = vmatpush1.msra.mxu0 %v916
    %1241 = vmatprep.subr.mxu0 %v913
    %1242 = vmatpush1.msra.mxu0 %v912
    %1243 = vmatprep.subr.mxu0 %v909
    %1244 = vmatpush1.msra.mxu0 %v908
    %1245 = vmatprep.subr.mxu0 %v905
    %1246 = vmatpush1.msra.mxu0 %v904
    %1247 = vmatprep.subr.mxu0 %v901
    %1248 = vmatpush1.msra.mxu0 %v900
    %1249 = vmatprep.subr.mxu0 0.0
    %1250 = vmatpush2.msra.mxu0 0.0
    %1251 = vmatprep.subr.mxu0 0.0
    %1252 = vmatpush2.msra.mxu0 0.0
    %1253 = vmatprep.subr.mxu0 0.0
    %1254 = vmatpush2.msra.mxu0 0.0
    %1255 = vmatprep.subr.mxu0 0.0
    %1256 = vmatpush2.msra.mxu0 0.0
    %1257 = vmatprep.subr.mxu0 0.0
    %1258 = vmatpush2.msra.mxu0 0.0
    %1259 = vmatprep.subr.mxu0 0.0
    %1260 = vmatpush2.msra.mxu0 0.0
    %1261 = vmatprep.subr.mxu0 0.0
    %1262 = vmatpush2.msra.mxu0 0.0
    %1263 = vmatprep.subr.mxu0 0.0
    %1264 = vmatpush2.msra.mxu0 0.0
    %1265 = vmatprep.subr.mxu0 0.0
    %1266 = vmatpush2.msra.mxu0 0.0
    %1267 = vmatprep.subr.mxu0 0.0
    %1268 = vmatpush2.msra.mxu0 0.0
    %1269 = vmatprep.subr.mxu0 0.0
    %1270 = vmatpush2.msra.mxu0 0.0
    %1271 = vmatprep.subr.mxu0 0.0
    %1272 = vmatpush2.msra.mxu0 0.0
    %1273 = vmatprep.subr.mxu0 0.0
    %1274 = vmatpush2.msra.mxu0 0.0
    %1275 = vmatprep.subr.mxu0 0.0
    %1276 = vmatpush2.msra.mxu0 0.0
    %1277 = vmatprep.subr.mxu0 0.0
    %1278 = vmatpush2.msra.mxu0 0.0
    %1279 = vmatprep.subr.mxu0 0.0
    %1280 = vmatpush2.msra.mxu0 0.0
    %1281 = vmatprep.mubr.f32.mxu0 0.0
    %1282 = vmatmul.mubr.f32.gmra.mxu0 %v964
    %v1283 = vpop.f32.mrf.mxu0
    %v1284 = vadd.f32 0.0, %v1283
    %v1285 = vpop.f32.mrf.mxu0
    %v1286 = vadd.f32 0.0, %v1285
    %1287 = vdwg.mxu0
    %v1288 = vadd.f32 %v1142, %v1213
    %v1289 = vadd.f32 %v1143, %v1215
    %v1290 = vadd.f32 %v1144, %v1284
    %v1291 = vadd.f32 %v1145, %v1286
    %v1292 = vxor.u32 %v1288, 2147483648
    %v1293 = vmul.f32 %v1292, 1.442695
    %v1294 = vpow.pop %v1293
    %v1295 = vadd.f32 %v1294, 1.0
    %v1296 = vrcp.pop %v1295
    %v1297 = vmul.f32 1.0, %v1296
    %v1298 = vxor.u32 %v1289, 2147483648
    %v1299 = vmul.f32 %v1298, 1.442695
    %v1300 = vpow.pop %v1299
    %v1301 = vadd.f32 %v1300, 1.0
    %v1302 = vrcp.pop %v1301
    %v1303 = vmul.f32 1.0, %v1302
    %v1304 = vtanh.pop %v1290
    %v1305 = vxor.u32 %v1291, 2147483648
    %v1306 = vmul.f32 %v1305, 1.442695
    %v1307 = vpow.pop %v1306
    %v1308 = vadd.f32 %v1307, 1.0
    %v1309 = vrcp.pop %v1308
    %v1310 = vmul.f32 1.0, %v1309
    %v1311 = vmul.f32 %v1303, %v965
    %v1312 = vmul.f32 %v1297, %v1304
    %v1313 = vadd.f32 %v1311, %v1312
    %v1314 = vtanh.pop %v1313
    %v1315 = vmul.f32 %v1310, %v1314
    %s1316 = scalar_lea.vmem %s119, 56
    %1317 = vst [vmem:[%s1316] sm:$0xff] %v1315
    %s1318 = scalar_lea.vmem [#allocation6], 32
    %v1319 = vld [vmem:[%s1318] sm:$0xff]
    %v1320 = vld [vmem:[%s1318 + $0x8] sm:$0xff]
    %v1321 = vld [vmem:[%s1318 + $0x10] sm:$0xff]
    %v1322 = vld [vmem:[%s1318 + $0x18] sm:$0xff]
    %1323 = vmatprep.subr.mxu0 %v895
    %1324 = vmatpush1.msra.mxu0 %v894
    %1325 = vmatprep.subr.mxu0 %v891
    %1326 = vmatpush1.msra.mxu0 %v890
    %1327 = vmatprep.subr.mxu0 %v887
    %1328 = vmatpush1.msra.mxu0 %v886
    %1329 = vmatprep.subr.mxu0 %v883
    %1330 = vmatpush1.msra.mxu0 %v882
    %1331 = vmatprep.subr.mxu0 %v879
    %1332 = vmatpush1.msra.mxu0 %v878
    %1333 = vmatprep.subr.mxu0 %v875
    %1334 = vmatpush1.msra.mxu0 %v874
    %1335 = vmatprep.subr.mxu0 %v871
    %1336 = vmatpush1.msra.mxu0 %v870
    %1337 = vmatprep.subr.mxu0 %v867
    %1338 = vmatpush1.msra.mxu0 %v866
    %1339 = vmatprep.subr.mxu0 %v863
    %1340 = vmatpush1.msra.mxu0 %v862
    %1341 = vmatprep.subr.mxu0 %v859
    %1342 = vmatpush1.msra.mxu0 %v858
    %1343 = vmatprep.subr.mxu0 %v855
    %1344 = vmatpush1.msra.mxu0 %v854
    %1345 = vmatprep.subr.mxu0 %v851
    %1346 = vmatpush1.msra.mxu0 %v850
    %1347 = vmatprep.subr.mxu0 %v847
    %1348 = vmatpush1.msra.mxu0 %v846
    %1349 = vmatprep.subr.mxu0 %v843
    %1350 = vmatpush1.msra.mxu0 %v842
    %1351 = vmatprep.subr.mxu0 %v839
    %1352 = vmatpush1.msra.mxu0 %v838
    %1353 = vmatprep.subr.mxu0 %v835
    %1354 = vmatpush1.msra.mxu0 %v834
    %1355 = vmatprep.subr.mxu0 0.0
    %1356 = vmatpush2.msra.mxu0 0.0
    %1357 = vmatprep.subr.mxu0 0.0
    %1358 = vmatpush2.msra.mxu0 0.0
    %1359 = vmatprep.subr.mxu0 0.0
    %1360 = vmatpush2.msra.mxu0 0.0
    %1361 = vmatprep.subr.mxu0 0.0
    %1362 = vmatpush2.msra.mxu0 0.0
    %1363 = vmatprep.subr.mxu0 0.0
    %1364 = vmatpush2.msra.mxu0 0.0
    %1365 = vmatprep.subr.mxu0 0.0
    %1366 = vmatpush2.msra.mxu0 0.0
    %1367 = vmatprep.subr.mxu0 0.0
    %1368 = vmatpush2.msra.mxu0 0.0
    %1369 = vmatprep.subr.mxu0 0.0
    %1370 = vmatpush2.msra.mxu0 0.0
    %1371 = vmatprep.subr.mxu0 0.0
    %1372 = vmatpush2.msra.mxu0 0.0
    %1373 = vmatprep.subr.mxu0 0.0
    %1374 = vmatpush2.msra.mxu0 0.0
    %1375 = vmatprep.subr.mxu0 0.0
    %1376 = vmatpush2.msra.mxu0 0.0
    %1377 = vmatprep.subr.mxu0 0.0
    %1378 = vmatpush2.msra.mxu0 0.0
    %1379 = vmatprep.subr.mxu0 0.0
    %1380 = vmatpush2.msra.mxu0 0.0
    %1381 = vmatprep.subr.mxu0 0.0
    %1382 = vmatpush2.msra.mxu0 0.0
    %1383 = vmatprep.subr.mxu0 0.0
    %1384 = vmatpush2.msra.mxu0 0.0
    %1385 = vmatprep.subr.mxu0 0.0
    %1386 = vmatpush2.msra.mxu0 0.0
    %1387 = vmatprep.mubr.f32.mxu0 0.0
    %1388 = vmatmul.mubr.f32.gmra.mxu0 %v1139
    %v1389 = vpop.f32.mrf.mxu0
    %v1390 = vadd.f32 0.0, %v1389
    %v1391 = vpop.f32.mrf.mxu0
    %v1392 = vadd.f32 0.0, %v1391
    %1393 = vdwg.mxu0
    %1394 = vmatprep.subr.mxu0 %v897
    %1395 = vmatpush1.msra.mxu0 %v896
    %1396 = vmatprep.subr.mxu0 %v893
    %1397 = vmatpush1.msra.mxu0 %v892
    %1398 = vmatprep.subr.mxu0 %v889
    %1399 = vmatpush1.msra.mxu0 %v888
    %1400 = vmatprep.subr.mxu0 %v885
    %1401 = vmatpush1.msra.mxu0 %v884
    %1402 = vmatprep.subr.mxu0 %v881
    %1403 = vmatpush1.msra.mxu0 %v880
    %1404 = vmatprep.subr.mxu0 %v877
    %1405 = vmatpush1.msra.mxu0 %v876
    %1406 = vmatprep.subr.mxu0 %v873
    %1407 = vmatpush1.msra.mxu0 %v872
    %1408 = vmatprep.subr.mxu0 %v869
    %1409 = vmatpush1.msra.mxu0 %v868
    %1410 = vmatprep.subr.mxu0 %v865
    %1411 = vmatpush1.msra.mxu0 %v864
    %1412 = vmatprep.subr.mxu0 %v861
    %1413 = vmatpush1.msra.mxu0 %v860
    %1414 = vmatprep.subr.mxu0 %v857
    %1415 = vmatpush1.msra.mxu0 %v856
    %1416 = vmatprep.subr.mxu0 %v853
    %1417 = vmatpush1.msra.mxu0 %v852
    %1418 = vmatprep.subr.mxu0 %v849
    %1419 = vmatpush1.msra.mxu0 %v848
    %1420 = vmatprep.subr.mxu0 %v845
    %1421 = vmatpush1.msra.mxu0 %v844
    %1422 = vmatprep.subr.mxu0 %v841
    %1423 = vmatpush1.msra.mxu0 %v840
    %1424 = vmatprep.subr.mxu0 %v837
    %1425 = vmatpush1.msra.mxu0 %v836
    %1426 = vmatprep.subr.mxu0 0.0
    %1427 = vmatpush2.msra.mxu0 0.0
    %1428 = vmatprep.subr.mxu0 0.0
    %1429 = vmatpush2.msra.mxu0 0.0
    %1430 = vmatprep.subr.mxu0 0.0
    %1431 = vmatpush2.msra.mxu0 0.0
    %1432 = vmatprep.subr.mxu0 0.0
    %1433 = vmatpush2.msra.mxu0 0.0
    %1434 = vmatprep.subr.mxu0 0.0
    %1435 = vmatpush2.msra.mxu0 0.0
    %1436 = vmatprep.subr.mxu0 0.0
    %1437 = vmatpush2.msra.mxu0 0.0
    %1438 = vmatprep.subr.mxu0 0.0
    %1439 = vmatpush2.msra.mxu0 0.0
    %1440 = vmatprep.subr.mxu0 0.0
    %1441 = vmatpush2.msra.mxu0 0.0
    %1442 = vmatprep.subr.mxu0 0.0
    %1443 = vmatpush2.msra.mxu0 0.0
    %1444 = vmatprep.subr.mxu0 0.0
    %1445 = vmatpush2.msra.mxu0 0.0
    %1446 = vmatprep.subr.mxu0 0.0
    %1447 = vmatpush2.msra.mxu0 0.0
    %1448 = vmatprep.subr.mxu0 0.0
    %1449 = vmatpush2.msra.mxu0 0.0
    %1450 = vmatprep.subr.mxu0 0.0
    %1451 = vmatpush2.msra.mxu0 0.0
    %1452 = vmatprep.subr.mxu0 0.0
    %1453 = vmatpush2.msra.mxu0 0.0
    %1454 = vmatprep.subr.mxu0 0.0
    %1455 = vmatpush2.msra.mxu0 0.0
    %1456 = vmatprep.subr.mxu0 0.0
    %1457 = vmatpush2.msra.mxu0 0.0
    %1458 = vmatprep.mubr.f32.mxu0 0.0
    %1459 = vmatmul.mubr.f32.gmra.mxu0 %v1139
    %v1460 = vpop.f32.mrf.mxu0
    %v1461 = vadd.f32 0.0, %v1460
    %v1462 = vpop.f32.mrf.mxu0
    %v1463 = vadd.f32 0.0, %v1462
    %1464 = vdwg.mxu0
    %v1465 = vadd.f32 %v1319, %v1390
    %v1466 = vadd.f32 %v1320, %v1392
    %v1467 = vadd.f32 %v1321, %v1461
    %v1468 = vadd.f32 %v1322, %v1463
    %v1469 = vxor.u32 %v1465, 2147483648
    %v1470 = vmul.f32 %v1469, 1.442695
    %v1471 = vpow.pop %v1470
    %v1472 = vadd.f32 %v1471, 1.0
    %v1473 = vrcp.pop %v1472
    %v1474 = vmul.f32 1.0, %v1473
    %v1475 = vxor.u32 %v1466, 2147483648
    %v1476 = vmul.f32 %v1475, 1.442695
    %v1477 = vpow.pop %v1476
    %v1478 = vadd.f32 %v1477, 1.0
    %v1479 = vrcp.pop %v1478
    %v1480 = vmul.f32 1.0, %v1479
    %v1481 = vtanh.pop %v1467
    %v1482 = vxor.u32 %v1468, 2147483648
    %v1483 = vmul.f32 %v1482, 1.442695
    %v1484 = vpow.pop %v1483
    %v1485 = vadd.f32 %v1484, 1.0
    %v1486 = vrcp.pop %v1485
    %v1487 = vmul.f32 1.0, %v1486
    %v1488 = vmul.f32 %v1480, %v1137
    %v1489 = vmul.f32 %v1474, %v1481
    %v1490 = vadd.f32 %v1488, %v1489
    %v1491 = vtanh.pop %v1490
    %v1492 = vmul.f32 %v1487, %v1491
    %s1493 = scalar_lea.vmem %s8, 8
    %1494 = vst [vmem:[%s1493] sm:$0xff] %v1492
    %s1495 = scalar_lea.vmem [#allocation7], 192
    %v1496 = vld [vmem:[%s1495] sm:$0xff]
    %v1497 = vld [vmem:[%s1495 + $0x8] sm:$0xff]
    %v1498 = vld [vmem:[%s1495 + $0x10] sm:$0xff]
    %v1499 = vld [vmem:[%s1495 + $0x18] sm:$0xff]
    %1500 = vmatprep.subr.mxu0 %v959
    %1501 = vmatpush1.msra.mxu0 %v958
    %1502 = vmatprep.subr.mxu0 %v955
    %1503 = vmatpush1.msra.mxu0 %v954
    %1504 = vmatprep.subr.mxu0 %v951
    %1505 = vmatpush1.msra.mxu0 %v950
    %1506 = vmatprep.subr.mxu0 %v947
    %1507 = vmatpush1.msra.mxu0 %v946
    %1508 = vmatprep.subr.mxu0 %v943
    %1509 = vmatpush1.msra.mxu0 %v942
    %1510 = vmatprep.subr.mxu0 %v939
    %1511 = vmatpush1.msra.mxu0 %v938
    %1512 = vmatprep.subr.mxu0 %v935
    %1513 = vmatpush1.msra.mxu0 %v934
    %1514 = vmatprep.subr.mxu0 %v931
    %1515 = vmatpush1.msra.mxu0 %v930
    %1516 = vmatprep.subr.mxu0 %v927
    %1517 = vmatpush1.msra.mxu0 %v926
    %1518 = vmatprep.subr.mxu0 %v923
    %1519 = vmatpush1.msra.mxu0 %v922
    %1520 = vmatprep.subr.mxu0 %v919
    %1521 = vmatpush1.msra.mxu0 %v918
    %1522 = vmatprep.subr.mxu0 %v915
    %1523 = vmatpush1.msra.mxu0 %v914
    %1524 = vmatprep.subr.mxu0 %v911
    %1525 = vmatpush1.msra.mxu0 %v910
    %1526 = vmatprep.subr.mxu0 %v907
    %1527 = vmatpush1.msra.mxu0 %v906
    %1528 = vmatprep.subr.mxu0 %v903
    %1529 = vmatpush1.msra.mxu0 %v902
    %1530 = vmatprep.subr.mxu0 %v899
    %1531 = vmatpush1.msra.mxu0 %v898
    %1532 = vmatprep.subr.mxu0 0.0
    %1533 = vmatpush2.msra.mxu0 0.0
    %1534 = vmatprep.subr.mxu0 0.0
    %1535 = vmatpush2.msra.mxu0 0.0
    %1536 = vmatprep.subr.mxu0 0.0
    %1537 = vmatpush2.msra.mxu0 0.0
    %1538 = vmatprep.subr.mxu0 0.0
    %1539 = vmatpush2.msra.mxu0 0.0
    %1540 = vmatprep.subr.mxu0 0.0
    %1541 = vmatpush2.msra.mxu0 0.0
    %1542 = vmatprep.subr.mxu0 0.0
    %1543 = vmatpush2.msra.mxu0 0.0
    %1544 = vmatprep.subr.mxu0 0.0
    %1545 = vmatpush2.msra.mxu0 0.0
    %1546 = vmatprep.subr.mxu0 0.0
    %1547 = vmatpush2.msra.mxu0 0.0
    %1548 = vmatprep.subr.mxu0 0.0
    %1549 = vmatpush2.msra.mxu0 0.0
    %1550 = vmatprep.subr.mxu0 0.0
    %1551 = vmatpush2.msra.mxu0 0.0
    %1552 = vmatprep.subr.mxu0 0.0
    %1553 = vmatpush2.msra.mxu0 0.0
    %1554 = vmatprep.subr.mxu0 0.0
    %1555 = vmatpush2.msra.mxu0 0.0
    %1556 = vmatprep.subr.mxu0 0.0
    %1557 = vmatpush2.msra.mxu0 0.0
    %1558 = vmatprep.subr.mxu0 0.0
    %1559 = vmatpush2.msra.mxu0 0.0
    %1560 = vmatprep.subr.mxu0 0.0
    %1561 = vmatpush2.msra.mxu0 0.0
    %1562 = vmatprep.subr.mxu0 0.0
    %1563 = vmatpush2.msra.mxu0 0.0
    %1564 = vmatprep.mubr.f32.mxu0 0.0
    %1565 = vmatmul.mubr.f32.gmra.mxu0 %v1315
    %v1566 = vpop.f32.mrf.mxu0
    %v1567 = vadd.f32 0.0, %v1566
    %v1568 = vpop.f32.mrf.mxu0
    %v1569 = vadd.f32 0.0, %v1568
    %1570 = vdwg.mxu0
    %1571 = vmatprep.subr.mxu0 %v961
    %1572 = vmatpush1.msra.mxu0 %v960
    %1573 = vmatprep.subr.mxu0 %v957
    %1574 = vmatpush1.msra.mxu0 %v956
    %1575 = vmatprep.subr.mxu0 %v953
    %1576 = vmatpush1.msra.mxu0 %v952
    %1577 = vmatprep.subr.mxu0 %v949
    %1578 = vmatpush1.msra.mxu0 %v948
    %1579 = vmatprep.subr.mxu0 %v945
    %1580 = vmatpush1.msra.mxu0 %v944
    %1581 = vmatprep.subr.mxu0 %v941
    %1582 = vmatpush1.msra.mxu0 %v940
    %1583 = vmatprep.subr.mxu0 %v937
    %1584 = vmatpush1.msra.mxu0 %v936
    %1585 = vmatprep.subr.mxu0 %v933
    %1586 = vmatpush1.msra.mxu0 %v932
    %1587 = vmatprep.subr.mxu0 %v929
    %1588 = vmatpush1.msra.mxu0 %v928
    %1589 = vmatprep.subr.mxu0 %v925
    %1590 = vmatpush1.msra.mxu0 %v924
    %1591 = vmatprep.subr.mxu0 %v921
    %1592 = vmatpush1.msra.mxu0 %v920
    %1593 = vmatprep.subr.mxu0 %v917
    %1594 = vmatpush1.msra.mxu0 %v916
    %1595 = vmatprep.subr.mxu0 %v913
    %1596 = vmatpush1.msra.mxu0 %v912
    %1597 = vmatprep.subr.mxu0 %v909
    %1598 = vmatpush1.msra.mxu0 %v908
    %1599 = vmatprep.subr.mxu0 %v905
    %1600 = vmatpush1.msra.mxu0 %v904
    %1601 = vmatprep.subr.mxu0 %v901
    %1602 = vmatpush1.msra.mxu0 %v900
    %1603 = vmatprep.subr.mxu0 0.0
    %1604 = vmatpush2.msra.mxu0 0.0
    %1605 = vmatprep.subr.mxu0 0.0
    %1606 = vmatpush2.msra.mxu0 0.0
    %1607 = vmatprep.subr.mxu0 0.0
    %1608 = vmatpush2.msra.mxu0 0.0
    %1609 = vmatprep.subr.mxu0 0.0
    %1610 = vmatpush2.msra.mxu0 0.0
    %1611 = vmatprep.subr.mxu0 0.0
    %1612 = vmatpush2.msra.mxu0 0.0
    %1613 = vmatprep.subr.mxu0 0.0
    %1614 = vmatpush2.msra.mxu0 0.0
    %1615 = vmatprep.subr.mxu0 0.0
    %1616 = vmatpush2.msra.mxu0 0.0
    %1617 = vmatprep.subr.mxu0 0.0
    %1618 = vmatpush2.msra.mxu0 0.0
    %1619 = vmatprep.subr.mxu0 0.0
    %1620 = vmatpush2.msra.mxu0 0.0
    %1621 = vmatprep.subr.mxu0 0.0
    %1622 = vmatpush2.msra.mxu0 0.0
    %1623 = vmatprep.subr.mxu0 0.0
    %1624 = vmatpush2.msra.mxu0 0.0
    %1625 = vmatprep.subr.mxu0 0.0
    %1626 = vmatpush2.msra.mxu0 0.0
    %1627 = vmatprep.subr.mxu0 0.0
    %1628 = vmatpush2.msra.mxu0 0.0
    %1629 = vmatprep.subr.mxu0 0.0
    %1630 = vmatpush2.msra.mxu0 0.0
    %1631 = vmatprep.subr.mxu0 0.0
    %1632 = vmatpush2.msra.mxu0 0.0
    %1633 = vmatprep.subr.mxu0 0.0
    %1634 = vmatpush2.msra.mxu0 0.0
    %1635 = vmatprep.mubr.f32.mxu0 0.0
    %1636 = vmatmul.mubr.f32.gmra.mxu0 %v1315
    %v1637 = vpop.f32.mrf.mxu0
    %v1638 = vadd.f32 0.0, %v1637
    %v1639 = vpop.f32.mrf.mxu0
    %v1640 = vadd.f32 0.0, %v1639
    %1641 = vdwg.mxu0
    %v1642 = vadd.f32 %v1496, %v1567
    %v1643 = vadd.f32 %v1497, %v1569
    %v1644 = vadd.f32 %v1498, %v1638
    %v1645 = vadd.f32 %v1499, %v1640
    %v1646 = vxor.u32 %v1642, 2147483648
    %v1647 = vmul.f32 %v1646, 1.442695
    %v1648 = vpow.pop %v1647
    %v1649 = vadd.f32 %v1648, 1.0
    %v1650 = vrcp.pop %v1649
    %v1651 = vmul.f32 1.0, %v1650
    %v1652 = vxor.u32 %v1643, 2147483648
    %v1653 = vmul.f32 %v1652, 1.442695
    %v1654 = vpow.pop %v1653
    %v1655 = vadd.f32 %v1654, 1.0
    %v1656 = vrcp.pop %v1655
    %v1657 = vmul.f32 1.0, %v1656
    %v1658 = vtanh.pop %v1644
    %v1659 = vxor.u32 %v1645, 2147483648
    %v1660 = vmul.f32 %v1659, 1.442695
    %v1661 = vpow.pop %v1660
    %v1662 = vadd.f32 %v1661, 1.0
    %v1663 = vrcp.pop %v1662
    %v1664 = vmul.f32 1.0, %v1663
    %v1665 = vmul.f32 %v1657, %v1313
    %v1666 = vmul.f32 %v1651, %v1658
    %v1667 = vadd.f32 %v1665, %v1666
    %v1668 = vtanh.pop %v1667
    %v1669 = vmul.f32 %v1664, %v1668
    %s1670 = scalar_lea.vmem %s119, 48
    %1671 = vst [vmem:[%s1670] sm:$0xff] %v1669
    %s1672 = scalar_lea.vmem [#allocation6], 64
    %v1673 = vld [vmem:[%s1672] sm:$0xff]
    %v1674 = vld [vmem:[%s1672 + $0x8] sm:$0xff]
    %v1675 = vld [vmem:[%s1672 + $0x10] sm:$0xff]
    %v1676 = vld [vmem:[%s1672 + $0x18] sm:$0xff]
    %1677 = vmatprep.subr.mxu0 %v895
    %1678 = vmatpush1.msra.mxu0 %v894
    %1679 = vmatprep.subr.mxu0 %v891
    %1680 = vmatpush1.msra.mxu0 %v890
    %1681 = vmatprep.subr.mxu0 %v887
    %1682 = vmatpush1.msra.mxu0 %v886
    %1683 = vmatprep.subr.mxu0 %v883
    %1684 = vmatpush1.msra.mxu0 %v882
    %1685 = vmatprep.subr.mxu0 %v879
    %1686 = vmatpush1.msra.mxu0 %v878
    %1687 = vmatprep.subr.mxu0 %v875
    %1688 = vmatpush1.msra.mxu0 %v874
    %1689 = vmatprep.subr.mxu0 %v871
    %1690 = vmatpush1.msra.mxu0 %v870
    %1691 = vmatprep.subr.mxu0 %v867
    %1692 = vmatpush1.msra.mxu0 %v866
    %1693 = vmatprep.subr.mxu0 %v863
    %1694 = vmatpush1.msra.mxu0 %v862
    %1695 = vmatprep.subr.mxu0 %v859
    %1696 = vmatpush1.msra.mxu0 %v858
    %1697 = vmatprep.subr.mxu0 %v855
    %1698 = vmatpush1.msra.mxu0 %v854
    %1699 = vmatprep.subr.mxu0 %v851
    %1700 = vmatpush1.msra.mxu0 %v850
    %1701 = vmatprep.subr.mxu0 %v847
    %1702 = vmatpush1.msra.mxu0 %v846
    %1703 = vmatprep.subr.mxu0 %v843
    %1704 = vmatpush1.msra.mxu0 %v842
    %1705 = vmatprep.subr.mxu0 %v839
    %1706 = vmatpush1.msra.mxu0 %v838
    %1707 = vmatprep.subr.mxu0 %v835
    %1708 = vmatpush1.msra.mxu0 %v834
    %1709 = vmatprep.subr.mxu0 0.0
    %1710 = vmatpush2.msra.mxu0 0.0
    %1711 = vmatprep.subr.mxu0 0.0
    %1712 = vmatpush2.msra.mxu0 0.0
    %1713 = vmatprep.subr.mxu0 0.0
    %1714 = vmatpush2.msra.mxu0 0.0
    %1715 = vmatprep.subr.mxu0 0.0
    %1716 = vmatpush2.msra.mxu0 0.0
    %1717 = vmatprep.subr.mxu0 0.0
    %1718 = vmatpush2.msra.mxu0 0.0
    %1719 = vmatprep.subr.mxu0 0.0
    %1720 = vmatpush2.msra.mxu0 0.0
    %1721 = vmatprep.subr.mxu0 0.0
    %1722 = vmatpush2.msra.mxu0 0.0
    %1723 = vmatprep.subr.mxu0 0.0
    %1724 = vmatpush2.msra.mxu0 0.0
    %1725 = vmatprep.subr.mxu0 0.0
    %1726 = vmatpush2.msra.mxu0 0.0
    %1727 = vmatprep.subr.mxu0 0.0
    %1728 = vmatpush2.msra.mxu0 0.0
    %1729 = vmatprep.subr.mxu0 0.0
    %1730 = vmatpush2.msra.mxu0 0.0
    %1731 = vmatprep.subr.mxu0 0.0
    %1732 = vmatpush2.msra.mxu0 0.0
    %1733 = vmatprep.subr.mxu0 0.0
    %1734 = vmatpush2.msra.mxu0 0.0
    %1735 = vmatprep.subr.mxu0 0.0
    %1736 = vmatpush2.msra.mxu0 0.0
    %1737 = vmatprep.subr.mxu0 0.0
    %1738 = vmatpush2.msra.mxu0 0.0
    %1739 = vmatprep.subr.mxu0 0.0
    %1740 = vmatpush2.msra.mxu0 0.0
    %1741 = vmatprep.mubr.f32.mxu0 0.0
    %1742 = vmatmul.mubr.f32.gmra.mxu0 %v1492
    %v1743 = vpop.f32.mrf.mxu0
    %v1744 = vadd.f32 0.0, %v1743
    %v1745 = vpop.f32.mrf.mxu0
    %v1746 = vadd.f32 0.0, %v1745
    %1747 = vdwg.mxu0
    %1748 = vmatprep.subr.mxu0 %v897
    %1749 = vmatpush1.msra.mxu0 %v896
    %1750 = vmatprep.subr.mxu0 %v893
    %1751 = vmatpush1.msra.mxu0 %v892
    %1752 = vmatprep.subr.mxu0 %v889
    %1753 = vmatpush1.msra.mxu0 %v888
    %1754 = vmatprep.subr.mxu0 %v885
    %1755 = vmatpush1.msra.mxu0 %v884
    %1756 = vmatprep.subr.mxu0 %v881
    %1757 = vmatpush1.msra.mxu0 %v880
    %1758 = vmatprep.subr.mxu0 %v877
    %1759 = vmatpush1.msra.mxu0 %v876
    %1760 = vmatprep.subr.mxu0 %v873
    %1761 = vmatpush1.msra.mxu0 %v872
    %1762 = vmatprep.subr.mxu0 %v869
    %1763 = vmatpush1.msra.mxu0 %v868
    %1764 = vmatprep.subr.mxu0 %v865
    %1765 = vmatpush1.msra.mxu0 %v864
    %1766 = vmatprep.subr.mxu0 %v861
    %1767 = vmatpush1.msra.mxu0 %v860
    %1768 = vmatprep.subr.mxu0 %v857
    %1769 = vmatpush1.msra.mxu0 %v856
    %1770 = vmatprep.subr.mxu0 %v853
    %1771 = vmatpush1.msra.mxu0 %v852
    %1772 = vmatprep.subr.mxu0 %v849
    %1773 = vmatpush1.msra.mxu0 %v848
    %1774 = vmatprep.subr.mxu0 %v845
    %1775 = vmatpush1.msra.mxu0 %v844
    %1776 = vmatprep.subr.mxu0 %v841
    %1777 = vmatpush1.msra.mxu0 %v840
    %1778 = vmatprep.subr.mxu0 %v837
    %1779 = vmatpush1.msra.mxu0 %v836
    %1780 = vmatprep.subr.mxu0 0.0
    %1781 = vmatpush2.msra.mxu0 0.0
    %1782 = vmatprep.subr.mxu0 0.0
    %1783 = vmatpush2.msra.mxu0 0.0
    %1784 = vmatprep.subr.mxu0 0.0
    %1785 = vmatpush2.msra.mxu0 0.0
    %1786 = vmatprep.subr.mxu0 0.0
    %1787 = vmatpush2.msra.mxu0 0.0
    %1788 = vmatprep.subr.mxu0 0.0
    %1789 = vmatpush2.msra.mxu0 0.0
    %1790 = vmatprep.subr.mxu0 0.0
    %1791 = vmatpush2.msra.mxu0 0.0
    %1792 = vmatprep.subr.mxu0 0.0
    %1793 = vmatpush2.msra.mxu0 0.0
    %1794 = vmatprep.subr.mxu0 0.0
    %1795 = vmatpush2.msra.mxu0 0.0
    %1796 = vmatprep.subr.mxu0 0.0
    %1797 = vmatpush2.msra.mxu0 0.0
    %1798 = vmatprep.subr.mxu0 0.0
    %1799 = vmatpush2.msra.mxu0 0.0
    %1800 = vmatprep.subr.mxu0 0.0
    %1801 = vmatpush2.msra.mxu0 0.0
    %1802 = vmatprep.subr.mxu0 0.0
    %1803 = vmatpush2.msra.mxu0 0.0
    %1804 = vmatprep.subr.mxu0 0.0
    %1805 = vmatpush2.msra.mxu0 0.0
    %1806 = vmatprep.subr.mxu0 0.0
    %1807 = vmatpush2.msra.mxu0 0.0
    %1808 = vmatprep.subr.mxu0 0.0
    %1809 = vmatpush2.msra.mxu0 0.0
    %1810 = vmatprep.subr.mxu0 0.0
    %1811 = vmatpush2.msra.mxu0 0.0
    %1812 = vmatprep.mubr.f32.mxu0 0.0
    %1813 = vmatmul.mubr.f32.gmra.mxu0 %v1492
    %v1814 = vpop.f32.mrf.mxu0
    %v1815 = vadd.f32 0.0, %v1814
    %v1816 = vpop.f32.mrf.mxu0
    %v1817 = vadd.f32 0.0, %v1816
    %1818 = vdwg.mxu0
    %v1819 = vadd.f32 %v1673, %v1744
    %v1820 = vadd.f32 %v1674, %v1746
    %v1821 = vadd.f32 %v1675, %v1815
    %v1822 = vadd.f32 %v1676, %v1817
    %v1823 = vxor.u32 %v1819, 2147483648
    %v1824 = vmul.f32 %v1823, 1.442695
    %v1825 = vpow.pop %v1824
    %v1826 = vadd.f32 %v1825, 1.0
    %v1827 = vrcp.pop %v1826
    %v1828 = vmul.f32 1.0, %v1827
    %v1829 = vxor.u32 %v1820, 2147483648
    %v1830 = vmul.f32 %v1829, 1.442695
    %v1831 = vpow.pop %v1830
    %v1832 = vadd.f32 %v1831, 1.0
    %v1833 = vrcp.pop %v1832
    %v1834 = vmul.f32 1.0, %v1833
    %v1835 = vtanh.pop %v1821
    %v1836 = vxor.u32 %v1822, 2147483648
    %v1837 = vmul.f32 %v1836, 1.442695
    %v1838 = vpow.pop %v1837
    %v1839 = vadd.f32 %v1838, 1.0
    %v1840 = vrcp.pop %v1839
    %v1841 = vmul.f32 1.0, %v1840
    %v1842 = vmul.f32 %v1834, %v1490
    %v1843 = vmul.f32 %v1828, %v1835
    %v1844 = vadd.f32 %v1842, %v1843
    %v1845 = vtanh.pop %v1844
    %v1846 = vmul.f32 %v1841, %v1845
    %s1847 = scalar_lea.vmem %s8, 16
    %1848 = vst [vmem:[%s1847] sm:$0xff] %v1846
    %s1849 = scalar_lea.vmem [#allocation7], 160
    %v1850 = vld [vmem:[%s1849] sm:$0xff]
    %v1851 = vld [vmem:[%s1849 + $0x8] sm:$0xff]
    %v1852 = vld [vmem:[%s1849 + $0x10] sm:$0xff]
    %v1853 = vld [vmem:[%s1849 + $0x18] sm:$0xff]
    %1854 = vmatprep.subr.mxu0 %v959
    %1855 = vmatpush1.msra.mxu0 %v958
    %1856 = vmatprep.subr.mxu0 %v955
    %1857 = vmatpush1.msra.mxu0 %v954
    %1858 = vmatprep.subr.mxu0 %v951
    %1859 = vmatpush1.msra.mxu0 %v950
    %1860 = vmatprep.subr.mxu0 %v947
    %1861 = vmatpush1.msra.mxu0 %v946
    %1862 = vmatprep.subr.mxu0 %v943
    %1863 = vmatpush1.msra.mxu0 %v942
    %1864 = vmatprep.subr.mxu0 %v939
    %1865 = vmatpush1.msra.mxu0 %v938
    %1866 = vmatprep.subr.mxu0 %v935
    %1867 = vmatpush1.msra.mxu0 %v934
    %1868 = vmatprep.subr.mxu0 %v931
    %1869 = vmatpush1.msra.mxu0 %v930
    %1870 = vmatprep.subr.mxu0 %v927
    %1871 = vmatpush1.msra.mxu0 %v926
    %1872 = vmatprep.subr.mxu0 %v923
    %1873 = vmatpush1.msra.mxu0 %v922
    %1874 = vmatprep.subr.mxu0 %v919
    %1875 = vmatpush1.msra.mxu0 %v918
    %1876 = vmatprep.subr.mxu0 %v915
    %1877 = vmatpush1.msra.mxu0 %v914
    %1878 = vmatprep.subr.mxu0 %v911
    %1879 = vmatpush1.msra.mxu0 %v910
    %1880 = vmatprep.subr.mxu0 %v907
    %1881 = vmatpush1.msra.mxu0 %v906
    %1882 = vmatprep.subr.mxu0 %v903
    %1883 = vmatpush1.msra.mxu0 %v902
    %1884 = vmatprep.subr.mxu0 %v899
    %1885 = vmatpush1.msra.mxu0 %v898
    %1886 = vmatprep.subr.mxu0 0.0
    %1887 = vmatpush2.msra.mxu0 0.0
    %1888 = vmatprep.subr.mxu0 0.0
    %1889 = vmatpush2.msra.mxu0 0.0
    %1890 = vmatprep.subr.mxu0 0.0
    %1891 = vmatpush2.msra.mxu0 0.0
    %1892 = vmatprep.subr.mxu0 0.0
    %1893 = vmatpush2.msra.mxu0 0.0
    %1894 = vmatprep.subr.mxu0 0.0
    %1895 = vmatpush2.msra.mxu0 0.0
    %1896 = vmatprep.subr.mxu0 0.0
    %1897 = vmatpush2.msra.mxu0 0.0
    %1898 = vmatprep.subr.mxu0 0.0
    %1899 = vmatpush2.msra.mxu0 0.0
    %1900 = vmatprep.subr.mxu0 0.0
    %1901 = vmatpush2.msra.mxu0 0.0
    %1902 = vmatprep.subr.mxu0 0.0
    %1903 = vmatpush2.msra.mxu0 0.0
    %1904 = vmatprep.subr.mxu0 0.0
    %1905 = vmatpush2.msra.mxu0 0.0
    %1906 = vmatprep.subr.mxu0 0.0
    %1907 = vmatpush2.msra.mxu0 0.0
    %1908 = vmatprep.subr.mxu0 0.0
    %1909 = vmatpush2.msra.mxu0 0.0
    %1910 = vmatprep.subr.mxu0 0.0
    %1911 = vmatpush2.msra.mxu0 0.0
    %1912 = vmatprep.subr.mxu0 0.0
    %1913 = vmatpush2.msra.mxu0 0.0
    %1914 = vmatprep.subr.mxu0 0.0
    %1915 = vmatpush2.msra.mxu0 0.0
    %1916 = vmatprep.subr.mxu0 0.0
    %1917 = vmatpush2.msra.mxu0 0.0
    %1918 = vmatprep.mubr.f32.mxu0 0.0
    %1919 = vmatmul.mubr.f32.gmra.mxu0 %v1669
    %v1920 = vpop.f32.mrf.mxu0
    %v1921 = vadd.f32 0.0, %v1920
    %v1922 = vpop.f32.mrf.mxu0
    %v1923 = vadd.f32 0.0, %v1922
    %1924 = vdwg.mxu0
    %1925 = vmatprep.subr.mxu0 %v961
    %1926 = vmatpush1.msra.mxu0 %v960
    %1927 = vmatprep.subr.mxu0 %v957
    %1928 = vmatpush1.msra.mxu0 %v956
    %1929 = vmatprep.subr.mxu0 %v953
    %1930 = vmatpush1.msra.mxu0 %v952
    %1931 = vmatprep.subr.mxu0 %v949
    %1932 = vmatpush1.msra.mxu0 %v948
    %1933 = vmatprep.subr.mxu0 %v945
    %1934 = vmatpush1.msra.mxu0 %v944
    %1935 = vmatprep.subr.mxu0 %v941
    %1936 = vmatpush1.msra.mxu0 %v940
    %1937 = vmatprep.subr.mxu0 %v937
    %1938 = vmatpush1.msra.mxu0 %v936
    %1939 = vmatprep.subr.mxu0 %v933
    %1940 = vmatpush1.msra.mxu0 %v932
    %1941 = vmatprep.subr.mxu0 %v929
    %1942 = vmatpush1.msra.mxu0 %v928
    %1943 = vmatprep.subr.mxu0 %v925
    %1944 = vmatpush1.msra.mxu0 %v924
    %1945 = vmatprep.subr.mxu0 %v921
    %1946 = vmatpush1.msra.mxu0 %v920
    %1947 = vmatprep.subr.mxu0 %v917
    %1948 = vmatpush1.msra.mxu0 %v916
    %1949 = vmatprep.subr.mxu0 %v913
    %1950 = vmatpush1.msra.mxu0 %v912
    %1951 = vmatprep.subr.mxu0 %v909
    %1952 = vmatpush1.msra.mxu0 %v908
    %1953 = vmatprep.subr.mxu0 %v905
    %1954 = vmatpush1.msra.mxu0 %v904
    %1955 = vmatprep.subr.mxu0 %v901
    %1956 = vmatpush1.msra.mxu0 %v900
    %1957 = vmatprep.subr.mxu0 0.0
    %1958 = vmatpush2.msra.mxu0 0.0
    %1959 = vmatprep.subr.mxu0 0.0
    %1960 = vmatpush2.msra.mxu0 0.0
    %1961 = vmatprep.subr.mxu0 0.0
    %1962 = vmatpush2.msra.mxu0 0.0
    %1963 = vmatprep.subr.mxu0 0.0
    %1964 = vmatpush2.msra.mxu0 0.0
    %1965 = vmatprep.subr.mxu0 0.0
    %1966 = vmatpush2.msra.mxu0 0.0
    %1967 = vmatprep.subr.mxu0 0.0
    %1968 = vmatpush2.msra.mxu0 0.0
    %1969 = vmatprep.subr.mxu0 0.0
    %1970 = vmatpush2.msra.mxu0 0.0
    %1971 = vmatprep.subr.mxu0 0.0
    %1972 = vmatpush2.msra.mxu0 0.0
    %1973 = vmatprep.subr.mxu0 0.0
    %1974 = vmatpush2.msra.mxu0 0.0
    %1975 = vmatprep.subr.mxu0 0.0
    %1976 = vmatpush2.msra.mxu0 0.0
    %1977 = vmatprep.subr.mxu0 0.0
    %1978 = vmatpush2.msra.mxu0 0.0
    %1979 = vmatprep.subr.mxu0 0.0
    %1980 = vmatpush2.msra.mxu0 0.0
    %1981 = vmatprep.subr.mxu0 0.0
    %1982 = vmatpush2.msra.mxu0 0.0
    %1983 = vmatprep.subr.mxu0 0.0
    %1984 = vmatpush2.msra.mxu0 0.0
    %1985 = vmatprep.subr.mxu0 0.0
    %1986 = vmatpush2.msra.mxu0 0.0
    %1987 = vmatprep.subr.mxu0 0.0
    %1988 = vmatpush2.msra.mxu0 0.0
    %1989 = vmatprep.mubr.f32.mxu0 0.0
    %1990 = vmatmul.mubr.f32.gmra.mxu0 %v1669
    %v1991 = vpop.f32.mrf.mxu0
    %v1992 = vadd.f32 0.0, %v1991
    %v1993 = vpop.f32.mrf.mxu0
    %v1994 = vadd.f32 0.0, %v1993
    %1995 = vdwg.mxu0
    %v1996 = vadd.f32 %v1850, %v1921
    %v1997 = vadd.f32 %v1851, %v1923
    %v1998 = vadd.f32 %v1852, %v1992
    %v1999 = vadd.f32 %v1853, %v1994
    %v2000 = vxor.u32 %v1996, 2147483648
    %v2001 = vmul.f32 %v2000, 1.442695
    %v2002 = vpow.pop %v2001
    %v2003 = vadd.f32 %v2002, 1.0
    %v2004 = vrcp.pop %v2003
    %v2005 = vmul.f32 1.0, %v2004
    %v2006 = vxor.u32 %v1997, 2147483648
    %v2007 = vmul.f32 %v2006, 1.442695
    %v2008 = vpow.pop %v2007
    %v2009 = vadd.f32 %v2008, 1.0
    %v2010 = vrcp.pop %v2009
    %v2011 = vmul.f32 1.0, %v2010
    %v2012 = vtanh.pop %v1998
    %v2013 = vxor.u32 %v1999, 2147483648
    %v2014 = vmul.f32 %v2013, 1.442695
    %v2015 = vpow.pop %v2014
    %v2016 = vadd.f32 %v2015, 1.0
    %v2017 = vrcp.pop %v2016
    %v2018 = vmul.f32 1.0, %v2017
    %v2019 = vmul.f32 %v2011, %v1667
    %v2020 = vmul.f32 %v2005, %v2012
    %v2021 = vadd.f32 %v2019, %v2020
    %v2022 = vtanh.pop %v2021
    %v2023 = vmul.f32 %v2018, %v2022
    %s2024 = scalar_lea.vmem %s119, 40
    %2025 = vst [vmem:[%s2024] sm:$0xff] %v2023
    %s2026 = scalar_lea.vmem [#allocation6], 96
    %v2027 = vld [vmem:[%s2026] sm:$0xff]
    %v2028 = vld [vmem:[%s2026 + $0x8] sm:$0xff]
    %v2029 = vld [vmem:[%s2026 + $0x10] sm:$0xff]
    %v2030 = vld [vmem:[%s2026 + $0x18] sm:$0xff]
    %2031 = vmatprep.subr.mxu0 %v895
    %2032 = vmatpush1.msra.mxu0 %v894
    %2033 = vmatprep.subr.mxu0 %v891
    %2034 = vmatpush1.msra.mxu0 %v890
    %2035 = vmatprep.subr.mxu0 %v887
    %2036 = vmatpush1.msra.mxu0 %v886
    %2037 = vmatprep.subr.mxu0 %v883
    %2038 = vmatpush1.msra.mxu0 %v882
    %2039 = vmatprep.subr.mxu0 %v879
    %2040 = vmatpush1.msra.mxu0 %v878
    %2041 = vmatprep.subr.mxu0 %v875
    %2042 = vmatpush1.msra.mxu0 %v874
    %2043 = vmatprep.subr.mxu0 %v871
    %2044 = vmatpush1.msra.mxu0 %v870
    %2045 = vmatprep.subr.mxu0 %v867
    %2046 = vmatpush1.msra.mxu0 %v866
    %2047 = vmatprep.subr.mxu0 %v863
    %2048 = vmatpush1.msra.mxu0 %v862
    %2049 = vmatprep.subr.mxu0 %v859
    %2050 = vmatpush1.msra.mxu0 %v858
    %2051 = vmatprep.subr.mxu0 %v855
    %2052 = vmatpush1.msra.mxu0 %v854
    %2053 = vmatprep.subr.mxu0 %v851
    %2054 = vmatpush1.msra.mxu0 %v850
    %2055 = vmatprep.subr.mxu0 %v847
    %2056 = vmatpush1.msra.mxu0 %v846
    %2057 = vmatprep.subr.mxu0 %v843
    %2058 = vmatpush1.msra.mxu0 %v842
    %2059 = vmatprep.subr.mxu0 %v839
    %2060 = vmatpush1.msra.mxu0 %v838
    %2061 = vmatprep.subr.mxu0 %v835
    %2062 = vmatpush1.msra.mxu0 %v834
    %2063 = vmatprep.subr.mxu0 0.0
    %2064 = vmatpush2.msra.mxu0 0.0
    %2065 = vmatprep.subr.mxu0 0.0
    %2066 = vmatpush2.msra.mxu0 0.0
    %2067 = vmatprep.subr.mxu0 0.0
    %2068 = vmatpush2.msra.mxu0 0.0
    %2069 = vmatprep.subr.mxu0 0.0
    %2070 = vmatpush2.msra.mxu0 0.0
    %2071 = vmatprep.subr.mxu0 0.0
    %2072 = vmatpush2.msra.mxu0 0.0
    %2073 = vmatprep.subr.mxu0 0.0
    %2074 = vmatpush2.msra.mxu0 0.0
    %2075 = vmatprep.subr.mxu0 0.0
    %2076 = vmatpush2.msra.mxu0 0.0
    %2077 = vmatprep.subr.mxu0 0.0
    %2078 = vmatpush2.msra.mxu0 0.0
    %2079 = vmatprep.subr.mxu0 0.0
    %2080 = vmatpush2.msra.mxu0 0.0
    %2081 = vmatprep.subr.mxu0 0.0
    %2082 = vmatpush2.msra.mxu0 0.0
    %2083 = vmatprep.subr.mxu0 0.0
    %2084 = vmatpush2.msra.mxu0 0.0
    %2085 = vmatprep.subr.mxu0 0.0
    %2086 = vmatpush2.msra.mxu0 0.0
    %2087 = vmatprep.subr.mxu0 0.0
    %2088 = vmatpush2.msra.mxu0 0.0
    %2089 = vmatprep.subr.mxu0 0.0
    %2090 = vmatpush2.msra.mxu0 0.0
    %2091 = vmatprep.subr.mxu0 0.0
    %2092 = vmatpush2.msra.mxu0 0.0
    %2093 = vmatprep.subr.mxu0 0.0
    %2094 = vmatpush2.msra.mxu0 0.0
    %2095 = vmatprep.mubr.f32.mxu0 0.0
    %2096 = vmatmul.mubr.f32.gmra.mxu0 %v1846
    %v2097 = vpop.f32.mrf.mxu0
    %v2098 = vadd.f32 0.0, %v2097
    %v2099 = vpop.f32.mrf.mxu0
    %v2100 = vadd.f32 0.0, %v2099
    %2101 = vdwg.mxu0
    %2102 = vmatprep.subr.mxu0 %v897
    %2103 = vmatpush1.msra.mxu0 %v896
    %2104 = vmatprep.subr.mxu0 %v893
    %2105 = vmatpush1.msra.mxu0 %v892
    %2106 = vmatprep.subr.mxu0 %v889
    %2107 = vmatpush1.msra.mxu0 %v888
    %2108 = vmatprep.subr.mxu0 %v885
    %2109 = vmatpush1.msra.mxu0 %v884
    %2110 = vmatprep.subr.mxu0 %v881
    %2111 = vmatpush1.msra.mxu0 %v880
    %2112 = vmatprep.subr.mxu0 %v877
    %2113 = vmatpush1.msra.mxu0 %v876
    %2114 = vmatprep.subr.mxu0 %v873
    %2115 = vmatpush1.msra.mxu0 %v872
    %2116 = vmatprep.subr.mxu0 %v869
    %2117 = vmatpush1.msra.mxu0 %v868
    %2118 = vmatprep.subr.mxu0 %v865
    %2119 = vmatpush1.msra.mxu0 %v864
    %2120 = vmatprep.subr.mxu0 %v861
    %2121 = vmatpush1.msra.mxu0 %v860
    %2122 = vmatprep.subr.mxu0 %v857
    %2123 = vmatpush1.msra.mxu0 %v856
    %2124 = vmatprep.subr.mxu0 %v853
    %2125 = vmatpush1.msra.mxu0 %v852
    %2126 = vmatprep.subr.mxu0 %v849
    %2127 = vmatpush1.msra.mxu0 %v848
    %2128 = vmatprep.subr.mxu0 %v845
    %2129 = vmatpush1.msra.mxu0 %v844
    %2130 = vmatprep.subr.mxu0 %v841
    %2131 = vmatpush1.msra.mxu0 %v840
    %2132 = vmatprep.subr.mxu0 %v837
    %2133 = vmatpush1.msra.mxu0 %v836
    %2134 = vmatprep.subr.mxu0 0.0
    %2135 = vmatpush2.msra.mxu0 0.0
    %2136 = vmatprep.subr.mxu0 0.0
    %2137 = vmatpush2.msra.mxu0 0.0
    %2138 = vmatprep.subr.mxu0 0.0
    %2139 = vmatpush2.msra.mxu0 0.0
    %2140 = vmatprep.subr.mxu0 0.0
    %2141 = vmatpush2.msra.mxu0 0.0
    %2142 = vmatprep.subr.mxu0 0.0
    %2143 = vmatpush2.msra.mxu0 0.0
    %2144 = vmatprep.subr.mxu0 0.0
    %2145 = vmatpush2.msra.mxu0 0.0
    %2146 = vmatprep.subr.mxu0 0.0
    %2147 = vmatpush2.msra.mxu0 0.0
    %2148 = vmatprep.subr.mxu0 0.0
    %2149 = vmatpush2.msra.mxu0 0.0
    %2150 = vmatprep.subr.mxu0 0.0
    %2151 = vmatpush2.msra.mxu0 0.0
    %2152 = vmatprep.subr.mxu0 0.0
    %2153 = vmatpush2.msra.mxu0 0.0
    %2154 = vmatprep.subr.mxu0 0.0
    %2155 = vmatpush2.msra.mxu0 0.0
    %2156 = vmatprep.subr.mxu0 0.0
    %2157 = vmatpush2.msra.mxu0 0.0
    %2158 = vmatprep.subr.mxu0 0.0
    %2159 = vmatpush2.msra.mxu0 0.0
    %2160 = vmatprep.subr.mxu0 0.0
    %2161 = vmatpush2.msra.mxu0 0.0
    %2162 = vmatprep.subr.mxu0 0.0
    %2163 = vmatpush2.msra.mxu0 0.0
    %2164 = vmatprep.subr.mxu0 0.0
    %2165 = vmatpush2.msra.mxu0 0.0
    %2166 = vmatprep.mubr.f32.mxu0 0.0
    %2167 = vmatmul.mubr.f32.gmra.mxu0 %v1846
    %v2168 = vpop.f32.mrf.mxu0
    %v2169 = vadd.f32 0.0, %v2168
    %v2170 = vpop.f32.mrf.mxu0
    %v2171 = vadd.f32 0.0, %v2170
    %2172 = vdwg.mxu0
    %v2173 = vadd.f32 %v2027, %v2098
    %v2174 = vadd.f32 %v2028, %v2100
    %v2175 = vadd.f32 %v2029, %v2169
    %v2176 = vadd.f32 %v2030, %v2171
    %v2177 = vxor.u32 %v2173, 2147483648
    %v2178 = vmul.f32 %v2177, 1.442695
    %v2179 = vpow.pop %v2178
    %v2180 = vadd.f32 %v2179, 1.0
    %v2181 = vrcp.pop %v2180
    %v2182 = vmul.f32 1.0, %v2181
    %v2183 = vxor.u32 %v2174, 2147483648
    %v2184 = vmul.f32 %v2183, 1.442695
    %v2185 = vpow.pop %v2184
    %v2186 = vadd.f32 %v2185, 1.0
    %v2187 = vrcp.pop %v2186
    %v2188 = vmul.f32 1.0, %v2187
    %v2189 = vtanh.pop %v2175
    %v2190 = vxor.u32 %v2176, 2147483648
    %v2191 = vmul.f32 %v2190, 1.442695
    %v2192 = vpow.pop %v2191
    %v2193 = vadd.f32 %v2192, 1.0
    %v2194 = vrcp.pop %v2193
    %v2195 = vmul.f32 1.0, %v2194
    %v2196 = vmul.f32 %v2188, %v1844
    %v2197 = vmul.f32 %v2182, %v2189
    %v2198 = vadd.f32 %v2196, %v2197
    %v2199 = vtanh.pop %v2198
    %v2200 = vmul.f32 %v2195, %v2199
    %s2201 = scalar_lea.vmem %s8, 24
    %2202 = vst [vmem:[%s2201] sm:$0xff] %v2200
    %s2203 = scalar_lea.vmem [#allocation7], 128
    %v2204 = vld [vmem:[%s2203] sm:$0xff]
    %v2205 = vld [vmem:[%s2203 + $0x8] sm:$0xff]
    %v2206 = vld [vmem:[%s2203 + $0x10] sm:$0xff]
    %v2207 = vld [vmem:[%s2203 + $0x18] sm:$0xff]
    %2208 = vmatprep.subr.mxu0 %v959
    %2209 = vmatpush1.msra.mxu0 %v958
    %2210 = vmatprep.subr.mxu0 %v955
    %2211 = vmatpush1.msra.mxu0 %v954
    %2212 = vmatprep.subr.mxu0 %v951
    %2213 = vmatpush1.msra.mxu0 %v950
    %2214 = vmatprep.subr.mxu0 %v947
    %2215 = vmatpush1.msra.mxu0 %v946
    %2216 = vmatprep.subr.mxu0 %v943
    %2217 = vmatpush1.msra.mxu0 %v942
    %2218 = vmatprep.subr.mxu0 %v939
    %2219 = vmatpush1.msra.mxu0 %v938
    %2220 = vmatprep.subr.mxu0 %v935
    %2221 = vmatpush1.msra.mxu0 %v934
    %2222 = vmatprep.subr.mxu0 %v931
    %2223 = vmatpush1.msra.mxu0 %v930
    %2224 = vmatprep.subr.mxu0 %v927
    %2225 = vmatpush1.msra.mxu0 %v926
    %2226 = vmatprep.subr.mxu0 %v923
    %2227 = vmatpush1.msra.mxu0 %v922
    %2228 = vmatprep.subr.mxu0 %v919
    %2229 = vmatpush1.msra.mxu0 %v918
    %2230 = vmatprep.subr.mxu0 %v915
    %2231 = vmatpush1.msra.mxu0 %v914
    %2232 = vmatprep.subr.mxu0 %v911
    %2233 = vmatpush1.msra.mxu0 %v910
    %2234 = vmatprep.subr.mxu0 %v907
    %2235 = vmatpush1.msra.mxu0 %v906
    %2236 = vmatprep.subr.mxu0 %v903
    %2237 = vmatpush1.msra.mxu0 %v902
    %2238 = vmatprep.subr.mxu0 %v899
    %2239 = vmatpush1.msra.mxu0 %v898
    %2240 = vmatprep.subr.mxu0 0.0
    %2241 = vmatpush2.msra.mxu0 0.0
    %2242 = vmatprep.subr.mxu0 0.0
    %2243 = vmatpush2.msra.mxu0 0.0
    %2244 = vmatprep.subr.mxu0 0.0
    %2245 = vmatpush2.msra.mxu0 0.0
    %2246 = vmatprep.subr.mxu0 0.0
    %2247 = vmatpush2.msra.mxu0 0.0
    %2248 = vmatprep.subr.mxu0 0.0
    %2249 = vmatpush2.msra.mxu0 0.0
    %2250 = vmatprep.subr.mxu0 0.0
    %2251 = vmatpush2.msra.mxu0 0.0
    %2252 = vmatprep.subr.mxu0 0.0
    %2253 = vmatpush2.msra.mxu0 0.0
    %2254 = vmatprep.subr.mxu0 0.0
    %2255 = vmatpush2.msra.mxu0 0.0
    %2256 = vmatprep.subr.mxu0 0.0
    %2257 = vmatpush2.msra.mxu0 0.0
    %2258 = vmatprep.subr.mxu0 0.0
    %2259 = vmatpush2.msra.mxu0 0.0
    %2260 = vmatprep.subr.mxu0 0.0
    %2261 = vmatpush2.msra.mxu0 0.0
    %2262 = vmatprep.subr.mxu0 0.0
    %2263 = vmatpush2.msra.mxu0 0.0
    %2264 = vmatprep.subr.mxu0 0.0
    %2265 = vmatpush2.msra.mxu0 0.0
    %2266 = vmatprep.subr.mxu0 0.0
    %2267 = vmatpush2.msra.mxu0 0.0
    %2268 = vmatprep.subr.mxu0 0.0
    %2269 = vmatpush2.msra.mxu0 0.0
    %2270 = vmatprep.subr.mxu0 0.0
    %2271 = vmatpush2.msra.mxu0 0.0
    %2272 = vmatprep.mubr.f32.mxu0 0.0
    %2273 = vmatmul.mubr.f32.gmra.mxu0 %v2023
    %v2274 = vpop.f32.mrf.mxu0
    %v2275 = vadd.f32 0.0, %v2274
    %v2276 = vpop.f32.mrf.mxu0
    %v2277 = vadd.f32 0.0, %v2276
    %2278 = vdwg.mxu0
    %2279 = vmatprep.subr.mxu0 %v961
    %2280 = vmatpush1.msra.mxu0 %v960
    %2281 = vmatprep.subr.mxu0 %v957
    %2282 = vmatpush1.msra.mxu0 %v956
    %2283 = vmatprep.subr.mxu0 %v953
    %2284 = vmatpush1.msra.mxu0 %v952
    %2285 = vmatprep.subr.mxu0 %v949
    %2286 = vmatpush1.msra.mxu0 %v948
    %2287 = vmatprep.subr.mxu0 %v945
    %2288 = vmatpush1.msra.mxu0 %v944
    %2289 = vmatprep.subr.mxu0 %v941
    %2290 = vmatpush1.msra.mxu0 %v940
    %2291 = vmatprep.subr.mxu0 %v937
    %2292 = vmatpush1.msra.mxu0 %v936
    %2293 = vmatprep.subr.mxu0 %v933
    %2294 = vmatpush1.msra.mxu0 %v932
    %2295 = vmatprep.subr.mxu0 %v929
    %2296 = vmatpush1.msra.mxu0 %v928
    %2297 = vmatprep.subr.mxu0 %v925
    %2298 = vmatpush1.msra.mxu0 %v924
    %2299 = vmatprep.subr.mxu0 %v921
    %2300 = vmatpush1.msra.mxu0 %v920
    %2301 = vmatprep.subr.mxu0 %v917
    %2302 = vmatpush1.msra.mxu0 %v916
    %2303 = vmatprep.subr.mxu0 %v913
    %2304 = vmatpush1.msra.mxu0 %v912
    %2305 = vmatprep.subr.mxu0 %v909
    %2306 = vmatpush1.msra.mxu0 %v908
    %2307 = vmatprep.subr.mxu0 %v905
    %2308 = vmatpush1.msra.mxu0 %v904
    %2309 = vmatprep.subr.mxu0 %v901
    %2310 = vmatpush1.msra.mxu0 %v900
    %2311 = vmatprep.subr.mxu0 0.0
    %2312 = vmatpush2.msra.mxu0 0.0
    %2313 = vmatprep.subr.mxu0 0.0
    %2314 = vmatpush2.msra.mxu0 0.0
    %2315 = vmatprep.subr.mxu0 0.0
    %2316 = vmatpush2.msra.mxu0 0.0
    %2317 = vmatprep.subr.mxu0 0.0
    %2318 = vmatpush2.msra.mxu0 0.0
    %2319 = vmatprep.subr.mxu0 0.0
    %2320 = vmatpush2.msra.mxu0 0.0
    %2321 = vmatprep.subr.mxu0 0.0
    %2322 = vmatpush2.msra.mxu0 0.0
    %2323 = vmatprep.subr.mxu0 0.0
    %2324 = vmatpush2.msra.mxu0 0.0
    %2325 = vmatprep.subr.mxu0 0.0
    %2326 = vmatpush2.msra.mxu0 0.0
    %2327 = vmatprep.subr.mxu0 0.0
    %2328 = vmatpush2.msra.mxu0 0.0
    %2329 = vmatprep.subr.mxu0 0.0
    %2330 = vmatpush2.msra.mxu0 0.0
    %2331 = vmatprep.subr.mxu0 0.0
    %2332 = vmatpush2.msra.mxu0 0.0
    %2333 = vmatprep.subr.mxu0 0.0
    %2334 = vmatpush2.msra.mxu0 0.0
    %2335 = vmatprep.subr.mxu0 0.0
    %2336 = vmatpush2.msra.mxu0 0.0
    %2337 = vmatprep.subr.mxu0 0.0
    %2338 = vmatpush2.msra.mxu0 0.0
    %2339 = vmatprep.subr.mxu0 0.0
    %2340 = vmatpush2.msra.mxu0 0.0
    %2341 = vmatprep.subr.mxu0 0.0
    %2342 = vmatpush2.msra.mxu0 0.0
    %2343 = vmatprep.mubr.f32.mxu0 0.0
    %2344 = vmatmul.mubr.f32.gmra.mxu0 %v2023
    %v2345 = vpop.f32.mrf.mxu0
    %v2346 = vadd.f32 0.0, %v2345
    %v2347 = vpop.f32.mrf.mxu0
    %v2348 = vadd.f32 0.0, %v2347
    %2349 = vdwg.mxu0
    %v2350 = vadd.f32 %v2204, %v2275
    %v2351 = vadd.f32 %v2205, %v2277
    %v2352 = vadd.f32 %v2206, %v2346
    %v2353 = vadd.f32 %v2207, %v2348
    %v2354 = vxor.u32 %v2350, 2147483648
    %v2355 = vmul.f32 %v2354, 1.442695
    %v2356 = vpow.pop %v2355
    %v2357 = vadd.f32 %v2356, 1.0
    %v2358 = vrcp.pop %v2357
    %v2359 = vmul.f32 1.0, %v2358
    %v2360 = vxor.u32 %v2351, 2147483648
    %v2361 = vmul.f32 %v2360, 1.442695
    %v2362 = vpow.pop %v2361
    %v2363 = vadd.f32 %v2362, 1.0
    %v2364 = vrcp.pop %v2363
    %v2365 = vmul.f32 1.0, %v2364
    %v2366 = vtanh.pop %v2352
    %v2367 = vxor.u32 %v2353, 2147483648
    %v2368 = vmul.f32 %v2367, 1.442695
    %v2369 = vpow.pop %v2368
    %v2370 = vadd.f32 %v2369, 1.0
    %v2371 = vrcp.pop %v2370
    %v2372 = vmul.f32 1.0, %v2371
    %v2373 = vmul.f32 %v2365, %v2021
    %v2374 = vmul.f32 %v2359, %v2366
    %v2375 = vadd.f32 %v2373, %v2374
    %v2376 = vtanh.pop %v2375
    %v2377 = vmul.f32 %v2372, %v2376
    %s2378 = scalar_lea.vmem %s119, 32
    %2379 = vst [vmem:[%s2378] sm:$0xff] %v2377
    %s2380 = scalar_lea.vmem [#allocation6], 128
    %v2381 = vld [vmem:[%s2380] sm:$0xff]
    %v2382 = vld [vmem:[%s2380 + $0x8] sm:$0xff]
    %v2383 = vld [vmem:[%s2380 + $0x10] sm:$0xff]
    %v2384 = vld [vmem:[%s2380 + $0x18] sm:$0xff]
    %2385 = vmatprep.subr.mxu0 %v895
    %2386 = vmatpush1.msra.mxu0 %v894
    %2387 = vmatprep.subr.mxu0 %v891
    %2388 = vmatpush1.msra.mxu0 %v890
    %2389 = vmatprep.subr.mxu0 %v887
    %2390 = vmatpush1.msra.mxu0 %v886
    %2391 = vmatprep.subr.mxu0 %v883
    %2392 = vmatpush1.msra.mxu0 %v882
    %2393 = vmatprep.subr.mxu0 %v879
    %2394 = vmatpush1.msra.mxu0 %v878
    %2395 = vmatprep.subr.mxu0 %v875
    %2396 = vmatpush1.msra.mxu0 %v874
    %2397 = vmatprep.subr.mxu0 %v871
    %2398 = vmatpush1.msra.mxu0 %v870
    %2399 = vmatprep.subr.mxu0 %v867
    %2400 = vmatpush1.msra.mxu0 %v866
    %2401 = vmatprep.subr.mxu0 %v863
    %2402 = vmatpush1.msra.mxu0 %v862
    %2403 = vmatprep.subr.mxu0 %v859
    %2404 = vmatpush1.msra.mxu0 %v858
    %2405 = vmatprep.subr.mxu0 %v855
    %2406 = vmatpush1.msra.mxu0 %v854
    %2407 = vmatprep.subr.mxu0 %v851
    %2408 = vmatpush1.msra.mxu0 %v850
    %2409 = vmatprep.subr.mxu0 %v847
    %2410 = vmatpush1.msra.mxu0 %v846
    %2411 = vmatprep.subr.mxu0 %v843
    %2412 = vmatpush1.msra.mxu0 %v842
    %2413 = vmatprep.subr.mxu0 %v839
    %2414 = vmatpush1.msra.mxu0 %v838
    %2415 = vmatprep.subr.mxu0 %v835
    %2416 = vmatpush1.msra.mxu0 %v834
    %2417 = vmatprep.subr.mxu0 0.0
    %2418 = vmatpush2.msra.mxu0 0.0
    %2419 = vmatprep.subr.mxu0 0.0
    %2420 = vmatpush2.msra.mxu0 0.0
    %2421 = vmatprep.subr.mxu0 0.0
    %2422 = vmatpush2.msra.mxu0 0.0
    %2423 = vmatprep.subr.mxu0 0.0
    %2424 = vmatpush2.msra.mxu0 0.0
    %2425 = vmatprep.subr.mxu0 0.0
    %2426 = vmatpush2.msra.mxu0 0.0
    %2427 = vmatprep.subr.mxu0 0.0
    %2428 = vmatpush2.msra.mxu0 0.0
    %2429 = vmatprep.subr.mxu0 0.0
    %2430 = vmatpush2.msra.mxu0 0.0
    %2431 = vmatprep.subr.mxu0 0.0
    %2432 = vmatpush2.msra.mxu0 0.0
    %2433 = vmatprep.subr.mxu0 0.0
    %2434 = vmatpush2.msra.mxu0 0.0
    %2435 = vmatprep.subr.mxu0 0.0
    %2436 = vmatpush2.msra.mxu0 0.0
    %2437 = vmatprep.subr.mxu0 0.0
    %2438 = vmatpush2.msra.mxu0 0.0
    %2439 = vmatprep.subr.mxu0 0.0
    %2440 = vmatpush2.msra.mxu0 0.0
    %2441 = vmatprep.subr.mxu0 0.0
    %2442 = vmatpush2.msra.mxu0 0.0
    %2443 = vmatprep.subr.mxu0 0.0
    %2444 = vmatpush2.msra.mxu0 0.0
    %2445 = vmatprep.subr.mxu0 0.0
    %2446 = vmatpush2.msra.mxu0 0.0
    %2447 = vmatprep.subr.mxu0 0.0
    %2448 = vmatpush2.msra.mxu0 0.0
    %2449 = vmatprep.mubr.f32.mxu0 0.0
    %2450 = vmatmul.mubr.f32.gmra.mxu0 %v2200
    %v2451 = vpop.f32.mrf.mxu0
    %v2452 = vadd.f32 0.0, %v2451
    %v2453 = vpop.f32.mrf.mxu0
    %v2454 = vadd.f32 0.0, %v2453
    %2455 = vdwg.mxu0
    %2456 = vmatprep.subr.mxu0 %v897
    %2457 = vmatpush1.msra.mxu0 %v896
    %2458 = vmatprep.subr.mxu0 %v893
    %2459 = vmatpush1.msra.mxu0 %v892
    %2460 = vmatprep.subr.mxu0 %v889
    %2461 = vmatpush1.msra.mxu0 %v888
    %2462 = vmatprep.subr.mxu0 %v885
    %2463 = vmatpush1.msra.mxu0 %v884
    %2464 = vmatprep.subr.mxu0 %v881
    %2465 = vmatpush1.msra.mxu0 %v880
    %2466 = vmatprep.subr.mxu0 %v877
    %2467 = vmatpush1.msra.mxu0 %v876
    %2468 = vmatprep.subr.mxu0 %v873
    %2469 = vmatpush1.msra.mxu0 %v872
    %2470 = vmatprep.subr.mxu0 %v869
    %2471 = vmatpush1.msra.mxu0 %v868
    %2472 = vmatprep.subr.mxu0 %v865
    %2473 = vmatpush1.msra.mxu0 %v864
    %2474 = vmatprep.subr.mxu0 %v861
    %2475 = vmatpush1.msra.mxu0 %v860
    %2476 = vmatprep.subr.mxu0 %v857
    %2477 = vmatpush1.msra.mxu0 %v856
    %2478 = vmatprep.subr.mxu0 %v853
    %2479 = vmatpush1.msra.mxu0 %v852
    %2480 = vmatprep.subr.mxu0 %v849
    %2481 = vmatpush1.msra.mxu0 %v848
    %2482 = vmatprep.subr.mxu0 %v845
    %2483 = vmatpush1.msra.mxu0 %v844
    %2484 = vmatprep.subr.mxu0 %v841
    %2485 = vmatpush1.msra.mxu0 %v840
    %2486 = vmatprep.subr.mxu0 %v837
    %2487 = vmatpush1.msra.mxu0 %v836
    %2488 = vmatprep.subr.mxu0 0.0
    %2489 = vmatpush2.msra.mxu0 0.0
    %2490 = vmatprep.subr.mxu0 0.0
    %2491 = vmatpush2.msra.mxu0 0.0
    %2492 = vmatprep.subr.mxu0 0.0
    %2493 = vmatpush2.msra.mxu0 0.0
    %2494 = vmatprep.subr.mxu0 0.0
    %2495 = vmatpush2.msra.mxu0 0.0
    %2496 = vmatprep.subr.mxu0 0.0
    %2497 = vmatpush2.msra.mxu0 0.0
    %2498 = vmatprep.subr.mxu0 0.0
    %2499 = vmatpush2.msra.mxu0 0.0
    %2500 = vmatprep.subr.mxu0 0.0
    %2501 = vmatpush2.msra.mxu0 0.0
    %2502 = vmatprep.subr.mxu0 0.0
    %2503 = vmatpush2.msra.mxu0 0.0
    %2504 = vmatprep.subr.mxu0 0.0
    %2505 = vmatpush2.msra.mxu0 0.0
    %2506 = vmatprep.subr.mxu0 0.0
    %2507 = vmatpush2.msra.mxu0 0.0
    %2508 = vmatprep.subr.mxu0 0.0
    %2509 = vmatpush2.msra.mxu0 0.0
    %2510 = vmatprep.subr.mxu0 0.0
    %2511 = vmatpush2.msra.mxu0 0.0
    %2512 = vmatprep.subr.mxu0 0.0
    %2513 = vmatpush2.msra.mxu0 0.0
    %2514 = vmatprep.subr.mxu0 0.0
    %2515 = vmatpush2.msra.mxu0 0.0
    %2516 = vmatprep.subr.mxu0 0.0
    %2517 = vmatpush2.msra.mxu0 0.0
    %2518 = vmatprep.subr.mxu0 0.0
    %2519 = vmatpush2.msra.mxu0 0.0
    %2520 = vmatprep.mubr.f32.mxu0 0.0
    %2521 = vmatmul.mubr.f32.gmra.mxu0 %v2200
    %v2522 = vpop.f32.mrf.mxu0
    %v2523 = vadd.f32 0.0, %v2522
    %v2524 = vpop.f32.mrf.mxu0
    %v2525 = vadd.f32 0.0, %v2524
    %2526 = vdwg.mxu0
    %v2527 = vadd.f32 %v2381, %v2452
    %v2528 = vadd.f32 %v2382, %v2454
    %v2529 = vadd.f32 %v2383, %v2523
    %v2530 = vadd.f32 %v2384, %v2525
    %v2531 = vxor.u32 %v2527, 2147483648
    %v2532 = vmul.f32 %v2531, 1.442695
    %v2533 = vpow.pop %v2532
    %v2534 = vadd.f32 %v2533, 1.0
    %v2535 = vrcp.pop %v2534
    %v2536 = vmul.f32 1.0, %v2535
    %v2537 = vxor.u32 %v2528, 2147483648
    %v2538 = vmul.f32 %v2537, 1.442695
    %v2539 = vpow.pop %v2538
    %v2540 = vadd.f32 %v2539, 1.0
    %v2541 = vrcp.pop %v2540
    %v2542 = vmul.f32 1.0, %v2541
    %v2543 = vtanh.pop %v2529
    %v2544 = vxor.u32 %v2530, 2147483648
    %v2545 = vmul.f32 %v2544, 1.442695
    %v2546 = vpow.pop %v2545
    %v2547 = vadd.f32 %v2546, 1.0
    %v2548 = vrcp.pop %v2547
    %v2549 = vmul.f32 1.0, %v2548
    %v2550 = vmul.f32 %v2542, %v2198
    %v2551 = vmul.f32 %v2536, %v2543
    %v2552 = vadd.f32 %v2550, %v2551
    %v2553 = vtanh.pop %v2552
    %v2554 = vmul.f32 %v2549, %v2553
    %s2555 = scalar_lea.vmem %s8, 32
    %2556 = vst [vmem:[%s2555] sm:$0xff] %v2554
    %s2557 = scalar_lea.vmem [#allocation7], 96
    %v2558 = vld [vmem:[%s2557] sm:$0xff]
    %v2559 = vld [vmem:[%s2557 + $0x8] sm:$0xff]
    %v2560 = vld [vmem:[%s2557 + $0x10] sm:$0xff]
    %v2561 = vld [vmem:[%s2557 + $0x18] sm:$0xff]
    %2562 = vmatprep.subr.mxu0 %v959
    %2563 = vmatpush1.msra.mxu0 %v958
    %2564 = vmatprep.subr.mxu0 %v955
    %2565 = vmatpush1.msra.mxu0 %v954
    %2566 = vmatprep.subr.mxu0 %v951
    %2567 = vmatpush1.msra.mxu0 %v950
    %2568 = vmatprep.subr.mxu0 %v947
    %2569 = vmatpush1.msra.mxu0 %v946
    %2570 = vmatprep.subr.mxu0 %v943
    %2571 = vmatpush1.msra.mxu0 %v942
    %2572 = vmatprep.subr.mxu0 %v939
    %2573 = vmatpush1.msra.mxu0 %v938
    %2574 = vmatprep.subr.mxu0 %v935
    %2575 = vmatpush1.msra.mxu0 %v934
    %2576 = vmatprep.subr.mxu0 %v931
    %2577 = vmatpush1.msra.mxu0 %v930
    %2578 = vmatprep.subr.mxu0 %v927
    %2579 = vmatpush1.msra.mxu0 %v926
    %2580 = vmatprep.subr.mxu0 %v923
    %2581 = vmatpush1.msra.mxu0 %v922
    %2582 = vmatprep.subr.mxu0 %v919
    %2583 = vmatpush1.msra.mxu0 %v918
    %2584 = vmatprep.subr.mxu0 %v915
    %2585 = vmatpush1.msra.mxu0 %v914
    %2586 = vmatprep.subr.mxu0 %v911
    %2587 = vmatpush1.msra.mxu0 %v910
    %2588 = vmatprep.subr.mxu0 %v907
    %2589 = vmatpush1.msra.mxu0 %v906
    %2590 = vmatprep.subr.mxu0 %v903
    %2591 = vmatpush1.msra.mxu0 %v902
    %2592 = vmatprep.subr.mxu0 %v899
    %2593 = vmatpush1.msra.mxu0 %v898
    %2594 = vmatprep.subr.mxu0 0.0
    %2595 = vmatpush2.msra.mxu0 0.0
    %2596 = vmatprep.subr.mxu0 0.0
    %2597 = vmatpush2.msra.mxu0 0.0
    %2598 = vmatprep.subr.mxu0 0.0
    %2599 = vmatpush2.msra.mxu0 0.0
    %2600 = vmatprep.subr.mxu0 0.0
    %2601 = vmatpush2.msra.mxu0 0.0
    %2602 = vmatprep.subr.mxu0 0.0
    %2603 = vmatpush2.msra.mxu0 0.0
    %2604 = vmatprep.subr.mxu0 0.0
    %2605 = vmatpush2.msra.mxu0 0.0
    %2606 = vmatprep.subr.mxu0 0.0
    %2607 = vmatpush2.msra.mxu0 0.0
    %2608 = vmatprep.subr.mxu0 0.0
    %2609 = vmatpush2.msra.mxu0 0.0
    %2610 = vmatprep.subr.mxu0 0.0
    %2611 = vmatpush2.msra.mxu0 0.0
    %2612 = vmatprep.subr.mxu0 0.0
    %2613 = vmatpush2.msra.mxu0 0.0
    %2614 = vmatprep.subr.mxu0 0.0
    %2615 = vmatpush2.msra.mxu0 0.0
    %2616 = vmatprep.subr.mxu0 0.0
    %2617 = vmatpush2.msra.mxu0 0.0
    %2618 = vmatprep.subr.mxu0 0.0
    %2619 = vmatpush2.msra.mxu0 0.0
    %2620 = vmatprep.subr.mxu0 0.0
    %2621 = vmatpush2.msra.mxu0 0.0
    %2622 = vmatprep.subr.mxu0 0.0
    %2623 = vmatpush2.msra.mxu0 0.0
    %2624 = vmatprep.subr.mxu0 0.0
    %2625 = vmatpush2.msra.mxu0 0.0
    %2626 = vmatprep.mubr.f32.mxu0 0.0
    %2627 = vmatmul.mubr.f32.gmra.mxu0 %v2377
    %v2628 = vpop.f32.mrf.mxu0
    %v2629 = vadd.f32 0.0, %v2628
    %v2630 = vpop.f32.mrf.mxu0
    %v2631 = vadd.f32 0.0, %v2630
    %2632 = vdwg.mxu0
    %2633 = vmatprep.subr.mxu0 %v961
    %2634 = vmatpush1.msra.mxu0 %v960
    %2635 = vmatprep.subr.mxu0 %v957
    %2636 = vmatpush1.msra.mxu0 %v956
    %2637 = vmatprep.subr.mxu0 %v953
    %2638 = vmatpush1.msra.mxu0 %v952
    %2639 = vmatprep.subr.mxu0 %v949
    %2640 = vmatpush1.msra.mxu0 %v948
    %2641 = vmatprep.subr.mxu0 %v945
    %2642 = vmatpush1.msra.mxu0 %v944
    %2643 = vmatprep.subr.mxu0 %v941
    %2644 = vmatpush1.msra.mxu0 %v940
    %2645 = vmatprep.subr.mxu0 %v937
    %2646 = vmatpush1.msra.mxu0 %v936
    %2647 = vmatprep.subr.mxu0 %v933
    %2648 = vmatpush1.msra.mxu0 %v932
    %2649 = vmatprep.subr.mxu0 %v929
    %2650 = vmatpush1.msra.mxu0 %v928
    %2651 = vmatprep.subr.mxu0 %v925
    %2652 = vmatpush1.msra.mxu0 %v924
    %2653 = vmatprep.subr.mxu0 %v921
    %2654 = vmatpush1.msra.mxu0 %v920
    %2655 = vmatprep.subr.mxu0 %v917
    %2656 = vmatpush1.msra.mxu0 %v916
    %2657 = vmatprep.subr.mxu0 %v913
    %2658 = vmatpush1.msra.mxu0 %v912
    %2659 = vmatprep.subr.mxu0 %v909
    %2660 = vmatpush1.msra.mxu0 %v908
    %2661 = vmatprep.subr.mxu0 %v905
    %2662 = vmatpush1.msra.mxu0 %v904
    %2663 = vmatprep.subr.mxu0 %v901
    %2664 = vmatpush1.msra.mxu0 %v900
    %2665 = vmatprep.subr.mxu0 0.0
    %2666 = vmatpush2.msra.mxu0 0.0
    %2667 = vmatprep.subr.mxu0 0.0
    %2668 = vmatpush2.msra.mxu0 0.0
    %2669 = vmatprep.subr.mxu0 0.0
    %2670 = vmatpush2.msra.mxu0 0.0
    %2671 = vmatprep.subr.mxu0 0.0
    %2672 = vmatpush2.msra.mxu0 0.0
    %2673 = vmatprep.subr.mxu0 0.0
    %2674 = vmatpush2.msra.mxu0 0.0
    %2675 = vmatprep.subr.mxu0 0.0
    %2676 = vmatpush2.msra.mxu0 0.0
    %2677 = vmatprep.subr.mxu0 0.0
    %2678 = vmatpush2.msra.mxu0 0.0
    %2679 = vmatprep.subr.mxu0 0.0
    %2680 = vmatpush2.msra.mxu0 0.0
    %2681 = vmatprep.subr.mxu0 0.0
    %2682 = vmatpush2.msra.mxu0 0.0
    %2683 = vmatprep.subr.mxu0 0.0
    %2684 = vmatpush2.msra.mxu0 0.0
    %2685 = vmatprep.subr.mxu0 0.0
    %2686 = vmatpush2.msra.mxu0 0.0
    %2687 = vmatprep.subr.mxu0 0.0
    %2688 = vmatpush2.msra.mxu0 0.0
    %2689 = vmatprep.subr.mxu0 0.0
    %2690 = vmatpush2.msra.mxu0 0.0
    %2691 = vmatprep.subr.mxu0 0.0
    %2692 = vmatpush2.msra.mxu0 0.0
    %2693 = vmatprep.subr.mxu0 0.0
    %2694 = vmatpush2.msra.mxu0 0.0
    %2695 = vmatprep.subr.mxu0 0.0
    %2696 = vmatpush2.msra.mxu0 0.0
    %2697 = vmatprep.mubr.f32.mxu0 0.0
    %2698 = vmatmul.mubr.f32.gmra.mxu0 %v2377
    %v2699 = vpop.f32.mrf.mxu0
    %v2700 = vadd.f32 0.0, %v2699
    %v2701 = vpop.f32.mrf.mxu0
    %v2702 = vadd.f32 0.0, %v2701
    %2703 = vdwg.mxu0
    %v2704 = vadd.f32 %v2558, %v2629
    %v2705 = vadd.f32 %v2559, %v2631
    %v2706 = vadd.f32 %v2560, %v2700
    %v2707 = vadd.f32 %v2561, %v2702
    %v2708 = vxor.u32 %v2704, 2147483648
    %v2709 = vmul.f32 %v2708, 1.442695
    %v2710 = vpow.pop %v2709
    %v2711 = vadd.f32 %v2710, 1.0
    %v2712 = vrcp.pop %v2711
    %v2713 = vmul.f32 1.0, %v2712
    %v2714 = vxor.u32 %v2705, 2147483648
    %v2715 = vmul.f32 %v2714, 1.442695
    %v2716 = vpow.pop %v2715
    %v2717 = vadd.f32 %v2716, 1.0
    %v2718 = vrcp.pop %v2717
    %v2719 = vmul.f32 1.0, %v2718
    %v2720 = vtanh.pop %v2706
    %v2721 = vxor.u32 %v2707, 2147483648
    %v2722 = vmul.f32 %v2721, 1.442695
    %v2723 = vpow.pop %v2722
    %v2724 = vadd.f32 %v2723, 1.0
    %v2725 = vrcp.pop %v2724
    %v2726 = vmul.f32 1.0, %v2725
    %v2727 = vmul.f32 %v2719, %v2375
    %v2728 = vmul.f32 %v2713, %v2720
    %v2729 = vadd.f32 %v2727, %v2728
    %v2730 = vtanh.pop %v2729
    %v2731 = vmul.f32 %v2726, %v2730
    %s2732 = scalar_lea.vmem %s119, 24
    %2733 = vst [vmem:[%s2732] sm:$0xff] %v2731
    %s2734 = scalar_lea.vmem [#allocation6], 160
    %v2735 = vld [vmem:[%s2734] sm:$0xff]
    %v2736 = vld [vmem:[%s2734 + $0x8] sm:$0xff]
    %v2737 = vld [vmem:[%s2734 + $0x10] sm:$0xff]
    %v2738 = vld [vmem:[%s2734 + $0x18] sm:$0xff]
    %2739 = vmatprep.subr.mxu0 %v895
    %2740 = vmatpush1.msra.mxu0 %v894
    %2741 = vmatprep.subr.mxu0 %v891
    %2742 = vmatpush1.msra.mxu0 %v890
    %2743 = vmatprep.subr.mxu0 %v887
    %2744 = vmatpush1.msra.mxu0 %v886
    %2745 = vmatprep.subr.mxu0 %v883
    %2746 = vmatpush1.msra.mxu0 %v882
    %2747 = vmatprep.subr.mxu0 %v879
    %2748 = vmatpush1.msra.mxu0 %v878
    %2749 = vmatprep.subr.mxu0 %v875
    %2750 = vmatpush1.msra.mxu0 %v874
    %2751 = vmatprep.subr.mxu0 %v871
    %2752 = vmatpush1.msra.mxu0 %v870
    %2753 = vmatprep.subr.mxu0 %v867
    %2754 = vmatpush1.msra.mxu0 %v866
    %2755 = vmatprep.subr.mxu0 %v863
    %2756 = vmatpush1.msra.mxu0 %v862
    %2757 = vmatprep.subr.mxu0 %v859
    %2758 = vmatpush1.msra.mxu0 %v858
    %2759 = vmatprep.subr.mxu0 %v855
    %2760 = vmatpush1.msra.mxu0 %v854
    %2761 = vmatprep.subr.mxu0 %v851
    %2762 = vmatpush1.msra.mxu0 %v850
    %2763 = vmatprep.subr.mxu0 %v847
    %2764 = vmatpush1.msra.mxu0 %v846
    %2765 = vmatprep.subr.mxu0 %v843
    %2766 = vmatpush1.msra.mxu0 %v842
    %2767 = vmatprep.subr.mxu0 %v839
    %2768 = vmatpush1.msra.mxu0 %v838
    %2769 = vmatprep.subr.mxu0 %v835
    %2770 = vmatpush1.msra.mxu0 %v834
    %2771 = vmatprep.subr.mxu0 0.0
    %2772 = vmatpush2.msra.mxu0 0.0
    %2773 = vmatprep.subr.mxu0 0.0
    %2774 = vmatpush2.msra.mxu0 0.0
    %2775 = vmatprep.subr.mxu0 0.0
    %2776 = vmatpush2.msra.mxu0 0.0
    %2777 = vmatprep.subr.mxu0 0.0
    %2778 = vmatpush2.msra.mxu0 0.0
    %2779 = vmatprep.subr.mxu0 0.0
    %2780 = vmatpush2.msra.mxu0 0.0
    %2781 = vmatprep.subr.mxu0 0.0
    %2782 = vmatpush2.msra.mxu0 0.0
    %2783 = vmatprep.subr.mxu0 0.0
    %2784 = vmatpush2.msra.mxu0 0.0
    %2785 = vmatprep.subr.mxu0 0.0
    %2786 = vmatpush2.msra.mxu0 0.0
    %2787 = vmatprep.subr.mxu0 0.0
    %2788 = vmatpush2.msra.mxu0 0.0
    %2789 = vmatprep.subr.mxu0 0.0
    %2790 = vmatpush2.msra.mxu0 0.0
    %2791 = vmatprep.subr.mxu0 0.0
    %2792 = vmatpush2.msra.mxu0 0.0
    %2793 = vmatprep.subr.mxu0 0.0
    %2794 = vmatpush2.msra.mxu0 0.0
    %2795 = vmatprep.subr.mxu0 0.0
    %2796 = vmatpush2.msra.mxu0 0.0
    %2797 = vmatprep.subr.mxu0 0.0
    %2798 = vmatpush2.msra.mxu0 0.0
    %2799 = vmatprep.subr.mxu0 0.0
    %2800 = vmatpush2.msra.mxu0 0.0
    %2801 = vmatprep.subr.mxu0 0.0
    %2802 = vmatpush2.msra.mxu0 0.0
    %2803 = vmatprep.mubr.f32.mxu0 0.0
    %2804 = vmatmul.mubr.f32.gmra.mxu0 %v2554
    %v2805 = vpop.f32.mrf.mxu0
    %v2806 = vadd.f32 0.0, %v2805
    %v2807 = vpop.f32.mrf.mxu0
    %v2808 = vadd.f32 0.0, %v2807
    %2809 = vdwg.mxu0
    %2810 = vmatprep.subr.mxu0 %v897
    %2811 = vmatpush1.msra.mxu0 %v896
    %2812 = vmatprep.subr.mxu0 %v893
    %2813 = vmatpush1.msra.mxu0 %v892
    %2814 = vmatprep.subr.mxu0 %v889
    %2815 = vmatpush1.msra.mxu0 %v888
    %2816 = vmatprep.subr.mxu0 %v885
    %2817 = vmatpush1.msra.mxu0 %v884
    %2818 = vmatprep.subr.mxu0 %v881
    %2819 = vmatpush1.msra.mxu0 %v880
    %2820 = vmatprep.subr.mxu0 %v877
    %2821 = vmatpush1.msra.mxu0 %v876
    %2822 = vmatprep.subr.mxu0 %v873
    %2823 = vmatpush1.msra.mxu0 %v872
    %2824 = vmatprep.subr.mxu0 %v869
    %2825 = vmatpush1.msra.mxu0 %v868
    %2826 = vmatprep.subr.mxu0 %v865
    %2827 = vmatpush1.msra.mxu0 %v864
    %2828 = vmatprep.subr.mxu0 %v861
    %2829 = vmatpush1.msra.mxu0 %v860
    %2830 = vmatprep.subr.mxu0 %v857
    %2831 = vmatpush1.msra.mxu0 %v856
    %2832 = vmatprep.subr.mxu0 %v853
    %2833 = vmatpush1.msra.mxu0 %v852
    %2834 = vmatprep.subr.mxu0 %v849
    %2835 = vmatpush1.msra.mxu0 %v848
    %2836 = vmatprep.subr.mxu0 %v845
    %2837 = vmatpush1.msra.mxu0 %v844
    %2838 = vmatprep.subr.mxu0 %v841
    %2839 = vmatpush1.msra.mxu0 %v840
    %2840 = vmatprep.subr.mxu0 %v837
    %2841 = vmatpush1.msra.mxu0 %v836
    %2842 = vmatprep.subr.mxu0 0.0
    %2843 = vmatpush2.msra.mxu0 0.0
    %2844 = vmatprep.subr.mxu0 0.0
    %2845 = vmatpush2.msra.mxu0 0.0
    %2846 = vmatprep.subr.mxu0 0.0
    %2847 = vmatpush2.msra.mxu0 0.0
    %2848 = vmatprep.subr.mxu0 0.0
    %2849 = vmatpush2.msra.mxu0 0.0
    %2850 = vmatprep.subr.mxu0 0.0
    %2851 = vmatpush2.msra.mxu0 0.0
    %2852 = vmatprep.subr.mxu0 0.0
    %2853 = vmatpush2.msra.mxu0 0.0
    %2854 = vmatprep.subr.mxu0 0.0
    %2855 = vmatpush2.msra.mxu0 0.0
    %2856 = vmatprep.subr.mxu0 0.0
    %2857 = vmatpush2.msra.mxu0 0.0
    %2858 = vmatprep.subr.mxu0 0.0
    %2859 = vmatpush2.msra.mxu0 0.0
    %2860 = vmatprep.subr.mxu0 0.0
    %2861 = vmatpush2.msra.mxu0 0.0
    %2862 = vmatprep.subr.mxu0 0.0
    %2863 = vmatpush2.msra.mxu0 0.0
    %2864 = vmatprep.subr.mxu0 0.0
    %2865 = vmatpush2.msra.mxu0 0.0
    %2866 = vmatprep.subr.mxu0 0.0
    %2867 = vmatpush2.msra.mxu0 0.0
    %2868 = vmatprep.subr.mxu0 0.0
    %2869 = vmatpush2.msra.mxu0 0.0
    %2870 = vmatprep.subr.mxu0 0.0
    %2871 = vmatpush2.msra.mxu0 0.0
    %2872 = vmatprep.subr.mxu0 0.0
    %2873 = vmatpush2.msra.mxu0 0.0
    %2874 = vmatprep.mubr.f32.mxu0 0.0
    %2875 = vmatmul.mubr.f32.gmra.mxu0 %v2554
    %v2876 = vpop.f32.mrf.mxu0
    %v2877 = vadd.f32 0.0, %v2876
    %v2878 = vpop.f32.mrf.mxu0
    %v2879 = vadd.f32 0.0, %v2878
    %2880 = vdwg.mxu0
    %v2881 = vadd.f32 %v2735, %v2806
    %v2882 = vadd.f32 %v2736, %v2808
    %v2883 = vadd.f32 %v2737, %v2877
    %v2884 = vadd.f32 %v2738, %v2879
    %v2885 = vxor.u32 %v2881, 2147483648
    %v2886 = vmul.f32 %v2885, 1.442695
    %v2887 = vpow.pop %v2886
    %v2888 = vadd.f32 %v2887, 1.0
    %v2889 = vrcp.pop %v2888
    %v2890 = vmul.f32 1.0, %v2889
    %v2891 = vxor.u32 %v2882, 2147483648
    %v2892 = vmul.f32 %v2891, 1.442695
    %v2893 = vpow.pop %v2892
    %v2894 = vadd.f32 %v2893, 1.0
    %v2895 = vrcp.pop %v2894
    %v2896 = vmul.f32 1.0, %v2895
    %v2897 = vtanh.pop %v2883
    %v2898 = vxor.u32 %v2884, 2147483648
    %v2899 = vmul.f32 %v2898, 1.442695
    %v2900 = vpow.pop %v2899
    %v2901 = vadd.f32 %v2900, 1.0
    %v2902 = vrcp.pop %v2901
    %v2903 = vmul.f32 1.0, %v2902
    %v2904 = vmul.f32 %v2896, %v2552
    %v2905 = vmul.f32 %v2890, %v2897
    %v2906 = vadd.f32 %v2904, %v2905
    %v2907 = vtanh.pop %v2906
    %v2908 = vmul.f32 %v2903, %v2907
    %s2909 = scalar_lea.vmem %s8, 40
    %2910 = vst [vmem:[%s2909] sm:$0xff] %v2908
    %s2911 = scalar_lea.vmem [#allocation7], 64
    %v2912 = vld [vmem:[%s2911] sm:$0xff]
    %v2913 = vld [vmem:[%s2911 + $0x8] sm:$0xff]
    %v2914 = vld [vmem:[%s2911 + $0x10] sm:$0xff]
    %v2915 = vld [vmem:[%s2911 + $0x18] sm:$0xff]
    %2916 = vmatprep.subr.mxu0 %v959
    %2917 = vmatpush1.msra.mxu0 %v958
    %2918 = vmatprep.subr.mxu0 %v955
    %2919 = vmatpush1.msra.mxu0 %v954
    %2920 = vmatprep.subr.mxu0 %v951
    %2921 = vmatpush1.msra.mxu0 %v950
    %2922 = vmatprep.subr.mxu0 %v947
    %2923 = vmatpush1.msra.mxu0 %v946
    %2924 = vmatprep.subr.mxu0 %v943
    %2925 = vmatpush1.msra.mxu0 %v942
    %2926 = vmatprep.subr.mxu0 %v939
    %2927 = vmatpush1.msra.mxu0 %v938
    %2928 = vmatprep.subr.mxu0 %v935
    %2929 = vmatpush1.msra.mxu0 %v934
    %2930 = vmatprep.subr.mxu0 %v931
    %2931 = vmatpush1.msra.mxu0 %v930
    %2932 = vmatprep.subr.mxu0 %v927
    %2933 = vmatpush1.msra.mxu0 %v926
    %2934 = vmatprep.subr.mxu0 %v923
    %2935 = vmatpush1.msra.mxu0 %v922
    %2936 = vmatprep.subr.mxu0 %v919
    %2937 = vmatpush1.msra.mxu0 %v918
    %2938 = vmatprep.subr.mxu0 %v915
    %2939 = vmatpush1.msra.mxu0 %v914
    %2940 = vmatprep.subr.mxu0 %v911
    %2941 = vmatpush1.msra.mxu0 %v910
    %2942 = vmatprep.subr.mxu0 %v907
    %2943 = vmatpush1.msra.mxu0 %v906
    %2944 = vmatprep.subr.mxu0 %v903
    %2945 = vmatpush1.msra.mxu0 %v902
    %2946 = vmatprep.subr.mxu0 %v899
    %2947 = vmatpush1.msra.mxu0 %v898
    %2948 = vmatprep.subr.mxu0 0.0
    %2949 = vmatpush2.msra.mxu0 0.0
    %2950 = vmatprep.subr.mxu0 0.0
    %2951 = vmatpush2.msra.mxu0 0.0
    %2952 = vmatprep.subr.mxu0 0.0
    %2953 = vmatpush2.msra.mxu0 0.0
    %2954 = vmatprep.subr.mxu0 0.0
    %2955 = vmatpush2.msra.mxu0 0.0
    %2956 = vmatprep.subr.mxu0 0.0
    %2957 = vmatpush2.msra.mxu0 0.0
    %2958 = vmatprep.subr.mxu0 0.0
    %2959 = vmatpush2.msra.mxu0 0.0
    %2960 = vmatprep.subr.mxu0 0.0
    %2961 = vmatpush2.msra.mxu0 0.0
    %2962 = vmatprep.subr.mxu0 0.0
    %2963 = vmatpush2.msra.mxu0 0.0
    %2964 = vmatprep.subr.mxu0 0.0
    %2965 = vmatpush2.msra.mxu0 0.0
    %2966 = vmatprep.subr.mxu0 0.0
    %2967 = vmatpush2.msra.mxu0 0.0
    %2968 = vmatprep.subr.mxu0 0.0
    %2969 = vmatpush2.msra.mxu0 0.0
    %2970 = vmatprep.subr.mxu0 0.0
    %2971 = vmatpush2.msra.mxu0 0.0
    %2972 = vmatprep.subr.mxu0 0.0
    %2973 = vmatpush2.msra.mxu0 0.0
    %2974 = vmatprep.subr.mxu0 0.0
    %2975 = vmatpush2.msra.mxu0 0.0
    %2976 = vmatprep.subr.mxu0 0.0
    %2977 = vmatpush2.msra.mxu0 0.0
    %2978 = vmatprep.subr.mxu0 0.0
    %2979 = vmatpush2.msra.mxu0 0.0
    %2980 = vmatprep.mubr.f32.mxu0 0.0
    %2981 = vmatmul.mubr.f32.gmra.mxu0 %v2731
    %v2982 = vpop.f32.mrf.mxu0
    %v2983 = vadd.f32 0.0, %v2982
    %v2984 = vpop.f32.mrf.mxu0
    %v2985 = vadd.f32 0.0, %v2984
    %2986 = vdwg.mxu0
    %2987 = vmatprep.subr.mxu0 %v961
    %2988 = vmatpush1.msra.mxu0 %v960
    %2989 = vmatprep.subr.mxu0 %v957
    %2990 = vmatpush1.msra.mxu0 %v956
    %2991 = vmatprep.subr.mxu0 %v953
    %2992 = vmatpush1.msra.mxu0 %v952
    %2993 = vmatprep.subr.mxu0 %v949
    %2994 = vmatpush1.msra.mxu0 %v948
    %2995 = vmatprep.subr.mxu0 %v945
    %2996 = vmatpush1.msra.mxu0 %v944
    %2997 = vmatprep.subr.mxu0 %v941
    %2998 = vmatpush1.msra.mxu0 %v940
    %2999 = vmatprep.subr.mxu0 %v937
    %3000 = vmatpush1.msra.mxu0 %v936
    %3001 = vmatprep.subr.mxu0 %v933
    %3002 = vmatpush1.msra.mxu0 %v932
    %3003 = vmatprep.subr.mxu0 %v929
    %3004 = vmatpush1.msra.mxu0 %v928
    %3005 = vmatprep.subr.mxu0 %v925
    %3006 = vmatpush1.msra.mxu0 %v924
    %3007 = vmatprep.subr.mxu0 %v921
    %3008 = vmatpush1.msra.mxu0 %v920
    %3009 = vmatprep.subr.mxu0 %v917
    %3010 = vmatpush1.msra.mxu0 %v916
    %3011 = vmatprep.subr.mxu0 %v913
    %3012 = vmatpush1.msra.mxu0 %v912
    %3013 = vmatprep.subr.mxu0 %v909
    %3014 = vmatpush1.msra.mxu0 %v908
    %3015 = vmatprep.subr.mxu0 %v905
    %3016 = vmatpush1.msra.mxu0 %v904
    %3017 = vmatprep.subr.mxu0 %v901
    %3018 = vmatpush1.msra.mxu0 %v900
    %3019 = vmatprep.subr.mxu0 0.0
    %3020 = vmatpush2.msra.mxu0 0.0
    %3021 = vmatprep.subr.mxu0 0.0
    %3022 = vmatpush2.msra.mxu0 0.0
    %3023 = vmatprep.subr.mxu0 0.0
    %3024 = vmatpush2.msra.mxu0 0.0
    %3025 = vmatprep.subr.mxu0 0.0
    %3026 = vmatpush2.msra.mxu0 0.0
    %3027 = vmatprep.subr.mxu0 0.0
    %3028 = vmatpush2.msra.mxu0 0.0
    %3029 = vmatprep.subr.mxu0 0.0
    %3030 = vmatpush2.msra.mxu0 0.0
    %3031 = vmatprep.subr.mxu0 0.0
    %3032 = vmatpush2.msra.mxu0 0.0
    %3033 = vmatprep.subr.mxu0 0.0
    %3034 = vmatpush2.msra.mxu0 0.0
    %3035 = vmatprep.subr.mxu0 0.0
    %3036 = vmatpush2.msra.mxu0 0.0
    %3037 = vmatprep.subr.mxu0 0.0
    %3038 = vmatpush2.msra.mxu0 0.0
    %3039 = vmatprep.subr.mxu0 0.0
    %3040 = vmatpush2.msra.mxu0 0.0
    %3041 = vmatprep.subr.mxu0 0.0
    %3042 = vmatpush2.msra.mxu0 0.0
    %3043 = vmatprep.subr.mxu0 0.0
    %3044 = vmatpush2.msra.mxu0 0.0
    %3045 = vmatprep.subr.mxu0 0.0
    %3046 = vmatpush2.msra.mxu0 0.0
    %3047 = vmatprep.subr.mxu0 0.0
    %3048 = vmatpush2.msra.mxu0 0.0
    %3049 = vmatprep.subr.mxu0 0.0
    %3050 = vmatpush2.msra.mxu0 0.0
    %3051 = vmatprep.mubr.f32.mxu0 0.0
    %3052 = vmatmul.mubr.f32.gmra.mxu0 %v2731
    %v3053 = vpop.f32.mrf.mxu0
    %v3054 = vadd.f32 0.0, %v3053
    %v3055 = vpop.f32.mrf.mxu0
    %v3056 = vadd.f32 0.0, %v3055
    %3057 = vdwg.mxu0
    %v3058 = vadd.f32 %v2912, %v2983
    %v3059 = vadd.f32 %v2913, %v2985
    %v3060 = vadd.f32 %v2914, %v3054
    %v3061 = vadd.f32 %v2915, %v3056
    %v3062 = vxor.u32 %v3058, 2147483648
    %v3063 = vmul.f32 %v3062, 1.442695
    %v3064 = vpow.pop %v3063
    %v3065 = vadd.f32 %v3064, 1.0
    %v3066 = vrcp.pop %v3065
    %v3067 = vmul.f32 1.0, %v3066
    %v3068 = vxor.u32 %v3059, 2147483648
    %v3069 = vmul.f32 %v3068, 1.442695
    %v3070 = vpow.pop %v3069
    %v3071 = vadd.f32 %v3070, 1.0
    %v3072 = vrcp.pop %v3071
    %v3073 = vmul.f32 1.0, %v3072
    %v3074 = vtanh.pop %v3060
    %v3075 = vxor.u32 %v3061, 2147483648
    %v3076 = vmul.f32 %v3075, 1.442695
    %v3077 = vpow.pop %v3076
    %v3078 = vadd.f32 %v3077, 1.0
    %v3079 = vrcp.pop %v3078
    %v3080 = vmul.f32 1.0, %v3079
    %v3081 = vmul.f32 %v3073, %v2729
    %v3082 = vmul.f32 %v3067, %v3074
    %v3083 = vadd.f32 %v3081, %v3082
    %v3084 = vtanh.pop %v3083
    %v3085 = vmul.f32 %v3080, %v3084
    %s3086 = scalar_lea.vmem %s119, 16
    %3087 = vst [vmem:[%s3086] sm:$0xff] %v3085
    %s3088 = scalar_lea.vmem [#allocation6], 192
    %v3089 = vld [vmem:[%s3088] sm:$0xff]
    %v3090 = vld [vmem:[%s3088 + $0x8] sm:$0xff]
    %v3091 = vld [vmem:[%s3088 + $0x10] sm:$0xff]
    %v3092 = vld [vmem:[%s3088 + $0x18] sm:$0xff]
    %3093 = vmatprep.subr.mxu0 %v895
    %3094 = vmatpush1.msra.mxu0 %v894
    %3095 = vmatprep.subr.mxu0 %v891
    %3096 = vmatpush1.msra.mxu0 %v890
    %3097 = vmatprep.subr.mxu0 %v887
    %3098 = vmatpush1.msra.mxu0 %v886
    %3099 = vmatprep.subr.mxu0 %v883
    %3100 = vmatpush1.msra.mxu0 %v882
    %3101 = vmatprep.subr.mxu0 %v879
    %3102 = vmatpush1.msra.mxu0 %v878
    %3103 = vmatprep.subr.mxu0 %v875
    %3104 = vmatpush1.msra.mxu0 %v874
    %3105 = vmatprep.subr.mxu0 %v871
    %3106 = vmatpush1.msra.mxu0 %v870
    %3107 = vmatprep.subr.mxu0 %v867
    %3108 = vmatpush1.msra.mxu0 %v866
    %3109 = vmatprep.subr.mxu0 %v863
    %3110 = vmatpush1.msra.mxu0 %v862
    %3111 = vmatprep.subr.mxu0 %v859
    %3112 = vmatpush1.msra.mxu0 %v858
    %3113 = vmatprep.subr.mxu0 %v855
    %3114 = vmatpush1.msra.mxu0 %v854
    %3115 = vmatprep.subr.mxu0 %v851
    %3116 = vmatpush1.msra.mxu0 %v850
    %3117 = vmatprep.subr.mxu0 %v847
    %3118 = vmatpush1.msra.mxu0 %v846
    %3119 = vmatprep.subr.mxu0 %v843
    %3120 = vmatpush1.msra.mxu0 %v842
    %3121 = vmatprep.subr.mxu0 %v839
    %3122 = vmatpush1.msra.mxu0 %v838
    %3123 = vmatprep.subr.mxu0 %v835
    %3124 = vmatpush1.msra.mxu0 %v834
    %3125 = vmatprep.subr.mxu0 0.0
    %3126 = vmatpush2.msra.mxu0 0.0
    %3127 = vmatprep.subr.mxu0 0.0
    %3128 = vmatpush2.msra.mxu0 0.0
    %3129 = vmatprep.subr.mxu0 0.0
    %3130 = vmatpush2.msra.mxu0 0.0
    %3131 = vmatprep.subr.mxu0 0.0
    %3132 = vmatpush2.msra.mxu0 0.0
    %3133 = vmatprep.subr.mxu0 0.0
    %3134 = vmatpush2.msra.mxu0 0.0
    %3135 = vmatprep.subr.mxu0 0.0
    %3136 = vmatpush2.msra.mxu0 0.0
    %3137 = vmatprep.subr.mxu0 0.0
    %3138 = vmatpush2.msra.mxu0 0.0
    %3139 = vmatprep.subr.mxu0 0.0
    %3140 = vmatpush2.msra.mxu0 0.0
    %3141 = vmatprep.subr.mxu0 0.0
    %3142 = vmatpush2.msra.mxu0 0.0
    %3143 = vmatprep.subr.mxu0 0.0
    %3144 = vmatpush2.msra.mxu0 0.0
    %3145 = vmatprep.subr.mxu0 0.0
    %3146 = vmatpush2.msra.mxu0 0.0
    %3147 = vmatprep.subr.mxu0 0.0
    %3148 = vmatpush2.msra.mxu0 0.0
    %3149 = vmatprep.subr.mxu0 0.0
    %3150 = vmatpush2.msra.mxu0 0.0
    %3151 = vmatprep.subr.mxu0 0.0
    %3152 = vmatpush2.msra.mxu0 0.0
    %3153 = vmatprep.subr.mxu0 0.0
    %3154 = vmatpush2.msra.mxu0 0.0
    %3155 = vmatprep.subr.mxu0 0.0
    %3156 = vmatpush2.msra.mxu0 0.0
    %3157 = vmatprep.mubr.f32.mxu0 0.0
    %3158 = vmatmul.mubr.f32.gmra.mxu0 %v2908
    %v3159 = vpop.f32.mrf.mxu0
    %v3160 = vadd.f32 0.0, %v3159
    %v3161 = vpop.f32.mrf.mxu0
    %v3162 = vadd.f32 0.0, %v3161
    %3163 = vdwg.mxu0
    %3164 = vmatprep.subr.mxu0 %v897
    %3165 = vmatpush1.msra.mxu0 %v896
    %3166 = vmatprep.subr.mxu0 %v893
    %3167 = vmatpush1.msra.mxu0 %v892
    %3168 = vmatprep.subr.mxu0 %v889
    %3169 = vmatpush1.msra.mxu0 %v888
    %3170 = vmatprep.subr.mxu0 %v885
    %3171 = vmatpush1.msra.mxu0 %v884
    %3172 = vmatprep.subr.mxu0 %v881
    %3173 = vmatpush1.msra.mxu0 %v880
    %3174 = vmatprep.subr.mxu0 %v877
    %3175 = vmatpush1.msra.mxu0 %v876
    %3176 = vmatprep.subr.mxu0 %v873
    %3177 = vmatpush1.msra.mxu0 %v872
    %3178 = vmatprep.subr.mxu0 %v869
    %3179 = vmatpush1.msra.mxu0 %v868
    %3180 = vmatprep.subr.mxu0 %v865
    %3181 = vmatpush1.msra.mxu0 %v864
    %3182 = vmatprep.subr.mxu0 %v861
    %3183 = vmatpush1.msra.mxu0 %v860
    %3184 = vmatprep.subr.mxu0 %v857
    %3185 = vmatpush1.msra.mxu0 %v856
    %3186 = vmatprep.subr.mxu0 %v853
    %3187 = vmatpush1.msra.mxu0 %v852
    %3188 = vmatprep.subr.mxu0 %v849
    %3189 = vmatpush1.msra.mxu0 %v848
    %3190 = vmatprep.subr.mxu0 %v845
    %3191 = vmatpush1.msra.mxu0 %v844
    %3192 = vmatprep.subr.mxu0 %v841
    %3193 = vmatpush1.msra.mxu0 %v840
    %3194 = vmatprep.subr.mxu0 %v837
    %3195 = vmatpush1.msra.mxu0 %v836
    %3196 = vmatprep.subr.mxu0 0.0
    %3197 = vmatpush2.msra.mxu0 0.0
    %3198 = vmatprep.subr.mxu0 0.0
    %3199 = vmatpush2.msra.mxu0 0.0
    %3200 = vmatprep.subr.mxu0 0.0
    %3201 = vmatpush2.msra.mxu0 0.0
    %3202 = vmatprep.subr.mxu0 0.0
    %3203 = vmatpush2.msra.mxu0 0.0
    %3204 = vmatprep.subr.mxu0 0.0
    %3205 = vmatpush2.msra.mxu0 0.0
    %3206 = vmatprep.subr.mxu0 0.0
    %3207 = vmatpush2.msra.mxu0 0.0
    %3208 = vmatprep.subr.mxu0 0.0
    %3209 = vmatpush2.msra.mxu0 0.0
    %3210 = vmatprep.subr.mxu0 0.0
    %3211 = vmatpush2.msra.mxu0 0.0
    %3212 = vmatprep.subr.mxu0 0.0
    %3213 = vmatpush2.msra.mxu0 0.0
    %3214 = vmatprep.subr.mxu0 0.0
    %3215 = vmatpush2.msra.mxu0 0.0
    %3216 = vmatprep.subr.mxu0 0.0
    %3217 = vmatpush2.msra.mxu0 0.0
    %3218 = vmatprep.subr.mxu0 0.0
    %3219 = vmatpush2.msra.mxu0 0.0
    %3220 = vmatprep.subr.mxu0 0.0
    %3221 = vmatpush2.msra.mxu0 0.0
    %3222 = vmatprep.subr.mxu0 0.0
    %3223 = vmatpush2.msra.mxu0 0.0
    %3224 = vmatprep.subr.mxu0 0.0
    %3225 = vmatpush2.msra.mxu0 0.0
    %3226 = vmatprep.subr.mxu0 0.0
    %3227 = vmatpush2.msra.mxu0 0.0
    %3228 = vmatprep.mubr.f32.mxu0 0.0
    %3229 = vmatmul.mubr.f32.gmra.mxu0 %v2908
    %v3230 = vpop.f32.mrf.mxu0
    %v3231 = vadd.f32 0.0, %v3230
    %v3232 = vpop.f32.mrf.mxu0
    %v3233 = vadd.f32 0.0, %v3232
    %3234 = vdwg.mxu0
    %v3235 = vadd.f32 %v3089, %v3160
    %v3236 = vadd.f32 %v3090, %v3162
    %v3237 = vadd.f32 %v3091, %v3231
    %v3238 = vadd.f32 %v3092, %v3233
    %v3239 = vxor.u32 %v3235, 2147483648
    %v3240 = vmul.f32 %v3239, 1.442695
    %v3241 = vpow.pop %v3240
    %v3242 = vadd.f32 %v3241, 1.0
    %v3243 = vrcp.pop %v3242
    %v3244 = vmul.f32 1.0, %v3243
    %v3245 = vxor.u32 %v3236, 2147483648
    %v3246 = vmul.f32 %v3245, 1.442695
    %v3247 = vpow.pop %v3246
    %v3248 = vadd.f32 %v3247, 1.0
    %v3249 = vrcp.pop %v3248
    %v3250 = vmul.f32 1.0, %v3249
    %v3251 = vtanh.pop %v3237
    %v3252 = vxor.u32 %v3238, 2147483648
    %v3253 = vmul.f32 %v3252, 1.442695
    %v3254 = vpow.pop %v3253
    %v3255 = vadd.f32 %v3254, 1.0
    %v3256 = vrcp.pop %v3255
    %v3257 = vmul.f32 1.0, %v3256
    %v3258 = vmul.f32 %v3250, %v2906
    %v3259 = vmul.f32 %v3244, %v3251
    %v3260 = vadd.f32 %v3258, %v3259
    %v3261 = vtanh.pop %v3260
    %v3262 = vmul.f32 %v3257, %v3261
    %s3263 = scalar_lea.vmem %s8, 48
    %3264 = vst [vmem:[%s3263] sm:$0xff] %v3262
    %s3265 = scalar_lea.vmem [#allocation7], 32
    %v3266 = vld [vmem:[%s3265] sm:$0xff]
    %v3267 = vld [vmem:[%s3265 + $0x8] sm:$0xff]
    %v3268 = vld [vmem:[%s3265 + $0x10] sm:$0xff]
    %v3269 = vld [vmem:[%s3265 + $0x18] sm:$0xff]
    %3270 = vmatprep.subr.mxu0 %v959
    %3271 = vmatpush1.msra.mxu0 %v958
    %3272 = vmatprep.subr.mxu0 %v955
    %3273 = vmatpush1.msra.mxu0 %v954
    %3274 = vmatprep.subr.mxu0 %v951
    %3275 = vmatpush1.msra.mxu0 %v950
    %3276 = vmatprep.subr.mxu0 %v947
    %3277 = vmatpush1.msra.mxu0 %v946
    %3278 = vmatprep.subr.mxu0 %v943
    %3279 = vmatpush1.msra.mxu0 %v942
    %3280 = vmatprep.subr.mxu0 %v939
    %3281 = vmatpush1.msra.mxu0 %v938
    %3282 = vmatprep.subr.mxu0 %v935
    %3283 = vmatpush1.msra.mxu0 %v934
    %3284 = vmatprep.subr.mxu0 %v931
    %3285 = vmatpush1.msra.mxu0 %v930
    %3286 = vmatprep.subr.mxu0 %v927
    %3287 = vmatpush1.msra.mxu0 %v926
    %3288 = vmatprep.subr.mxu0 %v923
    %3289 = vmatpush1.msra.mxu0 %v922
    %3290 = vmatprep.subr.mxu0 %v919
    %3291 = vmatpush1.msra.mxu0 %v918
    %3292 = vmatprep.subr.mxu0 %v915
    %3293 = vmatpush1.msra.mxu0 %v914
    %3294 = vmatprep.subr.mxu0 %v911
    %3295 = vmatpush1.msra.mxu0 %v910
    %3296 = vmatprep.subr.mxu0 %v907
    %3297 = vmatpush1.msra.mxu0 %v906
    %3298 = vmatprep.subr.mxu0 %v903
    %3299 = vmatpush1.msra.mxu0 %v902
    %3300 = vmatprep.subr.mxu0 %v899
    %3301 = vmatpush1.msra.mxu0 %v898
    %3302 = vmatprep.subr.mxu0 0.0
    %3303 = vmatpush2.msra.mxu0 0.0
    %3304 = vmatprep.subr.mxu0 0.0
    %3305 = vmatpush2.msra.mxu0 0.0
    %3306 = vmatprep.subr.mxu0 0.0
    %3307 = vmatpush2.msra.mxu0 0.0
    %3308 = vmatprep.subr.mxu0 0.0
    %3309 = vmatpush2.msra.mxu0 0.0
    %3310 = vmatprep.subr.mxu0 0.0
    %3311 = vmatpush2.msra.mxu0 0.0
    %3312 = vmatprep.subr.mxu0 0.0
    %3313 = vmatpush2.msra.mxu0 0.0
    %3314 = vmatprep.subr.mxu0 0.0
    %3315 = vmatpush2.msra.mxu0 0.0
    %3316 = vmatprep.subr.mxu0 0.0
    %3317 = vmatpush2.msra.mxu0 0.0
    %3318 = vmatprep.subr.mxu0 0.0
    %3319 = vmatpush2.msra.mxu0 0.0
    %3320 = vmatprep.subr.mxu0 0.0
    %3321 = vmatpush2.msra.mxu0 0.0
    %3322 = vmatprep.subr.mxu0 0.0
    %3323 = vmatpush2.msra.mxu0 0.0
    %3324 = vmatprep.subr.mxu0 0.0
    %3325 = vmatpush2.msra.mxu0 0.0
    %3326 = vmatprep.subr.mxu0 0.0
    %3327 = vmatpush2.msra.mxu0 0.0
    %3328 = vmatprep.subr.mxu0 0.0
    %3329 = vmatpush2.msra.mxu0 0.0
    %3330 = vmatprep.subr.mxu0 0.0
    %3331 = vmatpush2.msra.mxu0 0.0
    %3332 = vmatprep.subr.mxu0 0.0
    %3333 = vmatpush2.msra.mxu0 0.0
    %3334 = vmatprep.mubr.f32.mxu0 0.0
    %3335 = vmatmul.mubr.f32.gmra.mxu0 %v3085
    %v3336 = vpop.f32.mrf.mxu0
    %v3337 = vadd.f32 0.0, %v3336
    %v3338 = vpop.f32.mrf.mxu0
    %v3339 = vadd.f32 0.0, %v3338
    %3340 = vdwg.mxu0
    %3341 = vmatprep.subr.mxu0 %v961
    %3342 = vmatpush1.msra.mxu0 %v960
    %3343 = vmatprep.subr.mxu0 %v957
    %3344 = vmatpush1.msra.mxu0 %v956
    %3345 = vmatprep.subr.mxu0 %v953
    %3346 = vmatpush1.msra.mxu0 %v952
    %3347 = vmatprep.subr.mxu0 %v949
    %3348 = vmatpush1.msra.mxu0 %v948
    %3349 = vmatprep.subr.mxu0 %v945
    %3350 = vmatpush1.msra.mxu0 %v944
    %3351 = vmatprep.subr.mxu0 %v941
    %3352 = vmatpush1.msra.mxu0 %v940
    %3353 = vmatprep.subr.mxu0 %v937
    %3354 = vmatpush1.msra.mxu0 %v936
    %3355 = vmatprep.subr.mxu0 %v933
    %3356 = vmatpush1.msra.mxu0 %v932
    %3357 = vmatprep.subr.mxu0 %v929
    %3358 = vmatpush1.msra.mxu0 %v928
    %3359 = vmatprep.subr.mxu0 %v925
    %3360 = vmatpush1.msra.mxu0 %v924
    %3361 = vmatprep.subr.mxu0 %v921
    %3362 = vmatpush1.msra.mxu0 %v920
    %3363 = vmatprep.subr.mxu0 %v917
    %3364 = vmatpush1.msra.mxu0 %v916
    %3365 = vmatprep.subr.mxu0 %v913
    %3366 = vmatpush1.msra.mxu0 %v912
    %3367 = vmatprep.subr.mxu0 %v909
    %3368 = vmatpush1.msra.mxu0 %v908
    %3369 = vmatprep.subr.mxu0 %v905
    %3370 = vmatpush1.msra.mxu0 %v904
    %3371 = vmatprep.subr.mxu0 %v901
    %3372 = vmatpush1.msra.mxu0 %v900
    %3373 = vmatprep.subr.mxu0 0.0
    %3374 = vmatpush2.msra.mxu0 0.0
    %3375 = vmatprep.subr.mxu0 0.0
    %3376 = vmatpush2.msra.mxu0 0.0
    %3377 = vmatprep.subr.mxu0 0.0
    %3378 = vmatpush2.msra.mxu0 0.0
    %3379 = vmatprep.subr.mxu0 0.0
    %3380 = vmatpush2.msra.mxu0 0.0
    %3381 = vmatprep.subr.mxu0 0.0
    %3382 = vmatpush2.msra.mxu0 0.0
    %3383 = vmatprep.subr.mxu0 0.0
    %3384 = vmatpush2.msra.mxu0 0.0
    %3385 = vmatprep.subr.mxu0 0.0
    %3386 = vmatpush2.msra.mxu0 0.0
    %3387 = vmatprep.subr.mxu0 0.0
    %3388 = vmatpush2.msra.mxu0 0.0
    %3389 = vmatprep.subr.mxu0 0.0
    %3390 = vmatpush2.msra.mxu0 0.0
    %3391 = vmatprep.subr.mxu0 0.0
    %3392 = vmatpush2.msra.mxu0 0.0
    %3393 = vmatprep.subr.mxu0 0.0
    %3394 = vmatpush2.msra.mxu0 0.0
    %3395 = vmatprep.subr.mxu0 0.0
    %3396 = vmatpush2.msra.mxu0 0.0
    %3397 = vmatprep.subr.mxu0 0.0
    %3398 = vmatpush2.msra.mxu0 0.0
    %3399 = vmatprep.subr.mxu0 0.0
    %3400 = vmatpush2.msra.mxu0 0.0
    %3401 = vmatprep.subr.mxu0 0.0
    %3402 = vmatpush2.msra.mxu0 0.0
    %3403 = vmatprep.subr.mxu0 0.0
    %3404 = vmatpush2.msra.mxu0 0.0
    %3405 = vmatprep.mubr.f32.mxu0 0.0
    %3406 = vmatmul.mubr.f32.gmra.mxu0 %v3085
    %v3407 = vpop.f32.mrf.mxu0
    %v3408 = vadd.f32 0.0, %v3407
    %v3409 = vpop.f32.mrf.mxu0
    %v3410 = vadd.f32 0.0, %v3409
    %3411 = vdwg.mxu0
    %v3412 = vadd.f32 %v3266, %v3337
    %v3413 = vadd.f32 %v3267, %v3339
    %v3414 = vadd.f32 %v3268, %v3408
    %v3415 = vadd.f32 %v3269, %v3410
    %v3416 = vxor.u32 %v3412, 2147483648
    %v3417 = vmul.f32 %v3416, 1.442695
    %v3418 = vpow.pop %v3417
    %v3419 = vadd.f32 %v3418, 1.0
    %v3420 = vrcp.pop %v3419
    %v3421 = vmul.f32 1.0, %v3420
    %v3422 = vxor.u32 %v3413, 2147483648
    %v3423 = vmul.f32 %v3422, 1.442695
    %v3424 = vpow.pop %v3423
    %v3425 = vadd.f32 %v3424, 1.0
    %v3426 = vrcp.pop %v3425
    %v3427 = vmul.f32 1.0, %v3426
    %v3428 = vtanh.pop %v3414
    %v3429 = vxor.u32 %v3415, 2147483648
    %v3430 = vmul.f32 %v3429, 1.442695
    %v3431 = vpow.pop %v3430
    %v3432 = vadd.f32 %v3431, 1.0
    %v3433 = vrcp.pop %v3432
    %v3434 = vmul.f32 1.0, %v3433
    %v3435 = vmul.f32 %v3427, %v3083
    %v3436 = vmul.f32 %v3421, %v3428
    %v3437 = vadd.f32 %v3435, %v3436
    %v3438 = vtanh.pop %v3437
    %v3439 = vmul.f32 %v3434, %v3438
    %s3440 = scalar_lea.vmem %s119, 8
    %3441 = vst [vmem:[%s3440] sm:$0xff] %v3439
    %s3442 = scalar_lea.vmem [#allocation6], 224
    %v3443 = vld [vmem:[%s3442] sm:$0xff]
    %v3444 = vld [vmem:[%s3442 + $0x8] sm:$0xff]
    %v3445 = vld [vmem:[%s3442 + $0x10] sm:$0xff]
    %v3446 = vld [vmem:[%s3442 + $0x18] sm:$0xff]
    %3447 = vmatprep.subr.mxu0 %v895
    %3448 = vmatpush1.msra.mxu0 %v894
    %3449 = vmatprep.subr.mxu0 %v891
    %3450 = vmatpush1.msra.mxu0 %v890
    %3451 = vmatprep.subr.mxu0 %v887
    %3452 = vmatpush1.msra.mxu0 %v886
    %3453 = vmatprep.subr.mxu0 %v883
    %3454 = vmatpush1.msra.mxu0 %v882
    %3455 = vmatprep.subr.mxu0 %v879
    %3456 = vmatpush1.msra.mxu0 %v878
    %3457 = vmatprep.subr.mxu0 %v875
    %3458 = vmatpush1.msra.mxu0 %v874
    %3459 = vmatprep.subr.mxu0 %v871
    %3460 = vmatpush1.msra.mxu0 %v870
    %3461 = vmatprep.subr.mxu0 %v867
    %3462 = vmatpush1.msra.mxu0 %v866
    %3463 = vmatprep.subr.mxu0 %v863
    %3464 = vmatpush1.msra.mxu0 %v862
    %3465 = vmatprep.subr.mxu0 %v859
    %3466 = vmatpush1.msra.mxu0 %v858
    %3467 = vmatprep.subr.mxu0 %v855
    %3468 = vmatpush1.msra.mxu0 %v854
    %3469 = vmatprep.subr.mxu0 %v851
    %3470 = vmatpush1.msra.mxu0 %v850
    %3471 = vmatprep.subr.mxu0 %v847
    %3472 = vmatpush1.msra.mxu0 %v846
    %3473 = vmatprep.subr.mxu0 %v843
    %3474 = vmatpush1.msra.mxu0 %v842
    %3475 = vmatprep.subr.mxu0 %v839
    %3476 = vmatpush1.msra.mxu0 %v838
    %3477 = vmatprep.subr.mxu0 %v835
    %3478 = vmatpush1.msra.mxu0 %v834
    %3479 = vmatprep.subr.mxu0 0.0
    %3480 = vmatpush2.msra.mxu0 0.0
    %3481 = vmatprep.subr.mxu0 0.0
    %3482 = vmatpush2.msra.mxu0 0.0
    %3483 = vmatprep.subr.mxu0 0.0
    %3484 = vmatpush2.msra.mxu0 0.0
    %3485 = vmatprep.subr.mxu0 0.0
    %3486 = vmatpush2.msra.mxu0 0.0
    %3487 = vmatprep.subr.mxu0 0.0
    %3488 = vmatpush2.msra.mxu0 0.0
    %3489 = vmatprep.subr.mxu0 0.0
    %3490 = vmatpush2.msra.mxu0 0.0
    %3491 = vmatprep.subr.mxu0 0.0
    %3492 = vmatpush2.msra.mxu0 0.0
    %3493 = vmatprep.subr.mxu0 0.0
    %3494 = vmatpush2.msra.mxu0 0.0
    %3495 = vmatprep.subr.mxu0 0.0
    %3496 = vmatpush2.msra.mxu0 0.0
    %3497 = vmatprep.subr.mxu0 0.0
    %3498 = vmatpush2.msra.mxu0 0.0
    %3499 = vmatprep.subr.mxu0 0.0
    %3500 = vmatpush2.msra.mxu0 0.0
    %3501 = vmatprep.subr.mxu0 0.0
    %3502 = vmatpush2.msra.mxu0 0.0
    %3503 = vmatprep.subr.mxu0 0.0
    %3504 = vmatpush2.msra.mxu0 0.0
    %3505 = vmatprep.subr.mxu0 0.0
    %3506 = vmatpush2.msra.mxu0 0.0
    %3507 = vmatprep.subr.mxu0 0.0
    %3508 = vmatpush2.msra.mxu0 0.0
    %3509 = vmatprep.subr.mxu0 0.0
    %3510 = vmatpush2.msra.mxu0 0.0
    %3511 = vmatprep.mubr.f32.mxu0 0.0
    %3512 = vmatmul.mubr.f32.gmra.mxu0 %v3262
    %v3513 = vpop.f32.mrf.mxu0
    %v3514 = vadd.f32 0.0, %v3513
    %v3515 = vpop.f32.mrf.mxu0
    %v3516 = vadd.f32 0.0, %v3515
    %3517 = vdwg.mxu0
    %3518 = vmatprep.subr.mxu0 %v897
    %3519 = vmatpush1.msra.mxu0 %v896
    %3520 = vmatprep.subr.mxu0 %v893
    %3521 = vmatpush1.msra.mxu0 %v892
    %3522 = vmatprep.subr.mxu0 %v889
    %3523 = vmatpush1.msra.mxu0 %v888
    %3524 = vmatprep.subr.mxu0 %v885
    %3525 = vmatpush1.msra.mxu0 %v884
    %3526 = vmatprep.subr.mxu0 %v881
    %3527 = vmatpush1.msra.mxu0 %v880
    %3528 = vmatprep.subr.mxu0 %v877
    %3529 = vmatpush1.msra.mxu0 %v876
    %3530 = vmatprep.subr.mxu0 %v873
    %3531 = vmatpush1.msra.mxu0 %v872
    %3532 = vmatprep.subr.mxu0 %v869
    %3533 = vmatpush1.msra.mxu0 %v868
    %3534 = vmatprep.subr.mxu0 %v865
    %3535 = vmatpush1.msra.mxu0 %v864
    %3536 = vmatprep.subr.mxu0 %v861
    %3537 = vmatpush1.msra.mxu0 %v860
    %3538 = vmatprep.subr.mxu0 %v857
    %3539 = vmatpush1.msra.mxu0 %v856
    %3540 = vmatprep.subr.mxu0 %v853
    %3541 = vmatpush1.msra.mxu0 %v852
    %3542 = vmatprep.subr.mxu0 %v849
    %3543 = vmatpush1.msra.mxu0 %v848
    %3544 = vmatprep.subr.mxu0 %v845
    %3545 = vmatpush1.msra.mxu0 %v844
    %3546 = vmatprep.subr.mxu0 %v841
    %3547 = vmatpush1.msra.mxu0 %v840
    %3548 = vmatprep.subr.mxu0 %v837
    %3549 = vmatpush1.msra.mxu0 %v836
    %3550 = vmatprep.subr.mxu0 0.0
    %3551 = vmatpush2.msra.mxu0 0.0
    %3552 = vmatprep.subr.mxu0 0.0
    %3553 = vmatpush2.msra.mxu0 0.0
    %3554 = vmatprep.subr.mxu0 0.0
    %3555 = vmatpush2.msra.mxu0 0.0
    %3556 = vmatprep.subr.mxu0 0.0
    %3557 = vmatpush2.msra.mxu0 0.0
    %3558 = vmatprep.subr.mxu0 0.0
    %3559 = vmatpush2.msra.mxu0 0.0
    %3560 = vmatprep.subr.mxu0 0.0
    %3561 = vmatpush2.msra.mxu0 0.0
    %3562 = vmatprep.subr.mxu0 0.0
    %3563 = vmatpush2.msra.mxu0 0.0
    %3564 = vmatprep.subr.mxu0 0.0
    %3565 = vmatpush2.msra.mxu0 0.0
    %3566 = vmatprep.subr.mxu0 0.0
    %3567 = vmatpush2.msra.mxu0 0.0
    %3568 = vmatprep.subr.mxu0 0.0
    %3569 = vmatpush2.msra.mxu0 0.0
    %3570 = vmatprep.subr.mxu0 0.0
    %3571 = vmatpush2.msra.mxu0 0.0
    %3572 = vmatprep.subr.mxu0 0.0
    %3573 = vmatpush2.msra.mxu0 0.0
    %3574 = vmatprep.subr.mxu0 0.0
    %3575 = vmatpush2.msra.mxu0 0.0
    %3576 = vmatprep.subr.mxu0 0.0
    %3577 = vmatpush2.msra.mxu0 0.0
    %3578 = vmatprep.subr.mxu0 0.0
    %3579 = vmatpush2.msra.mxu0 0.0
    %3580 = vmatprep.subr.mxu0 0.0
    %3581 = vmatpush2.msra.mxu0 0.0
    %3582 = vmatprep.mubr.f32.mxu0 0.0
    %3583 = vmatmul.mubr.f32.gmra.mxu0 %v3262
    %v3584 = vpop.f32.mrf.mxu0
    %v3585 = vadd.f32 0.0, %v3584
    %v3586 = vpop.f32.mrf.mxu0
    %v3587 = vadd.f32 0.0, %v3586
    %3588 = vdwg.mxu0
    %v3589 = vadd.f32 %v3443, %v3514
    %v3590 = vadd.f32 %v3444, %v3516
    %v3591 = vadd.f32 %v3445, %v3585
    %v3592 = vadd.f32 %v3446, %v3587
    %v3593 = vxor.u32 %v3589, 2147483648
    %v3594 = vmul.f32 %v3593, 1.442695
    %v3595 = vpow.pop %v3594
    %v3596 = vadd.f32 %v3595, 1.0
    %v3597 = vrcp.pop %v3596
    %v3598 = vmul.f32 1.0, %v3597
    %v3599 = vxor.u32 %v3590, 2147483648
    %v3600 = vmul.f32 %v3599, 1.442695
    %v3601 = vpow.pop %v3600
    %v3602 = vadd.f32 %v3601, 1.0
    %v3603 = vrcp.pop %v3602
    %v3604 = vmul.f32 1.0, %v3603
    %v3605 = vtanh.pop %v3591
    %v3606 = vxor.u32 %v3592, 2147483648
    %v3607 = vmul.f32 %v3606, 1.442695
    %v3608 = vpow.pop %v3607
    %v3609 = vadd.f32 %v3608, 1.0
    %v3610 = vrcp.pop %v3609
    %v3611 = vmul.f32 1.0, %v3610
    %v3612 = vmul.f32 %v3604, %v3260
    %v3613 = vmul.f32 %v3598, %v3605
    %v3614 = vadd.f32 %v3612, %v3613
    %v3615 = vtanh.pop %v3614
    %v3616 = vmul.f32 %v3611, %v3615
    %s3617 = scalar_lea.vmem %s8, 56
    %3618 = vst [vmem:[%s3617] sm:$0xff] %v3616
    %v3619 = vld [vmem:[#allocation7] sm:$0xff]
    %v3620 = vld [vmem:[#allocation7 + $0x8] sm:$0xff]
    %v3621 = vld [vmem:[#allocation7 + $0x10] sm:$0xff]
    %v3622 = vld [vmem:[#allocation7 + $0x18] sm:$0xff]
    %3623 = vmatprep.subr.mxu0 %v959
    %3624 = vmatpush1.msra.mxu0 %v958
    %3625 = vmatprep.subr.mxu0 %v955
    %3626 = vmatpush1.msra.mxu0 %v954
    %3627 = vmatprep.subr.mxu0 %v951
    %3628 = vmatpush1.msra.mxu0 %v950
    %3629 = vmatprep.subr.mxu0 %v947
    %3630 = vmatpush1.msra.mxu0 %v946
    %3631 = vmatprep.subr.mxu0 %v943
    %3632 = vmatpush1.msra.mxu0 %v942
    %3633 = vmatprep.subr.mxu0 %v939
    %3634 = vmatpush1.msra.mxu0 %v938
    %3635 = vmatprep.subr.mxu0 %v935
    %3636 = vmatpush1.msra.mxu0 %v934
    %3637 = vmatprep.subr.mxu0 %v931
    %3638 = vmatpush1.msra.mxu0 %v930
    %3639 = vmatprep.subr.mxu0 %v927
    %3640 = vmatpush1.msra.mxu0 %v926
    %3641 = vmatprep.subr.mxu0 %v923
    %3642 = vmatpush1.msra.mxu0 %v922
    %3643 = vmatprep.subr.mxu0 %v919
    %3644 = vmatpush1.msra.mxu0 %v918
    %3645 = vmatprep.subr.mxu0 %v915
    %3646 = vmatpush1.msra.mxu0 %v914
    %3647 = vmatprep.subr.mxu0 %v911
    %3648 = vmatpush1.msra.mxu0 %v910
    %3649 = vmatprep.subr.mxu0 %v907
    %3650 = vmatpush1.msra.mxu0 %v906
    %3651 = vmatprep.subr.mxu0 %v903
    %3652 = vmatpush1.msra.mxu0 %v902
    %3653 = vmatprep.subr.mxu0 %v899
    %3654 = vmatpush1.msra.mxu0 %v898
    %3655 = vmatprep.subr.mxu0 0.0
    %3656 = vmatpush2.msra.mxu0 0.0
    %3657 = vmatprep.subr.mxu0 0.0
    %3658 = vmatpush2.msra.mxu0 0.0
    %3659 = vmatprep.subr.mxu0 0.0
    %3660 = vmatpush2.msra.mxu0 0.0
    %3661 = vmatprep.subr.mxu0 0.0
    %3662 = vmatpush2.msra.mxu0 0.0
    %3663 = vmatprep.subr.mxu0 0.0
    %3664 = vmatpush2.msra.mxu0 0.0
    %3665 = vmatprep.subr.mxu0 0.0
    %3666 = vmatpush2.msra.mxu0 0.0
    %3667 = vmatprep.subr.mxu0 0.0
    %3668 = vmatpush2.msra.mxu0 0.0
    %3669 = vmatprep.subr.mxu0 0.0
    %3670 = vmatpush2.msra.mxu0 0.0
    %3671 = vmatprep.subr.mxu0 0.0
    %3672 = vmatpush2.msra.mxu0 0.0
    %3673 = vmatprep.subr.mxu0 0.0
    %3674 = vmatpush2.msra.mxu0 0.0
    %3675 = vmatprep.subr.mxu0 0.0
    %3676 = vmatpush2.msra.mxu0 0.0
    %3677 = vmatprep.subr.mxu0 0.0
    %3678 = vmatpush2.msra.mxu0 0.0
    %3679 = vmatprep.subr.mxu0 0.0
    %3680 = vmatpush2.msra.mxu0 0.0
    %3681 = vmatprep.subr.mxu0 0.0
    %3682 = vmatpush2.msra.mxu0 0.0
    %3683 = vmatprep.subr.mxu0 0.0
    %3684 = vmatpush2.msra.mxu0 0.0
    %3685 = vmatprep.subr.mxu0 0.0
    %3686 = vmatpush2.msra.mxu0 0.0
    %3687 = vmatprep.mubr.f32.mxu0 0.0
    %3688 = vmatmul.mubr.f32.gmra.mxu0 %v3439
    %v3689 = vpop.f32.mrf.mxu0
    %v3690 = vadd.f32 0.0, %v3689
    %v3691 = vpop.f32.mrf.mxu0
    %v3692 = vadd.f32 0.0, %v3691
    %3693 = vdwg.mxu0
    %3694 = vmatprep.subr.mxu0 %v961
    %3695 = vmatpush1.msra.mxu0 %v960
    %3696 = vmatprep.subr.mxu0 %v957
    %3697 = vmatpush1.msra.mxu0 %v956
    %3698 = vmatprep.subr.mxu0 %v953
    %3699 = vmatpush1.msra.mxu0 %v952
    %3700 = vmatprep.subr.mxu0 %v949
    %3701 = vmatpush1.msra.mxu0 %v948
    %3702 = vmatprep.subr.mxu0 %v945
    %3703 = vmatpush1.msra.mxu0 %v944
    %3704 = vmatprep.subr.mxu0 %v941
    %3705 = vmatpush1.msra.mxu0 %v940
    %3706 = vmatprep.subr.mxu0 %v937
    %3707 = vmatpush1.msra.mxu0 %v936
    %3708 = vmatprep.subr.mxu0 %v933
    %3709 = vmatpush1.msra.mxu0 %v932
    %3710 = vmatprep.subr.mxu0 %v929
    %3711 = vmatpush1.msra.mxu0 %v928
    %3712 = vmatprep.subr.mxu0 %v925
    %3713 = vmatpush1.msra.mxu0 %v924
    %3714 = vmatprep.subr.mxu0 %v921
    %3715 = vmatpush1.msra.mxu0 %v920
    %3716 = vmatprep.subr.mxu0 %v917
    %3717 = vmatpush1.msra.mxu0 %v916
    %3718 = vmatprep.subr.mxu0 %v913
    %3719 = vmatpush1.msra.mxu0 %v912
    %3720 = vmatprep.subr.mxu0 %v909
    %3721 = vmatpush1.msra.mxu0 %v908
    %3722 = vmatprep.subr.mxu0 %v905
    %3723 = vmatpush1.msra.mxu0 %v904
    %3724 = vmatprep.subr.mxu0 %v901
    %3725 = vmatpush1.msra.mxu0 %v900
    %3726 = vmatprep.subr.mxu0 0.0
    %3727 = vmatpush2.msra.mxu0 0.0
    %3728 = vmatprep.subr.mxu0 0.0
    %3729 = vmatpush2.msra.mxu0 0.0
    %3730 = vmatprep.subr.mxu0 0.0
    %3731 = vmatpush2.msra.mxu0 0.0
    %3732 = vmatprep.subr.mxu0 0.0
    %3733 = vmatpush2.msra.mxu0 0.0
    %3734 = vmatprep.subr.mxu0 0.0
    %3735 = vmatpush2.msra.mxu0 0.0
    %3736 = vmatprep.subr.mxu0 0.0
    %3737 = vmatpush2.msra.mxu0 0.0
    %3738 = vmatprep.subr.mxu0 0.0
    %3739 = vmatpush2.msra.mxu0 0.0
    %3740 = vmatprep.subr.mxu0 0.0
    %3741 = vmatpush2.msra.mxu0 0.0
    %3742 = vmatprep.subr.mxu0 0.0
    %3743 = vmatpush2.msra.mxu0 0.0
    %3744 = vmatprep.subr.mxu0 0.0
    %3745 = vmatpush2.msra.mxu0 0.0
    %3746 = vmatprep.subr.mxu0 0.0
    %3747 = vmatpush2.msra.mxu0 0.0
    %3748 = vmatprep.subr.mxu0 0.0
    %3749 = vmatpush2.msra.mxu0 0.0
    %3750 = vmatprep.subr.mxu0 0.0
    %3751 = vmatpush2.msra.mxu0 0.0
    %3752 = vmatprep.subr.mxu0 0.0
    %3753 = vmatpush2.msra.mxu0 0.0
    %3754 = vmatprep.subr.mxu0 0.0
    %3755 = vmatpush2.msra.mxu0 0.0
    %3756 = vmatprep.subr.mxu0 0.0
    %3757 = vmatpush2.msra.mxu0 0.0
    %3758 = vmatprep.mubr.f32.mxu0 0.0
    %3759 = vmatmul.mubr.f32.gmra.mxu0 %v3439
    %v3760 = vpop.f32.mrf.mxu0
    %v3761 = vadd.f32 0.0, %v3760
    %v3762 = vpop.f32.mrf.mxu0
    %v3763 = vadd.f32 0.0, %v3762
    %3764 = vdwg.mxu0
    %v3765 = vadd.f32 %v3619, %v3690
    %v3766 = vadd.f32 %v3620, %v3692
    %v3767 = vadd.f32 %v3621, %v3761
    %v3768 = vadd.f32 %v3622, %v3763
    %v3769 = vxor.u32 %v3765, 2147483648
    %v3770 = vmul.f32 %v3769, 1.442695
    %v3771 = vpow.pop %v3770
    %v3772 = vadd.f32 %v3771, 1.0
    %v3773 = vrcp.pop %v3772
    %v3774 = vmul.f32 1.0, %v3773
    %v3775 = vxor.u32 %v3766, 2147483648
    %v3776 = vmul.f32 %v3775, 1.442695
    %v3777 = vpow.pop %v3776
    %v3778 = vadd.f32 %v3777, 1.0
    %v3779 = vrcp.pop %v3778
    %v3780 = vmul.f32 1.0, %v3779
    %v3781 = vtanh.pop %v3767
    %v3782 = vxor.u32 %v3768, 2147483648
    %v3783 = vmul.f32 %v3782, 1.442695
    %v3784 = vpow.pop %v3783
    %v3785 = vadd.f32 %v3784, 1.0
    %v3786 = vrcp.pop %v3785
    %v3787 = vmul.f32 1.0, %v3786
    %v3788 = vmul.f32 %v3780, %v3437
    %v3789 = vmul.f32 %v3774, %v3781
    %v3790 = vadd.f32 %v3788, %v3789
    %v3791 = vtanh.pop %v3790
    %v3792 = vmul.f32 %v3787, %v3791
    %3793 = vst [vmem:[%s119] sm:$0xff] %v3792
    %3794 = vst [vmem:[#allocation2] sm:$0xff] %v3616
    %3795 = vst [vmem:[#allocation3] sm:$0xff] %v3614
    %3796 = vst [vmem:[#allocation4] sm:$0xff] %v3792
    %3797 = vst [vmem:[#allocation5] sm:$0xff] %v3790
    %s3798 = ssub.s32 0, 0
    %s3799 = smul.u32 8, %s3798
    %p3800 = scmp.lt.s32.totalorder %s3799, 7
    %s3801 = scalar_select %p3800, %s3799, 7
    %s3802 = smul.addr %s3801, 8
    %s3803 = scalar_lea.vmem %s9, %s3802
    // Predicated region
    $region54: #{lstm_encoding_forward.2} parent=1 // pred_check
      _
    $region55: #{lstm_encoding_forward.2} parent=1 // pred_check_branch
      %3805 = sbr.rel (0) target = $region57
    $region56: #{lstm_encoding_forward.2} parent=1 // pred_region
      _
    $region57: #{lstm_encoding_forward.2} parent=1 // pred_fallthru
      _
    // Predicated region
    $region58: #{lstm_encoding_forward.2} parent=1 // pred_check
      _
    $region59: #{lstm_encoding_forward.2} parent=1 // pred_check_branch
      %3807 = sbr.rel (0) target = $region61
    $region60: #{lstm_encoding_forward.2} parent=1 // pred_region
      %s3808 = ssub.s32 0, 0
      %s3809 = smul.u32 8, %s3808
    $region61: #{lstm_encoding_forward.2} parent=1 // pred_fallthru
      _
    // Predicated region
    $region62: #{lstm_encoding_forward.2} parent=1 // pred_check
      _
    $region63: #{lstm_encoding_forward.2} parent=1 // pred_check_branch
      %3811 = sbr.rel (0) target = $region65
    $region64: #{lstm_encoding_forward.2} parent=1 // pred_region
      _
    $region65: #{lstm_encoding_forward.2} parent=1 // pred_fallthru
      _
    // Predicated region
    $region66: #{lstm_encoding_forward.2} parent=1 // pred_check
      _
    $region67: #{lstm_encoding_forward.2} parent=1 // pred_check_branch
      %3813 = sbr.rel (0) target = $region69
    $region68: #{lstm_encoding_forward.2} parent=1 // pred_region
      %s3814 = ssub.s32 0, 0
      %s3815 = smul.u32 8, %s3814
      %p3816 = scmp.lt.s32.totalorder %s3815, 7
      %s3817 = scalar_select %p3816, %s3815, 7
      %s3818 = smul.addr %s3817, 8
      %s3819 = scalar_lea.vmem %s9, %s3818
    $region69: #{lstm_encoding_forward.2} parent=1 // pred_fallthru
      _
    %3820 = vsyncpa [#allocation9], 1
    %3821 = vsyncpa [#allocation11], 1
    %3822 = vsyncpa [#allocation14], 1

</llo_original>
